<compile_context>
chip_gen: v5e
topology: v5e:2x2
jax: 0.10.0
libtpu: 0.0.40
codegen_flags: <defaults>
</compile_context>

<pallas_src>
import numpy as np
import jax
import jax.numpy as jnp
from jax.experimental import pallas as pl
from jax.experimental.pallas import tpu as pltpu

N_QUBITS = 9
N_BLOCKS = 5
DIM = 2 ** N_QUBITS            # 512
H_IN = 1224                    # input height that makes .view(-1, 512) valid
H_FINAL = 32                   # conv5 output height (16 channels * 32 = 512)
PHASES0 = 32                   # polyphase split of the raw input signal


# --------------------------------------------------------------------------
# Static layer plan (architecture only -- no weight values).
# --------------------------------------------------------------------------
_CONV_DEFS = [
    dict(cin=1,  cout=3,  k=5, p_in=32, mode="pool"),          # conv1
    dict(cin=3,  cout=5,  k=5, p_in=16, mode="pool"),          # conv2
    dict(cin=5,  cout=8,  k=5, p_in=8,  mode="stride2_pool"),  # conv3 (stride 2)
    dict(cin=8,  cout=16, k=4, p_in=2,  mode="pool"),          # conv4
    dict(cin=16, cout=16, k=5, p_in=1,  mode="plain"),         # conv5 (no pool)
]


def _make_layers():
    layers = []
    for d in _CONV_DEFS:
        p_in, k = d["p_in"], d["k"]
        if d["mode"] == "pool":             # conv(stride 1) + maxpool2
            groups = [list(range(0, p_in, 2)), list(range(1, p_in, 2))]
        elif d["mode"] == "stride2_pool":   # conv(stride 2) + maxpool2
            groups = [list(range(0, p_in, 4)), list(range(2, p_in, 4))]
        else:                               # conv(stride 1), no pool
            groups = [[0]]
        max_off = max((p + k - 1) // p_in for grp in groups for p in grp)
        plan = []
        for g, grp in enumerate(groups):
            for o in range(max_off + 1):
                if any((p + dk) // p_in == o for p in grp for dk in range(k)):
                    plan.append((g, o))
        layers.append(dict(d, groups=groups, plan=plan, max_off=max_off))
    # Row (position-within-phase) bookkeeping: conv5 output needs 32 valid rows.
    t = H_FINAL
    for lay in reversed(layers):
        lay["t_out"] = t
        t += lay["max_off"]
        lay["t_in"] = t
    return layers, t


LAYERS, T0 = _make_layers()     # T0 == 41 rows per phase at the (padded) input


# --------------------------------------------------------------------------
# Fused kernel: polyphase conv stack + quantum layer + Linear(9, 2)
# --------------------------------------------------------------------------
def qnn_kernel(x_ref,
               b1, p1, b2, p2, b3, p3, b4, p4, b5, p5,
               u6_ref, zw_ref, fcb_ref, out_ref):
    f32 = jnp.float32
    layer_refs = [(b1, p1), (b2, p2), (b3, p3), (b4, p4), (b5, p5)]

    act = x_ref[0]                                  # (T0, 32): rows x (phase*chan)
    for (b_ref, p_ref), lay in zip(layer_refs, LAYERS):
        t_out = lay["t_out"]
        outs = [None] * len(lay["groups"])
        for idx, (g, o) in enumerate(lay["plan"]):
            contrib = jnp.dot(act[o:o + t_out, :], b_ref[idx],
                              preferred_element_type=f32)
            outs[g] = contrib if outs[g] is None else outs[g] + contrib
        # conv bias -> ReLU -> BatchNorm (inference-mode, folded to scale/shift)
        bias, scale, shift = p_ref[0:1, :], p_ref[1:2, :], p_ref[2:3, :]
        outs = [jnp.maximum(y + bias, 0.0) * scale + shift for y in outs]
        # MaxPool2d((2,1)) == elementwise max of the two phase groups
        act = outs[0] if len(outs) == 1 else jnp.maximum(outs[0], outs[1])

    # act: (32, 16) -- rows = height h, lanes = channel c.
    # PyTorch flatten .view(-1, 512) index is 32*c + h; U6[h, c, :] holds the
    # matching row of [Re(U)^T | Im(U)^T], so the flatten is absorbed here.
    psi = None
    for h in range(H_FINAL):
        term = jnp.dot(act[h:h + 1, :], u6_ref[h], preferred_element_type=f32)
        psi = term if psi is None else psi + term   # (1, 1024) = [Re(psi) | Im(psi)]

    # |psi_k|^2 (unnormalized, matching tensorcircuit semantics), then the
    # folded (Zsign @ fc_w^T) matrix and the fc bias.
    prob = psi[:, :DIM] * psi[:, :DIM] + psi[:, DIM:] * psi[:, DIM:]
    out_ref[0] = jnp.dot(prob, zw_ref[...], preferred_element_type=f32) + fcb_ref[...]


def _const_spec(arr):
    return pl.BlockSpec(arr.shape, lambda b, nd=arr.ndim: (0,) * nd)


def qnn_pallas(x_phase, consts):
    n, t0, p0 = x_phase.shape
    in_specs = [pl.BlockSpec((1, t0, p0), lambda b: (b, 0, 0))]
    in_specs += [_const_spec(a) for a in consts]
    out = pl.pallas_call(
        qnn_kernel,
        grid=(n,),
        in_specs=in_specs,
        out_specs=pl.BlockSpec((1, 1, 2), lambda b: (b, 0, 0)),
        out_shape=jax.ShapeDtypeStruct((n, 1, 2), jnp.float32),
        compiler_params=pltpu.CompilerParams(
            dimension_semantics=("parallel",)),
    )(x_phase, *consts)
    return out[:, 0, :]


# --------------------------------------------------------------------------
# Parameter setup (plain JAX / numpy glue, done once outside the hot path)
# --------------------------------------------------------------------------
def build_circuit_unitary(q_weights):
    """Exact 512x512 unitary of qml() (qubit 0 = most significant bit)."""
    dim = DIM
    u = jnp.eye(dim, dtype=jnp.complex64).reshape((2,) * N_QUBITS + (dim,))
    hgate = (1.0 / np.sqrt(2.0)) * jnp.array([[1.0, 1.0], [1.0, -1.0]], jnp.complex64)

    def apply_1q(u, g, q):
        u = jnp.tensordot(g, u, axes=([1], [q]))
        return jnp.moveaxis(u, 0, q)

    def apply_2q(u, g, qc, qt):
        u = jnp.tensordot(g, u, axes=([2, 3], [qc, qt]))
        return jnp.moveaxis(u, (0, 1), (qc, qt))

    def rx_gate(theta):   # e^{-i theta X}
        c = jnp.cos(theta).astype(jnp.complex64)
        s = jnp.sin(theta).astype(jnp.complex64)
        return jnp.stack([jnp.stack([c, -1j * s]), jnp.stack([-1j * s, c])])

    def cry_gate(theta):  # controlled e^{-i theta Y}
        c = jnp.cos(theta).astype(jnp.complex64)
        s = jnp.sin(theta).astype(jnp.complex64)
        ry = jnp.stack([jnp.stack([c, -s]), jnp.stack([s, c])])
        eye2 = jnp.eye(2, dtype=jnp.complex64)
        z2 = jnp.zeros((2, 2), jnp.complex64)
        top = jnp.concatenate([eye2, z2], axis=1)
        bot = jnp.concatenate([z2, ry], axis=1)
        return jnp.concatenate([top, bot], axis=0).reshape(2, 2, 2, 2)

    for j in range(N_BLOCKS):
        for i in range(N_QUBITS):
            u = apply_1q(u, hgate, i)
        for i in range(N_QUBITS - 1):
            u = apply_2q(u, cry_gate(q_weights[j, i, 1]), i, i + 1)
        for i in range(N_QUBITS):
            u = apply_1q(u, rx_gate(q_weights[j, i, 0]), i)

    umat = u.reshape(dim, dim)
    return jnp.real(umat).astype(jnp.float32), jnp.imag(umat).astype(jnp.float32)


def init_params(key):
    ks = jax.random.split(key, 16)
    specs = [(3, 1, 5), (5, 3, 5), (8, 5, 5), (16, 8, 4), (16, 16, 5)]  # (Cout, Cin, KH)
    params = {}
    for idx, (cout, cin, kh) in enumerate(specs, start=1):
        kw, kb = ks[2 * (idx - 1)], ks[2 * (idx - 1) + 1]
        params[f"conv{idx}_w"] = (jax.random.normal(kw, (cout, cin, kh, 1), jnp.float32)
                                  / np.sqrt(cin * kh))
        params[f"conv{idx}_b"] = 0.1 * jax.random.normal(kb, (cout,), jnp.float32)
        params[f"bn{idx}_gamma"] = jnp.ones((cout,), jnp.float32)
        params[f"bn{idx}_beta"] = jnp.zeros((cout,), jnp.float32)
        params[f"bn{idx}_mean"] = jnp.zeros((cout,), jnp.float32)
        params[f"bn{idx}_var"] = jnp.ones((cout,), jnp.float32)
    params["q_weights"] = jax.random.normal(ks[10], (N_BLOCKS, N_QUBITS, 2), jnp.float32)
    params["fc_w"] = jax.random.normal(ks[11], (2, 9), jnp.float32) / 3.0
    params["fc_b"] = jnp.zeros((2,), jnp.float32)
    return params


def _build_layer_mats(w, lay):
    """Block weight matrices B[g, o] for one conv layer.  w: (k, cin, cout)."""
    cin, cout, k, p_in = lay["cin"], lay["cout"], lay["k"], lay["p_in"]
    mats = []
    for g, o in lay["plan"]:
        grp = lay["groups"][g]
        bmat = np.zeros((p_in * cin, len(grp) * cout), np.float32)
        for q, p in enumerate(grp):
            for dk in range(k):
                if (p + dk) // p_in == o:
                    qin = (p + dk) % p_in
                    bmat[qin * cin:(qin + 1) * cin, q * cout:(q + 1) * cout] += w[dk]
        mats.append(bmat)
    return np.stack(mats, axis=0)


def prepare_kernel_params(params):
    """Repack PyTorch-style parameters into the constants the fused kernel consumes."""
    eps = 1e-5
    consts = []
    for i, lay in enumerate(LAYERS, start=1):
        w = np.asarray(params[f"conv{i}_w"])[:, :, :, 0].transpose(2, 1, 0)  # (k,cin,cout)
        bmats = _build_layer_mats(w, lay)
        gamma = np.asarray(params[f"bn{i}_gamma"])
        beta = np.asarray(params[f"bn{i}_beta"])
        mean = np.asarray(params[f"bn{i}_mean"])
        var = np.asarray(params[f"bn{i}_var"])
        scale = gamma / np.sqrt(var + eps)
        shift = beta - mean * scale
        m = len(lay["groups"][0])
        pvec = np.stack([np.tile(np.asarray(params[f"conv{i}_b"]), m),
                         np.tile(scale, m),
                         np.tile(shift, m)], axis=0).astype(np.float32)  # (3, m*cout)
        consts += [jnp.asarray(bmats), jnp.asarray(pvec)]

    # Circuit unitary, arranged to absorb the channel-major flatten:
    #   U6[h, c, :] = [Re(U)^T | Im(U)^T][32*c + h, :]
    ur, ui = build_circuit_unitary(params["q_weights"])
    uu = jnp.concatenate([ur.T, ui.T], axis=1)                     # (512, 1024)
    u6 = uu.reshape(16, H_FINAL, 2 * DIM).transpose(1, 0, 2)       # (32, 16, 1024)

    # Fold Z-sign reduction and Linear(9, 2) into a single (512, 2) matrix.
    k_idx = np.arange(DIM)
    zsign = np.stack(
        [1.0 - 2.0 * ((k_idx >> (N_QUBITS - 1 - i)) & 1) for i in range(N_QUBITS)],
        axis=1).astype(np.float32)                                 # (512, 9)
    fc_wt = np.asarray(params["fc_w"]).T.astype(np.float32)        # (9, 2)
    zw = jnp.asarray(zsign @ fc_wt)                                # (512, 2)
    fcb = jnp.asarray(params["fc_b"]).reshape(1, 2)

    consts += [u6, zw, fcb]
    return consts


def quantum_forward(x_nchw, consts):
    # PyTorch NCHW input (N, 1, H, 1) -> per-sample 32-phase form (T0, 32):
    # element (j, p) = x[32*j + p].  Zero-padding past H_IN never feeds a valid
    # output (the network's valid-conv arithmetic guarantees it).
    n = x_nchw.shape[0]
    x_sig = x_nchw[:, 0, :, 0].astype(jnp.float32)                 # (N, 1224)
    pad = PHASES0 * T0 - x_sig.shape[1]
    x_phase = jnp.pad(x_sig, ((0, 0), (0, pad))).reshape(n, T0, PHASES0)
    return qnn_pallas(x_phase, consts)


if __name__ == "__main__":
    key = jax.random.PRNGKey(0)
    kp_key, x_key = jax.random.split(key)

    params = init_params(kp_key)
    consts = prepare_kernel_params(params)

    # batch=2, single-channel "signal" of height 1224, width 1 (NCHW)
    x = jax.random.normal(x_key, (2, 1, H_IN, 1), jnp.float32)

    out = jax.jit(quantum_forward)(x, consts)
    out = jax.block_until_ready(out)
    assert out.shape == (2, 2), out.shape
    assert bool(jnp.all(jnp.isfinite(out)))
    print("KERNEL_OK")
</pallas_src>

<mosaic_0001>
module attributes {stable_mosaic.version = 11 : i64} {
  func.func @qnn_kernel(%arg0: i32, %arg1: memref<1x41x32xf32, #tpu.memory_space<vmem>>, %arg2: memref<4x32x48xf32, #tpu.memory_space<vmem>>, %arg3: memref<3x48xf32, #tpu.memory_space<vmem>>, %arg4: memref<4x48x40xf32, #tpu.memory_space<vmem>>, %arg5: memref<3x40xf32, #tpu.memory_space<vmem>>, %arg6: memref<4x40x16xf32, #tpu.memory_space<vmem>>, %arg7: memref<3x16xf32, #tpu.memory_space<vmem>>, %arg8: memref<5x16x16xf32, #tpu.memory_space<vmem>>, %arg9: memref<3x16xf32, #tpu.memory_space<vmem>>, %arg10: memref<5x16x16xf32, #tpu.memory_space<vmem>>, %arg11: memref<3x16xf32, #tpu.memory_space<vmem>>, %arg12: memref<32x16x1024xf32, #tpu.memory_space<vmem>>, %arg13: memref<512x2xf32, #tpu.memory_space<vmem>>, %arg14: memref<1x2xf32, #tpu.memory_space<vmem>>, %arg15: memref<1x1x2xf32, #tpu.memory_space<vmem>>) attributes {dimension_semantics = [#tpu.dimension_semantics<parallel>], iteration_bounds = array<i64: 2>, scalar_prefetch = 0 : i64, scratch_operands = 0 : i64, tpu.core_type = #tpu.core_type<tc>, window_params = [{transform_indices = @transform_0, window_bounds = array<i64: 1, 41, 32>}, {pipeline_mode = #tpu.pipeline_mode<synchronous>, transform_indices = @transform_1, window_bounds = array<i64: 4, 32, 48>}, {pipeline_mode = #tpu.pipeline_mode<synchronous>, transform_indices = @transform_2, window_bounds = array<i64: 3, 48>}, {pipeline_mode = #tpu.pipeline_mode<synchronous>, transform_indices = @transform_3, window_bounds = array<i64: 4, 48, 40>}, {pipeline_mode = #tpu.pipeline_mode<synchronous>, transform_indices = @transform_4, window_bounds = array<i64: 3, 40>}, {pipeline_mode = #tpu.pipeline_mode<synchronous>, transform_indices = @transform_5, window_bounds = array<i64: 4, 40, 16>}, {pipeline_mode = #tpu.pipeline_mode<synchronous>, transform_indices = @transform_6, window_bounds = array<i64: 3, 16>}, {pipeline_mode = #tpu.pipeline_mode<synchronous>, transform_indices = @transform_7, window_bounds = array<i64: 5, 16, 16>}, {pipeline_mode = #tpu.pipeline_mode<synchronous>, transform_indices = @transform_8, window_bounds = array<i64: 3, 16>}, {pipeline_mode = #tpu.pipeline_mode<synchronous>, transform_indices = @transform_9, window_bounds = array<i64: 5, 16, 16>}, {pipeline_mode = #tpu.pipeline_mode<synchronous>, transform_indices = @transform_10, window_bounds = array<i64: 3, 16>}, {pipeline_mode = #tpu.pipeline_mode<synchronous>, transform_indices = @transform_11, window_bounds = array<i64: 32, 16, 1024>}, {pipeline_mode = #tpu.pipeline_mode<synchronous>, transform_indices = @transform_12, window_bounds = array<i64: 512, 2>}, {pipeline_mode = #tpu.pipeline_mode<synchronous>, transform_indices = @transform_13, window_bounds = array<i64: 1, 2>}, {transform_indices = @transform_14, window_bounds = array<i64: 1, 1, 2>}]} {
    %c0 = arith.constant 0 : index
    %c0_0 = arith.constant 0 : index
    %c0_1 = arith.constant 0 : index
    %0 = vector.load %arg1[%c0, %c0_0, %c0_1] : memref<1x41x32xf32, #tpu.memory_space<vmem>>, vector<1x41x32xf32>
    %1 = vector.shape_cast %0 : vector<1x41x32xf32> to vector<41x32xf32>
    %2 = vector.extract_strided_slice %1 {offsets = [0, 0], sizes = [40, 32], strides = [1, 1]} : vector<41x32xf32> to vector<40x32xf32>
    %c0_2 = arith.constant 0 : index
    %c0_3 = arith.constant 0 : index
    %c0_4 = arith.constant 0 : index
    %3 = vector.load %arg2[%c0_2, %c0_3, %c0_4] : memref<4x32x48xf32, #tpu.memory_space<vmem>>, vector<1x32x48xf32>
    %4 = vector.shape_cast %3 : vector<1x32x48xf32> to vector<32x48xf32>
    %cst = arith.constant dense<0.000000e+00> : vector<40x48xf32>
    %5 = tpu.matmul %2, %4, %cst {dimension_numbers = #tpu.dot_dimension_numbers<[1], [0], [0], [1], [0, 0, 1, 1], [], []>} : vector<40x32xf32>, vector<32x48xf32>, vector<40x48xf32> -> vector<40x48xf32>
    %6 = vector.extract_strided_slice %1 {offsets = [1, 0], sizes = [40, 32], strides = [1, 1]} : vector<41x32xf32> to vector<40x32xf32>
    %c1 = arith.constant 1 : index
    %c0_5 = arith.constant 0 : index
    %c0_6 = arith.constant 0 : index
    %7 = vector.load %arg2[%c1, %c0_5, %c0_6] : memref<4x32x48xf32, #tpu.memory_space<vmem>>, vector<1x32x48xf32>
    %8 = vector.shape_cast %7 : vector<1x32x48xf32> to vector<32x48xf32>
    %cst_7 = arith.constant dense<0.000000e+00> : vector<40x48xf32>
    %9 = tpu.matmul %6, %8, %cst_7 {dimension_numbers = #tpu.dot_dimension_numbers<[1], [0], [0], [1], [0, 0, 1, 1], [], []>} : vector<40x32xf32>, vector<32x48xf32>, vector<40x48xf32> -> vector<40x48xf32>
    %10 = arith.addf %5, %9 : vector<40x48xf32>
    %11 = vector.extract_strided_slice %1 {offsets = [0, 0], sizes = [40, 32], strides = [1, 1]} : vector<41x32xf32> to vector<40x32xf32>
    %c2 = arith.constant 2 : index
    %c0_8 = arith.constant 0 : index
    %c0_9 = arith.constant 0 : index
    %12 = vector.load %arg2[%c2, %c0_8, %c0_9] : memref<4x32x48xf32, #tpu.memory_space<vmem>>, vector<1x32x48xf32>
    %13 = vector.shape_cast %12 : vector<1x32x48xf32> to vector<32x48xf32>
    %cst_10 = arith.constant dense<0.000000e+00> : vector<40x48xf32>
    %14 = tpu.matmul %11, %13, %cst_10 {dimension_numbers = #tpu.dot_dimension_numbers<[1], [0], [0], [1], [0, 0, 1, 1], [], []>} : vector<40x32xf32>, vector<32x48xf32>, vector<40x48xf32> -> vector<40x48xf32>
    %15 = vector.extract_strided_slice %1 {offsets = [1, 0], sizes = [40, 32], strides = [1, 1]} : vector<41x32xf32> to vector<40x32xf32>
    %c3 = arith.constant 3 : index
    %c0_11 = arith.constant 0 : index
    %c0_12 = arith.constant 0 : index
    %16 = vector.load %arg2[%c3, %c0_11, %c0_12] : memref<4x32x48xf32, #tpu.memory_space<vmem>>, vector<1x32x48xf32>
    %17 = vector.shape_cast %16 : vector<1x32x48xf32> to vector<32x48xf32>
    %cst_13 = arith.constant dense<0.000000e+00> : vector<40x48xf32>
    %18 = tpu.matmul %15, %17, %cst_13 {dimension_numbers = #tpu.dot_dimension_numbers<[1], [0], [0], [1], [0, 0, 1, 1], [], []>} : vector<40x32xf32>, vector<32x48xf32>, vector<40x48xf32> -> vector<40x48xf32>
    %19 = arith.addf %14, %18 : vector<40x48xf32>
    %c0_14 = arith.constant 0 : index
    %c0_15 = arith.constant 0 : index
    %20 = vector.load %arg3[%c0_14, %c0_15] : memref<3x48xf32, #tpu.memory_space<vmem>>, vector<1x48xf32>
    %c1_16 = arith.constant 1 : index
    %c0_17 = arith.constant 0 : index
    %21 = vector.load %arg3[%c1_16, %c0_17] : memref<3x48xf32, #tpu.memory_space<vmem>>, vector<1x48xf32>
    %c2_18 = arith.constant 2 : index
    %c0_19 = arith.constant 0 : index
    %22 = vector.load %arg3[%c2_18, %c0_19] : memref<3x48xf32, #tpu.memory_space<vmem>>, vector<1x48xf32>
    %23 = vector.broadcast %20 : vector<1x48xf32> to vector<40x48xf32>
    %24 = arith.addf %10, %23 : vector<40x48xf32>
    %cst_20 = arith.constant 0.000000e+00 : f32
    %25 = vector.broadcast %cst_20 : f32 to vector<40x48xf32>
    %26 = arith.maximumf %24, %25 : vector<40x48xf32>
    %27 = vector.broadcast %21 : vector<1x48xf32> to vector<40x48xf32>
    %28 = arith.mulf %26, %27 : vector<40x48xf32>
    %29 = vector.broadcast %22 : vector<1x48xf32> to vector<40x48xf32>
    %30 = arith.addf %28, %29 : vector<40x48xf32>
    %31 = vector.broadcast %20 : vector<1x48xf32> to vector<40x48xf32>
    %32 = arith.addf %19, %31 : vector<40x48xf32>
    %cst_21 = arith.constant 0.000000e+00 : f32
    %33 = vector.broadcast %cst_21 : f32 to vector<40x48xf32>
    %34 = arith.maximumf %32, %33 : vector<40x48xf32>
    %35 = vector.broadcast %21 : vector<1x48xf32> to vector<40x48xf32>
    %36 = arith.mulf %34, %35 : vector<40x48xf32>
    %37 = vector.broadcast %22 : vector<1x48xf32> to vector<40x48xf32>
    %38 = arith.addf %36, %37 : vector<40x48xf32>
    %39 = arith.maximumf %30, %38 : vector<40x48xf32>
    %40 = vector.extract_strided_slice %39 {offsets = [0, 0], sizes = [39, 48], strides = [1, 1]} : vector<40x48xf32> to vector<39x48xf32>
    %c0_22 = arith.constant 0 : index
    %c0_23 = arith.constant 0 : index
    %c0_24 = arith.constant 0 : index
    %41 = vector.load %arg4[%c0_22, %c0_23, %c0_24] : memref<4x48x40xf32, #tpu.memory_space<vmem>>, vector<1x48x40xf32>
    %42 = vector.shape_cast %41 : vector<1x48x40xf32> to vector<48x40xf32>
    %cst_25 = arith.constant dense<0.000000e+00> : vector<39x40xf32>
    %43 = tpu.matmul %40, %42, %cst_25 {dimension_numbers = #tpu.dot_dimension_numbers<[1], [0], [0], [1], [0, 0, 1, 1], [], []>} : vector<39x48xf32>, vector<48x40xf32>, vector<39x40xf32> -> vector<39x40xf32>
    %44 = vector.extract_strided_slice %39 {offsets = [1, 0], sizes = [39, 48], strides = [1, 1]} : vector<40x48xf32> to vector<39x48xf32>
    %c1_26 = arith.constant 1 : index
    %c0_27 = arith.constant 0 : index
    %c0_28 = arith.constant 0 : index
    %45 = vector.load %arg4[%c1_26, %c0_27, %c0_28] : memref<4x48x40xf32, #tpu.memory_space<vmem>>, vector<1x48x40xf32>
    %46 = vector.shape_cast %45 : vector<1x48x40xf32> to vector<48x40xf32>
    %cst_29 = arith.constant dense<0.000000e+00> : vector<39x40xf32>
    %47 = tpu.matmul %44, %46, %cst_29 {dimension_numbers = #tpu.dot_dimension_numbers<[1], [0], [0], [1], [0, 0, 1, 1], [], []>} : vector<39x48xf32>, vector<48x40xf32>, vector<39x40xf32> -> vector<39x40xf32>
    %48 = arith.addf %43, %47 : vector<39x40xf32>
    %49 = vector.extract_strided_slice %39 {offsets = [0, 0], sizes = [39, 48], strides = [1, 1]} : vector<40x48xf32> to vector<39x48xf32>
    %c2_30 = arith.constant 2 : index
    %c0_31 = arith.constant 0 : index
    %c0_32 = arith.constant 0 : index
    %50 = vector.load %arg4[%c2_30, %c0_31, %c0_32] : memref<4x48x40xf32, #tpu.memory_space<vmem>>, vector<1x48x40xf32>
    %51 = vector.shape_cast %50 : vector<1x48x40xf32> to vector<48x40xf32>
    %cst_33 = arith.constant dense<0.000000e+00> : vector<39x40xf32>
    %52 = tpu.matmul %49, %51, %cst_33 {dimension_numbers = #tpu.dot_dimension_numbers<[1], [0], [0], [1], [0, 0, 1, 1], [], []>} : vector<39x48xf32>, vector<48x40xf32>, vector<39x40xf32> -> vector<39x40xf32>
    %53 = vector.extract_strided_slice %39 {offsets = [1, 0], sizes = [39, 48], strides = [1, 1]} : vector<40x48xf32> to vector<39x48xf32>
    %c3_34 = arith.constant 3 : index
    %c0_35 = arith.constant 0 : index
    %c0_36 = arith.constant 0 : index
    %54 = vector.load %arg4[%c3_34, %c0_35, %c0_36] : memref<4x48x40xf32, #tpu.memory_space<vmem>>, vector<1x48x40xf32>
    %55 = vector.shape_cast %54 : vector<1x48x40xf32> to vector<48x40xf32>
    %cst_37 = arith.constant dense<0.000000e+00> : vector<39x40xf32>
    %56 = tpu.matmul %53, %55, %cst_37 {dimension_numbers = #tpu.dot_dimension_numbers<[1], [0], [0], [1], [0, 0, 1, 1], [], []>} : vector<39x48xf32>, vector<48x40xf32>, vector<39x40xf32> -> vector<39x40xf32>
    %57 = arith.addf %52, %56 : vector<39x40xf32>
    %c0_38 = arith.constant 0 : index
    %c0_39 = arith.constant 0 : index
    %58 = vector.load %arg5[%c0_38, %c0_39] : memref<3x40xf32, #tpu.memory_space<vmem>>, vector<1x40xf32>
    %c1_40 = arith.constant 1 : index
    %c0_41 = arith.constant 0 : index
    %59 = vector.load %arg5[%c1_40, %c0_41] : memref<3x40xf32, #tpu.memory_space<vmem>>, vector<1x40xf32>
    %c2_42 = arith.constant 2 : index
    %c0_43 = arith.constant 0 : index
    %60 = vector.load %arg5[%c2_42, %c0_43] : memref<3x40xf32, #tpu.memory_space<vmem>>, vector<1x40xf32>
    %61 = vector.broadcast %58 : vector<1x40xf32> to vector<39x40xf32>
    %62 = arith.addf %48, %61 : vector<39x40xf32>
    %cst_44 = arith.constant 0.000000e+00 : f32
    %63 = vector.broadcast %cst_44 : f32 to vector<39x40xf32>
    %64 = arith.maximumf %62, %63 : vector<39x40xf32>
    %65 = vector.broadcast %59 : vector<1x40xf32> to vector<39x40xf32>
    %66 = arith.mulf %64, %65 : vector<39x40xf32>
    %67 = vector.broadcast %60 : vector<1x40xf32> to vector<39x40xf32>
    %68 = arith.addf %66, %67 : vector<39x40xf32>
    %69 = vector.broadcast %58 : vector<1x40xf32> to vector<39x40xf32>
    %70 = arith.addf %57, %69 : vector<39x40xf32>
    %cst_45 = arith.constant 0.000000e+00 : f32
    %71 = vector.broadcast %cst_45 : f32 to vector<39x40xf32>
    %72 = arith.maximumf %70, %71 : vector<39x40xf32>
    %73 = vector.broadcast %59 : vector<1x40xf32> to vector<39x40xf32>
    %74 = arith.mulf %72, %73 : vector<39x40xf32>
    %75 = vector.broadcast %60 : vector<1x40xf32> to vector<39x40xf32>
    %76 = arith.addf %74, %75 : vector<39x40xf32>
    %77 = arith.maximumf %68, %76 : vector<39x40xf32>
    %78 = vector.extract_strided_slice %77 {offsets = [0, 0], sizes = [38, 40], strides = [1, 1]} : vector<39x40xf32> to vector<38x40xf32>
    %c0_46 = arith.constant 0 : index
    %c0_47 = arith.constant 0 : index
    %c0_48 = arith.constant 0 : index
    %79 = vector.load %arg6[%c0_46, %c0_47, %c0_48] : memref<4x40x16xf32, #tpu.memory_space<vmem>>, vector<1x40x16xf32>
    %80 = vector.shape_cast %79 : vector<1x40x16xf32> to vector<40x16xf32>
    %cst_49 = arith.constant dense<0.000000e+00> : vector<38x16xf32>
    %81 = tpu.matmul %78, %80, %cst_49 {dimension_numbers = #tpu.dot_dimension_numbers<[1], [0], [0], [1], [0, 0, 1, 1], [], []>} : vector<38x40xf32>, vector<40x16xf32>, vector<38x16xf32> -> vector<38x16xf32>
    %82 = vector.extract_strided_slice %77 {offsets = [1, 0], sizes = [38, 40], strides = [1, 1]} : vector<39x40xf32> to vector<38x40xf32>
    %c1_50 = arith.constant 1 : index
    %c0_51 = arith.constant 0 : index
    %c0_52 = arith.constant 0 : index
    %83 = vector.load %arg6[%c1_50, %c0_51, %c0_52] : memref<4x40x16xf32, #tpu.memory_space<vmem>>, vector<1x40x16xf32>
    %84 = vector.shape_cast %83 : vector<1x40x16xf32> to vector<40x16xf32>
    %cst_53 = arith.constant dense<0.000000e+00> : vector<38x16xf32>
    %85 = tpu.matmul %82, %84, %cst_53 {dimension_numbers = #tpu.dot_dimension_numbers<[1], [0], [0], [1], [0, 0, 1, 1], [], []>} : vector<38x40xf32>, vector<40x16xf32>, vector<38x16xf32> -> vector<38x16xf32>
    %86 = arith.addf %81, %85 : vector<38x16xf32>
    %87 = vector.extract_strided_slice %77 {offsets = [0, 0], sizes = [38, 40], strides = [1, 1]} : vector<39x40xf32> to vector<38x40xf32>
    %c2_54 = arith.constant 2 : index
    %c0_55 = arith.constant 0 : index
    %c0_56 = arith.constant 0 : index
    %88 = vector.load %arg6[%c2_54, %c0_55, %c0_56] : memref<4x40x16xf32, #tpu.memory_space<vmem>>, vector<1x40x16xf32>
    %89 = vector.shape_cast %88 : vector<1x40x16xf32> to vector<40x16xf32>
    %cst_57 = arith.constant dense<0.000000e+00> : vector<38x16xf32>
    %90 = tpu.matmul %87, %89, %cst_57 {dimension_numbers = #tpu.dot_dimension_numbers<[1], [0], [0], [1], [0, 0, 1, 1], [], []>} : vector<38x40xf32>, vector<40x16xf32>, vector<38x16xf32> -> vector<38x16xf32>
    %91 = vector.extract_strided_slice %77 {offsets = [1, 0], sizes = [38, 40], strides = [1, 1]} : vector<39x40xf32> to vector<38x40xf32>
    %c3_58 = arith.constant 3 : index
    %c0_59 = arith.constant 0 : index
    %c0_60 = arith.constant 0 : index
    %92 = vector.load %arg6[%c3_58, %c0_59, %c0_60] : memref<4x40x16xf32, #tpu.memory_space<vmem>>, vector<1x40x16xf32>
    %93 = vector.shape_cast %92 : vector<1x40x16xf32> to vector<40x16xf32>
    %cst_61 = arith.constant dense<0.000000e+00> : vector<38x16xf32>
    %94 = tpu.matmul %91, %93, %cst_61 {dimension_numbers = #tpu.dot_dimension_numbers<[1], [0], [0], [1], [0, 0, 1, 1], [], []>} : vector<38x40xf32>, vector<40x16xf32>, vector<38x16xf32> -> vector<38x16xf32>
    %95 = arith.addf %90, %94 : vector<38x16xf32>
    %c0_62 = arith.constant 0 : index
    %c0_63 = arith.constant 0 : index
    %96 = vector.load %arg7[%c0_62, %c0_63] : memref<3x16xf32, #tpu.memory_space<vmem>>, vector<1x16xf32>
    %c1_64 = arith.constant 1 : index
    %c0_65 = arith.constant 0 : index
    %97 = vector.load %arg7[%c1_64, %c0_65] : memref<3x16xf32, #tpu.memory_space<vmem>>, vector<1x16xf32>
    %c2_66 = arith.constant 2 : index
    %c0_67 = arith.constant 0 : index
    %98 = vector.load %arg7[%c2_66, %c0_67] : memref<3x16xf32, #tpu.memory_space<vmem>>, vector<1x16xf32>
    %99 = vector.broadcast %96 : vector<1x16xf32> to vector<38x16xf32>
    %100 = arith.addf %86, %99 : vector<38x16xf32>
    %cst_68 = arith.constant 0.000000e+00 : f32
    %101 = vector.broadcast %cst_68 : f32 to vector<38x16xf32>
    %102 = arith.maximumf %100, %101 : vector<38x16xf32>
    %103 = vector.broadcast %97 : vector<1x16xf32> to vector<38x16xf32>
    %104 = arith.mulf %102, %103 : vector<38x16xf32>
    %105 = vector.broadcast %98 : vector<1x16xf32> to vector<38x16xf32>
    %106 = arith.addf %104, %105 : vector<38x16xf32>
    %107 = vector.broadcast %96 : vector<1x16xf32> to vector<38x16xf32>
    %108 = arith.addf %95, %107 : vector<38x16xf32>
    %cst_69 = arith.constant 0.000000e+00 : f32
    %109 = vector.broadcast %cst_69 : f32 to vector<38x16xf32>
    %110 = arith.maximumf %108, %109 : vector<38x16xf32>
    %111 = vector.broadcast %97 : vector<1x16xf32> to vector<38x16xf32>
    %112 = arith.mulf %110, %111 : vector<38x16xf32>
    %113 = vector.broadcast %98 : vector<1x16xf32> to vector<38x16xf32>
    %114 = arith.addf %112, %113 : vector<38x16xf32>
    %115 = arith.maximumf %106, %114 : vector<38x16xf32>
    %116 = vector.extract_strided_slice %115 {offsets = [0, 0], sizes = [36, 16], strides = [1, 1]} : vector<38x16xf32> to vector<36x16xf32>
    %c0_70 = arith.constant 0 : index
    %c0_71 = arith.constant 0 : index
    %c0_72 = arith.constant 0 : index
    %117 = vector.load %arg8[%c0_70, %c0_71, %c0_72] : memref<5x16x16xf32, #tpu.memory_space<vmem>>, vector<1x16x16xf32>
    %118 = vector.shape_cast %117 : vector<1x16x16xf32> to vector<16x16xf32>
    %cst_73 = arith.constant dense<0.000000e+00> : vector<36x16xf32>
    %119 = tpu.matmul %116, %118, %cst_73 {dimension_numbers = #tpu.dot_dimension_numbers<[1], [0], [0], [1], [0, 0, 1, 1], [], []>} : vector<36x16xf32>, vector<16x16xf32>, vector<36x16xf32> -> vector<36x16xf32>
    %120 = vector.extract_strided_slice %115 {offsets = [1, 0], sizes = [36, 16], strides = [1, 1]} : vector<38x16xf32> to vector<36x16xf32>
    %c1_74 = arith.constant 1 : index
    %c0_75 = arith.constant 0 : index
    %c0_76 = arith.constant 0 : index
    %121 = vector.load %arg8[%c1_74, %c0_75, %c0_76] : memref<5x16x16xf32, #tpu.memory_space<vmem>>, vector<1x16x16xf32>
    %122 = vector.shape_cast %121 : vector<1x16x16xf32> to vector<16x16xf32>
    %cst_77 = arith.constant dense<0.000000e+00> : vector<36x16xf32>
    %123 = tpu.matmul %120, %122, %cst_77 {dimension_numbers = #tpu.dot_dimension_numbers<[1], [0], [0], [1], [0, 0, 1, 1], [], []>} : vector<36x16xf32>, vector<16x16xf32>, vector<36x16xf32> -> vector<36x16xf32>
    %124 = arith.addf %119, %123 : vector<36x16xf32>
    %125 = vector.extract_strided_slice %115 {offsets = [0, 0], sizes = [36, 16], strides = [1, 1]} : vector<38x16xf32> to vector<36x16xf32>
    %c2_78 = arith.constant 2 : index
    %c0_79 = arith.constant 0 : index
    %c0_80 = arith.constant 0 : index
    %126 = vector.load %arg8[%c2_78, %c0_79, %c0_80] : memref<5x16x16xf32, #tpu.memory_space<vmem>>, vector<1x16x16xf32>
    %127 = vector.shape_cast %126 : vector<1x16x16xf32> to vector<16x16xf32>
    %cst_81 = arith.constant dense<0.000000e+00> : vector<36x16xf32>
    %128 = tpu.matmul %125, %127, %cst_81 {dimension_numbers = #tpu.dot_dimension_numbers<[1], [0], [0], [1], [0, 0, 1, 1], [], []>} : vector<36x16xf32>, vector<16x16xf32>, vector<36x16xf32> -> vector<36x16xf32>
    %129 = vector.extract_strided_slice %115 {offsets = [1, 0], sizes = [36, 16], strides = [1, 1]} : vector<38x16xf32> to vector<36x16xf32>
    %c3_82 = arith.constant 3 : index
    %c0_83 = arith.constant 0 : index
    %c0_84 = arith.constant 0 : index
    %130 = vector.load %arg8[%c3_82, %c0_83, %c0_84] : memref<5x16x16xf32, #tpu.memory_space<vmem>>, vector<1x16x16xf32>
    %131 = vector.shape_cast %130 : vector<1x16x16xf32> to vector<16x16xf32>
    %cst_85 = arith.constant dense<0.000000e+00> : vector<36x16xf32>
    %132 = tpu.matmul %129, %131, %cst_85 {dimension_numbers = #tpu.dot_dimension_numbers<[1], [0], [0], [1], [0, 0, 1, 1], [], []>} : vector<36x16xf32>, vector<16x16xf32>, vector<36x16xf32> -> vector<36x16xf32>
    %133 = arith.addf %128, %132 : vector<36x16xf32>
    %134 = vector.extract_strided_slice %115 {offsets = [2, 0], sizes = [36, 16], strides = [1, 1]} : vector<38x16xf32> to vector<36x16xf32>
    %c4 = arith.constant 4 : index
    %c0_86 = arith.constant 0 : index
    %c0_87 = arith.constant 0 : index
    %135 = vector.load %arg8[%c4, %c0_86, %c0_87] : memref<5x16x16xf32, #tpu.memory_space<vmem>>, vector<1x16x16xf32>
    %136 = vector.shape_cast %135 : vector<1x16x16xf32> to vector<16x16xf32>
    %cst_88 = arith.constant dense<0.000000e+00> : vector<36x16xf32>
    %137 = tpu.matmul %134, %136, %cst_88 {dimension_numbers = #tpu.dot_dimension_numbers<[1], [0], [0], [1], [0, 0, 1, 1], [], []>} : vector<36x16xf32>, vector<16x16xf32>, vector<36x16xf32> -> vector<36x16xf32>
    %138 = arith.addf %133, %137 : vector<36x16xf32>
    %c0_89 = arith.constant 0 : index
    %c0_90 = arith.constant 0 : index
    %139 = vector.load %arg9[%c0_89, %c0_90] : memref<3x16xf32, #tpu.memory_space<vmem>>, vector<1x16xf32>
    %c1_91 = arith.constant 1 : index
    %c0_92 = arith.constant 0 : index
    %140 = vector.load %arg9[%c1_91, %c0_92] : memref<3x16xf32, #tpu.memory_space<vmem>>, vector<1x16xf32>
    %c2_93 = arith.constant 2 : index
    %c0_94 = arith.constant 0 : index
    %141 = vector.load %arg9[%c2_93, %c0_94] : memref<3x16xf32, #tpu.memory_space<vmem>>, vector<1x16xf32>
    %142 = vector.broadcast %139 : vector<1x16xf32> to vector<36x16xf32>
    %143 = arith.addf %124, %142 : vector<36x16xf32>
    %cst_95 = arith.constant 0.000000e+00 : f32
    %144 = vector.broadcast %cst_95 : f32 to vector<36x16xf32>
    %145 = arith.maximumf %143, %144 : vector<36x16xf32>
    %146 = vector.broadcast %140 : vector<1x16xf32> to vector<36x16xf32>
    %147 = arith.mulf %145, %146 : vector<36x16xf32>
    %148 = vector.broadcast %141 : vector<1x16xf32> to vector<36x16xf32>
    %149 = arith.addf %147, %148 : vector<36x16xf32>
    %150 = vector.broadcast %139 : vector<1x16xf32> to vector<36x16xf32>
    %151 = arith.addf %138, %150 : vector<36x16xf32>
    %cst_96 = arith.constant 0.000000e+00 : f32
    %152 = vector.broadcast %cst_96 : f32 to vector<36x16xf32>
    %153 = arith.maximumf %151, %152 : vector<36x16xf32>
    %154 = vector.broadcast %140 : vector<1x16xf32> to vector<36x16xf32>
    %155 = arith.mulf %153, %154 : vector<36x16xf32>
    %156 = vector.broadcast %141 : vector<1x16xf32> to vector<36x16xf32>
    %157 = arith.addf %155, %156 : vector<36x16xf32>
    %158 = arith.maximumf %149, %157 : vector<36x16xf32>
    %159 = vector.extract_strided_slice %158 {offsets = [0, 0], sizes = [32, 16], strides = [1, 1]} : vector<36x16xf32> to vector<32x16xf32>
    %c0_97 = arith.constant 0 : index
    %c0_98 = arith.constant 0 : index
    %c0_99 = arith.constant 0 : index
    %160 = vector.load %arg10[%c0_97, %c0_98, %c0_99] : memref<5x16x16xf32, #tpu.memory_space<vmem>>, vector<1x16x16xf32>
    %161 = vector.shape_cast %160 : vector<1x16x16xf32> to vector<16x16xf32>
    %cst_100 = arith.constant dense<0.000000e+00> : vector<32x16xf32>
    %162 = tpu.matmul %159, %161, %cst_100 {dimension_numbers = #tpu.dot_dimension_numbers<[1], [0], [0], [1], [0, 0, 1, 1], [], []>} : vector<32x16xf32>, vector<16x16xf32>, vector<32x16xf32> -> vector<32x16xf32>
    %163 = vector.extract_strided_slice %158 {offsets = [1, 0], sizes = [32, 16], strides = [1, 1]} : vector<36x16xf32> to vector<32x16xf32>
    %c1_101 = arith.constant 1 : index
    %c0_102 = arith.constant 0 : index
    %c0_103 = arith.constant 0 : index
    %164 = vector.load %arg10[%c1_101, %c0_102, %c0_103] : memref<5x16x16xf32, #tpu.memory_space<vmem>>, vector<1x16x16xf32>
    %165 = vector.shape_cast %164 : vector<1x16x16xf32> to vector<16x16xf32>
    %cst_104 = arith.constant dense<0.000000e+00> : vector<32x16xf32>
    %166 = tpu.matmul %163, %165, %cst_104 {dimension_numbers = #tpu.dot_dimension_numbers<[1], [0], [0], [1], [0, 0, 1, 1], [], []>} : vector<32x16xf32>, vector<16x16xf32>, vector<32x16xf32> -> vector<32x16xf32>
    %167 = arith.addf %162, %166 : vector<32x16xf32>
    %168 = vector.extract_strided_slice %158 {offsets = [2, 0], sizes = [32, 16], strides = [1, 1]} : vector<36x16xf32> to vector<32x16xf32>
    %c2_105 = arith.constant 2 : index
    %c0_106 = arith.constant 0 : index
    %c0_107 = arith.constant 0 : index
    %169 = vector.load %arg10[%c2_105, %c0_106, %c0_107] : memref<5x16x16xf32, #tpu.memory_space<vmem>>, vector<1x16x16xf32>
    %170 = vector.shape_cast %169 : vector<1x16x16xf32> to vector<16x16xf32>
    %cst_108 = arith.constant dense<0.000000e+00> : vector<32x16xf32>
    %171 = tpu.matmul %168, %170, %cst_108 {dimension_numbers = #tpu.dot_dimension_numbers<[1], [0], [0], [1], [0, 0, 1, 1], [], []>} : vector<32x16xf32>, vector<16x16xf32>, vector<32x16xf32> -> vector<32x16xf32>
    %172 = arith.addf %167, %171 : vector<32x16xf32>
    %173 = vector.extract_strided_slice %158 {offsets = [3, 0], sizes = [32, 16], strides = [1, 1]} : vector<36x16xf32> to vector<32x16xf32>
    %c3_109 = arith.constant 3 : index
    %c0_110 = arith.constant 0 : index
    %c0_111 = arith.constant 0 : index
    %174 = vector.load %arg10[%c3_109, %c0_110, %c0_111] : memref<5x16x16xf32, #tpu.memory_space<vmem>>, vector<1x16x16xf32>
    %175 = vector.shape_cast %174 : vector<1x16x16xf32> to vector<16x16xf32>
    %cst_112 = arith.constant dense<0.000000e+00> : vector<32x16xf32>
    %176 = tpu.matmul %173, %175, %cst_112 {dimension_numbers = #tpu.dot_dimension_numbers<[1], [0], [0], [1], [0, 0, 1, 1], [], []>} : vector<32x16xf32>, vector<16x16xf32>, vector<32x16xf32> -> vector<32x16xf32>
    %177 = arith.addf %172, %176 : vector<32x16xf32>
    %178 = vector.extract_strided_slice %158 {offsets = [4, 0], sizes = [32, 16], strides = [1, 1]} : vector<36x16xf32> to vector<32x16xf32>
    %c4_113 = arith.constant 4 : index
    %c0_114 = arith.constant 0 : index
    %c0_115 = arith.constant 0 : index
    %179 = vector.load %arg10[%c4_113, %c0_114, %c0_115] : memref<5x16x16xf32, #tpu.memory_space<vmem>>, vector<1x16x16xf32>
    %180 = vector.shape_cast %179 : vector<1x16x16xf32> to vector<16x16xf32>
    %cst_116 = arith.constant dense<0.000000e+00> : vector<32x16xf32>
    %181 = tpu.matmul %178, %180, %cst_116 {dimension_numbers = #tpu.dot_dimension_numbers<[1], [0], [0], [1], [0, 0, 1, 1], [], []>} : vector<32x16xf32>, vector<16x16xf32>, vector<32x16xf32> -> vector<32x16xf32>
    %182 = arith.addf %177, %181 : vector<32x16xf32>
    %c0_117 = arith.constant 0 : index
    %c0_118 = arith.constant 0 : index
    %183 = vector.load %arg11[%c0_117, %c0_118] : memref<3x16xf32, #tpu.memory_space<vmem>>, vector<1x16xf32>
    %c1_119 = arith.constant 1 : index
    %c0_120 = arith.constant 0 : index
    %184 = vector.load %arg11[%c1_119, %c0_120] : memref<3x16xf32, #tpu.memory_space<vmem>>, vector<1x16xf32>
    %c2_121 = arith.constant 2 : index
    %c0_122 = arith.constant 0 : index
    %185 = vector.load %arg11[%c2_121, %c0_122] : memref<3x16xf32, #tpu.memory_space<vmem>>, vector<1x16xf32>
    %186 = vector.broadcast %183 : vector<1x16xf32> to vector<32x16xf32>
    %187 = arith.addf %182, %186 : vector<32x16xf32>
    %cst_123 = arith.constant 0.000000e+00 : f32
    %188 = vector.broadcast %cst_123 : f32 to vector<32x16xf32>
    %189 = arith.maximumf %187, %188 : vector<32x16xf32>
    %190 = vector.broadcast %184 : vector<1x16xf32> to vector<32x16xf32>
    %191 = arith.mulf %189, %190 : vector<32x16xf32>
    %192 = vector.broadcast %185 : vector<1x16xf32> to vector<32x16xf32>
    %193 = arith.addf %191, %192 : vector<32x16xf32>
    %194 = vector.extract_strided_slice %193 {offsets = [0, 0], sizes = [1, 16], strides = [1, 1]} : vector<32x16xf32> to vector<1x16xf32>
    %c0_124 = arith.constant 0 : index
    %c0_125 = arith.constant 0 : index
    %c0_126 = arith.constant 0 : index
    %195 = vector.load %arg12[%c0_124, %c0_125, %c0_126] : memref<32x16x1024xf32, #tpu.memory_space<vmem>>, vector<1x16x1024xf32>
    %196 = vector.shape_cast %195 : vector<1x16x1024xf32> to vector<16x1024xf32>
    %cst_127 = arith.constant dense<0.000000e+00> : vector<1x1024xf32>
    %197 = tpu.matmul %194, %196, %cst_127 {dimension_numbers = #tpu.dot_dimension_numbers<[1], [0], [0], [1], [0, 0, 1, 1], [], []>} : vector<1x16xf32>, vector<16x1024xf32>, vector<1x1024xf32> -> vector<1x1024xf32>
    %198 = vector.extract_strided_slice %193 {offsets = [1, 0], sizes = [1, 16], strides = [1, 1]} : vector<32x16xf32> to vector<1x16xf32>
    %c1_128 = arith.constant 1 : index
    %c0_129 = arith.constant 0 : index
    %c0_130 = arith.constant 0 : index
    %199 = vector.load %arg12[%c1_128, %c0_129, %c0_130] : memref<32x16x1024xf32, #tpu.memory_space<vmem>>, vector<1x16x1024xf32>
    %200 = vector.shape_cast %199 : vector<1x16x1024xf32> to vector<16x1024xf32>
    %cst_131 = arith.constant dense<0.000000e+00> : vector<1x1024xf32>
    %201 = tpu.matmul %198, %200, %cst_131 {dimension_numbers = #tpu.dot_dimension_numbers<[1], [0], [0], [1], [0, 0, 1, 1], [], []>} : vector<1x16xf32>, vector<16x1024xf32>, vector<1x1024xf32> -> vector<1x1024xf32>
    %202 = arith.addf %197, %201 : vector<1x1024xf32>
    %203 = vector.extract_strided_slice %193 {offsets = [2, 0], sizes = [1, 16], strides = [1, 1]} : vector<32x16xf32> to vector<1x16xf32>
    %c2_132 = arith.constant 2 : index
    %c0_133 = arith.constant 0 : index
    %c0_134 = arith.constant 0 : index
    %204 = vector.load %arg12[%c2_132, %c0_133, %c0_134] : memref<32x16x1024xf32, #tpu.memory_space<vmem>>, vector<1x16x1024xf32>
    %205 = vector.shape_cast %204 : vector<1x16x1024xf32> to vector<16x1024xf32>
    %cst_135 = arith.constant dense<0.000000e+00> : vector<1x1024xf32>
    %206 = tpu.matmul %203, %205, %cst_135 {dimension_numbers = #tpu.dot_dimension_numbers<[1], [0], [0], [1], [0, 0, 1, 1], [], []>} : vector<1x16xf32>, vector<16x1024xf32>, vector<1x1024xf32> -> vector<1x1024xf32>
    %207 = arith.addf %202, %206 : vector<1x1024xf32>
    %208 = vector.extract_strided_slice %193 {offsets = [3, 0], sizes = [1, 16], strides = [1, 1]} : vector<32x16xf32> to vector<1x16xf32>
    %c3_136 = arith.constant 3 : index
    %c0_137 = arith.constant 0 : index
    %c0_138 = arith.constant 0 : index
    %209 = vector.load %arg12[%c3_136, %c0_137, %c0_138] : memref<32x16x1024xf32, #tpu.memory_space<vmem>>, vector<1x16x1024xf32>
    %210 = vector.shape_cast %209 : vector<1x16x1024xf32> to vector<16x1024xf32>
    %cst_139 = arith.constant dense<0.000000e+00> : vector<1x1024xf32>
    %211 = tpu.matmul %208, %210, %cst_139 {dimension_numbers = #tpu.dot_dimension_numbers<[1], [0], [0], [1], [0, 0, 1, 1], [], []>} : vector<1x16xf32>, vector<16x1024xf32>, vector<1x1024xf32> -> vector<1x1024xf32>
    %212 = arith.addf %207, %211 : vector<1x1024xf32>
    %213 = vector.extract_strided_slice %193 {offsets = [4, 0], sizes = [1, 16], strides = [1, 1]} : vector<32x16xf32> to vector<1x16xf32>
    %c4_140 = arith.constant 4 : index
    %c0_141 = arith.constant 0 : index
    %c0_142 = arith.constant 0 : index
    %214 = vector.load %arg12[%c4_140, %c0_141, %c0_142] : memref<32x16x1024xf32, #tpu.memory_space<vmem>>, vector<1x16x1024xf32>
    %215 = vector.shape_cast %214 : vector<1x16x1024xf32> to vector<16x1024xf32>
    %cst_143 = arith.constant dense<0.000000e+00> : vector<1x1024xf32>
    %216 = tpu.matmul %213, %215, %cst_143 {dimension_numbers = #tpu.dot_dimension_numbers<[1], [0], [0], [1], [0, 0, 1, 1], [], []>} : vector<1x16xf32>, vector<16x1024xf32>, vector<1x1024xf32> -> vector<1x1024xf32>
    %217 = arith.addf %212, %216 : vector<1x1024xf32>
    %218 = vector.extract_strided_slice %193 {offsets = [5, 0], sizes = [1, 16], strides = [1, 1]} : vector<32x16xf32> to vector<1x16xf32>
    %c5 = arith.constant 5 : index
    %c0_144 = arith.constant 0 : index
    %c0_145 = arith.constant 0 : index
    %219 = vector.load %arg12[%c5, %c0_144, %c0_145] : memref<32x16x1024xf32, #tpu.memory_space<vmem>>, vector<1x16x1024xf32>
    %220 = vector.shape_cast %219 : vector<1x16x1024xf32> to vector<16x1024xf32>
    %cst_146 = arith.constant dense<0.000000e+00> : vector<1x1024xf32>
    %221 = tpu.matmul %218, %220, %cst_146 {dimension_numbers = #tpu.dot_dimension_numbers<[1], [0], [0], [1], [0, 0, 1, 1], [], []>} : vector<1x16xf32>, vector<16x1024xf32>, vector<1x1024xf32> -> vector<1x1024xf32>
    %222 = arith.addf %217, %221 : vector<1x1024xf32>
    %223 = vector.extract_strided_slice %193 {offsets = [6, 0], sizes = [1, 16], strides = [1, 1]} : vector<32x16xf32> to vector<1x16xf32>
    %c6 = arith.constant 6 : index
    %c0_147 = arith.constant 0 : index
    %c0_148 = arith.constant 0 : index
    %224 = vector.load %arg12[%c6, %c0_147, %c0_148] : memref<32x16x1024xf32, #tpu.memory_space<vmem>>, vector<1x16x1024xf32>
    %225 = vector.shape_cast %224 : vector<1x16x1024xf32> to vector<16x1024xf32>
    %cst_149 = arith.constant dense<0.000000e+00> : vector<1x1024xf32>
    %226 = tpu.matmul %223, %225, %cst_149 {dimension_numbers = #tpu.dot_dimension_numbers<[1], [0], [0], [1], [0, 0, 1, 1], [], []>} : vector<1x16xf32>, vector<16x1024xf32>, vector<1x1024xf32> -> vector<1x1024xf32>
    %227 = arith.addf %222, %226 : vector<1x1024xf32>
    %228 = vector.extract_strided_slice %193 {offsets = [7, 0], sizes = [1, 16], strides = [1, 1]} : vector<32x16xf32> to vector<1x16xf32>
    %c7 = arith.constant 7 : index
    %c0_150 = arith.constant 0 : index
    %c0_151 = arith.constant 0 : index
    %229 = vector.load %arg12[%c7, %c0_150, %c0_151] : memref<32x16x1024xf32, #tpu.memory_space<vmem>>, vector<1x16x1024xf32>
    %230 = vector.shape_cast %229 : vector<1x16x1024xf32> to vector<16x1024xf32>
    %cst_152 = arith.constant dense<0.000000e+00> : vector<1x1024xf32>
    %231 = tpu.matmul %228, %230, %cst_152 {dimension_numbers = #tpu.dot_dimension_numbers<[1], [0], [0], [1], [0, 0, 1, 1], [], []>} : vector<1x16xf32>, vector<16x1024xf32>, vector<1x1024xf32> -> vector<1x1024xf32>
    %232 = arith.addf %227, %231 : vector<1x1024xf32>
    %233 = vector.extract_strided_slice %193 {offsets = [8, 0], sizes = [1, 16], strides = [1, 1]} : vector<32x16xf32> to vector<1x16xf32>
    %c8 = arith.constant 8 : index
    %c0_153 = arith.constant 0 : index
    %c0_154 = arith.constant 0 : index
    %234 = vector.load %arg12[%c8, %c0_153, %c0_154] : memref<32x16x1024xf32, #tpu.memory_space<vmem>>, vector<1x16x1024xf32>
    %235 = vector.shape_cast %234 : vector<1x16x1024xf32> to vector<16x1024xf32>
    %cst_155 = arith.constant dense<0.000000e+00> : vector<1x1024xf32>
    %236 = tpu.matmul %233, %235, %cst_155 {dimension_numbers = #tpu.dot_dimension_numbers<[1], [0], [0], [1], [0, 0, 1, 1], [], []>} : vector<1x16xf32>, vector<16x1024xf32>, vector<1x1024xf32> -> vector<1x1024xf32>
    %237 = arith.addf %232, %236 : vector<1x1024xf32>
    %238 = vector.extract_strided_slice %193 {offsets = [9, 0], sizes = [1, 16], strides = [1, 1]} : vector<32x16xf32> to vector<1x16xf32>
    %c9 = arith.constant 9 : index
    %c0_156 = arith.constant 0 : index
    %c0_157 = arith.constant 0 : index
    %239 = vector.load %arg12[%c9, %c0_156, %c0_157] : memref<32x16x1024xf32, #tpu.memory_space<vmem>>, vector<1x16x1024xf32>
    %240 = vector.shape_cast %239 : vector<1x16x1024xf32> to vector<16x1024xf32>
    %cst_158 = arith.constant dense<0.000000e+00> : vector<1x1024xf32>
    %241 = tpu.matmul %238, %240, %cst_158 {dimension_numbers = #tpu.dot_dimension_numbers<[1], [0], [0], [1], [0, 0, 1, 1], [], []>} : vector<1x16xf32>, vector<16x1024xf32>, vector<1x1024xf32> -> vector<1x1024xf32>
    %242 = arith.addf %237, %241 : vector<1x1024xf32>
    %243 = vector.extract_strided_slice %193 {offsets = [10, 0], sizes = [1, 16], strides = [1, 1]} : vector<32x16xf32> to vector<1x16xf32>
    %c10 = arith.constant 10 : index
    %c0_159 = arith.constant 0 : index
    %c0_160 = arith.constant 0 : index
    %244 = vector.load %arg12[%c10, %c0_159, %c0_160] : memref<32x16x1024xf32, #tpu.memory_space<vmem>>, vector<1x16x1024xf32>
    %245 = vector.shape_cast %244 : vector<1x16x1024xf32> to vector<16x1024xf32>
    %cst_161 = arith.constant dense<0.000000e+00> : vector<1x1024xf32>
    %246 = tpu.matmul %243, %245, %cst_161 {dimension_numbers = #tpu.dot_dimension_numbers<[1], [0], [0], [1], [0, 0, 1, 1], [], []>} : vector<1x16xf32>, vector<16x1024xf32>, vector<1x1024xf32> -> vector<1x1024xf32>
    %247 = arith.addf %242, %246 : vector<1x1024xf32>
    %248 = vector.extract_strided_slice %193 {offsets = [11, 0], sizes = [1, 16], strides = [1, 1]} : vector<32x16xf32> to vector<1x16xf32>
    %c11 = arith.constant 11 : index
    %c0_162 = arith.constant 0 : index
    %c0_163 = arith.constant 0 : index
    %249 = vector.load %arg12[%c11, %c0_162, %c0_163] : memref<32x16x1024xf32, #tpu.memory_space<vmem>>, vector<1x16x1024xf32>
    %250 = vector.shape_cast %249 : vector<1x16x1024xf32> to vector<16x1024xf32>
    %cst_164 = arith.constant dense<0.000000e+00> : vector<1x1024xf32>
    %251 = tpu.matmul %248, %250, %cst_164 {dimension_numbers = #tpu.dot_dimension_numbers<[1], [0], [0], [1], [0, 0, 1, 1], [], []>} : vector<1x16xf32>, vector<16x1024xf32>, vector<1x1024xf32> -> vector<1x1024xf32>
    %252 = arith.addf %247, %251 : vector<1x1024xf32>
    %253 = vector.extract_strided_slice %193 {offsets = [12, 0], sizes = [1, 16], strides = [1, 1]} : vector<32x16xf32> to vector<1x16xf32>
    %c12 = arith.constant 12 : index
    %c0_165 = arith.constant 0 : index
    %c0_166 = arith.constant 0 : index
    %254 = vector.load %arg12[%c12, %c0_165, %c0_166] : memref<32x16x1024xf32, #tpu.memory_space<vmem>>, vector<1x16x1024xf32>
    %255 = vector.shape_cast %254 : vector<1x16x1024xf32> to vector<16x1024xf32>
    %cst_167 = arith.constant dense<0.000000e+00> : vector<1x1024xf32>
    %256 = tpu.matmul %253, %255, %cst_167 {dimension_numbers = #tpu.dot_dimension_numbers<[1], [0], [0], [1], [0, 0, 1, 1], [], []>} : vector<1x16xf32>, vector<16x1024xf32>, vector<1x1024xf32> -> vector<1x1024xf32>
    %257 = arith.addf %252, %256 : vector<1x1024xf32>
    %258 = vector.extract_strided_slice %193 {offsets = [13, 0], sizes = [1, 16], strides = [1, 1]} : vector<32x16xf32> to vector<1x16xf32>
    %c13 = arith.constant 13 : index
    %c0_168 = arith.constant 0 : index
    %c0_169 = arith.constant 0 : index
    %259 = vector.load %arg12[%c13, %c0_168, %c0_169] : memref<32x16x1024xf32, #tpu.memory_space<vmem>>, vector<1x16x1024xf32>
    %260 = vector.shape_cast %259 : vector<1x16x1024xf32> to vector<16x1024xf32>
    %cst_170 = arith.constant dense<0.000000e+00> : vector<1x1024xf32>
    %261 = tpu.matmul %258, %260, %cst_170 {dimension_numbers = #tpu.dot_dimension_numbers<[1], [0], [0], [1], [0, 0, 1, 1], [], []>} : vector<1x16xf32>, vector<16x1024xf32>, vector<1x1024xf32> -> vector<1x1024xf32>
    %262 = arith.addf %257, %261 : vector<1x1024xf32>
    %263 = vector.extract_strided_slice %193 {offsets = [14, 0], sizes = [1, 16], strides = [1, 1]} : vector<32x16xf32> to vector<1x16xf32>
    %c14 = arith.constant 14 : index
    %c0_171 = arith.constant 0 : index
    %c0_172 = arith.constant 0 : index
    %264 = vector.load %arg12[%c14, %c0_171, %c0_172] : memref<32x16x1024xf32, #tpu.memory_space<vmem>>, vector<1x16x1024xf32>
    %265 = vector.shape_cast %264 : vector<1x16x1024xf32> to vector<16x1024xf32>
    %cst_173 = arith.constant dense<0.000000e+00> : vector<1x1024xf32>
    %266 = tpu.matmul %263, %265, %cst_173 {dimension_numbers = #tpu.dot_dimension_numbers<[1], [0], [0], [1], [0, 0, 1, 1], [], []>} : vector<1x16xf32>, vector<16x1024xf32>, vector<1x1024xf32> -> vector<1x1024xf32>
    %267 = arith.addf %262, %266 : vector<1x1024xf32>
    %268 = vector.extract_strided_slice %193 {offsets = [15, 0], sizes = [1, 16], strides = [1, 1]} : vector<32x16xf32> to vector<1x16xf32>
    %c15 = arith.constant 15 : index
    %c0_174 = arith.constant 0 : index
    %c0_175 = arith.constant 0 : index
    %269 = vector.load %arg12[%c15, %c0_174, %c0_175] : memref<32x16x1024xf32, #tpu.memory_space<vmem>>, vector<1x16x1024xf32>
    %270 = vector.shape_cast %269 : vector<1x16x1024xf32> to vector<16x1024xf32>
    %cst_176 = arith.constant dense<0.000000e+00> : vector<1x1024xf32>
    %271 = tpu.matmul %268, %270, %cst_176 {dimension_numbers = #tpu.dot_dimension_numbers<[1], [0], [0], [1], [0, 0, 1, 1], [], []>} : vector<1x16xf32>, vector<16x1024xf32>, vector<1x1024xf32> -> vector<1x1024xf32>
    %272 = arith.addf %267, %271 : vector<1x1024xf32>
    %273 = vector.extract_strided_slice %193 {offsets = [16, 0], sizes = [1, 16], strides = [1, 1]} : vector<32x16xf32> to vector<1x16xf32>
    %c16 = arith.constant 16 : index
    %c0_177 = arith.constant 0 : index
    %c0_178 = arith.constant 0 : index
    %274 = vector.load %arg12[%c16, %c0_177, %c0_178] : memref<32x16x1024xf32, #tpu.memory_space<vmem>>, vector<1x16x1024xf32>
    %275 = vector.shape_cast %274 : vector<1x16x1024xf32> to vector<16x1024xf32>
    %cst_179 = arith.constant dense<0.000000e+00> : vector<1x1024xf32>
    %276 = tpu.matmul %273, %275, %cst_179 {dimension_numbers = #tpu.dot_dimension_numbers<[1], [0], [0], [1], [0, 0, 1, 1], [], []>} : vector<1x16xf32>, vector<16x1024xf32>, vector<1x1024xf32> -> vector<1x1024xf32>
    %277 = arith.addf %272, %276 : vector<1x1024xf32>
    %278 = vector.extract_strided_slice %193 {offsets = [17, 0], sizes = [1, 16], strides = [1, 1]} : vector<32x16xf32> to vector<1x16xf32>
    %c17 = arith.constant 17 : index
    %c0_180 = arith.constant 0 : index
    %c0_181 = arith.constant 0 : index
    %279 = vector.load %arg12[%c17, %c0_180, %c0_181] : memref<32x16x1024xf32, #tpu.memory_space<vmem>>, vector<1x16x1024xf32>
    %280 = vector.shape_cast %279 : vector<1x16x1024xf32> to vector<16x1024xf32>
    %cst_182 = arith.constant dense<0.000000e+00> : vector<1x1024xf32>
    %281 = tpu.matmul %278, %280, %cst_182 {dimension_numbers = #tpu.dot_dimension_numbers<[1], [0], [0], [1], [0, 0, 1, 1], [], []>} : vector<1x16xf32>, vector<16x1024xf32>, vector<1x1024xf32> -> vector<1x1024xf32>
    %282 = arith.addf %277, %281 : vector<1x1024xf32>
    %283 = vector.extract_strided_slice %193 {offsets = [18, 0], sizes = [1, 16], strides = [1, 1]} : vector<32x16xf32> to vector<1x16xf32>
    %c18 = arith.constant 18 : index
    %c0_183 = arith.constant 0 : index
    %c0_184 = arith.constant 0 : index
    %284 = vector.load %arg12[%c18, %c0_183, %c0_184] : memref<32x16x1024xf32, #tpu.memory_space<vmem>>, vector<1x16x1024xf32>
    %285 = vector.shape_cast %284 : vector<1x16x1024xf32> to vector<16x1024xf32>
    %cst_185 = arith.constant dense<0.000000e+00> : vector<1x1024xf32>
    %286 = tpu.matmul %283, %285, %cst_185 {dimension_numbers = #tpu.dot_dimension_numbers<[1], [0], [0], [1], [0, 0, 1, 1], [], []>} : vector<1x16xf32>, vector<16x1024xf32>, vector<1x1024xf32> -> vector<1x1024xf32>
    %287 = arith.addf %282, %286 : vector<1x1024xf32>
    %288 = vector.extract_strided_slice %193 {offsets = [19, 0], sizes = [1, 16], strides = [1, 1]} : vector<32x16xf32> to vector<1x16xf32>
    %c19 = arith.constant 19 : index
    %c0_186 = arith.constant 0 : index
    %c0_187 = arith.constant 0 : index
    %289 = vector.load %arg12[%c19, %c0_186, %c0_187] : memref<32x16x1024xf32, #tpu.memory_space<vmem>>, vector<1x16x1024xf32>
    %290 = vector.shape_cast %289 : vector<1x16x1024xf32> to vector<16x1024xf32>
    %cst_188 = arith.constant dense<0.000000e+00> : vector<1x1024xf32>
    %291 = tpu.matmul %288, %290, %cst_188 {dimension_numbers = #tpu.dot_dimension_numbers<[1], [0], [0], [1], [0, 0, 1, 1], [], []>} : vector<1x16xf32>, vector<16x1024xf32>, vector<1x1024xf32> -> vector<1x1024xf32>
    %292 = arith.addf %287, %291 : vector<1x1024xf32>
    %293 = vector.extract_strided_slice %193 {offsets = [20, 0], sizes = [1, 16], strides = [1, 1]} : vector<32x16xf32> to vector<1x16xf32>
    %c20 = arith.constant 20 : index
    %c0_189 = arith.constant 0 : index
    %c0_190 = arith.constant 0 : index
    %294 = vector.load %arg12[%c20, %c0_189, %c0_190] : memref<32x16x1024xf32, #tpu.memory_space<vmem>>, vector<1x16x1024xf32>
    %295 = vector.shape_cast %294 : vector<1x16x1024xf32> to vector<16x1024xf32>
    %cst_191 = arith.constant dense<0.000000e+00> : vector<1x1024xf32>
    %296 = tpu.matmul %293, %295, %cst_191 {dimension_numbers = #tpu.dot_dimension_numbers<[1], [0], [0], [1], [0, 0, 1, 1], [], []>} : vector<1x16xf32>, vector<16x1024xf32>, vector<1x1024xf32> -> vector<1x1024xf32>
    %297 = arith.addf %292, %296 : vector<1x1024xf32>
    %298 = vector.extract_strided_slice %193 {offsets = [21, 0], sizes = [1, 16], strides = [1, 1]} : vector<32x16xf32> to vector<1x16xf32>
    %c21 = arith.constant 21 : index
    %c0_192 = arith.constant 0 : index
    %c0_193 = arith.constant 0 : index
    %299 = vector.load %arg12[%c21, %c0_192, %c0_193] : memref<32x16x1024xf32, #tpu.memory_space<vmem>>, vector<1x16x1024xf32>
    %300 = vector.shape_cast %299 : vector<1x16x1024xf32> to vector<16x1024xf32>
    %cst_194 = arith.constant dense<0.000000e+00> : vector<1x1024xf32>
    %301 = tpu.matmul %298, %300, %cst_194 {dimension_numbers = #tpu.dot_dimension_numbers<[1], [0], [0], [1], [0, 0, 1, 1], [], []>} : vector<1x16xf32>, vector<16x1024xf32>, vector<1x1024xf32> -> vector<1x1024xf32>
    %302 = arith.addf %297, %301 : vector<1x1024xf32>
    %303 = vector.extract_strided_slice %193 {offsets = [22, 0], sizes = [1, 16], strides = [1, 1]} : vector<32x16xf32> to vector<1x16xf32>
    %c22 = arith.constant 22 : index
    %c0_195 = arith.constant 0 : index
    %c0_196 = arith.constant 0 : index
    %304 = vector.load %arg12[%c22, %c0_195, %c0_196] : memref<32x16x1024xf32, #tpu.memory_space<vmem>>, vector<1x16x1024xf32>
    %305 = vector.shape_cast %304 : vector<1x16x1024xf32> to vector<16x1024xf32>
    %cst_197 = arith.constant dense<0.000000e+00> : vector<1x1024xf32>
    %306 = tpu.matmul %303, %305, %cst_197 {dimension_numbers = #tpu.dot_dimension_numbers<[1], [0], [0], [1], [0, 0, 1, 1], [], []>} : vector<1x16xf32>, vector<16x1024xf32>, vector<1x1024xf32> -> vector<1x1024xf32>
    %307 = arith.addf %302, %306 : vector<1x1024xf32>
    %308 = vector.extract_strided_slice %193 {offsets = [23, 0], sizes = [1, 16], strides = [1, 1]} : vector<32x16xf32> to vector<1x16xf32>
    %c23 = arith.constant 23 : index
    %c0_198 = arith.constant 0 : index
    %c0_199 = arith.constant 0 : index
    %309 = vector.load %arg12[%c23, %c0_198, %c0_199] : memref<32x16x1024xf32, #tpu.memory_space<vmem>>, vector<1x16x1024xf32>
    %310 = vector.shape_cast %309 : vector<1x16x1024xf32> to vector<16x1024xf32>
    %cst_200 = arith.constant dense<0.000000e+00> : vector<1x1024xf32>
    %311 = tpu.matmul %308, %310, %cst_200 {dimension_numbers = #tpu.dot_dimension_numbers<[1], [0], [0], [1], [0, 0, 1, 1], [], []>} : vector<1x16xf32>, vector<16x1024xf32>, vector<1x1024xf32> -> vector<1x1024xf32>
    %312 = arith.addf %307, %311 : vector<1x1024xf32>
    %313 = vector.extract_strided_slice %193 {offsets = [24, 0], sizes = [1, 16], strides = [1, 1]} : vector<32x16xf32> to vector<1x16xf32>
    %c24 = arith.constant 24 : index
    %c0_201 = arith.constant 0 : index
    %c0_202 = arith.constant 0 : index
    %314 = vector.load %arg12[%c24, %c0_201, %c0_202] : memref<32x16x1024xf32, #tpu.memory_space<vmem>>, vector<1x16x1024xf32>
    %315 = vector.shape_cast %314 : vector<1x16x1024xf32> to vector<16x1024xf32>
    %cst_203 = arith.constant dense<0.000000e+00> : vector<1x1024xf32>
    %316 = tpu.matmul %313, %315, %cst_203 {dimension_numbers = #tpu.dot_dimension_numbers<[1], [0], [0], [1], [0, 0, 1, 1], [], []>} : vector<1x16xf32>, vector<16x1024xf32>, vector<1x1024xf32> -> vector<1x1024xf32>
    %317 = arith.addf %312, %316 : vector<1x1024xf32>
    %318 = vector.extract_strided_slice %193 {offsets = [25, 0], sizes = [1, 16], strides = [1, 1]} : vector<32x16xf32> to vector<1x16xf32>
    %c25 = arith.constant 25 : index
    %c0_204 = arith.constant 0 : index
    %c0_205 = arith.constant 0 : index
    %319 = vector.load %arg12[%c25, %c0_204, %c0_205] : memref<32x16x1024xf32, #tpu.memory_space<vmem>>, vector<1x16x1024xf32>
    %320 = vector.shape_cast %319 : vector<1x16x1024xf32> to vector<16x1024xf32>
    %cst_206 = arith.constant dense<0.000000e+00> : vector<1x1024xf32>
    %321 = tpu.matmul %318, %320, %cst_206 {dimension_numbers = #tpu.dot_dimension_numbers<[1], [0], [0], [1], [0, 0, 1, 1], [], []>} : vector<1x16xf32>, vector<16x1024xf32>, vector<1x1024xf32> -> vector<1x1024xf32>
    %322 = arith.addf %317, %321 : vector<1x1024xf32>
    %323 = vector.extract_strided_slice %193 {offsets = [26, 0], sizes = [1, 16], strides = [1, 1]} : vector<32x16xf32> to vector<1x16xf32>
    %c26 = arith.constant 26 : index
    %c0_207 = arith.constant 0 : index
    %c0_208 = arith.constant 0 : index
    %324 = vector.load %arg12[%c26, %c0_207, %c0_208] : memref<32x16x1024xf32, #tpu.memory_space<vmem>>, vector<1x16x1024xf32>
    %325 = vector.shape_cast %324 : vector<1x16x1024xf32> to vector<16x1024xf32>
    %cst_209 = arith.constant dense<0.000000e+00> : vector<1x1024xf32>
    %326 = tpu.matmul %323, %325, %cst_209 {dimension_numbers = #tpu.dot_dimension_numbers<[1], [0], [0], [1], [0, 0, 1, 1], [], []>} : vector<1x16xf32>, vector<16x1024xf32>, vector<1x1024xf32> -> vector<1x1024xf32>
    %327 = arith.addf %322, %326 : vector<1x1024xf32>
    %328 = vector.extract_strided_slice %193 {offsets = [27, 0], sizes = [1, 16], strides = [1, 1]} : vector<32x16xf32> to vector<1x16xf32>
    %c27 = arith.constant 27 : index
    %c0_210 = arith.constant 0 : index
    %c0_211 = arith.constant 0 : index
    %329 = vector.load %arg12[%c27, %c0_210, %c0_211] : memref<32x16x1024xf32, #tpu.memory_space<vmem>>, vector<1x16x1024xf32>
    %330 = vector.shape_cast %329 : vector<1x16x1024xf32> to vector<16x1024xf32>
    %cst_212 = arith.constant dense<0.000000e+00> : vector<1x1024xf32>
    %331 = tpu.matmul %328, %330, %cst_212 {dimension_numbers = #tpu.dot_dimension_numbers<[1], [0], [0], [1], [0, 0, 1, 1], [], []>} : vector<1x16xf32>, vector<16x1024xf32>, vector<1x1024xf32> -> vector<1x1024xf32>
    %332 = arith.addf %327, %331 : vector<1x1024xf32>
    %333 = vector.extract_strided_slice %193 {offsets = [28, 0], sizes = [1, 16], strides = [1, 1]} : vector<32x16xf32> to vector<1x16xf32>
    %c28 = arith.constant 28 : index
    %c0_213 = arith.constant 0 : index
    %c0_214 = arith.constant 0 : index
    %334 = vector.load %arg12[%c28, %c0_213, %c0_214] : memref<32x16x1024xf32, #tpu.memory_space<vmem>>, vector<1x16x1024xf32>
    %335 = vector.shape_cast %334 : vector<1x16x1024xf32> to vector<16x1024xf32>
    %cst_215 = arith.constant dense<0.000000e+00> : vector<1x1024xf32>
    %336 = tpu.matmul %333, %335, %cst_215 {dimension_numbers = #tpu.dot_dimension_numbers<[1], [0], [0], [1], [0, 0, 1, 1], [], []>} : vector<1x16xf32>, vector<16x1024xf32>, vector<1x1024xf32> -> vector<1x1024xf32>
    %337 = arith.addf %332, %336 : vector<1x1024xf32>
    %338 = vector.extract_strided_slice %193 {offsets = [29, 0], sizes = [1, 16], strides = [1, 1]} : vector<32x16xf32> to vector<1x16xf32>
    %c29 = arith.constant 29 : index
    %c0_216 = arith.constant 0 : index
    %c0_217 = arith.constant 0 : index
    %339 = vector.load %arg12[%c29, %c0_216, %c0_217] : memref<32x16x1024xf32, #tpu.memory_space<vmem>>, vector<1x16x1024xf32>
    %340 = vector.shape_cast %339 : vector<1x16x1024xf32> to vector<16x1024xf32>
    %cst_218 = arith.constant dense<0.000000e+00> : vector<1x1024xf32>
    %341 = tpu.matmul %338, %340, %cst_218 {dimension_numbers = #tpu.dot_dimension_numbers<[1], [0], [0], [1], [0, 0, 1, 1], [], []>} : vector<1x16xf32>, vector<16x1024xf32>, vector<1x1024xf32> -> vector<1x1024xf32>
    %342 = arith.addf %337, %341 : vector<1x1024xf32>
    %343 = vector.extract_strided_slice %193 {offsets = [30, 0], sizes = [1, 16], strides = [1, 1]} : vector<32x16xf32> to vector<1x16xf32>
    %c30 = arith.constant 30 : index
    %c0_219 = arith.constant 0 : index
    %c0_220 = arith.constant 0 : index
    %344 = vector.load %arg12[%c30, %c0_219, %c0_220] : memref<32x16x1024xf32, #tpu.memory_space<vmem>>, vector<1x16x1024xf32>
    %345 = vector.shape_cast %344 : vector<1x16x1024xf32> to vector<16x1024xf32>
    %cst_221 = arith.constant dense<0.000000e+00> : vector<1x1024xf32>
    %346 = tpu.matmul %343, %345, %cst_221 {dimension_numbers = #tpu.dot_dimension_numbers<[1], [0], [0], [1], [0, 0, 1, 1], [], []>} : vector<1x16xf32>, vector<16x1024xf32>, vector<1x1024xf32> -> vector<1x1024xf32>
    %347 = arith.addf %342, %346 : vector<1x1024xf32>
    %348 = vector.extract_strided_slice %193 {offsets = [31, 0], sizes = [1, 16], strides = [1, 1]} : vector<32x16xf32> to vector<1x16xf32>
    %c31 = arith.constant 31 : index
    %c0_222 = arith.constant 0 : index
    %c0_223 = arith.constant 0 : index
    %349 = vector.load %arg12[%c31, %c0_222, %c0_223] : memref<32x16x1024xf32, #tpu.memory_space<vmem>>, vector<1x16x1024xf32>
    %350 = vector.shape_cast %349 : vector<1x16x1024xf32> to vector<16x1024xf32>
    %cst_224 = arith.constant dense<0.000000e+00> : vector<1x1024xf32>
    %351 = tpu.matmul %348, %350, %cst_224 {dimension_numbers = #tpu.dot_dimension_numbers<[1], [0], [0], [1], [0, 0, 1, 1], [], []>} : vector<1x16xf32>, vector<16x1024xf32>, vector<1x1024xf32> -> vector<1x1024xf32>
    %352 = arith.addf %347, %351 : vector<1x1024xf32>
    %353 = vector.extract_strided_slice %352 {offsets = [0, 0], sizes = [1, 512], strides = [1, 1]} : vector<1x1024xf32> to vector<1x512xf32>
    %354 = vector.extract_strided_slice %352 {offsets = [0, 0], sizes = [1, 512], strides = [1, 1]} : vector<1x1024xf32> to vector<1x512xf32>
    %355 = arith.mulf %353, %354 : vector<1x512xf32>
    %356 = vector.extract_strided_slice %352 {offsets = [0, 512], sizes = [1, 512], strides = [1, 1]} : vector<1x1024xf32> to vector<1x512xf32>
    %357 = vector.extract_strided_slice %352 {offsets = [0, 512], sizes = [1, 512], strides = [1, 1]} : vector<1x1024xf32> to vector<1x512xf32>
    %358 = arith.mulf %356, %357 : vector<1x512xf32>
    %359 = arith.addf %355, %358 : vector<1x512xf32>
    %c0_225 = arith.constant 0 : index
    %c0_226 = arith.constant 0 : index
    %360 = vector.load %arg13[%c0_225, %c0_226] : memref<512x2xf32, #tpu.memory_space<vmem>>, vector<512x2xf32>
    %cst_227 = arith.constant dense<0.000000e+00> : vector<1x2xf32>
    %361 = tpu.matmul %359, %360, %cst_227 {dimension_numbers = #tpu.dot_dimension_numbers<[1], [0], [0], [1], [0, 0, 1, 1], [], []>} : vector<1x512xf32>, vector<512x2xf32>, vector<1x2xf32> -> vector<1x2xf32>
    %c0_228 = arith.constant 0 : index
    %c0_229 = arith.constant 0 : index
    %362 = vector.load %arg14[%c0_228, %c0_229] : memref<1x2xf32, #tpu.memory_space<vmem>>, vector<1x2xf32>
    %363 = arith.addf %361, %362 : vector<1x2xf32>
    %c0_230 = arith.constant 0 : index
    %c0_231 = arith.constant 0 : index
    %c0_232 = arith.constant 0 : index
    %364 = vector.load %arg15[%c0_230, %c0_231, %c0_232] : memref<1x1x2xf32, #tpu.memory_space<vmem>>, vector<1x1x2xf32>
    %365 = vector.shape_cast %364 : vector<1x1x2xf32> to vector<1x2xf32>
    %366 = vector.shape_cast %363 : vector<1x2xf32> to vector<1x1x2xf32>
    tpu.vector_store %arg15[%c0_230, %c0_231, %c0_232], %366 {strides = array<i32>} : memref<1x1x2xf32, #tpu.memory_space<vmem>>, vector<1x1x2xf32>,
    return
  }
  func.func @transform_0(%arg0: i32) -> (i32, i32, i32) {
    %c0_i32 = arith.constant 0 : i32
    %c0_i32_0 = arith.constant 0 : i32
    %c0_i32_1 = arith.constant 0 : i32
    return %arg0, %c0_i32, %c0_i32_0 : i32, i32, i32
  }
  func.func @transform_1(%arg0: i32) -> (i32, i32, i32) {
    %c0_i32 = arith.constant 0 : i32
    %c0_i32_0 = arith.constant 0 : i32
    %c0_i32_1 = arith.constant 0 : i32
    %c0_i32_2 = arith.constant 0 : i32
    return %c0_i32, %c0_i32_0, %c0_i32_1 : i32, i32, i32
  }
  func.func @transform_2(%arg0: i32) -> (i32, i32) {
    %c0_i32 = arith.constant 0 : i32
    %c0_i32_0 = arith.constant 0 : i32
    %c0_i32_1 = arith.constant 0 : i32
    return %c0_i32, %c0_i32_0 : i32, i32
  }
  func.func @transform_3(%arg0: i32) -> (i32, i32, i32) {
    %c0_i32 = arith.constant 0 : i32
    %c0_i32_0 = arith.constant 0 : i32
    %c0_i32_1 = arith.constant 0 : i32
    %c0_i32_2 = arith.constant 0 : i32
    return %c0_i32, %c0_i32_0, %c0_i32_1 : i32, i32, i32
  }
  func.func @transform_4(%arg0: i32) -> (i32, i32) {
    %c0_i32 = arith.constant 0 : i32
    %c0_i32_0 = arith.constant 0 : i32
    %c0_i32_1 = arith.constant 0 : i32
    return %c0_i32, %c0_i32_0 : i32, i32
  }
  func.func @transform_5(%arg0: i32) -> (i32, i32, i32) {
    %c0_i32 = arith.constant 0 : i32
    %c0_i32_0 = arith.constant 0 : i32
    %c0_i32_1 = arith.constant 0 : i32
    %c0_i32_2 = arith.constant 0 : i32
    return %c0_i32, %c0_i32_0, %c0_i32_1 : i32, i32, i32
  }
  func.func @transform_6(%arg0: i32) -> (i32, i32) {
    %c0_i32 = arith.constant 0 : i32
    %c0_i32_0 = arith.constant 0 : i32
    %c0_i32_1 = arith.constant 0 : i32
    return %c0_i32, %c0_i32_0 : i32, i32
  }
  func.func @transform_7(%arg0: i32) -> (i32, i32, i32) {
    %c0_i32 = arith.constant 0 : i32
    %c0_i32_0 = arith.constant 0 : i32
    %c0_i32_1 = arith.constant 0 : i32
    %c0_i32_2 = arith.constant 0 : i32
    return %c0_i32, %c0_i32_0, %c0_i32_1 : i32, i32, i32
  }
  func.func @transform_8(%arg0: i32) -> (i32, i32) {
    %c0_i32 = arith.constant 0 : i32
    %c0_i32_0 = arith.constant 0 : i32
    %c0_i32_1 = arith.constant 0 : i32
    return %c0_i32, %c0_i32_0 : i32, i32
  }
  func.func @transform_9(%arg0: i32) -> (i32, i32, i32) {
    %c0_i32 = arith.constant 0 : i32
    %c0_i32_0 = arith.constant 0 : i32
    %c0_i32_1 = arith.constant 0 : i32
    %c0_i32_2 = arith.constant 0 : i32
    return %c0_i32, %c0_i32_0, %c0_i32_1 : i32, i32, i32
  }
  func.func @transform_10(%arg0: i32) -> (i32, i32) {
    %c0_i32 = arith.constant 0 : i32
    %c0_i32_0 = arith.constant 0 : i32
    %c0_i32_1 = arith.constant 0 : i32
    return %c0_i32, %c0_i32_0 : i32, i32
  }
  func.func @transform_11(%arg0: i32) -> (i32, i32, i32) {
    %c0_i32 = arith.constant 0 : i32
    %c0_i32_0 = arith.constant 0 : i32
    %c0_i32_1 = arith.constant 0 : i32
    %c0_i32_2 = arith.constant 0 : i32
    return %c0_i32, %c0_i32_0, %c0_i32_1 : i32, i32, i32
  }
  func.func @transform_12(%arg0: i32) -> (i32, i32) {
    %c0_i32 = arith.constant 0 : i32
    %c0_i32_0 = arith.constant 0 : i32
    %c0_i32_1 = arith.constant 0 : i32
    return %c0_i32, %c0_i32_0 : i32, i32
  }
  func.func @transform_13(%arg0: i32) -> (i32, i32) {
    %c0_i32 = arith.constant 0 : i32
    %c0_i32_0 = arith.constant 0 : i32
    %c0_i32_1 = arith.constant 0 : i32
    return %c0_i32, %c0_i32_0 : i32, i32
  }
  func.func @transform_14(%arg0: i32) -> (i32, i32, i32) {
    %c0_i32 = arith.constant 0 : i32
    %c0_i32_0 = arith.constant 0 : i32
    %c0_i32_1 = arith.constant 0 : i32
    return %arg0, %c0_i32, %c0_i32_0 : i32, i32, i32
  }
}

</mosaic_0001>

<llo_original>
// kernel: quantum_forward.1
$region0: #{quantum_forward.1}
  #allocation0 [shape = 'u32[]', space=smem, size = 0x4, offset = 0x4, fixed_abs, tag = 'smem constant byte address 0x4 - core index']
  #allocation1 [shape = 'u32[72,128]{1,0:T(1,128)}', space=vmem, size = 0x9000, scoped, tag = 'internal scratch']
  %s0 = inlined_call_operand.vmem [shape: f32[2,41,32], index: 0, kind: input, shape index: {}]
  %s1 = inlined_call_operand.hbm [shape: f32[4,32,48], index: 1, kind: input, shape index: {}]
  %s2 = inlined_call_operand.hbm [shape: f32[3,48], index: 2, kind: input, shape index: {}]
  %s3 = inlined_call_operand.vmem [shape: f32[4,48,40], index: 3, kind: input, shape index: {}]
  %s4 = inlined_call_operand.hbm [shape: f32[3,40], index: 4, kind: input, shape index: {}]
  %s5 = inlined_call_operand.vmem [shape: f32[4,40,16], index: 5, kind: input, shape index: {}]
  %s6 = inlined_call_operand.hbm [shape: f32[3,16], index: 6, kind: input, shape index: {}]
  %s7 = inlined_call_operand.hbm [shape: f32[5,16,16], index: 7, kind: input, shape index: {}]
  %s8 = inlined_call_operand.hbm [shape: f32[3,16], index: 8, kind: input, shape index: {}]
  %s9 = inlined_call_operand.hbm [shape: f32[5,16,16], index: 9, kind: input, shape index: {}]
  %s10 = inlined_call_operand.hbm [shape: f32[3,16], index: 10, kind: input, shape index: {}]
  %s11 = inlined_call_operand.hbm [shape: f32[32,16,1024], index: 11, kind: input, shape index: {}]
  %s12 = inlined_call_operand.vmem [shape: f32[512,2], index: 12, kind: input, shape index: {}]
  %s13 = inlined_call_operand.hbm [shape: f32[1,2], index: 13, kind: input, shape index: {}]
  %s14 = inlined_call_operand.hbm [shape: f32[2,1,2], index: 14, kind: output, shape index: {}]
  %s15 = sld [smem:[#allocation0]]
  $region129: #{quantum_forward.1} parent=0
    _
  %s17 = ssub.s32 1, %s15
  %s18 = scalar_select 0, %s17, %s15
  $region1: #{quantum_forward.1} parent=0
    #allocation2 [shape = 'u8[65536]{0}', space=vmem, size = 0x10000, scoped, tag = 'input window, operand 1, single buffered']
    #allocation3 [shape = 's32[2]{0}', space=sflag, size = 0x8, scoped, tag = 'scoped memory for quantum_forward.1']
    #allocation4 [shape = 's32[2]{0}', space=sflag, size = 0x8, scoped, tag = 'scoped memory for quantum_forward.1']
    #allocation5 [shape = 'u8[2048]{0}', space=vmem, size = 0x800, scoped, tag = 'input window, operand 2, single buffered']
    #allocation6 [shape = 's32[1]{0}', space=sflag, size = 0x4, scoped, tag = 'scoped memory for quantum_forward.1']
    #allocation7 [shape = 'u8[2048]{0}', space=vmem, size = 0x800, scoped, tag = 'input window, operand 4, single buffered']
    #allocation8 [shape = 'u8[2048]{0}', space=vmem, size = 0x800, scoped, tag = 'input window, operand 6, single buffered']
    #allocation9 [shape = 's32[1]{0}', space=sflag, size = 0x4, scoped, tag = 'scoped memory for quantum_forward.1']
    #allocation10 [shape = 'u8[40960]{0}', space=vmem, size = 0xa000, scoped, tag = 'input window, operand 7, single buffered']
    #allocation11 [shape = 'u8[2048]{0}', space=vmem, size = 0x800, scoped, tag = 'input window, operand 8, single buffered']
    #allocation12 [shape = 's32[1]{0}', space=sflag, size = 0x4, scoped, tag = 'scoped memory for quantum_forward.1']
    #allocation13 [shape = 'u8[40960]{0}', space=vmem, size = 0xa000, scoped, tag = 'input window, operand 9, single buffered']
    #allocation14 [shape = 'u8[2048]{0}', space=vmem, size = 0x800, scoped, tag = 'input window, operand 10, single buffered']
    #allocation15 [shape = 's32[1]{0}', space=sflag, size = 0x4, scoped, tag = 'scoped memory for quantum_forward.1']
    #allocation16 [shape = 'u8[2097152]{0}', space=vmem, size = 0x200000, scoped, tag = 'input window, operand 11, single buffered']
    #allocation17 [shape = 'u8[512]{0}', space=vmem, size = 0x400, scoped, tag = 'input window, operand 13, single buffered']
    #allocation18 [shape = 's32[1]{0}', space=sflag, size = 0x4, scoped, tag = 'scoped memory for quantum_forward.1']
    #allocation19 [shape = 'u8[1024]{0}', space=vmem, size = 0x400, scoped, tag = 'output window, operand 0']
    %19 = vsyncpa [#allocation3], 0
    %20 = vsyncpa [#allocation6], 0
    %21 = vsyncpa [#allocation9], 0
    %22 = vsyncpa [#allocation12], 0
    %23 = vsyncpa [#allocation15], 0
    %24 = vsyncpa [#allocation18], 0
    %25 = vsyncpa [#allocation4], 0
    %s26 = scalar_lea.sflag [#allocation4], 1
    %27 = vsyncpa %s26, 0
    loop: start=0, step=1, limit=4
    $region2: #{quantum_forward.1} parent=1 // loop_pre_header
      _
    $region3: #{quantum_forward.1} parent=1 // loop_header
      %s29 = sphi 0, %s33
      %p30 = scmp.ge.s32.totalorder %s29, 4
      %s39 = sphi 0, %s41
      %s42 = sphi 0, %s39
      %s43 = sphi 0, %s42
      %s59 = sphi 0, %s43
      %s63 = sphi 0, %s63
      %s65 = sphi 0, %s63
      %s66 = sphi 0, %s65
      %s80 = sphi 0, %s66
      %s84 = sphi 0, %s84
      %s86 = sphi 0, %s84
      %s87 = sphi 0, %s86
      %s101 = sphi 0, %s87
      %s105 = sphi 0, %s105
      %s107 = sphi 0, %s105
      %s108 = sphi 0, %s107
      %s122 = sphi 0, %s108
      %s126 = sphi 0, %s126
      %s128 = sphi 0, %s126
      %s129 = sphi 0, %s128
      %s143 = sphi 0, %s129
      %s147 = sphi 0, %s147
      %s149 = sphi 0, %s147
      %s150 = sphi 0, %s149
      %s164 = sphi 0, %s150
      %s168 = sphi 0, %s168
      %s170 = sphi 0, %s168
      %s171 = sphi 0, %s170
      %s185 = sphi 0, %s171
      %s189 = sphi 0, %s189
      %s191 = sphi 0, %s189
      %s192 = sphi 0, %s191
      %s206 = sphi 0, %s192
      %s210 = sphi 0, %s210
      %s212 = sphi 0, %s210
      %s213 = sphi 0, %s212
      %s227 = sphi 0, %s213
      %s231 = sphi 0, %s231
      %s233 = sphi 0, %s231
      %s234 = sphi 0, %s233
      %s248 = sphi 0, %s234
      %s252 = sphi 0, %s252
      %s254 = sphi 0, %s252
      %s255 = sphi 0, %s254
      %s269 = sphi 0, %s255
      %s273 = sphi 0, %s273
      %s275 = sphi 0, %s273
      %s276 = sphi 0, %s275
      %s290 = sphi 0, %s276
      %s294 = sphi 0, %s294
      %s296 = sphi 0, %s294
      %s297 = sphi 0, %s296
      %s311 = sphi 0, %s297
      %s315 = sphi 0, %s315
      %s317 = sphi 0, %s315
      %s318 = sphi 0, %s317
      %s332 = sphi 0, %s318
      %s338 = sphi 0, %s340
      %s341 = sphi 0, %s338
      %s342 = sphi 0, %s341
      %s358 = sphi 0, %s342
    $region4: #{quantum_forward.1} parent=1 // loop_header_branch
      %32 = sbr.rel (%p30) target = $region8
    $region5: #{quantum_forward.1} parent=1 // loop_body
      %s34 = ssub.s32 %s29, 1
      %s35 = ssub.s32 %s29, 2
      %s36 = sadd.s32 %s29, 1
      %s37 = ssub.s32 %s29, %s36
      %p38 = scmp.eq.s32.totalorder %s37, 0
      %s40 = sadd.s32 %s39, 1
      %s41 = scalar_select %p38, %s39, %s40
      %p44 = pneg %p38
      %p45 = scmp.eq.s32.totalorder %s29, 1
      %p46 = por %p44, %p45
      %p47 = scmp.ne.s32.totalorder %s39, %s42
      %p48 = scmp.eq.s32.totalorder %s29, 0
      %p49 = por %p47, %p48
      %p50 = scmp.ne.s32.totalorder %s39, %s42
      %p51 = scmp.eq.s32.totalorder %s34, 1
      %p52 = por %p50, %p51
      %p53 = scmp.ne.s32.totalorder %s42, %s43
      %p54 = scmp.eq.s32.totalorder %s34, 0
      %p55 = por %p53, %p54
      %p56 = scmp.ne.s32.totalorder %s42, %s43
      %p57 = scmp.eq.s32.totalorder %s35, 1
      %p58 = por %p56, %p57
      %p60 = scmp.ne.s32.totalorder %s43, %s59
      %p61 = scmp.eq.s32.totalorder %s35, 0
      %p62 = por %p60, %p61
      %s64 = sadd.s32 %s63, 1
      %p67 = scmp.eq.s32.totalorder %s29, 1
      %p68 = scmp.ne.s32.totalorder %s63, %s65
      %p69 = scmp.eq.s32.totalorder %s29, 0
      %p70 = por %p68, %p69
      %p71 = scmp.ne.s32.totalorder %s63, %s65
      %p72 = scmp.eq.s32.totalorder %s34, 1
      %p73 = por %p71, %p72
      %p74 = scmp.ne.s32.totalorder %s65, %s66
      %p75 = scmp.eq.s32.totalorder %s34, 0
      %p76 = por %p74, %p75
      %p77 = scmp.ne.s32.totalorder %s65, %s66
      %p78 = scmp.eq.s32.totalorder %s35, 1
      %p79 = por %p77, %p78
      %p81 = scmp.ne.s32.totalorder %s66, %s80
      %p82 = scmp.eq.s32.totalorder %s35, 0
      %p83 = por %p81, %p82
      %s85 = sadd.s32 %s84, 1
      %p88 = scmp.eq.s32.totalorder %s29, 1
      %p89 = scmp.ne.s32.totalorder %s84, %s86
      %p90 = scmp.eq.s32.totalorder %s29, 0
      %p91 = por %p89, %p90
      %p92 = scmp.ne.s32.totalorder %s84, %s86
      %p93 = scmp.eq.s32.totalorder %s34, 1
      %p94 = por %p92, %p93
      %p95 = scmp.ne.s32.totalorder %s86, %s87
      %p96 = scmp.eq.s32.totalorder %s34, 0
      %p97 = por %p95, %p96
      %p98 = scmp.ne.s32.totalorder %s86, %s87
      %p99 = scmp.eq.s32.totalorder %s35, 1
      %p100 = por %p98, %p99
      %p102 = scmp.ne.s32.totalorder %s87, %s101
      %p103 = scmp.eq.s32.totalorder %s35, 0
      %p104 = por %p102, %p103
      %s106 = sadd.s32 %s105, 1
      %p109 = scmp.eq.s32.totalorder %s29, 1
      %p110 = scmp.ne.s32.totalorder %s105, %s107
      %p111 = scmp.eq.s32.totalorder %s29, 0
      %p112 = por %p110, %p111
      %p113 = scmp.ne.s32.totalorder %s105, %s107
      %p114 = scmp.eq.s32.totalorder %s34, 1
      %p115 = por %p113, %p114
      %p116 = scmp.ne.s32.totalorder %s107, %s108
      %p117 = scmp.eq.s32.totalorder %s34, 0
      %p118 = por %p116, %p117
      %p119 = scmp.ne.s32.totalorder %s107, %s108
      %p120 = scmp.eq.s32.totalorder %s35, 1
      %p121 = por %p119, %p120
      %p123 = scmp.ne.s32.totalorder %s108, %s122
      %p124 = scmp.eq.s32.totalorder %s35, 0
      %p125 = por %p123, %p124
      %s127 = sadd.s32 %s126, 1
      %p130 = scmp.eq.s32.totalorder %s29, 1
      %p131 = scmp.ne.s32.totalorder %s126, %s128
      %p132 = scmp.eq.s32.totalorder %s29, 0
      %p133 = por %p131, %p132
      %p134 = scmp.ne.s32.totalorder %s126, %s128
      %p135 = scmp.eq.s32.totalorder %s34, 1
      %p136 = por %p134, %p135
      %p137 = scmp.ne.s32.totalorder %s128, %s129
      %p138 = scmp.eq.s32.totalorder %s34, 0
      %p139 = por %p137, %p138
      %p140 = scmp.ne.s32.totalorder %s128, %s129
      %p141 = scmp.eq.s32.totalorder %s35, 1
      %p142 = por %p140, %p141
      %p144 = scmp.ne.s32.totalorder %s129, %s143
      %p145 = scmp.eq.s32.totalorder %s35, 0
      %p146 = por %p144, %p145
      %s148 = sadd.s32 %s147, 1
      %p151 = scmp.eq.s32.totalorder %s29, 1
      %p152 = scmp.ne.s32.totalorder %s147, %s149
      %p153 = scmp.eq.s32.totalorder %s29, 0
      %p154 = por %p152, %p153
      %p155 = scmp.ne.s32.totalorder %s147, %s149
      %p156 = scmp.eq.s32.totalorder %s34, 1
      %p157 = por %p155, %p156
      %p158 = scmp.ne.s32.totalorder %s149, %s150
      %p159 = scmp.eq.s32.totalorder %s34, 0
      %p160 = por %p158, %p159
      %p161 = scmp.ne.s32.totalorder %s149, %s150
      %p162 = scmp.eq.s32.totalorder %s35, 1
      %p163 = por %p161, %p162
      %p165 = scmp.ne.s32.totalorder %s150, %s164
      %p166 = scmp.eq.s32.totalorder %s35, 0
      %p167 = por %p165, %p166
      %s169 = sadd.s32 %s168, 1
      %p172 = scmp.eq.s32.totalorder %s29, 1
      %p173 = scmp.ne.s32.totalorder %s168, %s170
      %p174 = scmp.eq.s32.totalorder %s29, 0
      %p175 = por %p173, %p174
      %p176 = scmp.ne.s32.totalorder %s168, %s170
      %p177 = scmp.eq.s32.totalorder %s34, 1
      %p178 = por %p176, %p177
      %p179 = scmp.ne.s32.totalorder %s170, %s171
      %p180 = scmp.eq.s32.totalorder %s34, 0
      %p181 = por %p179, %p180
      %p182 = scmp.ne.s32.totalorder %s170, %s171
      %p183 = scmp.eq.s32.totalorder %s35, 1
      %p184 = por %p182, %p183
      %p186 = scmp.ne.s32.totalorder %s171, %s185
      %p187 = scmp.eq.s32.totalorder %s35, 0
      %p188 = por %p186, %p187
      %s190 = sadd.s32 %s189, 1
      %p193 = scmp.eq.s32.totalorder %s29, 1
      %p194 = scmp.ne.s32.totalorder %s189, %s191
      %p195 = scmp.eq.s32.totalorder %s29, 0
      %p196 = por %p194, %p195
      %p197 = scmp.ne.s32.totalorder %s189, %s191
      %p198 = scmp.eq.s32.totalorder %s34, 1
      %p199 = por %p197, %p198
      %p200 = scmp.ne.s32.totalorder %s191, %s192
      %p201 = scmp.eq.s32.totalorder %s34, 0
      %p202 = por %p200, %p201
      %p203 = scmp.ne.s32.totalorder %s191, %s192
      %p204 = scmp.eq.s32.totalorder %s35, 1
      %p205 = por %p203, %p204
      %p207 = scmp.ne.s32.totalorder %s192, %s206
      %p208 = scmp.eq.s32.totalorder %s35, 0
      %p209 = por %p207, %p208
      %s211 = sadd.s32 %s210, 1
      %p214 = scmp.eq.s32.totalorder %s29, 1
      %p215 = scmp.ne.s32.totalorder %s210, %s212
      %p216 = scmp.eq.s32.totalorder %s29, 0
      %p217 = por %p215, %p216
      %p218 = scmp.ne.s32.totalorder %s210, %s212
      %p219 = scmp.eq.s32.totalorder %s34, 1
      %p220 = por %p218, %p219
      %p221 = scmp.ne.s32.totalorder %s212, %s213
      %p222 = scmp.eq.s32.totalorder %s34, 0
      %p223 = por %p221, %p222
      %p224 = scmp.ne.s32.totalorder %s212, %s213
      %p225 = scmp.eq.s32.totalorder %s35, 1
      %p226 = por %p224, %p225
      %p228 = scmp.ne.s32.totalorder %s213, %s227
      %p229 = scmp.eq.s32.totalorder %s35, 0
      %p230 = por %p228, %p229
      %s232 = sadd.s32 %s231, 1
      %p235 = scmp.eq.s32.totalorder %s29, 1
      %p236 = scmp.ne.s32.totalorder %s231, %s233
      %p237 = scmp.eq.s32.totalorder %s29, 0
      %p238 = por %p236, %p237
      %p239 = scmp.ne.s32.totalorder %s231, %s233
      %p240 = scmp.eq.s32.totalorder %s34, 1
      %p241 = por %p239, %p240
      %p242 = scmp.ne.s32.totalorder %s233, %s234
      %p243 = scmp.eq.s32.totalorder %s34, 0
      %p244 = por %p242, %p243
      %p245 = scmp.ne.s32.totalorder %s233, %s234
      %p246 = scmp.eq.s32.totalorder %s35, 1
      %p247 = por %p245, %p246
      %p249 = scmp.ne.s32.totalorder %s234, %s248
      %p250 = scmp.eq.s32.totalorder %s35, 0
      %p251 = por %p249, %p250
      %s253 = sadd.s32 %s252, 1
      %p256 = scmp.eq.s32.totalorder %s29, 1
      %p257 = scmp.ne.s32.totalorder %s252, %s254
      %p258 = scmp.eq.s32.totalorder %s29, 0
      %p259 = por %p257, %p258
      %p260 = scmp.ne.s32.totalorder %s252, %s254
      %p261 = scmp.eq.s32.totalorder %s34, 1
      %p262 = por %p260, %p261
      %p263 = scmp.ne.s32.totalorder %s254, %s255
      %p264 = scmp.eq.s32.totalorder %s34, 0
      %p265 = por %p263, %p264
      %p266 = scmp.ne.s32.totalorder %s254, %s255
      %p267 = scmp.eq.s32.totalorder %s35, 1
      %p268 = por %p266, %p267
      %p270 = scmp.ne.s32.totalorder %s255, %s269
      %p271 = scmp.eq.s32.totalorder %s35, 0
      %p272 = por %p270, %p271
      %s274 = sadd.s32 %s273, 1
      %p277 = scmp.eq.s32.totalorder %s29, 1
      %p278 = scmp.ne.s32.totalorder %s273, %s275
      %p279 = scmp.eq.s32.totalorder %s29, 0
      %p280 = por %p278, %p279
      %p281 = scmp.ne.s32.totalorder %s273, %s275
      %p282 = scmp.eq.s32.totalorder %s34, 1
      %p283 = por %p281, %p282
      %p284 = scmp.ne.s32.totalorder %s275, %s276
      %p285 = scmp.eq.s32.totalorder %s34, 0
      %p286 = por %p284, %p285
      %p287 = scmp.ne.s32.totalorder %s275, %s276
      %p288 = scmp.eq.s32.totalorder %s35, 1
      %p289 = por %p287, %p288
      %p291 = scmp.ne.s32.totalorder %s276, %s290
      %p292 = scmp.eq.s32.totalorder %s35, 0
      %p293 = por %p291, %p292
      %s295 = sadd.s32 %s294, 1
      %p298 = scmp.eq.s32.totalorder %s29, 1
      %p299 = scmp.ne.s32.totalorder %s294, %s296
      %p300 = scmp.eq.s32.totalorder %s29, 0
      %p301 = por %p299, %p300
      %p302 = scmp.ne.s32.totalorder %s294, %s296
      %p303 = scmp.eq.s32.totalorder %s34, 1
      %p304 = por %p302, %p303
      %p305 = scmp.ne.s32.totalorder %s296, %s297
      %p306 = scmp.eq.s32.totalorder %s34, 0
      %p307 = por %p305, %p306
      %p308 = scmp.ne.s32.totalorder %s296, %s297
      %p309 = scmp.eq.s32.totalorder %s35, 1
      %p310 = por %p308, %p309
      %p312 = scmp.ne.s32.totalorder %s297, %s311
      %p313 = scmp.eq.s32.totalorder %s35, 0
      %p314 = por %p312, %p313
      %s316 = sadd.s32 %s315, 1
      %p319 = scmp.eq.s32.totalorder %s29, 1
      %p320 = scmp.ne.s32.totalorder %s315, %s317
      %p321 = scmp.eq.s32.totalorder %s29, 0
      %p322 = por %p320, %p321
      %p323 = scmp.ne.s32.totalorder %s315, %s317
      %p324 = scmp.eq.s32.totalorder %s34, 1
      %p325 = por %p323, %p324
      %p326 = scmp.ne.s32.totalorder %s317, %s318
      %p327 = scmp.eq.s32.totalorder %s34, 0
      %p328 = por %p326, %p327
      %p329 = scmp.ne.s32.totalorder %s317, %s318
      %p330 = scmp.eq.s32.totalorder %s35, 1
      %p331 = por %p329, %p330
      %p333 = scmp.ne.s32.totalorder %s318, %s332
      %p334 = scmp.eq.s32.totalorder %s35, 0
      %p335 = por %p333, %p334
      %s336 = ssub.s32 %s29, %s36
      %p337 = scmp.eq.s32.totalorder %s336, 0
      %s339 = sadd.s32 %s338, 1
      %s340 = scalar_select %p337, %s338, %s339
      %p343 = pneg %p337
      %p344 = scmp.eq.s32.totalorder %s29, 1
      %p345 = por %p343, %p344
      %p346 = scmp.ne.s32.totalorder %s338, %s341
      %p347 = scmp.eq.s32.totalorder %s29, 0
      %p348 = por %p346, %p347
      %p349 = scmp.ne.s32.totalorder %s338, %s341
      %p350 = scmp.eq.s32.totalorder %s34, 1
      %p351 = por %p349, %p350
      %p352 = scmp.ne.s32.totalorder %s341, %s342
      %p353 = scmp.eq.s32.totalorder %s34, 0
      %p354 = por %p352, %p353
      %p355 = scmp.ne.s32.totalorder %s341, %s342
      %p356 = scmp.eq.s32.totalorder %s35, 1
      %p357 = por %p355, %p356
      %p359 = scmp.ne.s32.totalorder %s342, %s358
      %p360 = scmp.eq.s32.totalorder %s35, 0
      %p361 = por %p359, %p360
      %p362 = scmp.le.s32.totalorder 1, %s29
      %p363 = scmp.lt.s32.totalorder %s29, 3
      %p364 = pnand %p362, %p363
      %p365 = pneg %p364
      // Predicated region
      $region9: #{quantum_forward.1} parent=5 // pred_check
        _
      $region10: #{quantum_forward.1} parent=5 // pred_check_branch
        %367 = sbr.rel (%p364) target = $region12
      $region11: #{quantum_forward.1} parent=5 // pred_region
        %s368 = ssub.s32 %s29, 1
        // Predicated region
        $region13: #{quantum_forward.1} parent=11 // pred_check
          %p369 = pneg %p76
        $region14: #{quantum_forward.1} parent=11 // pred_check_branch
          %371 = sbr.rel (%p369) target = $region16
        $region15: #{quantum_forward.1} parent=11 // pred_region
          %373 = vsyncadd [#allocation3], 0
          %s374 = sshll.u32 %s1, 4
          %s375 = int_to_ptr.hbm [resolvable:$true] %s374
          %s376 = sshll.u32 [#allocation2], 4
          %s377 = int_to_ptr.vmem [resolvable:$true] %s376
          %382 = dma.hbm_to_vmem [thread:$0]  %s375, 2048, %s377, [#allocation3], 128, 128, 8
        $region16: #{quantum_forward.1} parent=11 // pred_fallthru
          _
        // Predicated region
        $region17: #{quantum_forward.1} parent=11 // pred_check
          %p383 = pneg %p97
        $region18: #{quantum_forward.1} parent=11 // pred_check_branch
          %385 = sbr.rel (%p383) target = $region20
        $region19: #{quantum_forward.1} parent=11 // pred_region
          %387 = vsyncadd [#allocation6], 0
          %s389 = sshll.u32 %s2, 4
          %s390 = int_to_ptr.hbm [resolvable:$true] %s389
          %s391 = sshll.u32 [#allocation5], 4
          %s392 = int_to_ptr.vmem [resolvable:$true] %s391
          %394 = dma.hbm_to_vmem [thread:$0]  %s390, 64, %s392, [#allocation6]
        $region20: #{quantum_forward.1} parent=11 // pred_fallthru
          _
        // Predicated region
        $region21: #{quantum_forward.1} parent=11 // pred_check
          %p395 = pneg %p118
        $region22: #{quantum_forward.1} parent=11 // pred_check_branch
          %397 = sbr.rel (%p395) target = $region24
        $region23: #{quantum_forward.1} parent=11 // pred_region
          _
        $region24: #{quantum_forward.1} parent=11 // pred_fallthru
          _
        // Predicated region
        $region25: #{quantum_forward.1} parent=11 // pred_check
          %p398 = pneg %p139
        $region26: #{quantum_forward.1} parent=11 // pred_check_branch
          %400 = sbr.rel (%p398) target = $region28
        $region27: #{quantum_forward.1} parent=11 // pred_region
          %402 = vsyncadd [#allocation6], 0
          %s404 = sshll.u32 %s4, 4
          %s405 = int_to_ptr.hbm [resolvable:$true] %s404
          %s406 = sshll.u32 [#allocation7], 4
          %s407 = int_to_ptr.vmem [resolvable:$true] %s406
          %409 = dma.hbm_to_vmem [thread:$0]  %s405, 64, %s407, [#allocation6]
        $region28: #{quantum_forward.1} parent=11 // pred_fallthru
          _
        // Predicated region
        $region29: #{quantum_forward.1} parent=11 // pred_check
          %p410 = pneg %p160
        $region30: #{quantum_forward.1} parent=11 // pred_check_branch
          %412 = sbr.rel (%p410) target = $region32
        $region31: #{quantum_forward.1} parent=11 // pred_region
          _
        $region32: #{quantum_forward.1} parent=11 // pred_fallthru
          _
        // Predicated region
        $region33: #{quantum_forward.1} parent=11 // pred_check
          %p413 = pneg %p181
        $region34: #{quantum_forward.1} parent=11 // pred_check_branch
          %415 = sbr.rel (%p413) target = $region36
        $region35: #{quantum_forward.1} parent=11 // pred_region
          %417 = vsyncadd [#allocation9], 0
          %s419 = sshll.u32 %s6, 4
          %s420 = int_to_ptr.hbm [resolvable:$true] %s419
          %s421 = sshll.u32 [#allocation8], 4
          %s422 = int_to_ptr.vmem [resolvable:$true] %s421
          %424 = dma.hbm_to_vmem [thread:$0]  %s420, 64, %s422, [#allocation9]
        $region36: #{quantum_forward.1} parent=11 // pred_fallthru
          _
        // Predicated region
        $region37: #{quantum_forward.1} parent=11 // pred_check
          %p425 = pneg %p202
        $region38: #{quantum_forward.1} parent=11 // pred_check_branch
          %427 = sbr.rel (%p425) target = $region40
        $region39: #{quantum_forward.1} parent=11 // pred_region
          %429 = vsyncadd [#allocation9], 0
          %s430 = sshll.u32 %s7, 4
          %s431 = int_to_ptr.hbm [resolvable:$true] %s430
          %s432 = sshll.u32 [#allocation10], 4
          %s433 = int_to_ptr.vmem [resolvable:$true] %s432
          %438 = dma.hbm_to_vmem [thread:$0]  %s431, 1280, %s433, [#allocation9], 128, 128, 8
        $region40: #{quantum_forward.1} parent=11 // pred_fallthru
          _
        // Predicated region
        $region41: #{quantum_forward.1} parent=11 // pred_check
          %p439 = pneg %p223
        $region42: #{quantum_forward.1} parent=11 // pred_check_branch
          %441 = sbr.rel (%p439) target = $region44
        $region43: #{quantum_forward.1} parent=11 // pred_region
          %443 = vsyncadd [#allocation12], 0
          %s445 = sshll.u32 %s8, 4
          %s446 = int_to_ptr.hbm [resolvable:$true] %s445
          %s447 = sshll.u32 [#allocation11], 4
          %s448 = int_to_ptr.vmem [resolvable:$true] %s447
          %450 = dma.hbm_to_vmem [thread:$0]  %s446, 64, %s448, [#allocation12]
        $region44: #{quantum_forward.1} parent=11 // pred_fallthru
          _
        // Predicated region
        $region45: #{quantum_forward.1} parent=11 // pred_check
          %p451 = pneg %p244
        $region46: #{quantum_forward.1} parent=11 // pred_check_branch
          %453 = sbr.rel (%p451) target = $region48
        $region47: #{quantum_forward.1} parent=11 // pred_region
          %455 = vsyncadd [#allocation12], 0
          %s456 = sshll.u32 %s9, 4
          %s457 = int_to_ptr.hbm [resolvable:$true] %s456
          %s458 = sshll.u32 [#allocation13], 4
          %s459 = int_to_ptr.vmem [resolvable:$true] %s458
          %464 = dma.hbm_to_vmem [thread:$0]  %s457, 1280, %s459, [#allocation12], 128, 128, 8
        $region48: #{quantum_forward.1} parent=11 // pred_fallthru
          _
        // Predicated region
        $region49: #{quantum_forward.1} parent=11 // pred_check
          %p465 = pneg %p265
        $region50: #{quantum_forward.1} parent=11 // pred_check_branch
          %467 = sbr.rel (%p465) target = $region52
        $region51: #{quantum_forward.1} parent=11 // pred_region
          %469 = vsyncadd [#allocation15], 0
          %s471 = sshll.u32 %s10, 4
          %s472 = int_to_ptr.hbm [resolvable:$true] %s471
          %s473 = sshll.u32 [#allocation14], 4
          %s474 = int_to_ptr.vmem [resolvable:$true] %s473
          %476 = dma.hbm_to_vmem [thread:$0]  %s472, 64, %s474, [#allocation15]
        $region52: #{quantum_forward.1} parent=11 // pred_fallthru
          _
        // Predicated region
        $region53: #{quantum_forward.1} parent=11 // pred_check
          %p477 = pneg %p286
        $region54: #{quantum_forward.1} parent=11 // pred_check_branch
          %479 = sbr.rel (%p477) target = $region56
        $region55: #{quantum_forward.1} parent=11 // pred_region
          %481 = vsyncadd [#allocation15], 0
          %s482 = sshll.u32 %s11, 4
          %s483 = int_to_ptr.hbm [resolvable:$true] %s482
          %s484 = sshll.u32 [#allocation16], 4
          %s485 = int_to_ptr.vmem [resolvable:$true] %s484
          %490 = dma.hbm_to_vmem [thread:$0]  %s483, 65536, %s485, [#allocation15], 1024, 1024, 64
        $region56: #{quantum_forward.1} parent=11 // pred_fallthru
          _
        // Predicated region
        $region57: #{quantum_forward.1} parent=11 // pred_check
          %p491 = pneg %p307
        $region58: #{quantum_forward.1} parent=11 // pred_check_branch
          %493 = sbr.rel (%p491) target = $region60
        $region59: #{quantum_forward.1} parent=11 // pred_region
          _
        $region60: #{quantum_forward.1} parent=11 // pred_fallthru
          _
        // Predicated region
        $region61: #{quantum_forward.1} parent=11 // pred_check
          %p494 = pneg %p328
        $region62: #{quantum_forward.1} parent=11 // pred_check_branch
          %496 = sbr.rel (%p494) target = $region64
        $region63: #{quantum_forward.1} parent=11 // pred_region
          %498 = vsyncadd [#allocation18], 0
          %s500 = sshll.u32 %s13, 4
          %s501 = int_to_ptr.hbm [resolvable:$true] %s500
          %s502 = sshll.u32 [#allocation17], 4
          %s503 = int_to_ptr.vmem [resolvable:$true] %s502
          %505 = dma.hbm_to_vmem [thread:$0]  %s501, 16, %s503, [#allocation18]
        $region64: #{quantum_forward.1} parent=11 // pred_fallthru
          _
      $region12: #{quantum_forward.1} parent=5 // pred_fallthru
        _
      %p506 = scmp.lt.s32.totalorder %s29, 2
      // Predicated region
      $region65: #{quantum_forward.1} parent=5 // pred_check
        %p507 = pneg %p506
      $region66: #{quantum_forward.1} parent=5 // pred_check_branch
        %509 = sbr.rel (%p507) target = $region68
      $region67: #{quantum_forward.1} parent=5 // pred_region
        // Predicated region
        $region69: #{quantum_forward.1} parent=67 // pred_check
          %p510 = pneg %p49
        $region70: #{quantum_forward.1} parent=67 // pred_check_branch
          %512 = sbr.rel (%p510) target = $region72
        $region71: #{quantum_forward.1} parent=67 // pred_region
          %p513 = scmp.lt.s32.totalorder %s29, 1
          %s514 = scalar_select %p513, %s29, 1
          %s515 = smul.addr %s514, 6
          %s516 = smul.addr %s515, 8
          %s517 = scalar_lea.vmem %s0, %s516
        $region72: #{quantum_forward.1} parent=67 // pred_fallthru
          _
      $region68: #{quantum_forward.1} parent=5 // pred_fallthru
        _
      %p518 = scmp.le.s32.totalorder 1, %s29
      %p519 = scmp.lt.s32.totalorder %s29, 3
      %p520 = pnand %p518, %p519
      %p521 = pneg %p520
      // Predicated region
      $region73: #{quantum_forward.1} parent=5 // pred_check
        _
      $region74: #{quantum_forward.1} parent=5 // pred_check_branch
        %523 = sbr.rel (%p520) target = $region76
      $region75: #{quantum_forward.1} parent=5 // pred_region
        %s524 = ssub.s32 %s29, 1
        // Predicated region
        $region77: #{quantum_forward.1} parent=75 // pred_check
          %p525 = pneg %p76
        $region78: #{quantum_forward.1} parent=75 // pred_check_branch
          %527 = sbr.rel (%p525) target = $region80
        $region79: #{quantum_forward.1} parent=75 // pred_region
          %529 = dma.done [#allocation3], 2048
        $region80: #{quantum_forward.1} parent=75 // pred_fallthru
          _
        // Predicated region
        $region81: #{quantum_forward.1} parent=75 // pred_check
          %p530 = pneg %p97
        $region82: #{quantum_forward.1} parent=75 // pred_check_branch
          %532 = sbr.rel (%p530) target = $region84
        $region83: #{quantum_forward.1} parent=75 // pred_region
          %534 = dma.done [#allocation6], 64
        $region84: #{quantum_forward.1} parent=75 // pred_fallthru
          _
        // Predicated region
        $region85: #{quantum_forward.1} parent=75 // pred_check
          %p535 = pneg %p139
        $region86: #{quantum_forward.1} parent=75 // pred_check_branch
          %537 = sbr.rel (%p535) target = $region88
        $region87: #{quantum_forward.1} parent=75 // pred_region
          %539 = dma.done [#allocation6], 64
        $region88: #{quantum_forward.1} parent=75 // pred_fallthru
          _
        // Predicated region
        $region89: #{quantum_forward.1} parent=75 // pred_check
          %p540 = pneg %p181
        $region90: #{quantum_forward.1} parent=75 // pred_check_branch
          %542 = sbr.rel (%p540) target = $region92
        $region91: #{quantum_forward.1} parent=75 // pred_region
          %544 = dma.done [#allocation9], 64
        $region92: #{quantum_forward.1} parent=75 // pred_fallthru
          _
        // Predicated region
        $region93: #{quantum_forward.1} parent=75 // pred_check
          %p545 = pneg %p202
        $region94: #{quantum_forward.1} parent=75 // pred_check_branch
          %547 = sbr.rel (%p545) target = $region96
        $region95: #{quantum_forward.1} parent=75 // pred_region
          %549 = dma.done [#allocation9], 1280
        $region96: #{quantum_forward.1} parent=75 // pred_fallthru
          _
        // Predicated region
        $region97: #{quantum_forward.1} parent=75 // pred_check
          %p550 = pneg %p223
        $region98: #{quantum_forward.1} parent=75 // pred_check_branch
          %552 = sbr.rel (%p550) target = $region100
        $region99: #{quantum_forward.1} parent=75 // pred_region
          %554 = dma.done [#allocation12], 64
        $region100: #{quantum_forward.1} parent=75 // pred_fallthru
          _
        // Predicated region
        $region101: #{quantum_forward.1} parent=75 // pred_check
          %p555 = pneg %p244
        $region102: #{quantum_forward.1} parent=75 // pred_check_branch
          %557 = sbr.rel (%p555) target = $region104
        $region103: #{quantum_forward.1} parent=75 // pred_region
          %559 = dma.done [#allocation12], 1280
        $region104: #{quantum_forward.1} parent=75 // pred_fallthru
          _
        // Predicated region
        $region105: #{quantum_forward.1} parent=75 // pred_check
          %p560 = pneg %p265
        $region106: #{quantum_forward.1} parent=75 // pred_check_branch
          %562 = sbr.rel (%p560) target = $region108
        $region107: #{quantum_forward.1} parent=75 // pred_region
          %564 = dma.done [#allocation15], 64
        $region108: #{quantum_forward.1} parent=75 // pred_fallthru
          _
        // Predicated region
        $region109: #{quantum_forward.1} parent=75 // pred_check
          %p565 = pneg %p286
        $region110: #{quantum_forward.1} parent=75 // pred_check_branch
          %567 = sbr.rel (%p565) target = $region112
        $region111: #{quantum_forward.1} parent=75 // pred_region
          %569 = dma.done [#allocation15], 65536
        $region112: #{quantum_forward.1} parent=75 // pred_fallthru
          _
        // Predicated region
        $region113: #{quantum_forward.1} parent=75 // pred_check
          %p570 = pneg %p328
        $region114: #{quantum_forward.1} parent=75 // pred_check_branch
          %572 = sbr.rel (%p570) target = $region116
        $region115: #{quantum_forward.1} parent=75 // pred_region
          %574 = dma.done [#allocation18], 16
        $region116: #{quantum_forward.1} parent=75 // pred_fallthru
          _
        %p575 = scmp.lt.s32.totalorder %s34, 1
        %s576 = scalar_select %p575, %s34, 1
        %s577 = smul.addr %s576, 6
        %s578 = smul.addr %s577, 8
        %s579 = scalar_lea.vmem %s0, %s578
        %p580 = pneg %p55
        %p581 = pneg %p52
        %p582 = pneg %p76
        %p583 = pneg %p73
        %p584 = pneg %p97
        %p585 = pneg %p94
        %p586 = pneg %p118
        %p587 = pneg %p115
        %p588 = pneg %p139
        %p589 = pneg %p136
        %p590 = pneg %p160
        %p591 = pneg %p157
        %p592 = pneg %p181
        %p593 = pneg %p178
        %p594 = pneg %p202
        %p595 = pneg %p199
        %p596 = pneg %p223
        %p597 = pneg %p220
        %p598 = pneg %p244
        %p599 = pneg %p241
        %p600 = pneg %p265
        %p601 = pneg %p262
        %p602 = pneg %p286
        %p603 = pneg %p283
        %p604 = pneg %p307
        %p605 = pneg %p304
        %p606 = pneg %p328
        %p607 = pneg %p325
        %p608 = pneg %p354
        %p609 = pneg %p351
        %s610 = sand.u32 %s341, 1
        %s611 = scalar_lea.sflag [#allocation4], %s610
        %s612 = sand.u32 %s341, 1
        %s613 = scalar_lea.vmem [#allocation19], %s612
        %p614 = scmp.lt.s32.totalorder %s34, 1
        %s615 = scalar_select %p614, %s34, 1
        %s616 = smul.addr %s615, 6
        %s617 = smul.addr %s616, 8
        %s618 = scalar_lea.vmem %s0, %s617
        %v619 = vld [vmem:[%s618] sm:$0xff]
        %v620 = vld [vmem:[%s618 + $0x8] sm:$0xff]
        %v621 = vld [vmem:[%s618 + $0x10] sm:$0xff]
        %v622 = vld [vmem:[%s618 + $0x18] sm:$0xff]
        %v623 = vld [vmem:[%s618 + $0x20] sm:$0xff]
        %v624 = vld [vmem:[%s618 + $0x28] sm:$0x1]
        %v625 = vld [vmem:[#allocation2] sm:$0xff]
        %v626 = vld [vmem:[#allocation2 + $0x8] sm:$0xff]
        %v627 = vld [vmem:[#allocation2 + $0x10] sm:$0xff]
        %v628 = vld [vmem:[#allocation2 + $0x18] sm:$0xff]
        %s629 = scalar_lea.vmem [#allocation2], 32
        %v630 = vld [vmem:[%s629] sm:$0xff]
        %v631 = vld [vmem:[%s629 + $0x8] sm:$0xff]
        %v632 = vld [vmem:[%s629 + $0x10] sm:$0xff]
        %v633 = vld [vmem:[%s629 + $0x18] sm:$0xff]
        %vm640 = vcmask 1046528
        %v641 = vrot.slane %v619, 1
        %v642 = vrot.slane %v620, 1
        %v643 = vsel %vm640, %v641, %v642
        %v644 = vrot.slane %v621, 1
        %v645 = vsel %vm640, %v642, %v644
        %v646 = vrot.slane %v622, 1
        %v647 = vsel %vm640, %v644, %v646
        %v648 = vrot.slane %v623, 1
        %v649 = vsel %vm640, %v646, %v648
        %v650 = vrot.slane %v624, 1
        %v651 = vsel %vm640, %v648, %v650
        %vm652 = vcmask 261120
        %v653 = vsel %vm652, %v643, 0
        %v655 = vsel %vm652, %v645, 0
        %v657 = vsel %vm652, %v647, 0
        %v659 = vsel %vm652, %v649, 0
        %v661 = vsel %vm652, %v651, 0
        %663 = vmatpush.msra.mxu0 0.0
        %664 = vmatpush.msra.mxu0 0.0
        %665 = vmatpush.msra.mxu0 0.0
        %666 = vmatpush.msra.mxu0 0.0
        %667 = vmatpush.msra.mxu0 0.0
        %668 = vmatpush.msra.mxu0 0.0
        %669 = vmatpush.msra.mxu0 0.0
        %670 = vmatpush.msra.mxu0 0.0
        %671 = vmatpush.msra.mxu0 0.0
        %672 = vmatpush.msra.mxu0 0.0
        %673 = vmatpush.msra.mxu0 0.0
        %674 = vmatpush.msra.mxu0 0.0
        %675 = vmatpush.msra.mxu0 %v633
        %676 = vmatpush.msra.mxu0 %v632
        %677 = vmatpush.msra.mxu0 %v631
        %678 = vmatpush.msra.mxu0 %v630
        %679 = vmatmul.f32.gmra.mxu0 %v653
        %v680 = vpop.f32.mrf.mxu0
        %v681 = vadd.f32 0.0, %v680
        %682 = vmatmul.f32.gmra.mxu0 %v655
        %v683 = vpop.f32.mrf.mxu0
        %v684 = vadd.f32 0.0, %v683
        %685 = vmatmul.f32.gmra.mxu0 %v657
        %v686 = vpop.f32.mrf.mxu0
        %v687 = vadd.f32 0.0, %v686
        %688 = vmatmul.f32.gmra.mxu0 %v659
        %v689 = vpop.f32.mrf.mxu0
        %v690 = vadd.f32 0.0, %v689
        %691 = vmatmul.f32.gmra.mxu0 %v661
        %v692 = vpop.f32.mrf.mxu0
        %v693 = vadd.f32 0.0, %v692
        %694 = vdwg.mxu0
        %v695 = vsel %vm652, %v619, 0
        %v697 = vsel %vm652, %v620, 0
        %v699 = vsel %vm652, %v621, 0
        %v701 = vsel %vm652, %v622, 0
        %v703 = vsel %vm652, %v623, 0
        %705 = vmatpush.msra.mxu0 0.0
        %706 = vmatpush.msra.mxu0 0.0
        %707 = vmatpush.msra.mxu0 0.0
        %708 = vmatpush.msra.mxu0 0.0
        %709 = vmatpush.msra.mxu0 0.0
        %710 = vmatpush.msra.mxu0 0.0
        %711 = vmatpush.msra.mxu0 0.0
        %712 = vmatpush.msra.mxu0 0.0
        %713 = vmatpush.msra.mxu0 0.0
        %714 = vmatpush.msra.mxu0 0.0
        %715 = vmatpush.msra.mxu0 0.0
        %716 = vmatpush.msra.mxu0 0.0
        %717 = vmatpush.msra.mxu0 %v628
        %718 = vmatpush.msra.mxu0 %v627
        %719 = vmatpush.msra.mxu0 %v626
        %720 = vmatpush.msra.mxu0 %v625
        %721 = vmatmul.f32.gmra.mxu0 %v695
        %v722 = vpop.f32.mrf.mxu0
        %v723 = vadd.f32 %v681, %v722
        %724 = vmatmul.f32.gmra.mxu0 %v697
        %v725 = vpop.f32.mrf.mxu0
        %v726 = vadd.f32 %v684, %v725
        %727 = vmatmul.f32.gmra.mxu0 %v699
        %v728 = vpop.f32.mrf.mxu0
        %v729 = vadd.f32 %v687, %v728
        %730 = vmatmul.f32.gmra.mxu0 %v701
        %v731 = vpop.f32.mrf.mxu0
        %v732 = vadd.f32 %v690, %v731
        %733 = vmatmul.f32.gmra.mxu0 %v703
        %v734 = vpop.f32.mrf.mxu0
        %v735 = vadd.f32 %v693, %v734
        %736 = vdwg.mxu0
        %s737 = scalar_lea.vmem [#allocation2], 64
        %v738 = vld [vmem:[%s737] sm:$0xff]
        %v739 = vld [vmem:[%s737 + $0x8] sm:$0xff]
        %v740 = vld [vmem:[%s737 + $0x10] sm:$0xff]
        %v741 = vld [vmem:[%s737 + $0x18] sm:$0xff]
        %s742 = scalar_lea.vmem [#allocation2], 96
        %v743 = vld [vmem:[%s742] sm:$0xff]
        %v744 = vld [vmem:[%s742 + $0x8] sm:$0xff]
        %v745 = vld [vmem:[%s742 + $0x10] sm:$0xff]
        %v746 = vld [vmem:[%s742 + $0x18] sm:$0xff]
        %747 = vmatpush.msra.mxu0 0.0
        %748 = vmatpush.msra.mxu0 0.0
        %749 = vmatpush.msra.mxu0 0.0
        %750 = vmatpush.msra.mxu0 0.0
        %751 = vmatpush.msra.mxu0 0.0
        %752 = vmatpush.msra.mxu0 0.0
        %753 = vmatpush.msra.mxu0 0.0
        %754 = vmatpush.msra.mxu0 0.0
        %755 = vmatpush.msra.mxu0 0.0
        %756 = vmatpush.msra.mxu0 0.0
        %757 = vmatpush.msra.mxu0 0.0
        %758 = vmatpush.msra.mxu0 0.0
        %759 = vmatpush.msra.mxu0 %v746
        %760 = vmatpush.msra.mxu0 %v745
        %761 = vmatpush.msra.mxu0 %v744
        %762 = vmatpush.msra.mxu0 %v743
        %763 = vmatmul.f32.gmra.mxu0 %v653
        %v764 = vpop.f32.mrf.mxu0
        %v765 = vadd.f32 0.0, %v764
        %766 = vmatmul.f32.gmra.mxu0 %v655
        %v767 = vpop.f32.mrf.mxu0
        %v768 = vadd.f32 0.0, %v767
        %769 = vmatmul.f32.gmra.mxu0 %v657
        %v770 = vpop.f32.mrf.mxu0
        %v771 = vadd.f32 0.0, %v770
        %772 = vmatmul.f32.gmra.mxu0 %v659
        %v773 = vpop.f32.mrf.mxu0
        %v774 = vadd.f32 0.0, %v773
        %775 = vmatmul.f32.gmra.mxu0 %v661
        %v776 = vpop.f32.mrf.mxu0
        %v777 = vadd.f32 0.0, %v776
        %778 = vdwg.mxu0
        %779 = vmatpush.msra.mxu0 0.0
        %780 = vmatpush.msra.mxu0 0.0
        %781 = vmatpush.msra.mxu0 0.0
        %782 = vmatpush.msra.mxu0 0.0
        %783 = vmatpush.msra.mxu0 0.0
        %784 = vmatpush.msra.mxu0 0.0
        %785 = vmatpush.msra.mxu0 0.0
        %786 = vmatpush.msra.mxu0 0.0
        %787 = vmatpush.msra.mxu0 0.0
        %788 = vmatpush.msra.mxu0 0.0
        %789 = vmatpush.msra.mxu0 0.0
        %790 = vmatpush.msra.mxu0 0.0
        %791 = vmatpush.msra.mxu0 %v741
        %792 = vmatpush.msra.mxu0 %v740
        %793 = vmatpush.msra.mxu0 %v739
        %794 = vmatpush.msra.mxu0 %v738
        %795 = vmatmul.f32.gmra.mxu0 %v695
        %v796 = vpop.f32.mrf.mxu0
        %v797 = vadd.f32 %v765, %v796
        %798 = vmatmul.f32.gmra.mxu0 %v697
        %v799 = vpop.f32.mrf.mxu0
        %v800 = vadd.f32 %v768, %v799
        %801 = vmatmul.f32.gmra.mxu0 %v699
        %v802 = vpop.f32.mrf.mxu0
        %v803 = vadd.f32 %v771, %v802
        %804 = vmatmul.f32.gmra.mxu0 %v701
        %v805 = vpop.f32.mrf.mxu0
        %v806 = vadd.f32 %v774, %v805
        %807 = vmatmul.f32.gmra.mxu0 %v703
        %v808 = vpop.f32.mrf.mxu0
        %v809 = vadd.f32 %v777, %v808
        %810 = vdwg.mxu0
        %v811 = vld [vmem:[#allocation5] sm:$0x1]
        %v812 = vld [vmem:[#allocation5 + $0x1] sm:$0x1]
        %v813 = vld [vmem:[#allocation5 + $0x2] sm:$0x1]
        %v814 = vperm.slane %v811, 0
        %v815 = vadd.f32 %v723, %v814
        %v816 = vadd.f32 %v726, %v814
        %v817 = vadd.f32 %v729, %v814
        %v818 = vadd.f32 %v732, %v814
        %v819 = vadd.f32 %v735, %v814
        %v820 = vmax.f32 %v815, 0.0
        %v821 = vmax.f32 %v816, 0.0
        %v822 = vmax.f32 %v817, 0.0
        %v823 = vmax.f32 %v818, 0.0
        %v824 = vmax.f32 %v819, 0.0
        %v825 = vperm.slane %v812, 0
        %v826 = vmul.f32 %v820, %v825
        %v827 = vmul.f32 %v821, %v825
        %v828 = vmul.f32 %v822, %v825
        %v829 = vmul.f32 %v823, %v825
        %v830 = vmul.f32 %v824, %v825
        %v831 = vperm.slane %v813, 0
        %v832 = vadd.f32 %v826, %v831
        %v833 = vadd.f32 %v827, %v831
        %v834 = vadd.f32 %v828, %v831
        %v835 = vadd.f32 %v829, %v831
        %v836 = vadd.f32 %v830, %v831
        %v837 = vadd.f32 %v797, %v814
        %v838 = vadd.f32 %v800, %v814
        %v839 = vadd.f32 %v803, %v814
        %v840 = vadd.f32 %v806, %v814
        %v841 = vadd.f32 %v809, %v814
        %v842 = vmax.f32 %v837, 0.0
        %v843 = vmax.f32 %v838, 0.0
        %v844 = vmax.f32 %v839, 0.0
        %v845 = vmax.f32 %v840, 0.0
        %v846 = vmax.f32 %v841, 0.0
        %v847 = vmul.f32 %v842, %v825
        %v848 = vmul.f32 %v843, %v825
        %v849 = vmul.f32 %v844, %v825
        %v850 = vmul.f32 %v845, %v825
        %v851 = vmul.f32 %v846, %v825
        %v852 = vadd.f32 %v847, %v831
        %v853 = vadd.f32 %v848, %v831
        %v854 = vadd.f32 %v849, %v831
        %v855 = vadd.f32 %v850, %v831
        %v856 = vadd.f32 %v851, %v831
        %v857 = vmax.f32 %v832, %v852
        %v858 = vmax.f32 %v833, %v853
        %v859 = vmax.f32 %v834, %v854
        %v860 = vmax.f32 %v835, %v855
        %v861 = vmax.f32 %v836, %v856
        %v862 = vld [vmem:[%s3] sm:$0xff]
        %v863 = vld [vmem:[%s3 + $0x8] sm:$0xff]
        %v864 = vld [vmem:[%s3 + $0x10] sm:$0xff]
        %v865 = vld [vmem:[%s3 + $0x18] sm:$0xff]
        %v866 = vld [vmem:[%s3 + $0x20] sm:$0xff]
        %v867 = vld [vmem:[%s3 + $0x28] sm:$0xff]
        %s868 = scalar_lea.vmem %s3, 48
        %v869 = vld [vmem:[%s868] sm:$0xff]
        %v870 = vld [vmem:[%s868 + $0x8] sm:$0xff]
        %v871 = vld [vmem:[%s868 + $0x10] sm:$0xff]
        %v872 = vld [vmem:[%s868 + $0x18] sm:$0xff]
        %v873 = vld [vmem:[%s868 + $0x20] sm:$0xff]
        %v874 = vld [vmem:[%s868 + $0x28] sm:$0xff]
        %v880 = vrot.slane %v857, 1
        %v881 = vrot.slane %v858, 1
        %v882 = vsel %vm640, %v880, %v881
        %v883 = vrot.slane %v859, 1
        %v884 = vsel %vm640, %v881, %v883
        %v885 = vrot.slane %v860, 1
        %v886 = vsel %vm640, %v883, %v885
        %v887 = vrot.slane %v861, 1
        %v888 = vsel %vm640, %v885, %v887
        %vm889 = vcmask 392192
        %v890 = vsel %vm889, %v882, 0
        %v892 = vsel %vm889, %v884, 0
        %v894 = vsel %vm889, %v886, 0
        %v896 = vsel %vm889, %v888, 0
        %v898 = vsel %vm889, %v887, 0
        %900 = vmatpush.msra.mxu0 0.0
        %901 = vmatpush.msra.mxu0 0.0
        %902 = vmatpush.msra.mxu0 0.0
        %903 = vmatpush.msra.mxu0 0.0
        %904 = vmatpush.msra.mxu0 0.0
        %905 = vmatpush.msra.mxu0 0.0
        %906 = vmatpush.msra.mxu0 0.0
        %907 = vmatpush.msra.mxu0 0.0
        %908 = vmatpush.msra.mxu0 0.0
        %909 = vmatpush.msra.mxu0 0.0
        %910 = vmatpush.msra.mxu0 %v874
        %911 = vmatpush.msra.mxu0 %v873
        %912 = vmatpush.msra.mxu0 %v872
        %913 = vmatpush.msra.mxu0 %v871
        %914 = vmatpush.msra.mxu0 %v870
        %915 = vmatpush.msra.mxu0 %v869
        %916 = vmatmul.f32.gmra.mxu0 %v890
        %v917 = vpop.f32.mrf.mxu0
        %v918 = vadd.f32 0.0, %v917
        %919 = vmatmul.f32.gmra.mxu0 %v892
        %v920 = vpop.f32.mrf.mxu0
        %v921 = vadd.f32 0.0, %v920
        %922 = vmatmul.f32.gmra.mxu0 %v894
        %v923 = vpop.f32.mrf.mxu0
        %v924 = vadd.f32 0.0, %v923
        %925 = vmatmul.f32.gmra.mxu0 %v896
        %v926 = vpop.f32.mrf.mxu0
        %v927 = vadd.f32 0.0, %v926
        %928 = vmatmul.f32.gmra.mxu0 %v898
        %v929 = vpop.f32.mrf.mxu0
        %v930 = vadd.f32 0.0, %v929
        %931 = vdwg.mxu0
        %v932 = vsel %vm889, %v857, 0
        %v934 = vsel %vm889, %v858, 0
        %v936 = vsel %vm889, %v859, 0
        %v938 = vsel %vm889, %v860, 0
        %v940 = vsel %vm889, %v861, 0
        %942 = vmatpush.msra.mxu0 0.0
        %943 = vmatpush.msra.mxu0 0.0
        %944 = vmatpush.msra.mxu0 0.0
        %945 = vmatpush.msra.mxu0 0.0
        %946 = vmatpush.msra.mxu0 0.0
        %947 = vmatpush.msra.mxu0 0.0
        %948 = vmatpush.msra.mxu0 0.0
        %949 = vmatpush.msra.mxu0 0.0
        %950 = vmatpush.msra.mxu0 0.0
        %951 = vmatpush.msra.mxu0 0.0
        %952 = vmatpush.msra.mxu0 %v867
        %953 = vmatpush.msra.mxu0 %v866
        %954 = vmatpush.msra.mxu0 %v865
        %955 = vmatpush.msra.mxu0 %v864
        %956 = vmatpush.msra.mxu0 %v863
        %957 = vmatpush.msra.mxu0 %v862
        %958 = vmatmul.f32.gmra.mxu0 %v932
        %v959 = vpop.f32.mrf.mxu0
        %v960 = vadd.f32 %v918, %v959
        %961 = vmatmul.f32.gmra.mxu0 %v934
        %v962 = vpop.f32.mrf.mxu0
        %v963 = vadd.f32 %v921, %v962
        %964 = vmatmul.f32.gmra.mxu0 %v936
        %v965 = vpop.f32.mrf.mxu0
        %v966 = vadd.f32 %v924, %v965
        %967 = vmatmul.f32.gmra.mxu0 %v938
        %v968 = vpop.f32.mrf.mxu0
        %v969 = vadd.f32 %v927, %v968
        %970 = vmatmul.f32.gmra.mxu0 %v940
        %v971 = vpop.f32.mrf.mxu0
        %v972 = vadd.f32 %v930, %v971
        %973 = vdwg.mxu0
        %s974 = scalar_lea.vmem %s3, 96
        %v975 = vld [vmem:[%s974] sm:$0xff]
        %v976 = vld [vmem:[%s974 + $0x8] sm:$0xff]
        %v977 = vld [vmem:[%s974 + $0x10] sm:$0xff]
        %v978 = vld [vmem:[%s974 + $0x18] sm:$0xff]
        %v979 = vld [vmem:[%s974 + $0x20] sm:$0xff]
        %v980 = vld [vmem:[%s974 + $0x28] sm:$0xff]
        %s981 = scalar_lea.vmem %s3, 144
        %v982 = vld [vmem:[%s981] sm:$0xff]
        %v983 = vld [vmem:[%s981 + $0x8] sm:$0xff]
        %v984 = vld [vmem:[%s981 + $0x10] sm:$0xff]
        %v985 = vld [vmem:[%s981 + $0x18] sm:$0xff]
        %v986 = vld [vmem:[%s981 + $0x20] sm:$0xff]
        %v987 = vld [vmem:[%s981 + $0x28] sm:$0xff]
        %988 = vmatpush.msra.mxu0 0.0
        %989 = vmatpush.msra.mxu0 0.0
        %990 = vmatpush.msra.mxu0 0.0
        %991 = vmatpush.msra.mxu0 0.0
        %992 = vmatpush.msra.mxu0 0.0
        %993 = vmatpush.msra.mxu0 0.0
        %994 = vmatpush.msra.mxu0 0.0
        %995 = vmatpush.msra.mxu0 0.0
        %996 = vmatpush.msra.mxu0 0.0
        %997 = vmatpush.msra.mxu0 0.0
        %998 = vmatpush.msra.mxu0 %v987
        %999 = vmatpush.msra.mxu0 %v986
        %1000 = vmatpush.msra.mxu0 %v985
        %1001 = vmatpush.msra.mxu0 %v984
        %1002 = vmatpush.msra.mxu0 %v983
        %1003 = vmatpush.msra.mxu0 %v982
        %1004 = vmatmul.f32.gmra.mxu0 %v890
        %v1005 = vpop.f32.mrf.mxu0
        %v1006 = vadd.f32 0.0, %v1005
        %1007 = vmatmul.f32.gmra.mxu0 %v892
        %v1008 = vpop.f32.mrf.mxu0
        %v1009 = vadd.f32 0.0, %v1008
        %1010 = vmatmul.f32.gmra.mxu0 %v894
        %v1011 = vpop.f32.mrf.mxu0
        %v1012 = vadd.f32 0.0, %v1011
        %1013 = vmatmul.f32.gmra.mxu0 %v896
        %v1014 = vpop.f32.mrf.mxu0
        %v1015 = vadd.f32 0.0, %v1014
        %1016 = vmatmul.f32.gmra.mxu0 %v898
        %v1017 = vpop.f32.mrf.mxu0
        %v1018 = vadd.f32 0.0, %v1017
        %1019 = vdwg.mxu0
        %1020 = vmatpush.msra.mxu0 0.0
        %1021 = vmatpush.msra.mxu0 0.0
        %1022 = vmatpush.msra.mxu0 0.0
        %1023 = vmatpush.msra.mxu0 0.0
        %1024 = vmatpush.msra.mxu0 0.0
        %1025 = vmatpush.msra.mxu0 0.0
        %1026 = vmatpush.msra.mxu0 0.0
        %1027 = vmatpush.msra.mxu0 0.0
        %1028 = vmatpush.msra.mxu0 0.0
        %1029 = vmatpush.msra.mxu0 0.0
        %1030 = vmatpush.msra.mxu0 %v980
        %1031 = vmatpush.msra.mxu0 %v979
        %1032 = vmatpush.msra.mxu0 %v978
        %1033 = vmatpush.msra.mxu0 %v977
        %1034 = vmatpush.msra.mxu0 %v976
        %1035 = vmatpush.msra.mxu0 %v975
        %1036 = vmatmul.f32.gmra.mxu0 %v932
        %v1037 = vpop.f32.mrf.mxu0
        %v1038 = vadd.f32 %v1006, %v1037
        %1039 = vmatmul.f32.gmra.mxu0 %v934
        %v1040 = vpop.f32.mrf.mxu0
        %v1041 = vadd.f32 %v1009, %v1040
        %1042 = vmatmul.f32.gmra.mxu0 %v936
        %v1043 = vpop.f32.mrf.mxu0
        %v1044 = vadd.f32 %v1012, %v1043
        %1045 = vmatmul.f32.gmra.mxu0 %v938
        %v1046 = vpop.f32.mrf.mxu0
        %v1047 = vadd.f32 %v1015, %v1046
        %1048 = vmatmul.f32.gmra.mxu0 %v940
        %v1049 = vpop.f32.mrf.mxu0
        %v1050 = vadd.f32 %v1018, %v1049
        %1051 = vdwg.mxu0
        %v1052 = vld [vmem:[#allocation7] sm:$0x1]
        %v1053 = vld [vmem:[#allocation7 + $0x1] sm:$0x1]
        %v1054 = vld [vmem:[#allocation7 + $0x2] sm:$0x1]
        %v1055 = vperm.slane %v1052, 0
        %v1056 = vadd.f32 %v960, %v1055
        %v1057 = vadd.f32 %v963, %v1055
        %v1058 = vadd.f32 %v966, %v1055
        %v1059 = vadd.f32 %v969, %v1055
        %v1060 = vadd.f32 %v972, %v1055
        %v1061 = vmax.f32 %v1056, 0.0
        %v1062 = vmax.f32 %v1057, 0.0
        %v1063 = vmax.f32 %v1058, 0.0
        %v1064 = vmax.f32 %v1059, 0.0
        %v1065 = vmax.f32 %v1060, 0.0
        %v1066 = vperm.slane %v1053, 0
        %v1067 = vmul.f32 %v1061, %v1066
        %v1068 = vmul.f32 %v1062, %v1066
        %v1069 = vmul.f32 %v1063, %v1066
        %v1070 = vmul.f32 %v1064, %v1066
        %v1071 = vmul.f32 %v1065, %v1066
        %v1072 = vperm.slane %v1054, 0
        %v1073 = vadd.f32 %v1067, %v1072
        %v1074 = vadd.f32 %v1068, %v1072
        %v1075 = vadd.f32 %v1069, %v1072
        %v1076 = vadd.f32 %v1070, %v1072
        %v1077 = vadd.f32 %v1071, %v1072
        %v1078 = vadd.f32 %v1038, %v1055
        %v1079 = vadd.f32 %v1041, %v1055
        %v1080 = vadd.f32 %v1044, %v1055
        %v1081 = vadd.f32 %v1047, %v1055
        %v1082 = vadd.f32 %v1050, %v1055
        %v1083 = vmax.f32 %v1078, 0.0
        %v1084 = vmax.f32 %v1079, 0.0
        %v1085 = vmax.f32 %v1080, 0.0
        %v1086 = vmax.f32 %v1081, 0.0
        %v1087 = vmax.f32 %v1082, 0.0
        %v1088 = vmul.f32 %v1083, %v1066
        %v1089 = vmul.f32 %v1084, %v1066
        %v1090 = vmul.f32 %v1085, %v1066
        %v1091 = vmul.f32 %v1086, %v1066
        %v1092 = vmul.f32 %v1087, %v1066
        %v1093 = vadd.f32 %v1088, %v1072
        %v1094 = vadd.f32 %v1089, %v1072
        %v1095 = vadd.f32 %v1090, %v1072
        %v1096 = vadd.f32 %v1091, %v1072
        %v1097 = vadd.f32 %v1092, %v1072
        %v1098 = vmax.f32 %v1073, %v1093
        %v1099 = vmax.f32 %v1074, %v1094
        %v1100 = vmax.f32 %v1075, %v1095
        %v1101 = vmax.f32 %v1076, %v1096
        %v1102 = vmax.f32 %v1077, %v1097
        %v1103 = vld [vmem:[%s5] sm:$0xff]
        %v1104 = vld [vmem:[%s5 + $0x8] sm:$0xff]
        %v1105 = vld [vmem:[%s5 + $0x10] sm:$0xff]
        %v1106 = vld [vmem:[%s5 + $0x18] sm:$0xff]
        %v1107 = vld [vmem:[%s5 + $0x20] sm:$0xff]
        %s1108 = scalar_lea.vmem %s5, 40
        %v1109 = vld [vmem:[%s1108] sm:$0xff]
        %v1110 = vld [vmem:[%s1108 + $0x8] sm:$0xff]
        %v1111 = vld [vmem:[%s1108 + $0x10] sm:$0xff]
        %v1112 = vld [vmem:[%s1108 + $0x18] sm:$0xff]
        %v1113 = vld [vmem:[%s1108 + $0x20] sm:$0xff]
        %v1119 = vrot.slane %v1098, 1
        %v1120 = vrot.slane %v1099, 1
        %v1121 = vsel %vm640, %v1119, %v1120
        %v1122 = vrot.slane %v1100, 1
        %v1123 = vsel %vm640, %v1120, %v1122
        %v1124 = vrot.slane %v1101, 1
        %v1125 = vsel %vm640, %v1122, %v1124
        %v1126 = vrot.slane %v1102, 1
        %v1127 = vsel %vm640, %v1124, %v1126
        %vm1128 = vcmask 326656
        %v1129 = vsel %vm1128, %v1121, 0
        %v1131 = vsel %vm1128, %v1123, 0
        %v1133 = vsel %vm1128, %v1125, 0
        %v1135 = vsel %vm1128, %v1127, 0
        %v1137 = vsel %vm1128, %v1126, 0
        %1139 = vmatpush.msra.mxu0 0.0
        %1140 = vmatpush.msra.mxu0 0.0
        %1141 = vmatpush.msra.mxu0 0.0
        %1142 = vmatpush.msra.mxu0 0.0
        %1143 = vmatpush.msra.mxu0 0.0
        %1144 = vmatpush.msra.mxu0 0.0
        %1145 = vmatpush.msra.mxu0 0.0
        %1146 = vmatpush.msra.mxu0 0.0
        %1147 = vmatpush.msra.mxu0 0.0
        %1148 = vmatpush.msra.mxu0 0.0
        %1149 = vmatpush.msra.mxu0 0.0
        %1150 = vmatpush.msra.mxu0 %v1113
        %1151 = vmatpush.msra.mxu0 %v1112
        %1152 = vmatpush.msra.mxu0 %v1111
        %1153 = vmatpush.msra.mxu0 %v1110
        %1154 = vmatpush.msra.mxu0 %v1109
        %1155 = vmatmul.f32.gmra.mxu0 %v1129
        %v1156 = vpop.f32.mrf.mxu0
        %v1157 = vadd.f32 0.0, %v1156
        %1158 = vmatmul.f32.gmra.mxu0 %v1131
        %v1159 = vpop.f32.mrf.mxu0
        %v1160 = vadd.f32 0.0, %v1159
        %1161 = vmatmul.f32.gmra.mxu0 %v1133
        %v1162 = vpop.f32.mrf.mxu0
        %v1163 = vadd.f32 0.0, %v1162
        %1164 = vmatmul.f32.gmra.mxu0 %v1135
        %v1165 = vpop.f32.mrf.mxu0
        %v1166 = vadd.f32 0.0, %v1165
        %1167 = vmatmul.f32.gmra.mxu0 %v1137
        %v1168 = vpop.f32.mrf.mxu0
        %v1169 = vadd.f32 0.0, %v1168
        %1170 = vdwg.mxu0
        %v1171 = vsel %vm1128, %v1098, 0
        %v1173 = vsel %vm1128, %v1099, 0
        %v1175 = vsel %vm1128, %v1100, 0
        %v1177 = vsel %vm1128, %v1101, 0
        %v1179 = vsel %vm1128, %v1102, 0
        %1181 = vmatpush.msra.mxu0 0.0
        %1182 = vmatpush.msra.mxu0 0.0
        %1183 = vmatpush.msra.mxu0 0.0
        %1184 = vmatpush.msra.mxu0 0.0
        %1185 = vmatpush.msra.mxu0 0.0
        %1186 = vmatpush.msra.mxu0 0.0
        %1187 = vmatpush.msra.mxu0 0.0
        %1188 = vmatpush.msra.mxu0 0.0
        %1189 = vmatpush.msra.mxu0 0.0
        %1190 = vmatpush.msra.mxu0 0.0
        %1191 = vmatpush.msra.mxu0 0.0
        %1192 = vmatpush.msra.mxu0 %v1107
        %1193 = vmatpush.msra.mxu0 %v1106
        %1194 = vmatpush.msra.mxu0 %v1105
        %1195 = vmatpush.msra.mxu0 %v1104
        %1196 = vmatpush.msra.mxu0 %v1103
        %1197 = vmatmul.f32.gmra.mxu0 %v1171
        %v1198 = vpop.f32.mrf.mxu0
        %v1199 = vadd.f32 %v1157, %v1198
        %1200 = vmatmul.f32.gmra.mxu0 %v1173
        %v1201 = vpop.f32.mrf.mxu0
        %v1202 = vadd.f32 %v1160, %v1201
        %1203 = vmatmul.f32.gmra.mxu0 %v1175
        %v1204 = vpop.f32.mrf.mxu0
        %v1205 = vadd.f32 %v1163, %v1204
        %1206 = vmatmul.f32.gmra.mxu0 %v1177
        %v1207 = vpop.f32.mrf.mxu0
        %v1208 = vadd.f32 %v1166, %v1207
        %1209 = vmatmul.f32.gmra.mxu0 %v1179
        %v1210 = vpop.f32.mrf.mxu0
        %v1211 = vadd.f32 %v1169, %v1210
        %1212 = vdwg.mxu0
        %s1213 = scalar_lea.vmem %s5, 80
        %v1214 = vld [vmem:[%s1213] sm:$0xff]
        %v1215 = vld [vmem:[%s1213 + $0x8] sm:$0xff]
        %v1216 = vld [vmem:[%s1213 + $0x10] sm:$0xff]
        %v1217 = vld [vmem:[%s1213 + $0x18] sm:$0xff]
        %v1218 = vld [vmem:[%s1213 + $0x20] sm:$0xff]
        %s1219 = scalar_lea.vmem %s5, 120
        %v1220 = vld [vmem:[%s1219] sm:$0xff]
        %v1221 = vld [vmem:[%s1219 + $0x8] sm:$0xff]
        %v1222 = vld [vmem:[%s1219 + $0x10] sm:$0xff]
        %v1223 = vld [vmem:[%s1219 + $0x18] sm:$0xff]
        %v1224 = vld [vmem:[%s1219 + $0x20] sm:$0xff]
        %1225 = vmatpush.msra.mxu0 0.0
        %1226 = vmatpush.msra.mxu0 0.0
        %1227 = vmatpush.msra.mxu0 0.0
        %1228 = vmatpush.msra.mxu0 0.0
        %1229 = vmatpush.msra.mxu0 0.0
        %1230 = vmatpush.msra.mxu0 0.0
        %1231 = vmatpush.msra.mxu0 0.0
        %1232 = vmatpush.msra.mxu0 0.0
        %1233 = vmatpush.msra.mxu0 0.0
        %1234 = vmatpush.msra.mxu0 0.0
        %1235 = vmatpush.msra.mxu0 0.0
        %1236 = vmatpush.msra.mxu0 %v1224
        %1237 = vmatpush.msra.mxu0 %v1223
        %1238 = vmatpush.msra.mxu0 %v1222
        %1239 = vmatpush.msra.mxu0 %v1221
        %1240 = vmatpush.msra.mxu0 %v1220
        %1241 = vmatmul.f32.gmra.mxu0 %v1129
        %v1242 = vpop.f32.mrf.mxu0
        %v1243 = vadd.f32 0.0, %v1242
        %1244 = vmatmul.f32.gmra.mxu0 %v1131
        %v1245 = vpop.f32.mrf.mxu0
        %v1246 = vadd.f32 0.0, %v1245
        %1247 = vmatmul.f32.gmra.mxu0 %v1133
        %v1248 = vpop.f32.mrf.mxu0
        %v1249 = vadd.f32 0.0, %v1248
        %1250 = vmatmul.f32.gmra.mxu0 %v1135
        %v1251 = vpop.f32.mrf.mxu0
        %v1252 = vadd.f32 0.0, %v1251
        %1253 = vmatmul.f32.gmra.mxu0 %v1137
        %v1254 = vpop.f32.mrf.mxu0
        %v1255 = vadd.f32 0.0, %v1254
        %1256 = vdwg.mxu0
        %1257 = vmatpush.msra.mxu0 0.0
        %1258 = vmatpush.msra.mxu0 0.0
        %1259 = vmatpush.msra.mxu0 0.0
        %1260 = vmatpush.msra.mxu0 0.0
        %1261 = vmatpush.msra.mxu0 0.0
        %1262 = vmatpush.msra.mxu0 0.0
        %1263 = vmatpush.msra.mxu0 0.0
        %1264 = vmatpush.msra.mxu0 0.0
        %1265 = vmatpush.msra.mxu0 0.0
        %1266 = vmatpush.msra.mxu0 0.0
        %1267 = vmatpush.msra.mxu0 0.0
        %1268 = vmatpush.msra.mxu0 %v1218
        %1269 = vmatpush.msra.mxu0 %v1217
        %1270 = vmatpush.msra.mxu0 %v1216
        %1271 = vmatpush.msra.mxu0 %v1215
        %1272 = vmatpush.msra.mxu0 %v1214
        %1273 = vmatmul.f32.gmra.mxu0 %v1171
        %v1274 = vpop.f32.mrf.mxu0
        %v1275 = vadd.f32 %v1243, %v1274
        %1276 = vmatmul.f32.gmra.mxu0 %v1173
        %v1277 = vpop.f32.mrf.mxu0
        %v1278 = vadd.f32 %v1246, %v1277
        %1279 = vmatmul.f32.gmra.mxu0 %v1175
        %v1280 = vpop.f32.mrf.mxu0
        %v1281 = vadd.f32 %v1249, %v1280
        %1282 = vmatmul.f32.gmra.mxu0 %v1177
        %v1283 = vpop.f32.mrf.mxu0
        %v1284 = vadd.f32 %v1252, %v1283
        %1285 = vmatmul.f32.gmra.mxu0 %v1179
        %v1286 = vpop.f32.mrf.mxu0
        %v1287 = vadd.f32 %v1255, %v1286
        %1288 = vdwg.mxu0
        %v1289 = vld [vmem:[#allocation8] sm:$0x1]
        %v1290 = vld [vmem:[#allocation8 + $0x1] sm:$0x1]
        %v1291 = vld [vmem:[#allocation8 + $0x2] sm:$0x1]
        %v1292 = vperm.slane %v1289, 0
        %v1293 = vadd.f32 %v1199, %v1292
        %v1294 = vadd.f32 %v1202, %v1292
        %v1295 = vadd.f32 %v1205, %v1292
        %v1296 = vadd.f32 %v1208, %v1292
        %v1297 = vadd.f32 %v1211, %v1292
        %v1298 = vmax.f32 %v1293, 0.0
        %v1299 = vmax.f32 %v1294, 0.0
        %v1300 = vmax.f32 %v1295, 0.0
        %v1301 = vmax.f32 %v1296, 0.0
        %v1302 = vmax.f32 %v1297, 0.0
        %v1303 = vperm.slane %v1290, 0
        %v1304 = vmul.f32 %v1298, %v1303
        %v1305 = vmul.f32 %v1299, %v1303
        %v1306 = vmul.f32 %v1300, %v1303
        %v1307 = vmul.f32 %v1301, %v1303
        %v1308 = vmul.f32 %v1302, %v1303
        %v1309 = vperm.slane %v1291, 0
        %v1310 = vadd.f32 %v1304, %v1309
        %v1311 = vadd.f32 %v1305, %v1309
        %v1312 = vadd.f32 %v1306, %v1309
        %v1313 = vadd.f32 %v1307, %v1309
        %v1314 = vadd.f32 %v1308, %v1309
        %v1315 = vadd.f32 %v1275, %v1292
        %v1316 = vadd.f32 %v1278, %v1292
        %v1317 = vadd.f32 %v1281, %v1292
        %v1318 = vadd.f32 %v1284, %v1292
        %v1319 = vadd.f32 %v1287, %v1292
        %v1320 = vmax.f32 %v1315, 0.0
        %v1321 = vmax.f32 %v1316, 0.0
        %v1322 = vmax.f32 %v1317, 0.0
        %v1323 = vmax.f32 %v1318, 0.0
        %v1324 = vmax.f32 %v1319, 0.0
        %v1325 = vmul.f32 %v1320, %v1303
        %v1326 = vmul.f32 %v1321, %v1303
        %v1327 = vmul.f32 %v1322, %v1303
        %v1328 = vmul.f32 %v1323, %v1303
        %v1329 = vmul.f32 %v1324, %v1303
        %v1330 = vadd.f32 %v1325, %v1309
        %v1331 = vadd.f32 %v1326, %v1309
        %v1332 = vadd.f32 %v1327, %v1309
        %v1333 = vadd.f32 %v1328, %v1309
        %v1334 = vadd.f32 %v1329, %v1309
        %v1335 = vmax.f32 %v1310, %v1330
        %v1336 = vmax.f32 %v1311, %v1331
        %v1337 = vmax.f32 %v1312, %v1332
        %v1338 = vmax.f32 %v1313, %v1333
        %v1339 = vmax.f32 %v1314, %v1334
        %v1340 = vld [vmem:[#allocation10] sm:$0xff]
        %v1341 = vld [vmem:[#allocation10 + $0x8] sm:$0xff]
        %s1342 = scalar_lea.vmem [#allocation10], 16
        %v1343 = vld [vmem:[%s1342] sm:$0xff]
        %v1344 = vld [vmem:[%s1342 + $0x8] sm:$0xff]
        %v1350 = vrot.slane %v1335, 1
        %v1351 = vrot.slane %v1336, 1
        %v1352 = vsel %vm640, %v1350, %v1351
        %v1353 = vrot.slane %v1337, 1
        %v1354 = vsel %vm640, %v1351, %v1353
        %v1355 = vrot.slane %v1338, 1
        %v1356 = vsel %vm640, %v1353, %v1355
        %v1357 = vrot.slane %v1339, 1
        %v1358 = vsel %vm640, %v1355, %v1357
        %vm1359 = vcmask 130048
        %v1360 = vsel %vm1359, %v1352, 0
        %v1362 = vsel %vm1359, %v1354, 0
        %v1364 = vsel %vm1359, %v1356, 0
        %v1366 = vsel %vm1359, %v1358, 0
        %v1368 = vsel %vm1359, %v1357, 0
        %1370 = vmatpush.msra.mxu0 0.0
        %1371 = vmatpush.msra.mxu0 0.0
        %1372 = vmatpush.msra.mxu0 0.0
        %1373 = vmatpush.msra.mxu0 0.0
        %1374 = vmatpush.msra.mxu0 0.0
        %1375 = vmatpush.msra.mxu0 0.0
        %1376 = vmatpush.msra.mxu0 0.0
        %1377 = vmatpush.msra.mxu0 0.0
        %1378 = vmatpush.msra.mxu0 0.0
        %1379 = vmatpush.msra.mxu0 0.0
        %1380 = vmatpush.msra.mxu0 0.0
        %1381 = vmatpush.msra.mxu0 0.0
        %1382 = vmatpush.msra.mxu0 0.0
        %1383 = vmatpush.msra.mxu0 0.0
        %1384 = vmatpush.msra.mxu0 %v1344
        %1385 = vmatpush.msra.mxu0 %v1343
        %1386 = vmatmul.f32.gmra.mxu0 %v1360
        %v1387 = vpop.f32.mrf.mxu0
        %v1388 = vadd.f32 0.0, %v1387
        %1389 = vmatmul.f32.gmra.mxu0 %v1362
        %v1390 = vpop.f32.mrf.mxu0
        %v1391 = vadd.f32 0.0, %v1390
        %1392 = vmatmul.f32.gmra.mxu0 %v1364
        %v1393 = vpop.f32.mrf.mxu0
        %v1394 = vadd.f32 0.0, %v1393
        %1395 = vmatmul.f32.gmra.mxu0 %v1366
        %v1396 = vpop.f32.mrf.mxu0
        %v1397 = vadd.f32 0.0, %v1396
        %1398 = vmatmul.f32.gmra.mxu0 %v1368
        %v1399 = vpop.f32.mrf.mxu0
        %v1400 = vadd.f32 0.0, %v1399
        %1401 = vdwg.mxu0
        %v1402 = vsel %vm1359, %v1335, 0
        %v1404 = vsel %vm1359, %v1336, 0
        %v1406 = vsel %vm1359, %v1337, 0
        %v1408 = vsel %vm1359, %v1338, 0
        %v1410 = vsel %vm1359, %v1339, 0
        %1412 = vmatpush.msra.mxu0 0.0
        %1413 = vmatpush.msra.mxu0 0.0
        %1414 = vmatpush.msra.mxu0 0.0
        %1415 = vmatpush.msra.mxu0 0.0
        %1416 = vmatpush.msra.mxu0 0.0
        %1417 = vmatpush.msra.mxu0 0.0
        %1418 = vmatpush.msra.mxu0 0.0
        %1419 = vmatpush.msra.mxu0 0.0
        %1420 = vmatpush.msra.mxu0 0.0
        %1421 = vmatpush.msra.mxu0 0.0
        %1422 = vmatpush.msra.mxu0 0.0
        %1423 = vmatpush.msra.mxu0 0.0
        %1424 = vmatpush.msra.mxu0 0.0
        %1425 = vmatpush.msra.mxu0 0.0
        %1426 = vmatpush.msra.mxu0 %v1341
        %1427 = vmatpush.msra.mxu0 %v1340
        %1428 = vmatmul.f32.gmra.mxu0 %v1402
        %v1429 = vpop.f32.mrf.mxu0
        %v1430 = vadd.f32 %v1388, %v1429
        %1431 = vmatmul.f32.gmra.mxu0 %v1404
        %v1432 = vpop.f32.mrf.mxu0
        %v1433 = vadd.f32 %v1391, %v1432
        %1434 = vmatmul.f32.gmra.mxu0 %v1406
        %v1435 = vpop.f32.mrf.mxu0
        %v1436 = vadd.f32 %v1394, %v1435
        %1437 = vmatmul.f32.gmra.mxu0 %v1408
        %v1438 = vpop.f32.mrf.mxu0
        %v1439 = vadd.f32 %v1397, %v1438
        %1440 = vmatmul.f32.gmra.mxu0 %v1410
        %v1441 = vpop.f32.mrf.mxu0
        %v1442 = vadd.f32 %v1400, %v1441
        %1443 = vdwg.mxu0
        %s1444 = scalar_lea.vmem [#allocation10], 32
        %v1445 = vld [vmem:[%s1444] sm:$0xff]
        %v1446 = vld [vmem:[%s1444 + $0x8] sm:$0xff]
        %s1447 = scalar_lea.vmem [#allocation10], 48
        %v1448 = vld [vmem:[%s1447] sm:$0xff]
        %v1449 = vld [vmem:[%s1447 + $0x8] sm:$0xff]
        %1450 = vmatpush.msra.mxu0 0.0
        %1451 = vmatpush.msra.mxu0 0.0
        %1452 = vmatpush.msra.mxu0 0.0
        %1453 = vmatpush.msra.mxu0 0.0
        %1454 = vmatpush.msra.mxu0 0.0
        %1455 = vmatpush.msra.mxu0 0.0
        %1456 = vmatpush.msra.mxu0 0.0
        %1457 = vmatpush.msra.mxu0 0.0
        %1458 = vmatpush.msra.mxu0 0.0
        %1459 = vmatpush.msra.mxu0 0.0
        %1460 = vmatpush.msra.mxu0 0.0
        %1461 = vmatpush.msra.mxu0 0.0
        %1462 = vmatpush.msra.mxu0 0.0
        %1463 = vmatpush.msra.mxu0 0.0
        %1464 = vmatpush.msra.mxu0 %v1449
        %1465 = vmatpush.msra.mxu0 %v1448
        %1466 = vmatmul.f32.gmra.mxu0 %v1360
        %v1467 = vpop.f32.mrf.mxu0
        %v1468 = vadd.f32 0.0, %v1467
        %1469 = vmatmul.f32.gmra.mxu0 %v1362
        %v1470 = vpop.f32.mrf.mxu0
        %v1471 = vadd.f32 0.0, %v1470
        %1472 = vmatmul.f32.gmra.mxu0 %v1364
        %v1473 = vpop.f32.mrf.mxu0
        %v1474 = vadd.f32 0.0, %v1473
        %1475 = vmatmul.f32.gmra.mxu0 %v1366
        %v1476 = vpop.f32.mrf.mxu0
        %v1477 = vadd.f32 0.0, %v1476
        %1478 = vmatmul.f32.gmra.mxu0 %v1368
        %v1479 = vpop.f32.mrf.mxu0
        %v1480 = vadd.f32 0.0, %v1479
        %1481 = vdwg.mxu0
        %1482 = vmatpush.msra.mxu0 0.0
        %1483 = vmatpush.msra.mxu0 0.0
        %1484 = vmatpush.msra.mxu0 0.0
        %1485 = vmatpush.msra.mxu0 0.0
        %1486 = vmatpush.msra.mxu0 0.0
        %1487 = vmatpush.msra.mxu0 0.0
        %1488 = vmatpush.msra.mxu0 0.0
        %1489 = vmatpush.msra.mxu0 0.0
        %1490 = vmatpush.msra.mxu0 0.0
        %1491 = vmatpush.msra.mxu0 0.0
        %1492 = vmatpush.msra.mxu0 0.0
        %1493 = vmatpush.msra.mxu0 0.0
        %1494 = vmatpush.msra.mxu0 0.0
        %1495 = vmatpush.msra.mxu0 0.0
        %1496 = vmatpush.msra.mxu0 %v1446
        %1497 = vmatpush.msra.mxu0 %v1445
        %1498 = vmatmul.f32.gmra.mxu0 %v1402
        %v1499 = vpop.f32.mrf.mxu0
        %v1500 = vadd.f32 %v1468, %v1499
        %1501 = vmatmul.f32.gmra.mxu0 %v1404
        %v1502 = vpop.f32.mrf.mxu0
        %v1503 = vadd.f32 %v1471, %v1502
        %1504 = vmatmul.f32.gmra.mxu0 %v1406
        %v1505 = vpop.f32.mrf.mxu0
        %v1506 = vadd.f32 %v1474, %v1505
        %1507 = vmatmul.f32.gmra.mxu0 %v1408
        %v1508 = vpop.f32.mrf.mxu0
        %v1509 = vadd.f32 %v1477, %v1508
        %1510 = vmatmul.f32.gmra.mxu0 %v1410
        %v1511 = vpop.f32.mrf.mxu0
        %v1512 = vadd.f32 %v1480, %v1511
        %1513 = vdwg.mxu0
        %s1514 = scalar_lea.vmem [#allocation10], 64
        %v1515 = vld [vmem:[%s1514] sm:$0xff]
        %v1516 = vld [vmem:[%s1514 + $0x8] sm:$0xff]
        %vm1517 = vcmask 1045504
        %v1518 = vrot.slane %v1335, 2
        %v1519 = vrot.slane %v1336, 2
        %v1520 = vsel %vm1517, %v1518, %v1519
        %v1521 = vrot.slane %v1337, 2
        %v1522 = vsel %vm1517, %v1519, %v1521
        %v1523 = vrot.slane %v1338, 2
        %v1524 = vsel %vm1517, %v1521, %v1523
        %v1525 = vrot.slane %v1339, 2
        %v1526 = vsel %vm1517, %v1523, %v1525
        %v1527 = vsel %vm1359, %v1520, 0
        %v1529 = vsel %vm1359, %v1522, 0
        %v1531 = vsel %vm1359, %v1524, 0
        %v1533 = vsel %vm1359, %v1526, 0
        %v1535 = vsel %vm1359, %v1525, 0
        %1537 = vmatpush.msra.mxu0 0.0
        %1538 = vmatpush.msra.mxu0 0.0
        %1539 = vmatpush.msra.mxu0 0.0
        %1540 = vmatpush.msra.mxu0 0.0
        %1541 = vmatpush.msra.mxu0 0.0
        %1542 = vmatpush.msra.mxu0 0.0
        %1543 = vmatpush.msra.mxu0 0.0
        %1544 = vmatpush.msra.mxu0 0.0
        %1545 = vmatpush.msra.mxu0 0.0
        %1546 = vmatpush.msra.mxu0 0.0
        %1547 = vmatpush.msra.mxu0 0.0
        %1548 = vmatpush.msra.mxu0 0.0
        %1549 = vmatpush.msra.mxu0 0.0
        %1550 = vmatpush.msra.mxu0 0.0
        %1551 = vmatpush.msra.mxu0 %v1516
        %1552 = vmatpush.msra.mxu0 %v1515
        %1553 = vmatmul.f32.gmra.mxu0 %v1527
        %v1554 = vpop.f32.mrf.mxu0
        %v1555 = vadd.f32 0.0, %v1554
        %1556 = vmatmul.f32.gmra.mxu0 %v1529
        %v1557 = vpop.f32.mrf.mxu0
        %v1558 = vadd.f32 0.0, %v1557
        %1559 = vmatmul.f32.gmra.mxu0 %v1531
        %v1560 = vpop.f32.mrf.mxu0
        %v1561 = vadd.f32 0.0, %v1560
        %1562 = vmatmul.f32.gmra.mxu0 %v1533
        %v1563 = vpop.f32.mrf.mxu0
        %v1564 = vadd.f32 0.0, %v1563
        %1565 = vmatmul.f32.gmra.mxu0 %v1535
        %v1566 = vpop.f32.mrf.mxu0
        %v1567 = vadd.f32 0.0, %v1566
        %1568 = vdwg.mxu0
        %v1569 = vadd.f32 %v1500, %v1555
        %v1570 = vadd.f32 %v1503, %v1558
        %v1571 = vadd.f32 %v1506, %v1561
        %v1572 = vadd.f32 %v1509, %v1564
        %v1573 = vadd.f32 %v1512, %v1567
        %v1574 = vld [vmem:[#allocation11] sm:$0x1]
        %v1575 = vld [vmem:[#allocation11 + $0x1] sm:$0x1]
        %v1576 = vld [vmem:[#allocation11 + $0x2] sm:$0x1]
        %v1577 = vperm.slane %v1574, 0
        %v1578 = vadd.f32 %v1430, %v1577
        %v1579 = vadd.f32 %v1433, %v1577
        %v1580 = vadd.f32 %v1436, %v1577
        %v1581 = vadd.f32 %v1439, %v1577
        %v1582 = vadd.f32 %v1442, %v1577
        %v1583 = vmax.f32 %v1578, 0.0
        %v1584 = vmax.f32 %v1579, 0.0
        %v1585 = vmax.f32 %v1580, 0.0
        %v1586 = vmax.f32 %v1581, 0.0
        %v1587 = vmax.f32 %v1582, 0.0
        %v1588 = vperm.slane %v1575, 0
        %v1589 = vmul.f32 %v1583, %v1588
        %v1590 = vmul.f32 %v1584, %v1588
        %v1591 = vmul.f32 %v1585, %v1588
        %v1592 = vmul.f32 %v1586, %v1588
        %v1593 = vmul.f32 %v1587, %v1588
        %v1594 = vperm.slane %v1576, 0
        %v1595 = vadd.f32 %v1589, %v1594
        %v1596 = vadd.f32 %v1590, %v1594
        %v1597 = vadd.f32 %v1591, %v1594
        %v1598 = vadd.f32 %v1592, %v1594
        %v1599 = vadd.f32 %v1593, %v1594
        %v1600 = vadd.f32 %v1569, %v1577
        %v1601 = vadd.f32 %v1570, %v1577
        %v1602 = vadd.f32 %v1571, %v1577
        %v1603 = vadd.f32 %v1572, %v1577
        %v1604 = vadd.f32 %v1573, %v1577
        %v1605 = vmax.f32 %v1600, 0.0
        %v1606 = vmax.f32 %v1601, 0.0
        %v1607 = vmax.f32 %v1602, 0.0
        %v1608 = vmax.f32 %v1603, 0.0
        %v1609 = vmax.f32 %v1604, 0.0
        %v1610 = vmul.f32 %v1605, %v1588
        %v1611 = vmul.f32 %v1606, %v1588
        %v1612 = vmul.f32 %v1607, %v1588
        %v1613 = vmul.f32 %v1608, %v1588
        %v1614 = vmul.f32 %v1609, %v1588
        %v1615 = vadd.f32 %v1610, %v1594
        %v1616 = vadd.f32 %v1611, %v1594
        %v1617 = vadd.f32 %v1612, %v1594
        %v1618 = vadd.f32 %v1613, %v1594
        %v1619 = vadd.f32 %v1614, %v1594
        %v1620 = vmax.f32 %v1595, %v1615
        %v1621 = vmax.f32 %v1596, %v1616
        %v1622 = vmax.f32 %v1597, %v1617
        %v1623 = vmax.f32 %v1598, %v1618
        %v1624 = vmax.f32 %v1599, %v1619
        %v1625 = vld [vmem:[#allocation13] sm:$0xff]
        %v1626 = vld [vmem:[#allocation13 + $0x8] sm:$0xff]
        %s1627 = scalar_lea.vmem [#allocation13], 16
        %v1628 = vld [vmem:[%s1627] sm:$0xff]
        %v1629 = vld [vmem:[%s1627 + $0x8] sm:$0xff]
        %v1635 = vrot.slane %v1620, 1
        %v1636 = vrot.slane %v1621, 1
        %v1637 = vsel %vm640, %v1635, %v1636
        %v1638 = vrot.slane %v1622, 1
        %v1639 = vsel %vm640, %v1636, %v1638
        %v1640 = vrot.slane %v1623, 1
        %v1641 = vsel %vm640, %v1638, %v1640
        %v1642 = vrot.slane %v1624, 1
        %v1643 = vsel %vm640, %v1640, %v1642
        %v1644 = vsel %vm1359, %v1637, 0
        %v1646 = vsel %vm1359, %v1639, 0
        %v1648 = vsel %vm1359, %v1641, 0
        %v1650 = vsel %vm1359, %v1643, 0
        %1652 = vmatpush.msra.mxu0 0.0
        %1653 = vmatpush.msra.mxu0 0.0
        %1654 = vmatpush.msra.mxu0 0.0
        %1655 = vmatpush.msra.mxu0 0.0
        %1656 = vmatpush.msra.mxu0 0.0
        %1657 = vmatpush.msra.mxu0 0.0
        %1658 = vmatpush.msra.mxu0 0.0
        %1659 = vmatpush.msra.mxu0 0.0
        %1660 = vmatpush.msra.mxu0 0.0
        %1661 = vmatpush.msra.mxu0 0.0
        %1662 = vmatpush.msra.mxu0 0.0
        %1663 = vmatpush.msra.mxu0 0.0
        %1664 = vmatpush.msra.mxu0 0.0
        %1665 = vmatpush.msra.mxu0 0.0
        %1666 = vmatpush.msra.mxu0 %v1629
        %1667 = vmatpush.msra.mxu0 %v1628
        %1668 = vmatmul.f32.gmra.mxu0 %v1644
        %v1669 = vpop.f32.mrf.mxu0
        %v1670 = vadd.f32 0.0, %v1669
        %1671 = vmatmul.f32.gmra.mxu0 %v1646
        %v1672 = vpop.f32.mrf.mxu0
        %v1673 = vadd.f32 0.0, %v1672
        %1674 = vmatmul.f32.gmra.mxu0 %v1648
        %v1675 = vpop.f32.mrf.mxu0
        %v1676 = vadd.f32 0.0, %v1675
        %1677 = vmatmul.f32.gmra.mxu0 %v1650
        %v1678 = vpop.f32.mrf.mxu0
        %v1679 = vadd.f32 0.0, %v1678
        %1680 = vdwg.mxu0
        %v1681 = vsel %vm1359, %v1620, 0
        %v1683 = vsel %vm1359, %v1621, 0
        %v1685 = vsel %vm1359, %v1622, 0
        %v1687 = vsel %vm1359, %v1623, 0
        %1689 = vmatpush.msra.mxu0 0.0
        %1690 = vmatpush.msra.mxu0 0.0
        %1691 = vmatpush.msra.mxu0 0.0
        %1692 = vmatpush.msra.mxu0 0.0
        %1693 = vmatpush.msra.mxu0 0.0
        %1694 = vmatpush.msra.mxu0 0.0
        %1695 = vmatpush.msra.mxu0 0.0
        %1696 = vmatpush.msra.mxu0 0.0
        %1697 = vmatpush.msra.mxu0 0.0
        %1698 = vmatpush.msra.mxu0 0.0
        %1699 = vmatpush.msra.mxu0 0.0
        %1700 = vmatpush.msra.mxu0 0.0
        %1701 = vmatpush.msra.mxu0 0.0
        %1702 = vmatpush.msra.mxu0 0.0
        %1703 = vmatpush.msra.mxu0 %v1626
        %1704 = vmatpush.msra.mxu0 %v1625
        %1705 = vmatmul.f32.gmra.mxu0 %v1681
        %v1706 = vpop.f32.mrf.mxu0
        %v1707 = vadd.f32 %v1670, %v1706
        %1708 = vmatmul.f32.gmra.mxu0 %v1683
        %v1709 = vpop.f32.mrf.mxu0
        %v1710 = vadd.f32 %v1673, %v1709
        %1711 = vmatmul.f32.gmra.mxu0 %v1685
        %v1712 = vpop.f32.mrf.mxu0
        %v1713 = vadd.f32 %v1676, %v1712
        %1714 = vmatmul.f32.gmra.mxu0 %v1687
        %v1715 = vpop.f32.mrf.mxu0
        %v1716 = vadd.f32 %v1679, %v1715
        %1717 = vdwg.mxu0
        %s1718 = scalar_lea.vmem [#allocation13], 32
        %v1719 = vld [vmem:[%s1718] sm:$0xff]
        %v1720 = vld [vmem:[%s1718 + $0x8] sm:$0xff]
        %v1721 = vrot.slane %v1620, 2
        %v1722 = vrot.slane %v1621, 2
        %v1723 = vsel %vm1517, %v1721, %v1722
        %v1724 = vrot.slane %v1622, 2
        %v1725 = vsel %vm1517, %v1722, %v1724
        %v1726 = vrot.slane %v1623, 2
        %v1727 = vsel %vm1517, %v1724, %v1726
        %v1728 = vrot.slane %v1624, 2
        %v1729 = vsel %vm1517, %v1726, %v1728
        %v1730 = vsel %vm1359, %v1723, 0
        %v1732 = vsel %vm1359, %v1725, 0
        %v1734 = vsel %vm1359, %v1727, 0
        %v1736 = vsel %vm1359, %v1729, 0
        %1738 = vmatpush.msra.mxu0 0.0
        %1739 = vmatpush.msra.mxu0 0.0
        %1740 = vmatpush.msra.mxu0 0.0
        %1741 = vmatpush.msra.mxu0 0.0
        %1742 = vmatpush.msra.mxu0 0.0
        %1743 = vmatpush.msra.mxu0 0.0
        %1744 = vmatpush.msra.mxu0 0.0
        %1745 = vmatpush.msra.mxu0 0.0
        %1746 = vmatpush.msra.mxu0 0.0
        %1747 = vmatpush.msra.mxu0 0.0
        %1748 = vmatpush.msra.mxu0 0.0
        %1749 = vmatpush.msra.mxu0 0.0
        %1750 = vmatpush.msra.mxu0 0.0
        %1751 = vmatpush.msra.mxu0 0.0
        %1752 = vmatpush.msra.mxu0 %v1720
        %1753 = vmatpush.msra.mxu0 %v1719
        %1754 = vmatmul.f32.gmra.mxu0 %v1730
        %v1755 = vpop.f32.mrf.mxu0
        %v1756 = vadd.f32 0.0, %v1755
        %1757 = vmatmul.f32.gmra.mxu0 %v1732
        %v1758 = vpop.f32.mrf.mxu0
        %v1759 = vadd.f32 0.0, %v1758
        %1760 = vmatmul.f32.gmra.mxu0 %v1734
        %v1761 = vpop.f32.mrf.mxu0
        %v1762 = vadd.f32 0.0, %v1761
        %1763 = vmatmul.f32.gmra.mxu0 %v1736
        %v1764 = vpop.f32.mrf.mxu0
        %v1765 = vadd.f32 0.0, %v1764
        %1766 = vdwg.mxu0
        %v1767 = vadd.f32 %v1707, %v1756
        %v1768 = vadd.f32 %v1710, %v1759
        %v1769 = vadd.f32 %v1713, %v1762
        %v1770 = vadd.f32 %v1716, %v1765
        %s1771 = scalar_lea.vmem [#allocation13], 48
        %v1772 = vld [vmem:[%s1771] sm:$0xff]
        %v1773 = vld [vmem:[%s1771 + $0x8] sm:$0xff]
        %vm1774 = vcmask 1044480
        %v1775 = vrot.slane %v1620, 3
        %v1776 = vrot.slane %v1621, 3
        %v1777 = vsel %vm1774, %v1775, %v1776
        %v1778 = vrot.slane %v1622, 3
        %v1779 = vsel %vm1774, %v1776, %v1778
        %v1780 = vrot.slane %v1623, 3
        %v1781 = vsel %vm1774, %v1778, %v1780
        %v1782 = vrot.slane %v1624, 3
        %v1783 = vsel %vm1774, %v1780, %v1782
        %v1784 = vsel %vm1359, %v1777, 0
        %v1786 = vsel %vm1359, %v1779, 0
        %v1788 = vsel %vm1359, %v1781, 0
        %v1790 = vsel %vm1359, %v1783, 0
        %1792 = vmatpush.msra.mxu0 0.0
        %1793 = vmatpush.msra.mxu0 0.0
        %1794 = vmatpush.msra.mxu0 0.0
        %1795 = vmatpush.msra.mxu0 0.0
        %1796 = vmatpush.msra.mxu0 0.0
        %1797 = vmatpush.msra.mxu0 0.0
        %1798 = vmatpush.msra.mxu0 0.0
        %1799 = vmatpush.msra.mxu0 0.0
        %1800 = vmatpush.msra.mxu0 0.0
        %1801 = vmatpush.msra.mxu0 0.0
        %1802 = vmatpush.msra.mxu0 0.0
        %1803 = vmatpush.msra.mxu0 0.0
        %1804 = vmatpush.msra.mxu0 0.0
        %1805 = vmatpush.msra.mxu0 0.0
        %1806 = vmatpush.msra.mxu0 %v1773
        %1807 = vmatpush.msra.mxu0 %v1772
        %1808 = vmatmul.f32.gmra.mxu0 %v1784
        %v1809 = vpop.f32.mrf.mxu0
        %v1810 = vadd.f32 0.0, %v1809
        %1811 = vmatmul.f32.gmra.mxu0 %v1786
        %v1812 = vpop.f32.mrf.mxu0
        %v1813 = vadd.f32 0.0, %v1812
        %1814 = vmatmul.f32.gmra.mxu0 %v1788
        %v1815 = vpop.f32.mrf.mxu0
        %v1816 = vadd.f32 0.0, %v1815
        %1817 = vmatmul.f32.gmra.mxu0 %v1790
        %v1818 = vpop.f32.mrf.mxu0
        %v1819 = vadd.f32 0.0, %v1818
        %1820 = vdwg.mxu0
        %v1821 = vadd.f32 %v1767, %v1810
        %v1822 = vadd.f32 %v1768, %v1813
        %v1823 = vadd.f32 %v1769, %v1816
        %v1824 = vadd.f32 %v1770, %v1819
        %s1825 = scalar_lea.vmem [#allocation13], 64
        %v1826 = vld [vmem:[%s1825] sm:$0xff]
        %v1827 = vld [vmem:[%s1825 + $0x8] sm:$0xff]
        %vm1828 = vcmask 1043456
        %v1829 = vrot.slane %v1620, 4
        %v1830 = vrot.slane %v1621, 4
        %v1831 = vsel %vm1828, %v1829, %v1830
        %v1832 = vrot.slane %v1622, 4
        %v1833 = vsel %vm1828, %v1830, %v1832
        %v1834 = vrot.slane %v1623, 4
        %v1835 = vsel %vm1828, %v1832, %v1834
        %v1836 = vrot.slane %v1624, 4
        %v1837 = vsel %vm1828, %v1834, %v1836
        %v1838 = vsel %vm1359, %v1831, 0
        %v1840 = vsel %vm1359, %v1833, 0
        %v1842 = vsel %vm1359, %v1835, 0
        %v1844 = vsel %vm1359, %v1837, 0
        %1846 = vmatpush.msra.mxu0 0.0
        %1847 = vmatpush.msra.mxu0 0.0
        %1848 = vmatpush.msra.mxu0 0.0
        %1849 = vmatpush.msra.mxu0 0.0
        %1850 = vmatpush.msra.mxu0 0.0
        %1851 = vmatpush.msra.mxu0 0.0
        %1852 = vmatpush.msra.mxu0 0.0
        %1853 = vmatpush.msra.mxu0 0.0
        %1854 = vmatpush.msra.mxu0 0.0
        %1855 = vmatpush.msra.mxu0 0.0
        %1856 = vmatpush.msra.mxu0 0.0
        %1857 = vmatpush.msra.mxu0 0.0
        %1858 = vmatpush.msra.mxu0 0.0
        %1859 = vmatpush.msra.mxu0 0.0
        %1860 = vmatpush.msra.mxu0 %v1827
        %1861 = vmatpush.msra.mxu0 %v1826
        %1862 = vmatmul.f32.gmra.mxu0 %v1838
        %v1863 = vpop.f32.mrf.mxu0
        %v1864 = vadd.f32 0.0, %v1863
        %1865 = vmatmul.f32.gmra.mxu0 %v1840
        %v1866 = vpop.f32.mrf.mxu0
        %v1867 = vadd.f32 0.0, %v1866
        %1868 = vmatmul.f32.gmra.mxu0 %v1842
        %v1869 = vpop.f32.mrf.mxu0
        %v1870 = vadd.f32 0.0, %v1869
        %1871 = vmatmul.f32.gmra.mxu0 %v1844
        %v1872 = vpop.f32.mrf.mxu0
        %v1873 = vadd.f32 0.0, %v1872
        %1874 = vdwg.mxu0
        %v1875 = vadd.f32 %v1821, %v1864
        %v1876 = vadd.f32 %v1822, %v1867
        %v1877 = vadd.f32 %v1823, %v1870
        %v1878 = vadd.f32 %v1824, %v1873
        %v1879 = vld [vmem:[#allocation14] sm:$0x1]
        %v1880 = vld [vmem:[#allocation14 + $0x1] sm:$0x1]
        %v1881 = vld [vmem:[#allocation14 + $0x2] sm:$0x1]
        %v1882 = vperm.slane %v1879, 0
        %v1883 = vadd.f32 %v1875, %v1882
        %v1884 = vadd.f32 %v1876, %v1882
        %v1885 = vadd.f32 %v1877, %v1882
        %v1886 = vadd.f32 %v1878, %v1882
        %v1887 = vmax.f32 %v1883, 0.0
        %v1888 = vmax.f32 %v1884, 0.0
        %v1889 = vmax.f32 %v1885, 0.0
        %v1890 = vmax.f32 %v1886, 0.0
        %v1891 = vperm.slane %v1880, 0
        %v1892 = vmul.f32 %v1887, %v1891
        %v1893 = vmul.f32 %v1888, %v1891
        %v1894 = vmul.f32 %v1889, %v1891
        %v1895 = vmul.f32 %v1890, %v1891
        %v1896 = vperm.slane %v1881, 0
        %v1897 = vadd.f32 %v1892, %v1896
        %v1898 = vadd.f32 %v1893, %v1896
        %v1899 = vadd.f32 %v1894, %v1896
        %v1900 = vadd.f32 %v1895, %v1896
        %v1901 = vld [vmem:[#allocation16] sm:$0xff]
        %v1902 = vld [vmem:[#allocation16 + $0x8] sm:$0xff]
        %v1903 = vld [vmem:[#allocation16 + $0x10] sm:$0xff]
        %v1904 = vld [vmem:[#allocation16 + $0x18] sm:$0xff]
        %v1905 = vld [vmem:[#allocation16 + $0x20] sm:$0xff]
        %v1906 = vld [vmem:[#allocation16 + $0x28] sm:$0xff]
        %v1907 = vld [vmem:[#allocation16 + $0x30] sm:$0xff]
        %v1908 = vld [vmem:[#allocation16 + $0x38] sm:$0xff]
        %v1909 = vld [vmem:[#allocation16 + $0x40] sm:$0xff]
        %v1910 = vld [vmem:[#allocation16 + $0x48] sm:$0xff]
        %v1911 = vld [vmem:[#allocation16 + $0x50] sm:$0xff]
        %v1912 = vld [vmem:[#allocation16 + $0x58] sm:$0xff]
        %v1913 = vld [vmem:[#allocation16 + $0x60] sm:$0xff]
        %v1914 = vld [vmem:[#allocation16 + $0x68] sm:$0xff]
        %v1915 = vld [vmem:[#allocation16 + $0x70] sm:$0xff]
        %v1916 = vld [vmem:[#allocation16 + $0x78] sm:$0xff]
        %s1917 = scalar_lea.vmem [#allocation16], 128
        %v1918 = vld [vmem:[%s1917] sm:$0xff]
        %v1919 = vld [vmem:[%s1917 + $0x8] sm:$0xff]
        %v1920 = vld [vmem:[%s1917 + $0x10] sm:$0xff]
        %v1921 = vld [vmem:[%s1917 + $0x18] sm:$0xff]
        %v1922 = vld [vmem:[%s1917 + $0x20] sm:$0xff]
        %v1923 = vld [vmem:[%s1917 + $0x28] sm:$0xff]
        %v1924 = vld [vmem:[%s1917 + $0x30] sm:$0xff]
        %v1925 = vld [vmem:[%s1917 + $0x38] sm:$0xff]
        %v1926 = vld [vmem:[%s1917 + $0x40] sm:$0xff]
        %v1927 = vld [vmem:[%s1917 + $0x48] sm:$0xff]
        %v1928 = vld [vmem:[%s1917 + $0x50] sm:$0xff]
        %v1929 = vld [vmem:[%s1917 + $0x58] sm:$0xff]
        %v1930 = vld [vmem:[%s1917 + $0x60] sm:$0xff]
        %v1931 = vld [vmem:[%s1917 + $0x68] sm:$0xff]
        %v1932 = vld [vmem:[%s1917 + $0x70] sm:$0xff]
        %v1933 = vld [vmem:[%s1917 + $0x78] sm:$0xff]
        %v1935 = vrot.slane %v1897, 1
        %v1936 = vsel %vm1359, %v1935, 0
        %1938 = vmatpush.msra.mxu0 0.0
        %1939 = vmatpush.msra.mxu0 0.0
        %1940 = vmatpush.msra.mxu0 0.0
        %1941 = vmatpush.msra.mxu0 0.0
        %1942 = vmatpush.msra.mxu0 0.0
        %1943 = vmatpush.msra.mxu0 0.0
        %1944 = vmatpush.msra.mxu0 0.0
        %1945 = vmatpush.msra.mxu0 0.0
        %1946 = vmatpush.msra.mxu0 0.0
        %1947 = vmatpush.msra.mxu0 0.0
        %1948 = vmatpush.msra.mxu0 0.0
        %1949 = vmatpush.msra.mxu0 0.0
        %1950 = vmatpush.msra.mxu0 0.0
        %1951 = vmatpush.msra.mxu0 0.0
        %1952 = vmatpush.msra.mxu0 %v1926
        %1953 = vmatpush.msra.mxu0 %v1918
        %1954 = vmatmul.f32.gmra.mxu0 %v1936
        %v1955 = vpop.f32.mrf.mxu0
        %v1956 = vadd.f32 0.0, %v1955
        %1957 = vdwg.mxu0
        %1958 = vmatpush.msra.mxu0 0.0
        %1959 = vmatpush.msra.mxu0 0.0
        %1960 = vmatpush.msra.mxu0 0.0
        %1961 = vmatpush.msra.mxu0 0.0
        %1962 = vmatpush.msra.mxu0 0.0
        %1963 = vmatpush.msra.mxu0 0.0
        %1964 = vmatpush.msra.mxu0 0.0
        %1965 = vmatpush.msra.mxu0 0.0
        %1966 = vmatpush.msra.mxu0 0.0
        %1967 = vmatpush.msra.mxu0 0.0
        %1968 = vmatpush.msra.mxu0 0.0
        %1969 = vmatpush.msra.mxu0 0.0
        %1970 = vmatpush.msra.mxu0 0.0
        %1971 = vmatpush.msra.mxu0 0.0
        %1972 = vmatpush.msra.mxu0 %v1927
        %1973 = vmatpush.msra.mxu0 %v1919
        %1974 = vmatmul.f32.gmra.mxu0 %v1936
        %v1975 = vpop.f32.mrf.mxu0
        %v1976 = vadd.f32 0.0, %v1975
        %1977 = vdwg.mxu0
        %1978 = vmatpush.msra.mxu0 0.0
        %1979 = vmatpush.msra.mxu0 0.0
        %1980 = vmatpush.msra.mxu0 0.0
        %1981 = vmatpush.msra.mxu0 0.0
        %1982 = vmatpush.msra.mxu0 0.0
        %1983 = vmatpush.msra.mxu0 0.0
        %1984 = vmatpush.msra.mxu0 0.0
        %1985 = vmatpush.msra.mxu0 0.0
        %1986 = vmatpush.msra.mxu0 0.0
        %1987 = vmatpush.msra.mxu0 0.0
        %1988 = vmatpush.msra.mxu0 0.0
        %1989 = vmatpush.msra.mxu0 0.0
        %1990 = vmatpush.msra.mxu0 0.0
        %1991 = vmatpush.msra.mxu0 0.0
        %1992 = vmatpush.msra.mxu0 %v1928
        %1993 = vmatpush.msra.mxu0 %v1920
        %1994 = vmatmul.f32.gmra.mxu0 %v1936
        %v1995 = vpop.f32.mrf.mxu0
        %v1996 = vadd.f32 0.0, %v1995
        %1997 = vdwg.mxu0
        %1998 = vmatpush.msra.mxu0 0.0
        %1999 = vmatpush.msra.mxu0 0.0
        %2000 = vmatpush.msra.mxu0 0.0
        %2001 = vmatpush.msra.mxu0 0.0
        %2002 = vmatpush.msra.mxu0 0.0
        %2003 = vmatpush.msra.mxu0 0.0
        %2004 = vmatpush.msra.mxu0 0.0
        %2005 = vmatpush.msra.mxu0 0.0
        %2006 = vmatpush.msra.mxu0 0.0
        %2007 = vmatpush.msra.mxu0 0.0
        %2008 = vmatpush.msra.mxu0 0.0
        %2009 = vmatpush.msra.mxu0 0.0
        %2010 = vmatpush.msra.mxu0 0.0
        %2011 = vmatpush.msra.mxu0 0.0
        %2012 = vmatpush.msra.mxu0 %v1929
        %2013 = vmatpush.msra.mxu0 %v1921
        %2014 = vmatmul.f32.gmra.mxu0 %v1936
        %v2015 = vpop.f32.mrf.mxu0
        %v2016 = vadd.f32 0.0, %v2015
        %2017 = vdwg.mxu0
        %2018 = vmatpush.msra.mxu0 0.0
        %2019 = vmatpush.msra.mxu0 0.0
        %2020 = vmatpush.msra.mxu0 0.0
        %2021 = vmatpush.msra.mxu0 0.0
        %2022 = vmatpush.msra.mxu0 0.0
        %2023 = vmatpush.msra.mxu0 0.0
        %2024 = vmatpush.msra.mxu0 0.0
        %2025 = vmatpush.msra.mxu0 0.0
        %2026 = vmatpush.msra.mxu0 0.0
        %2027 = vmatpush.msra.mxu0 0.0
        %2028 = vmatpush.msra.mxu0 0.0
        %2029 = vmatpush.msra.mxu0 0.0
        %2030 = vmatpush.msra.mxu0 0.0
        %2031 = vmatpush.msra.mxu0 0.0
        %2032 = vmatpush.msra.mxu0 %v1930
        %2033 = vmatpush.msra.mxu0 %v1922
        %2034 = vmatmul.f32.gmra.mxu0 %v1936
        %v2035 = vpop.f32.mrf.mxu0
        %v2036 = vadd.f32 0.0, %v2035
        %2037 = vdwg.mxu0
        %2038 = vmatpush.msra.mxu0 0.0
        %2039 = vmatpush.msra.mxu0 0.0
        %2040 = vmatpush.msra.mxu0 0.0
        %2041 = vmatpush.msra.mxu0 0.0
        %2042 = vmatpush.msra.mxu0 0.0
        %2043 = vmatpush.msra.mxu0 0.0
        %2044 = vmatpush.msra.mxu0 0.0
        %2045 = vmatpush.msra.mxu0 0.0
        %2046 = vmatpush.msra.mxu0 0.0
        %2047 = vmatpush.msra.mxu0 0.0
        %2048 = vmatpush.msra.mxu0 0.0
        %2049 = vmatpush.msra.mxu0 0.0
        %2050 = vmatpush.msra.mxu0 0.0
        %2051 = vmatpush.msra.mxu0 0.0
        %2052 = vmatpush.msra.mxu0 %v1931
        %2053 = vmatpush.msra.mxu0 %v1923
        %2054 = vmatmul.f32.gmra.mxu0 %v1936
        %v2055 = vpop.f32.mrf.mxu0
        %v2056 = vadd.f32 0.0, %v2055
        %2057 = vdwg.mxu0
        %2058 = vmatpush.msra.mxu0 0.0
        %2059 = vmatpush.msra.mxu0 0.0
        %2060 = vmatpush.msra.mxu0 0.0
        %2061 = vmatpush.msra.mxu0 0.0
        %2062 = vmatpush.msra.mxu0 0.0
        %2063 = vmatpush.msra.mxu0 0.0
        %2064 = vmatpush.msra.mxu0 0.0
        %2065 = vmatpush.msra.mxu0 0.0
        %2066 = vmatpush.msra.mxu0 0.0
        %2067 = vmatpush.msra.mxu0 0.0
        %2068 = vmatpush.msra.mxu0 0.0
        %2069 = vmatpush.msra.mxu0 0.0
        %2070 = vmatpush.msra.mxu0 0.0
        %2071 = vmatpush.msra.mxu0 0.0
        %2072 = vmatpush.msra.mxu0 %v1932
        %2073 = vmatpush.msra.mxu0 %v1924
        %2074 = vmatmul.f32.gmra.mxu0 %v1936
        %v2075 = vpop.f32.mrf.mxu0
        %v2076 = vadd.f32 0.0, %v2075
        %2077 = vdwg.mxu0
        %2078 = vmatpush.msra.mxu0 0.0
        %2079 = vmatpush.msra.mxu0 0.0
        %2080 = vmatpush.msra.mxu0 0.0
        %2081 = vmatpush.msra.mxu0 0.0
        %2082 = vmatpush.msra.mxu0 0.0
        %2083 = vmatpush.msra.mxu0 0.0
        %2084 = vmatpush.msra.mxu0 0.0
        %2085 = vmatpush.msra.mxu0 0.0
        %2086 = vmatpush.msra.mxu0 0.0
        %2087 = vmatpush.msra.mxu0 0.0
        %2088 = vmatpush.msra.mxu0 0.0
        %2089 = vmatpush.msra.mxu0 0.0
        %2090 = vmatpush.msra.mxu0 0.0
        %2091 = vmatpush.msra.mxu0 0.0
        %2092 = vmatpush.msra.mxu0 %v1933
        %2093 = vmatpush.msra.mxu0 %v1925
        %2094 = vmatmul.f32.gmra.mxu0 %v1936
        %v2095 = vpop.f32.mrf.mxu0
        %v2096 = vadd.f32 0.0, %v2095
        %2097 = vdwg.mxu0
        %v2098 = vsel %vm1359, %v1897, 0
        %2100 = vmatpush.msra.mxu0 0.0
        %2101 = vmatpush.msra.mxu0 0.0
        %2102 = vmatpush.msra.mxu0 0.0
        %2103 = vmatpush.msra.mxu0 0.0
        %2104 = vmatpush.msra.mxu0 0.0
        %2105 = vmatpush.msra.mxu0 0.0
        %2106 = vmatpush.msra.mxu0 0.0
        %2107 = vmatpush.msra.mxu0 0.0
        %2108 = vmatpush.msra.mxu0 0.0
        %2109 = vmatpush.msra.mxu0 0.0
        %2110 = vmatpush.msra.mxu0 0.0
        %2111 = vmatpush.msra.mxu0 0.0
        %2112 = vmatpush.msra.mxu0 0.0
        %2113 = vmatpush.msra.mxu0 0.0
        %2114 = vmatpush.msra.mxu0 %v1909
        %2115 = vmatpush.msra.mxu0 %v1901
        %2116 = vmatmul.f32.gmra.mxu0 %v2098
        %v2117 = vpop.f32.mrf.mxu0
        %v2118 = vadd.f32 %v1956, %v2117
        %2119 = vdwg.mxu0
        %2120 = vmatpush.msra.mxu0 0.0
        %2121 = vmatpush.msra.mxu0 0.0
        %2122 = vmatpush.msra.mxu0 0.0
        %2123 = vmatpush.msra.mxu0 0.0
        %2124 = vmatpush.msra.mxu0 0.0
        %2125 = vmatpush.msra.mxu0 0.0
        %2126 = vmatpush.msra.mxu0 0.0
        %2127 = vmatpush.msra.mxu0 0.0
        %2128 = vmatpush.msra.mxu0 0.0
        %2129 = vmatpush.msra.mxu0 0.0
        %2130 = vmatpush.msra.mxu0 0.0
        %2131 = vmatpush.msra.mxu0 0.0
        %2132 = vmatpush.msra.mxu0 0.0
        %2133 = vmatpush.msra.mxu0 0.0
        %2134 = vmatpush.msra.mxu0 %v1910
        %2135 = vmatpush.msra.mxu0 %v1902
        %2136 = vmatmul.f32.gmra.mxu0 %v2098
        %v2137 = vpop.f32.mrf.mxu0
        %v2138 = vadd.f32 %v1976, %v2137
        %2139 = vdwg.mxu0
        %2140 = vmatpush.msra.mxu0 0.0
        %2141 = vmatpush.msra.mxu0 0.0
        %2142 = vmatpush.msra.mxu0 0.0
        %2143 = vmatpush.msra.mxu0 0.0
        %2144 = vmatpush.msra.mxu0 0.0
        %2145 = vmatpush.msra.mxu0 0.0
        %2146 = vmatpush.msra.mxu0 0.0
        %2147 = vmatpush.msra.mxu0 0.0
        %2148 = vmatpush.msra.mxu0 0.0
        %2149 = vmatpush.msra.mxu0 0.0
        %2150 = vmatpush.msra.mxu0 0.0
        %2151 = vmatpush.msra.mxu0 0.0
        %2152 = vmatpush.msra.mxu0 0.0
        %2153 = vmatpush.msra.mxu0 0.0
        %2154 = vmatpush.msra.mxu0 %v1911
        %2155 = vmatpush.msra.mxu0 %v1903
        %2156 = vmatmul.f32.gmra.mxu0 %v2098
        %v2157 = vpop.f32.mrf.mxu0
        %v2158 = vadd.f32 %v1996, %v2157
        %2159 = vdwg.mxu0
        %2160 = vmatpush.msra.mxu0 0.0
        %2161 = vmatpush.msra.mxu0 0.0
        %2162 = vmatpush.msra.mxu0 0.0
        %2163 = vmatpush.msra.mxu0 0.0
        %2164 = vmatpush.msra.mxu0 0.0
        %2165 = vmatpush.msra.mxu0 0.0
        %2166 = vmatpush.msra.mxu0 0.0
        %2167 = vmatpush.msra.mxu0 0.0
        %2168 = vmatpush.msra.mxu0 0.0
        %2169 = vmatpush.msra.mxu0 0.0
        %2170 = vmatpush.msra.mxu0 0.0
        %2171 = vmatpush.msra.mxu0 0.0
        %2172 = vmatpush.msra.mxu0 0.0
        %2173 = vmatpush.msra.mxu0 0.0
        %2174 = vmatpush.msra.mxu0 %v1912
        %2175 = vmatpush.msra.mxu0 %v1904
        %2176 = vmatmul.f32.gmra.mxu0 %v2098
        %v2177 = vpop.f32.mrf.mxu0
        %v2178 = vadd.f32 %v2016, %v2177
        %2179 = vdwg.mxu0
        %2180 = vmatpush.msra.mxu0 0.0
        %2181 = vmatpush.msra.mxu0 0.0
        %2182 = vmatpush.msra.mxu0 0.0
        %2183 = vmatpush.msra.mxu0 0.0
        %2184 = vmatpush.msra.mxu0 0.0
        %2185 = vmatpush.msra.mxu0 0.0
        %2186 = vmatpush.msra.mxu0 0.0
        %2187 = vmatpush.msra.mxu0 0.0
        %2188 = vmatpush.msra.mxu0 0.0
        %2189 = vmatpush.msra.mxu0 0.0
        %2190 = vmatpush.msra.mxu0 0.0
        %2191 = vmatpush.msra.mxu0 0.0
        %2192 = vmatpush.msra.mxu0 0.0
        %2193 = vmatpush.msra.mxu0 0.0
        %2194 = vmatpush.msra.mxu0 %v1913
        %2195 = vmatpush.msra.mxu0 %v1905
        %2196 = vmatmul.f32.gmra.mxu0 %v2098
        %v2197 = vpop.f32.mrf.mxu0
        %v2198 = vadd.f32 %v2036, %v2197
        %2199 = vdwg.mxu0
        %2200 = vmatpush.msra.mxu0 0.0
        %2201 = vmatpush.msra.mxu0 0.0
        %2202 = vmatpush.msra.mxu0 0.0
        %2203 = vmatpush.msra.mxu0 0.0
        %2204 = vmatpush.msra.mxu0 0.0
        %2205 = vmatpush.msra.mxu0 0.0
        %2206 = vmatpush.msra.mxu0 0.0
        %2207 = vmatpush.msra.mxu0 0.0
        %2208 = vmatpush.msra.mxu0 0.0
        %2209 = vmatpush.msra.mxu0 0.0
        %2210 = vmatpush.msra.mxu0 0.0
        %2211 = vmatpush.msra.mxu0 0.0
        %2212 = vmatpush.msra.mxu0 0.0
        %2213 = vmatpush.msra.mxu0 0.0
        %2214 = vmatpush.msra.mxu0 %v1914
        %2215 = vmatpush.msra.mxu0 %v1906
        %2216 = vmatmul.f32.gmra.mxu0 %v2098
        %v2217 = vpop.f32.mrf.mxu0
        %v2218 = vadd.f32 %v2056, %v2217
        %2219 = vdwg.mxu0
        %2220 = vmatpush.msra.mxu0 0.0
        %2221 = vmatpush.msra.mxu0 0.0
        %2222 = vmatpush.msra.mxu0 0.0
        %2223 = vmatpush.msra.mxu0 0.0
        %2224 = vmatpush.msra.mxu0 0.0
        %2225 = vmatpush.msra.mxu0 0.0
        %2226 = vmatpush.msra.mxu0 0.0
        %2227 = vmatpush.msra.mxu0 0.0
        %2228 = vmatpush.msra.mxu0 0.0
        %2229 = vmatpush.msra.mxu0 0.0
        %2230 = vmatpush.msra.mxu0 0.0
        %2231 = vmatpush.msra.mxu0 0.0
        %2232 = vmatpush.msra.mxu0 0.0
        %2233 = vmatpush.msra.mxu0 0.0
        %2234 = vmatpush.msra.mxu0 %v1915
        %2235 = vmatpush.msra.mxu0 %v1907
        %2236 = vmatmul.f32.gmra.mxu0 %v2098
        %v2237 = vpop.f32.mrf.mxu0
        %v2238 = vadd.f32 %v2076, %v2237
        %2239 = vdwg.mxu0
        %2240 = vmatpush.msra.mxu0 0.0
        %2241 = vmatpush.msra.mxu0 0.0
        %2242 = vmatpush.msra.mxu0 0.0
        %2243 = vmatpush.msra.mxu0 0.0
        %2244 = vmatpush.msra.mxu0 0.0
        %2245 = vmatpush.msra.mxu0 0.0
        %2246 = vmatpush.msra.mxu0 0.0
        %2247 = vmatpush.msra.mxu0 0.0
        %2248 = vmatpush.msra.mxu0 0.0
        %2249 = vmatpush.msra.mxu0 0.0
        %2250 = vmatpush.msra.mxu0 0.0
        %2251 = vmatpush.msra.mxu0 0.0
        %2252 = vmatpush.msra.mxu0 0.0
        %2253 = vmatpush.msra.mxu0 0.0
        %2254 = vmatpush.msra.mxu0 %v1916
        %2255 = vmatpush.msra.mxu0 %v1908
        %2256 = vmatmul.f32.gmra.mxu0 %v2098
        %v2257 = vpop.f32.mrf.mxu0
        %v2258 = vadd.f32 %v2096, %v2257
        %2259 = vdwg.mxu0
        %s2260 = scalar_lea.vmem [#allocation16], 256
        %v2261 = vld [vmem:[%s2260] sm:$0xff]
        %v2262 = vld [vmem:[%s2260 + $0x8] sm:$0xff]
        %v2263 = vld [vmem:[%s2260 + $0x10] sm:$0xff]
        %v2264 = vld [vmem:[%s2260 + $0x18] sm:$0xff]
        %v2265 = vld [vmem:[%s2260 + $0x20] sm:$0xff]
        %v2266 = vld [vmem:[%s2260 + $0x28] sm:$0xff]
        %v2267 = vld [vmem:[%s2260 + $0x30] sm:$0xff]
        %v2268 = vld [vmem:[%s2260 + $0x38] sm:$0xff]
        %v2269 = vld [vmem:[%s2260 + $0x40] sm:$0xff]
        %v2270 = vld [vmem:[%s2260 + $0x48] sm:$0xff]
        %v2271 = vld [vmem:[%s2260 + $0x50] sm:$0xff]
        %v2272 = vld [vmem:[%s2260 + $0x58] sm:$0xff]
        %v2273 = vld [vmem:[%s2260 + $0x60] sm:$0xff]
        %v2274 = vld [vmem:[%s2260 + $0x68] sm:$0xff]
        %v2275 = vld [vmem:[%s2260 + $0x70] sm:$0xff]
        %v2276 = vld [vmem:[%s2260 + $0x78] sm:$0xff]
        %v2277 = vrot.slane %v1897, 2
        %v2278 = vsel %vm1359, %v2277, 0
        %2280 = vmatpush.msra.mxu0 0.0
        %2281 = vmatpush.msra.mxu0 0.0
        %2282 = vmatpush.msra.mxu0 0.0
        %2283 = vmatpush.msra.mxu0 0.0
        %2284 = vmatpush.msra.mxu0 0.0
        %2285 = vmatpush.msra.mxu0 0.0
        %2286 = vmatpush.msra.mxu0 0.0
        %2287 = vmatpush.msra.mxu0 0.0
        %2288 = vmatpush.msra.mxu0 0.0
        %2289 = vmatpush.msra.mxu0 0.0
        %2290 = vmatpush.msra.mxu0 0.0
        %2291 = vmatpush.msra.mxu0 0.0
        %2292 = vmatpush.msra.mxu0 0.0
        %2293 = vmatpush.msra.mxu0 0.0
        %2294 = vmatpush.msra.mxu0 %v2269
        %2295 = vmatpush.msra.mxu0 %v2261
        %2296 = vmatmul.f32.gmra.mxu0 %v2278
        %v2297 = vpop.f32.mrf.mxu0
        %v2298 = vadd.f32 0.0, %v2297
        %2299 = vdwg.mxu0
        %2300 = vmatpush.msra.mxu0 0.0
        %2301 = vmatpush.msra.mxu0 0.0
        %2302 = vmatpush.msra.mxu0 0.0
        %2303 = vmatpush.msra.mxu0 0.0
        %2304 = vmatpush.msra.mxu0 0.0
        %2305 = vmatpush.msra.mxu0 0.0
        %2306 = vmatpush.msra.mxu0 0.0
        %2307 = vmatpush.msra.mxu0 0.0
        %2308 = vmatpush.msra.mxu0 0.0
        %2309 = vmatpush.msra.mxu0 0.0
        %2310 = vmatpush.msra.mxu0 0.0
        %2311 = vmatpush.msra.mxu0 0.0
        %2312 = vmatpush.msra.mxu0 0.0
        %2313 = vmatpush.msra.mxu0 0.0
        %2314 = vmatpush.msra.mxu0 %v2270
        %2315 = vmatpush.msra.mxu0 %v2262
        %2316 = vmatmul.f32.gmra.mxu0 %v2278
        %v2317 = vpop.f32.mrf.mxu0
        %v2318 = vadd.f32 0.0, %v2317
        %2319 = vdwg.mxu0
        %2320 = vmatpush.msra.mxu0 0.0
        %2321 = vmatpush.msra.mxu0 0.0
        %2322 = vmatpush.msra.mxu0 0.0
        %2323 = vmatpush.msra.mxu0 0.0
        %2324 = vmatpush.msra.mxu0 0.0
        %2325 = vmatpush.msra.mxu0 0.0
        %2326 = vmatpush.msra.mxu0 0.0
        %2327 = vmatpush.msra.mxu0 0.0
        %2328 = vmatpush.msra.mxu0 0.0
        %2329 = vmatpush.msra.mxu0 0.0
        %2330 = vmatpush.msra.mxu0 0.0
        %2331 = vmatpush.msra.mxu0 0.0
        %2332 = vmatpush.msra.mxu0 0.0
        %2333 = vmatpush.msra.mxu0 0.0
        %2334 = vmatpush.msra.mxu0 %v2271
        %2335 = vmatpush.msra.mxu0 %v2263
        %2336 = vmatmul.f32.gmra.mxu0 %v2278
        %v2337 = vpop.f32.mrf.mxu0
        %v2338 = vadd.f32 0.0, %v2337
        %2339 = vdwg.mxu0
        %2340 = vmatpush.msra.mxu0 0.0
        %2341 = vmatpush.msra.mxu0 0.0
        %2342 = vmatpush.msra.mxu0 0.0
        %2343 = vmatpush.msra.mxu0 0.0
        %2344 = vmatpush.msra.mxu0 0.0
        %2345 = vmatpush.msra.mxu0 0.0
        %2346 = vmatpush.msra.mxu0 0.0
        %2347 = vmatpush.msra.mxu0 0.0
        %2348 = vmatpush.msra.mxu0 0.0
        %2349 = vmatpush.msra.mxu0 0.0
        %2350 = vmatpush.msra.mxu0 0.0
        %2351 = vmatpush.msra.mxu0 0.0
        %2352 = vmatpush.msra.mxu0 0.0
        %2353 = vmatpush.msra.mxu0 0.0
        %2354 = vmatpush.msra.mxu0 %v2272
        %2355 = vmatpush.msra.mxu0 %v2264
        %2356 = vmatmul.f32.gmra.mxu0 %v2278
        %v2357 = vpop.f32.mrf.mxu0
        %v2358 = vadd.f32 0.0, %v2357
        %2359 = vdwg.mxu0
        %2360 = vmatpush.msra.mxu0 0.0
        %2361 = vmatpush.msra.mxu0 0.0
        %2362 = vmatpush.msra.mxu0 0.0
        %2363 = vmatpush.msra.mxu0 0.0
        %2364 = vmatpush.msra.mxu0 0.0
        %2365 = vmatpush.msra.mxu0 0.0
        %2366 = vmatpush.msra.mxu0 0.0
        %2367 = vmatpush.msra.mxu0 0.0
        %2368 = vmatpush.msra.mxu0 0.0
        %2369 = vmatpush.msra.mxu0 0.0
        %2370 = vmatpush.msra.mxu0 0.0
        %2371 = vmatpush.msra.mxu0 0.0
        %2372 = vmatpush.msra.mxu0 0.0
        %2373 = vmatpush.msra.mxu0 0.0
        %2374 = vmatpush.msra.mxu0 %v2273
        %2375 = vmatpush.msra.mxu0 %v2265
        %2376 = vmatmul.f32.gmra.mxu0 %v2278
        %v2377 = vpop.f32.mrf.mxu0
        %v2378 = vadd.f32 0.0, %v2377
        %2379 = vdwg.mxu0
        %2380 = vmatpush.msra.mxu0 0.0
        %2381 = vmatpush.msra.mxu0 0.0
        %2382 = vmatpush.msra.mxu0 0.0
        %2383 = vmatpush.msra.mxu0 0.0
        %2384 = vmatpush.msra.mxu0 0.0
        %2385 = vmatpush.msra.mxu0 0.0
        %2386 = vmatpush.msra.mxu0 0.0
        %2387 = vmatpush.msra.mxu0 0.0
        %2388 = vmatpush.msra.mxu0 0.0
        %2389 = vmatpush.msra.mxu0 0.0
        %2390 = vmatpush.msra.mxu0 0.0
        %2391 = vmatpush.msra.mxu0 0.0
        %2392 = vmatpush.msra.mxu0 0.0
        %2393 = vmatpush.msra.mxu0 0.0
        %2394 = vmatpush.msra.mxu0 %v2274
        %2395 = vmatpush.msra.mxu0 %v2266
        %2396 = vmatmul.f32.gmra.mxu0 %v2278
        %v2397 = vpop.f32.mrf.mxu0
        %v2398 = vadd.f32 0.0, %v2397
        %2399 = vdwg.mxu0
        %2400 = vmatpush.msra.mxu0 0.0
        %2401 = vmatpush.msra.mxu0 0.0
        %2402 = vmatpush.msra.mxu0 0.0
        %2403 = vmatpush.msra.mxu0 0.0
        %2404 = vmatpush.msra.mxu0 0.0
        %2405 = vmatpush.msra.mxu0 0.0
        %2406 = vmatpush.msra.mxu0 0.0
        %2407 = vmatpush.msra.mxu0 0.0
        %2408 = vmatpush.msra.mxu0 0.0
        %2409 = vmatpush.msra.mxu0 0.0
        %2410 = vmatpush.msra.mxu0 0.0
        %2411 = vmatpush.msra.mxu0 0.0
        %2412 = vmatpush.msra.mxu0 0.0
        %2413 = vmatpush.msra.mxu0 0.0
        %2414 = vmatpush.msra.mxu0 %v2275
        %2415 = vmatpush.msra.mxu0 %v2267
        %2416 = vmatmul.f32.gmra.mxu0 %v2278
        %v2417 = vpop.f32.mrf.mxu0
        %v2418 = vadd.f32 0.0, %v2417
        %2419 = vdwg.mxu0
        %2420 = vmatpush.msra.mxu0 0.0
        %2421 = vmatpush.msra.mxu0 0.0
        %2422 = vmatpush.msra.mxu0 0.0
        %2423 = vmatpush.msra.mxu0 0.0
        %2424 = vmatpush.msra.mxu0 0.0
        %2425 = vmatpush.msra.mxu0 0.0
        %2426 = vmatpush.msra.mxu0 0.0
        %2427 = vmatpush.msra.mxu0 0.0
        %2428 = vmatpush.msra.mxu0 0.0
        %2429 = vmatpush.msra.mxu0 0.0
        %2430 = vmatpush.msra.mxu0 0.0
        %2431 = vmatpush.msra.mxu0 0.0
        %2432 = vmatpush.msra.mxu0 0.0
        %2433 = vmatpush.msra.mxu0 0.0
        %2434 = vmatpush.msra.mxu0 %v2276
        %2435 = vmatpush.msra.mxu0 %v2268
        %2436 = vmatmul.f32.gmra.mxu0 %v2278
        %v2437 = vpop.f32.mrf.mxu0
        %v2438 = vadd.f32 0.0, %v2437
        %2439 = vdwg.mxu0
        %v2440 = vadd.f32 %v2118, %v2298
        %v2441 = vadd.f32 %v2138, %v2318
        %v2442 = vadd.f32 %v2158, %v2338
        %v2443 = vadd.f32 %v2178, %v2358
        %v2444 = vadd.f32 %v2198, %v2378
        %v2445 = vadd.f32 %v2218, %v2398
        %v2446 = vadd.f32 %v2238, %v2418
        %v2447 = vadd.f32 %v2258, %v2438
        %s2448 = scalar_lea.vmem [#allocation16], 384
        %v2449 = vld [vmem:[%s2448] sm:$0xff]
        %v2450 = vld [vmem:[%s2448 + $0x8] sm:$0xff]
        %v2451 = vld [vmem:[%s2448 + $0x10] sm:$0xff]
        %v2452 = vld [vmem:[%s2448 + $0x18] sm:$0xff]
        %v2453 = vld [vmem:[%s2448 + $0x20] sm:$0xff]
        %v2454 = vld [vmem:[%s2448 + $0x28] sm:$0xff]
        %v2455 = vld [vmem:[%s2448 + $0x30] sm:$0xff]
        %v2456 = vld [vmem:[%s2448 + $0x38] sm:$0xff]
        %v2457 = vld [vmem:[%s2448 + $0x40] sm:$0xff]
        %v2458 = vld [vmem:[%s2448 + $0x48] sm:$0xff]
        %v2459 = vld [vmem:[%s2448 + $0x50] sm:$0xff]
        %v2460 = vld [vmem:[%s2448 + $0x58] sm:$0xff]
        %v2461 = vld [vmem:[%s2448 + $0x60] sm:$0xff]
        %v2462 = vld [vmem:[%s2448 + $0x68] sm:$0xff]
        %v2463 = vld [vmem:[%s2448 + $0x70] sm:$0xff]
        %v2464 = vld [vmem:[%s2448 + $0x78] sm:$0xff]
        %v2465 = vrot.slane %v1897, 3
        %v2466 = vsel %vm1359, %v2465, 0
        %2468 = vmatpush.msra.mxu0 0.0
        %2469 = vmatpush.msra.mxu0 0.0
        %2470 = vmatpush.msra.mxu0 0.0
        %2471 = vmatpush.msra.mxu0 0.0
        %2472 = vmatpush.msra.mxu0 0.0
        %2473 = vmatpush.msra.mxu0 0.0
        %2474 = vmatpush.msra.mxu0 0.0
        %2475 = vmatpush.msra.mxu0 0.0
        %2476 = vmatpush.msra.mxu0 0.0
        %2477 = vmatpush.msra.mxu0 0.0
        %2478 = vmatpush.msra.mxu0 0.0
        %2479 = vmatpush.msra.mxu0 0.0
        %2480 = vmatpush.msra.mxu0 0.0
        %2481 = vmatpush.msra.mxu0 0.0
        %2482 = vmatpush.msra.mxu0 %v2457
        %2483 = vmatpush.msra.mxu0 %v2449
        %2484 = vmatmul.f32.gmra.mxu0 %v2466
        %v2485 = vpop.f32.mrf.mxu0
        %v2486 = vadd.f32 0.0, %v2485
        %2487 = vdwg.mxu0
        %2488 = vmatpush.msra.mxu0 0.0
        %2489 = vmatpush.msra.mxu0 0.0
        %2490 = vmatpush.msra.mxu0 0.0
        %2491 = vmatpush.msra.mxu0 0.0
        %2492 = vmatpush.msra.mxu0 0.0
        %2493 = vmatpush.msra.mxu0 0.0
        %2494 = vmatpush.msra.mxu0 0.0
        %2495 = vmatpush.msra.mxu0 0.0
        %2496 = vmatpush.msra.mxu0 0.0
        %2497 = vmatpush.msra.mxu0 0.0
        %2498 = vmatpush.msra.mxu0 0.0
        %2499 = vmatpush.msra.mxu0 0.0
        %2500 = vmatpush.msra.mxu0 0.0
        %2501 = vmatpush.msra.mxu0 0.0
        %2502 = vmatpush.msra.mxu0 %v2458
        %2503 = vmatpush.msra.mxu0 %v2450
        %2504 = vmatmul.f32.gmra.mxu0 %v2466
        %v2505 = vpop.f32.mrf.mxu0
        %v2506 = vadd.f32 0.0, %v2505
        %2507 = vdwg.mxu0
        %2508 = vmatpush.msra.mxu0 0.0
        %2509 = vmatpush.msra.mxu0 0.0
        %2510 = vmatpush.msra.mxu0 0.0
        %2511 = vmatpush.msra.mxu0 0.0
        %2512 = vmatpush.msra.mxu0 0.0
        %2513 = vmatpush.msra.mxu0 0.0
        %2514 = vmatpush.msra.mxu0 0.0
        %2515 = vmatpush.msra.mxu0 0.0
        %2516 = vmatpush.msra.mxu0 0.0
        %2517 = vmatpush.msra.mxu0 0.0
        %2518 = vmatpush.msra.mxu0 0.0
        %2519 = vmatpush.msra.mxu0 0.0
        %2520 = vmatpush.msra.mxu0 0.0
        %2521 = vmatpush.msra.mxu0 0.0
        %2522 = vmatpush.msra.mxu0 %v2459
        %2523 = vmatpush.msra.mxu0 %v2451
        %2524 = vmatmul.f32.gmra.mxu0 %v2466
        %v2525 = vpop.f32.mrf.mxu0
        %v2526 = vadd.f32 0.0, %v2525
        %2527 = vdwg.mxu0
        %2528 = vmatpush.msra.mxu0 0.0
        %2529 = vmatpush.msra.mxu0 0.0
        %2530 = vmatpush.msra.mxu0 0.0
        %2531 = vmatpush.msra.mxu0 0.0
        %2532 = vmatpush.msra.mxu0 0.0
        %2533 = vmatpush.msra.mxu0 0.0
        %2534 = vmatpush.msra.mxu0 0.0
        %2535 = vmatpush.msra.mxu0 0.0
        %2536 = vmatpush.msra.mxu0 0.0
        %2537 = vmatpush.msra.mxu0 0.0
        %2538 = vmatpush.msra.mxu0 0.0
        %2539 = vmatpush.msra.mxu0 0.0
        %2540 = vmatpush.msra.mxu0 0.0
        %2541 = vmatpush.msra.mxu0 0.0
        %2542 = vmatpush.msra.mxu0 %v2460
        %2543 = vmatpush.msra.mxu0 %v2452
        %2544 = vmatmul.f32.gmra.mxu0 %v2466
        %v2545 = vpop.f32.mrf.mxu0
        %v2546 = vadd.f32 0.0, %v2545
        %2547 = vdwg.mxu0
        %2548 = vmatpush.msra.mxu0 0.0
        %2549 = vmatpush.msra.mxu0 0.0
        %2550 = vmatpush.msra.mxu0 0.0
        %2551 = vmatpush.msra.mxu0 0.0
        %2552 = vmatpush.msra.mxu0 0.0
        %2553 = vmatpush.msra.mxu0 0.0
        %2554 = vmatpush.msra.mxu0 0.0
        %2555 = vmatpush.msra.mxu0 0.0
        %2556 = vmatpush.msra.mxu0 0.0
        %2557 = vmatpush.msra.mxu0 0.0
        %2558 = vmatpush.msra.mxu0 0.0
        %2559 = vmatpush.msra.mxu0 0.0
        %2560 = vmatpush.msra.mxu0 0.0
        %2561 = vmatpush.msra.mxu0 0.0
        %2562 = vmatpush.msra.mxu0 %v2461
        %2563 = vmatpush.msra.mxu0 %v2453
        %2564 = vmatmul.f32.gmra.mxu0 %v2466
        %v2565 = vpop.f32.mrf.mxu0
        %v2566 = vadd.f32 0.0, %v2565
        %2567 = vdwg.mxu0
        %2568 = vmatpush.msra.mxu0 0.0
        %2569 = vmatpush.msra.mxu0 0.0
        %2570 = vmatpush.msra.mxu0 0.0
        %2571 = vmatpush.msra.mxu0 0.0
        %2572 = vmatpush.msra.mxu0 0.0
        %2573 = vmatpush.msra.mxu0 0.0
        %2574 = vmatpush.msra.mxu0 0.0
        %2575 = vmatpush.msra.mxu0 0.0
        %2576 = vmatpush.msra.mxu0 0.0
        %2577 = vmatpush.msra.mxu0 0.0
        %2578 = vmatpush.msra.mxu0 0.0
        %2579 = vmatpush.msra.mxu0 0.0
        %2580 = vmatpush.msra.mxu0 0.0
        %2581 = vmatpush.msra.mxu0 0.0
        %2582 = vmatpush.msra.mxu0 %v2462
        %2583 = vmatpush.msra.mxu0 %v2454
        %2584 = vmatmul.f32.gmra.mxu0 %v2466
        %v2585 = vpop.f32.mrf.mxu0
        %v2586 = vadd.f32 0.0, %v2585
        %2587 = vdwg.mxu0
        %2588 = vmatpush.msra.mxu0 0.0
        %2589 = vmatpush.msra.mxu0 0.0
        %2590 = vmatpush.msra.mxu0 0.0
        %2591 = vmatpush.msra.mxu0 0.0
        %2592 = vmatpush.msra.mxu0 0.0
        %2593 = vmatpush.msra.mxu0 0.0
        %2594 = vmatpush.msra.mxu0 0.0
        %2595 = vmatpush.msra.mxu0 0.0
        %2596 = vmatpush.msra.mxu0 0.0
        %2597 = vmatpush.msra.mxu0 0.0
        %2598 = vmatpush.msra.mxu0 0.0
        %2599 = vmatpush.msra.mxu0 0.0
        %2600 = vmatpush.msra.mxu0 0.0
        %2601 = vmatpush.msra.mxu0 0.0
        %2602 = vmatpush.msra.mxu0 %v2463
        %2603 = vmatpush.msra.mxu0 %v2455
        %2604 = vmatmul.f32.gmra.mxu0 %v2466
        %v2605 = vpop.f32.mrf.mxu0
        %v2606 = vadd.f32 0.0, %v2605
        %2607 = vdwg.mxu0
        %2608 = vmatpush.msra.mxu0 0.0
        %2609 = vmatpush.msra.mxu0 0.0
        %2610 = vmatpush.msra.mxu0 0.0
        %2611 = vmatpush.msra.mxu0 0.0
        %2612 = vmatpush.msra.mxu0 0.0
        %2613 = vmatpush.msra.mxu0 0.0
        %2614 = vmatpush.msra.mxu0 0.0
        %2615 = vmatpush.msra.mxu0 0.0
        %2616 = vmatpush.msra.mxu0 0.0
        %2617 = vmatpush.msra.mxu0 0.0
        %2618 = vmatpush.msra.mxu0 0.0
        %2619 = vmatpush.msra.mxu0 0.0
        %2620 = vmatpush.msra.mxu0 0.0
        %2621 = vmatpush.msra.mxu0 0.0
        %2622 = vmatpush.msra.mxu0 %v2464
        %2623 = vmatpush.msra.mxu0 %v2456
        %2624 = vmatmul.f32.gmra.mxu0 %v2466
        %v2625 = vpop.f32.mrf.mxu0
        %v2626 = vadd.f32 0.0, %v2625
        %2627 = vdwg.mxu0
        %v2628 = vadd.f32 %v2440, %v2486
        %v2629 = vadd.f32 %v2441, %v2506
        %v2630 = vadd.f32 %v2442, %v2526
        %v2631 = vadd.f32 %v2443, %v2546
        %v2632 = vadd.f32 %v2444, %v2566
        %v2633 = vadd.f32 %v2445, %v2586
        %v2634 = vadd.f32 %v2446, %v2606
        %v2635 = vadd.f32 %v2447, %v2626
        %s2636 = scalar_lea.vmem [#allocation16], 512
        %v2637 = vld [vmem:[%s2636] sm:$0xff]
        %v2638 = vld [vmem:[%s2636 + $0x8] sm:$0xff]
        %v2639 = vld [vmem:[%s2636 + $0x10] sm:$0xff]
        %v2640 = vld [vmem:[%s2636 + $0x18] sm:$0xff]
        %v2641 = vld [vmem:[%s2636 + $0x20] sm:$0xff]
        %v2642 = vld [vmem:[%s2636 + $0x28] sm:$0xff]
        %v2643 = vld [vmem:[%s2636 + $0x30] sm:$0xff]
        %v2644 = vld [vmem:[%s2636 + $0x38] sm:$0xff]
        %v2645 = vld [vmem:[%s2636 + $0x40] sm:$0xff]
        %v2646 = vld [vmem:[%s2636 + $0x48] sm:$0xff]
        %v2647 = vld [vmem:[%s2636 + $0x50] sm:$0xff]
        %v2648 = vld [vmem:[%s2636 + $0x58] sm:$0xff]
        %v2649 = vld [vmem:[%s2636 + $0x60] sm:$0xff]
        %v2650 = vld [vmem:[%s2636 + $0x68] sm:$0xff]
        %v2651 = vld [vmem:[%s2636 + $0x70] sm:$0xff]
        %v2652 = vld [vmem:[%s2636 + $0x78] sm:$0xff]
        %v2653 = vrot.slane %v1897, 4
        %v2654 = vsel %vm1359, %v2653, 0
        %2656 = vmatpush.msra.mxu0 0.0
        %2657 = vmatpush.msra.mxu0 0.0
        %2658 = vmatpush.msra.mxu0 0.0
        %2659 = vmatpush.msra.mxu0 0.0
        %2660 = vmatpush.msra.mxu0 0.0
        %2661 = vmatpush.msra.mxu0 0.0
        %2662 = vmatpush.msra.mxu0 0.0
        %2663 = vmatpush.msra.mxu0 0.0
        %2664 = vmatpush.msra.mxu0 0.0
        %2665 = vmatpush.msra.mxu0 0.0
        %2666 = vmatpush.msra.mxu0 0.0
        %2667 = vmatpush.msra.mxu0 0.0
        %2668 = vmatpush.msra.mxu0 0.0
        %2669 = vmatpush.msra.mxu0 0.0
        %2670 = vmatpush.msra.mxu0 %v2645
        %2671 = vmatpush.msra.mxu0 %v2637
        %2672 = vmatmul.f32.gmra.mxu0 %v2654
        %v2673 = vpop.f32.mrf.mxu0
        %v2674 = vadd.f32 0.0, %v2673
        %2675 = vdwg.mxu0
        %2676 = vmatpush.msra.mxu0 0.0
        %2677 = vmatpush.msra.mxu0 0.0
        %2678 = vmatpush.msra.mxu0 0.0
        %2679 = vmatpush.msra.mxu0 0.0
        %2680 = vmatpush.msra.mxu0 0.0
        %2681 = vmatpush.msra.mxu0 0.0
        %2682 = vmatpush.msra.mxu0 0.0
        %2683 = vmatpush.msra.mxu0 0.0
        %2684 = vmatpush.msra.mxu0 0.0
        %2685 = vmatpush.msra.mxu0 0.0
        %2686 = vmatpush.msra.mxu0 0.0
        %2687 = vmatpush.msra.mxu0 0.0
        %2688 = vmatpush.msra.mxu0 0.0
        %2689 = vmatpush.msra.mxu0 0.0
        %2690 = vmatpush.msra.mxu0 %v2646
        %2691 = vmatpush.msra.mxu0 %v2638
        %2692 = vmatmul.f32.gmra.mxu0 %v2654
        %v2693 = vpop.f32.mrf.mxu0
        %v2694 = vadd.f32 0.0, %v2693
        %2695 = vdwg.mxu0
        %2696 = vmatpush.msra.mxu0 0.0
        %2697 = vmatpush.msra.mxu0 0.0
        %2698 = vmatpush.msra.mxu0 0.0
        %2699 = vmatpush.msra.mxu0 0.0
        %2700 = vmatpush.msra.mxu0 0.0
        %2701 = vmatpush.msra.mxu0 0.0
        %2702 = vmatpush.msra.mxu0 0.0
        %2703 = vmatpush.msra.mxu0 0.0
        %2704 = vmatpush.msra.mxu0 0.0
        %2705 = vmatpush.msra.mxu0 0.0
        %2706 = vmatpush.msra.mxu0 0.0
        %2707 = vmatpush.msra.mxu0 0.0
        %2708 = vmatpush.msra.mxu0 0.0
        %2709 = vmatpush.msra.mxu0 0.0
        %2710 = vmatpush.msra.mxu0 %v2647
        %2711 = vmatpush.msra.mxu0 %v2639
        %2712 = vmatmul.f32.gmra.mxu0 %v2654
        %v2713 = vpop.f32.mrf.mxu0
        %v2714 = vadd.f32 0.0, %v2713
        %2715 = vdwg.mxu0
        %2716 = vmatpush.msra.mxu0 0.0
        %2717 = vmatpush.msra.mxu0 0.0
        %2718 = vmatpush.msra.mxu0 0.0
        %2719 = vmatpush.msra.mxu0 0.0
        %2720 = vmatpush.msra.mxu0 0.0
        %2721 = vmatpush.msra.mxu0 0.0
        %2722 = vmatpush.msra.mxu0 0.0
        %2723 = vmatpush.msra.mxu0 0.0
        %2724 = vmatpush.msra.mxu0 0.0
        %2725 = vmatpush.msra.mxu0 0.0
        %2726 = vmatpush.msra.mxu0 0.0
        %2727 = vmatpush.msra.mxu0 0.0
        %2728 = vmatpush.msra.mxu0 0.0
        %2729 = vmatpush.msra.mxu0 0.0
        %2730 = vmatpush.msra.mxu0 %v2648
        %2731 = vmatpush.msra.mxu0 %v2640
        %2732 = vmatmul.f32.gmra.mxu0 %v2654
        %v2733 = vpop.f32.mrf.mxu0
        %v2734 = vadd.f32 0.0, %v2733
        %2735 = vdwg.mxu0
        %2736 = vmatpush.msra.mxu0 0.0
        %2737 = vmatpush.msra.mxu0 0.0
        %2738 = vmatpush.msra.mxu0 0.0
        %2739 = vmatpush.msra.mxu0 0.0
        %2740 = vmatpush.msra.mxu0 0.0
        %2741 = vmatpush.msra.mxu0 0.0
        %2742 = vmatpush.msra.mxu0 0.0
        %2743 = vmatpush.msra.mxu0 0.0
        %2744 = vmatpush.msra.mxu0 0.0
        %2745 = vmatpush.msra.mxu0 0.0
        %2746 = vmatpush.msra.mxu0 0.0
        %2747 = vmatpush.msra.mxu0 0.0
        %2748 = vmatpush.msra.mxu0 0.0
        %2749 = vmatpush.msra.mxu0 0.0
        %2750 = vmatpush.msra.mxu0 %v2649
        %2751 = vmatpush.msra.mxu0 %v2641
        %2752 = vmatmul.f32.gmra.mxu0 %v2654
        %v2753 = vpop.f32.mrf.mxu0
        %v2754 = vadd.f32 0.0, %v2753
        %2755 = vdwg.mxu0
        %2756 = vmatpush.msra.mxu0 0.0
        %2757 = vmatpush.msra.mxu0 0.0
        %2758 = vmatpush.msra.mxu0 0.0
        %2759 = vmatpush.msra.mxu0 0.0
        %2760 = vmatpush.msra.mxu0 0.0
        %2761 = vmatpush.msra.mxu0 0.0
        %2762 = vmatpush.msra.mxu0 0.0
        %2763 = vmatpush.msra.mxu0 0.0
        %2764 = vmatpush.msra.mxu0 0.0
        %2765 = vmatpush.msra.mxu0 0.0
        %2766 = vmatpush.msra.mxu0 0.0
        %2767 = vmatpush.msra.mxu0 0.0
        %2768 = vmatpush.msra.mxu0 0.0
        %2769 = vmatpush.msra.mxu0 0.0
        %2770 = vmatpush.msra.mxu0 %v2650
        %2771 = vmatpush.msra.mxu0 %v2642
        %2772 = vmatmul.f32.gmra.mxu0 %v2654
        %v2773 = vpop.f32.mrf.mxu0
        %v2774 = vadd.f32 0.0, %v2773
        %2775 = vdwg.mxu0
        %2776 = vmatpush.msra.mxu0 0.0
        %2777 = vmatpush.msra.mxu0 0.0
        %2778 = vmatpush.msra.mxu0 0.0
        %2779 = vmatpush.msra.mxu0 0.0
        %2780 = vmatpush.msra.mxu0 0.0
        %2781 = vmatpush.msra.mxu0 0.0
        %2782 = vmatpush.msra.mxu0 0.0
        %2783 = vmatpush.msra.mxu0 0.0
        %2784 = vmatpush.msra.mxu0 0.0
        %2785 = vmatpush.msra.mxu0 0.0
        %2786 = vmatpush.msra.mxu0 0.0
        %2787 = vmatpush.msra.mxu0 0.0
        %2788 = vmatpush.msra.mxu0 0.0
        %2789 = vmatpush.msra.mxu0 0.0
        %2790 = vmatpush.msra.mxu0 %v2651
        %2791 = vmatpush.msra.mxu0 %v2643
        %2792 = vmatmul.f32.gmra.mxu0 %v2654
        %v2793 = vpop.f32.mrf.mxu0
        %v2794 = vadd.f32 0.0, %v2793
        %2795 = vdwg.mxu0
        %2796 = vmatpush.msra.mxu0 0.0
        %2797 = vmatpush.msra.mxu0 0.0
        %2798 = vmatpush.msra.mxu0 0.0
        %2799 = vmatpush.msra.mxu0 0.0
        %2800 = vmatpush.msra.mxu0 0.0
        %2801 = vmatpush.msra.mxu0 0.0
        %2802 = vmatpush.msra.mxu0 0.0
        %2803 = vmatpush.msra.mxu0 0.0
        %2804 = vmatpush.msra.mxu0 0.0
        %2805 = vmatpush.msra.mxu0 0.0
        %2806 = vmatpush.msra.mxu0 0.0
        %2807 = vmatpush.msra.mxu0 0.0
        %2808 = vmatpush.msra.mxu0 0.0
        %2809 = vmatpush.msra.mxu0 0.0
        %2810 = vmatpush.msra.mxu0 %v2652
        %2811 = vmatpush.msra.mxu0 %v2644
        %2812 = vmatmul.f32.gmra.mxu0 %v2654
        %v2813 = vpop.f32.mrf.mxu0
        %v2814 = vadd.f32 0.0, %v2813
        %2815 = vdwg.mxu0
        %v2816 = vadd.f32 %v2628, %v2674
        %v2817 = vadd.f32 %v2629, %v2694
        %v2818 = vadd.f32 %v2630, %v2714
        %v2819 = vadd.f32 %v2631, %v2734
        %v2820 = vadd.f32 %v2632, %v2754
        %v2821 = vadd.f32 %v2633, %v2774
        %v2822 = vadd.f32 %v2634, %v2794
        %v2823 = vadd.f32 %v2635, %v2814
        %s2824 = scalar_lea.vmem [#allocation16], 640
        %v2825 = vld [vmem:[%s2824] sm:$0xff]
        %v2826 = vld [vmem:[%s2824 + $0x8] sm:$0xff]
        %v2827 = vld [vmem:[%s2824 + $0x10] sm:$0xff]
        %v2828 = vld [vmem:[%s2824 + $0x18] sm:$0xff]
        %v2829 = vld [vmem:[%s2824 + $0x20] sm:$0xff]
        %v2830 = vld [vmem:[%s2824 + $0x28] sm:$0xff]
        %v2831 = vld [vmem:[%s2824 + $0x30] sm:$0xff]
        %v2832 = vld [vmem:[%s2824 + $0x38] sm:$0xff]
        %v2833 = vld [vmem:[%s2824 + $0x40] sm:$0xff]
        %v2834 = vld [vmem:[%s2824 + $0x48] sm:$0xff]
        %v2835 = vld [vmem:[%s2824 + $0x50] sm:$0xff]
        %v2836 = vld [vmem:[%s2824 + $0x58] sm:$0xff]
        %v2837 = vld [vmem:[%s2824 + $0x60] sm:$0xff]
        %v2838 = vld [vmem:[%s2824 + $0x68] sm:$0xff]
        %v2839 = vld [vmem:[%s2824 + $0x70] sm:$0xff]
        %v2840 = vld [vmem:[%s2824 + $0x78] sm:$0xff]
        %v2841 = vrot.slane %v1897, 5
        %v2842 = vsel %vm1359, %v2841, 0
        %2844 = vmatpush.msra.mxu0 0.0
        %2845 = vmatpush.msra.mxu0 0.0
        %2846 = vmatpush.msra.mxu0 0.0
        %2847 = vmatpush.msra.mxu0 0.0
        %2848 = vmatpush.msra.mxu0 0.0
        %2849 = vmatpush.msra.mxu0 0.0
        %2850 = vmatpush.msra.mxu0 0.0
        %2851 = vmatpush.msra.mxu0 0.0
        %2852 = vmatpush.msra.mxu0 0.0
        %2853 = vmatpush.msra.mxu0 0.0
        %2854 = vmatpush.msra.mxu0 0.0
        %2855 = vmatpush.msra.mxu0 0.0
        %2856 = vmatpush.msra.mxu0 0.0
        %2857 = vmatpush.msra.mxu0 0.0
        %2858 = vmatpush.msra.mxu0 %v2833
        %2859 = vmatpush.msra.mxu0 %v2825
        %2860 = vmatmul.f32.gmra.mxu0 %v2842
        %v2861 = vpop.f32.mrf.mxu0
        %v2862 = vadd.f32 0.0, %v2861
        %2863 = vdwg.mxu0
        %2864 = vmatpush.msra.mxu0 0.0
        %2865 = vmatpush.msra.mxu0 0.0
        %2866 = vmatpush.msra.mxu0 0.0
        %2867 = vmatpush.msra.mxu0 0.0
        %2868 = vmatpush.msra.mxu0 0.0
        %2869 = vmatpush.msra.mxu0 0.0
        %2870 = vmatpush.msra.mxu0 0.0
        %2871 = vmatpush.msra.mxu0 0.0
        %2872 = vmatpush.msra.mxu0 0.0
        %2873 = vmatpush.msra.mxu0 0.0
        %2874 = vmatpush.msra.mxu0 0.0
        %2875 = vmatpush.msra.mxu0 0.0
        %2876 = vmatpush.msra.mxu0 0.0
        %2877 = vmatpush.msra.mxu0 0.0
        %2878 = vmatpush.msra.mxu0 %v2834
        %2879 = vmatpush.msra.mxu0 %v2826
        %2880 = vmatmul.f32.gmra.mxu0 %v2842
        %v2881 = vpop.f32.mrf.mxu0
        %v2882 = vadd.f32 0.0, %v2881
        %2883 = vdwg.mxu0
        %2884 = vmatpush.msra.mxu0 0.0
        %2885 = vmatpush.msra.mxu0 0.0
        %2886 = vmatpush.msra.mxu0 0.0
        %2887 = vmatpush.msra.mxu0 0.0
        %2888 = vmatpush.msra.mxu0 0.0
        %2889 = vmatpush.msra.mxu0 0.0
        %2890 = vmatpush.msra.mxu0 0.0
        %2891 = vmatpush.msra.mxu0 0.0
        %2892 = vmatpush.msra.mxu0 0.0
        %2893 = vmatpush.msra.mxu0 0.0
        %2894 = vmatpush.msra.mxu0 0.0
        %2895 = vmatpush.msra.mxu0 0.0
        %2896 = vmatpush.msra.mxu0 0.0
        %2897 = vmatpush.msra.mxu0 0.0
        %2898 = vmatpush.msra.mxu0 %v2835
        %2899 = vmatpush.msra.mxu0 %v2827
        %2900 = vmatmul.f32.gmra.mxu0 %v2842
        %v2901 = vpop.f32.mrf.mxu0
        %v2902 = vadd.f32 0.0, %v2901
        %2903 = vdwg.mxu0
        %2904 = vmatpush.msra.mxu0 0.0
        %2905 = vmatpush.msra.mxu0 0.0
        %2906 = vmatpush.msra.mxu0 0.0
        %2907 = vmatpush.msra.mxu0 0.0
        %2908 = vmatpush.msra.mxu0 0.0
        %2909 = vmatpush.msra.mxu0 0.0
        %2910 = vmatpush.msra.mxu0 0.0
        %2911 = vmatpush.msra.mxu0 0.0
        %2912 = vmatpush.msra.mxu0 0.0
        %2913 = vmatpush.msra.mxu0 0.0
        %2914 = vmatpush.msra.mxu0 0.0
        %2915 = vmatpush.msra.mxu0 0.0
        %2916 = vmatpush.msra.mxu0 0.0
        %2917 = vmatpush.msra.mxu0 0.0
        %2918 = vmatpush.msra.mxu0 %v2836
        %2919 = vmatpush.msra.mxu0 %v2828
        %2920 = vmatmul.f32.gmra.mxu0 %v2842
        %v2921 = vpop.f32.mrf.mxu0
        %v2922 = vadd.f32 0.0, %v2921
        %2923 = vdwg.mxu0
        %2924 = vmatpush.msra.mxu0 0.0
        %2925 = vmatpush.msra.mxu0 0.0
        %2926 = vmatpush.msra.mxu0 0.0
        %2927 = vmatpush.msra.mxu0 0.0
        %2928 = vmatpush.msra.mxu0 0.0
        %2929 = vmatpush.msra.mxu0 0.0
        %2930 = vmatpush.msra.mxu0 0.0
        %2931 = vmatpush.msra.mxu0 0.0
        %2932 = vmatpush.msra.mxu0 0.0
        %2933 = vmatpush.msra.mxu0 0.0
        %2934 = vmatpush.msra.mxu0 0.0
        %2935 = vmatpush.msra.mxu0 0.0
        %2936 = vmatpush.msra.mxu0 0.0
        %2937 = vmatpush.msra.mxu0 0.0
        %2938 = vmatpush.msra.mxu0 %v2837
        %2939 = vmatpush.msra.mxu0 %v2829
        %2940 = vmatmul.f32.gmra.mxu0 %v2842
        %v2941 = vpop.f32.mrf.mxu0
        %v2942 = vadd.f32 0.0, %v2941
        %2943 = vdwg.mxu0
        %2944 = vmatpush.msra.mxu0 0.0
        %2945 = vmatpush.msra.mxu0 0.0
        %2946 = vmatpush.msra.mxu0 0.0
        %2947 = vmatpush.msra.mxu0 0.0
        %2948 = vmatpush.msra.mxu0 0.0
        %2949 = vmatpush.msra.mxu0 0.0
        %2950 = vmatpush.msra.mxu0 0.0
        %2951 = vmatpush.msra.mxu0 0.0
        %2952 = vmatpush.msra.mxu0 0.0
        %2953 = vmatpush.msra.mxu0 0.0
        %2954 = vmatpush.msra.mxu0 0.0
        %2955 = vmatpush.msra.mxu0 0.0
        %2956 = vmatpush.msra.mxu0 0.0
        %2957 = vmatpush.msra.mxu0 0.0
        %2958 = vmatpush.msra.mxu0 %v2838
        %2959 = vmatpush.msra.mxu0 %v2830
        %2960 = vmatmul.f32.gmra.mxu0 %v2842
        %v2961 = vpop.f32.mrf.mxu0
        %v2962 = vadd.f32 0.0, %v2961
        %2963 = vdwg.mxu0
        %2964 = vmatpush.msra.mxu0 0.0
        %2965 = vmatpush.msra.mxu0 0.0
        %2966 = vmatpush.msra.mxu0 0.0
        %2967 = vmatpush.msra.mxu0 0.0
        %2968 = vmatpush.msra.mxu0 0.0
        %2969 = vmatpush.msra.mxu0 0.0
        %2970 = vmatpush.msra.mxu0 0.0
        %2971 = vmatpush.msra.mxu0 0.0
        %2972 = vmatpush.msra.mxu0 0.0
        %2973 = vmatpush.msra.mxu0 0.0
        %2974 = vmatpush.msra.mxu0 0.0
        %2975 = vmatpush.msra.mxu0 0.0
        %2976 = vmatpush.msra.mxu0 0.0
        %2977 = vmatpush.msra.mxu0 0.0
        %2978 = vmatpush.msra.mxu0 %v2839
        %2979 = vmatpush.msra.mxu0 %v2831
        %2980 = vmatmul.f32.gmra.mxu0 %v2842
        %v2981 = vpop.f32.mrf.mxu0
        %v2982 = vadd.f32 0.0, %v2981
        %2983 = vdwg.mxu0
        %2984 = vmatpush.msra.mxu0 0.0
        %2985 = vmatpush.msra.mxu0 0.0
        %2986 = vmatpush.msra.mxu0 0.0
        %2987 = vmatpush.msra.mxu0 0.0
        %2988 = vmatpush.msra.mxu0 0.0
        %2989 = vmatpush.msra.mxu0 0.0
        %2990 = vmatpush.msra.mxu0 0.0
        %2991 = vmatpush.msra.mxu0 0.0
        %2992 = vmatpush.msra.mxu0 0.0
        %2993 = vmatpush.msra.mxu0 0.0
        %2994 = vmatpush.msra.mxu0 0.0
        %2995 = vmatpush.msra.mxu0 0.0
        %2996 = vmatpush.msra.mxu0 0.0
        %2997 = vmatpush.msra.mxu0 0.0
        %2998 = vmatpush.msra.mxu0 %v2840
        %2999 = vmatpush.msra.mxu0 %v2832
        %3000 = vmatmul.f32.gmra.mxu0 %v2842
        %v3001 = vpop.f32.mrf.mxu0
        %v3002 = vadd.f32 0.0, %v3001
        %3003 = vdwg.mxu0
        %v3004 = vadd.f32 %v2816, %v2862
        %v3005 = vadd.f32 %v2817, %v2882
        %v3006 = vadd.f32 %v2818, %v2902
        %v3007 = vadd.f32 %v2819, %v2922
        %v3008 = vadd.f32 %v2820, %v2942
        %v3009 = vadd.f32 %v2821, %v2962
        %v3010 = vadd.f32 %v2822, %v2982
        %v3011 = vadd.f32 %v2823, %v3002
        %s3012 = scalar_lea.vmem [#allocation16], 768
        %v3013 = vld [vmem:[%s3012] sm:$0xff]
        %v3014 = vld [vmem:[%s3012 + $0x8] sm:$0xff]
        %v3015 = vld [vmem:[%s3012 + $0x10] sm:$0xff]
        %v3016 = vld [vmem:[%s3012 + $0x18] sm:$0xff]
        %v3017 = vld [vmem:[%s3012 + $0x20] sm:$0xff]
        %v3018 = vld [vmem:[%s3012 + $0x28] sm:$0xff]
        %v3019 = vld [vmem:[%s3012 + $0x30] sm:$0xff]
        %v3020 = vld [vmem:[%s3012 + $0x38] sm:$0xff]
        %v3021 = vld [vmem:[%s3012 + $0x40] sm:$0xff]
        %v3022 = vld [vmem:[%s3012 + $0x48] sm:$0xff]
        %v3023 = vld [vmem:[%s3012 + $0x50] sm:$0xff]
        %v3024 = vld [vmem:[%s3012 + $0x58] sm:$0xff]
        %v3025 = vld [vmem:[%s3012 + $0x60] sm:$0xff]
        %v3026 = vld [vmem:[%s3012 + $0x68] sm:$0xff]
        %v3027 = vld [vmem:[%s3012 + $0x70] sm:$0xff]
        %v3028 = vld [vmem:[%s3012 + $0x78] sm:$0xff]
        %v3029 = vrot.slane %v1897, 6
        %v3030 = vsel %vm1359, %v3029, 0
        %3032 = vmatpush.msra.mxu0 0.0
        %3033 = vmatpush.msra.mxu0 0.0
        %3034 = vmatpush.msra.mxu0 0.0
        %3035 = vmatpush.msra.mxu0 0.0
        %3036 = vmatpush.msra.mxu0 0.0
        %3037 = vmatpush.msra.mxu0 0.0
        %3038 = vmatpush.msra.mxu0 0.0
        %3039 = vmatpush.msra.mxu0 0.0
        %3040 = vmatpush.msra.mxu0 0.0
        %3041 = vmatpush.msra.mxu0 0.0
        %3042 = vmatpush.msra.mxu0 0.0
        %3043 = vmatpush.msra.mxu0 0.0
        %3044 = vmatpush.msra.mxu0 0.0
        %3045 = vmatpush.msra.mxu0 0.0
        %3046 = vmatpush.msra.mxu0 %v3021
        %3047 = vmatpush.msra.mxu0 %v3013
        %3048 = vmatmul.f32.gmra.mxu0 %v3030
        %v3049 = vpop.f32.mrf.mxu0
        %v3050 = vadd.f32 0.0, %v3049
        %3051 = vdwg.mxu0
        %3052 = vmatpush.msra.mxu0 0.0
        %3053 = vmatpush.msra.mxu0 0.0
        %3054 = vmatpush.msra.mxu0 0.0
        %3055 = vmatpush.msra.mxu0 0.0
        %3056 = vmatpush.msra.mxu0 0.0
        %3057 = vmatpush.msra.mxu0 0.0
        %3058 = vmatpush.msra.mxu0 0.0
        %3059 = vmatpush.msra.mxu0 0.0
        %3060 = vmatpush.msra.mxu0 0.0
        %3061 = vmatpush.msra.mxu0 0.0
        %3062 = vmatpush.msra.mxu0 0.0
        %3063 = vmatpush.msra.mxu0 0.0
        %3064 = vmatpush.msra.mxu0 0.0
        %3065 = vmatpush.msra.mxu0 0.0
        %3066 = vmatpush.msra.mxu0 %v3022
        %3067 = vmatpush.msra.mxu0 %v3014
        %3068 = vmatmul.f32.gmra.mxu0 %v3030
        %v3069 = vpop.f32.mrf.mxu0
        %v3070 = vadd.f32 0.0, %v3069
        %3071 = vdwg.mxu0
        %3072 = vmatpush.msra.mxu0 0.0
        %3073 = vmatpush.msra.mxu0 0.0
        %3074 = vmatpush.msra.mxu0 0.0
        %3075 = vmatpush.msra.mxu0 0.0
        %3076 = vmatpush.msra.mxu0 0.0
        %3077 = vmatpush.msra.mxu0 0.0
        %3078 = vmatpush.msra.mxu0 0.0
        %3079 = vmatpush.msra.mxu0 0.0
        %3080 = vmatpush.msra.mxu0 0.0
        %3081 = vmatpush.msra.mxu0 0.0
        %3082 = vmatpush.msra.mxu0 0.0
        %3083 = vmatpush.msra.mxu0 0.0
        %3084 = vmatpush.msra.mxu0 0.0
        %3085 = vmatpush.msra.mxu0 0.0
        %3086 = vmatpush.msra.mxu0 %v3023
        %3087 = vmatpush.msra.mxu0 %v3015
        %3088 = vmatmul.f32.gmra.mxu0 %v3030
        %v3089 = vpop.f32.mrf.mxu0
        %v3090 = vadd.f32 0.0, %v3089
        %3091 = vdwg.mxu0
        %3092 = vmatpush.msra.mxu0 0.0
        %3093 = vmatpush.msra.mxu0 0.0
        %3094 = vmatpush.msra.mxu0 0.0
        %3095 = vmatpush.msra.mxu0 0.0
        %3096 = vmatpush.msra.mxu0 0.0
        %3097 = vmatpush.msra.mxu0 0.0
        %3098 = vmatpush.msra.mxu0 0.0
        %3099 = vmatpush.msra.mxu0 0.0
        %3100 = vmatpush.msra.mxu0 0.0
        %3101 = vmatpush.msra.mxu0 0.0
        %3102 = vmatpush.msra.mxu0 0.0
        %3103 = vmatpush.msra.mxu0 0.0
        %3104 = vmatpush.msra.mxu0 0.0
        %3105 = vmatpush.msra.mxu0 0.0
        %3106 = vmatpush.msra.mxu0 %v3024
        %3107 = vmatpush.msra.mxu0 %v3016
        %3108 = vmatmul.f32.gmra.mxu0 %v3030
        %v3109 = vpop.f32.mrf.mxu0
        %v3110 = vadd.f32 0.0, %v3109
        %3111 = vdwg.mxu0
        %3112 = vmatpush.msra.mxu0 0.0
        %3113 = vmatpush.msra.mxu0 0.0
        %3114 = vmatpush.msra.mxu0 0.0
        %3115 = vmatpush.msra.mxu0 0.0
        %3116 = vmatpush.msra.mxu0 0.0
        %3117 = vmatpush.msra.mxu0 0.0
        %3118 = vmatpush.msra.mxu0 0.0
        %3119 = vmatpush.msra.mxu0 0.0
        %3120 = vmatpush.msra.mxu0 0.0
        %3121 = vmatpush.msra.mxu0 0.0
        %3122 = vmatpush.msra.mxu0 0.0
        %3123 = vmatpush.msra.mxu0 0.0
        %3124 = vmatpush.msra.mxu0 0.0
        %3125 = vmatpush.msra.mxu0 0.0
        %3126 = vmatpush.msra.mxu0 %v3025
        %3127 = vmatpush.msra.mxu0 %v3017
        %3128 = vmatmul.f32.gmra.mxu0 %v3030
        %v3129 = vpop.f32.mrf.mxu0
        %v3130 = vadd.f32 0.0, %v3129
        %3131 = vdwg.mxu0
        %3132 = vmatpush.msra.mxu0 0.0
        %3133 = vmatpush.msra.mxu0 0.0
        %3134 = vmatpush.msra.mxu0 0.0
        %3135 = vmatpush.msra.mxu0 0.0
        %3136 = vmatpush.msra.mxu0 0.0
        %3137 = vmatpush.msra.mxu0 0.0
        %3138 = vmatpush.msra.mxu0 0.0
        %3139 = vmatpush.msra.mxu0 0.0
        %3140 = vmatpush.msra.mxu0 0.0
        %3141 = vmatpush.msra.mxu0 0.0
        %3142 = vmatpush.msra.mxu0 0.0
        %3143 = vmatpush.msra.mxu0 0.0
        %3144 = vmatpush.msra.mxu0 0.0
        %3145 = vmatpush.msra.mxu0 0.0
        %3146 = vmatpush.msra.mxu0 %v3026
        %3147 = vmatpush.msra.mxu0 %v3018
        %3148 = vmatmul.f32.gmra.mxu0 %v3030
        %v3149 = vpop.f32.mrf.mxu0
        %v3150 = vadd.f32 0.0, %v3149
        %3151 = vdwg.mxu0
        %3152 = vmatpush.msra.mxu0 0.0
        %3153 = vmatpush.msra.mxu0 0.0
        %3154 = vmatpush.msra.mxu0 0.0
        %3155 = vmatpush.msra.mxu0 0.0
        %3156 = vmatpush.msra.mxu0 0.0
        %3157 = vmatpush.msra.mxu0 0.0
        %3158 = vmatpush.msra.mxu0 0.0
        %3159 = vmatpush.msra.mxu0 0.0
        %3160 = vmatpush.msra.mxu0 0.0
        %3161 = vmatpush.msra.mxu0 0.0
        %3162 = vmatpush.msra.mxu0 0.0
        %3163 = vmatpush.msra.mxu0 0.0
        %3164 = vmatpush.msra.mxu0 0.0
        %3165 = vmatpush.msra.mxu0 0.0
        %3166 = vmatpush.msra.mxu0 %v3027
        %3167 = vmatpush.msra.mxu0 %v3019
        %3168 = vmatmul.f32.gmra.mxu0 %v3030
        %v3169 = vpop.f32.mrf.mxu0
        %v3170 = vadd.f32 0.0, %v3169
        %3171 = vdwg.mxu0
        %3172 = vmatpush.msra.mxu0 0.0
        %3173 = vmatpush.msra.mxu0 0.0
        %3174 = vmatpush.msra.mxu0 0.0
        %3175 = vmatpush.msra.mxu0 0.0
        %3176 = vmatpush.msra.mxu0 0.0
        %3177 = vmatpush.msra.mxu0 0.0
        %3178 = vmatpush.msra.mxu0 0.0
        %3179 = vmatpush.msra.mxu0 0.0
        %3180 = vmatpush.msra.mxu0 0.0
        %3181 = vmatpush.msra.mxu0 0.0
        %3182 = vmatpush.msra.mxu0 0.0
        %3183 = vmatpush.msra.mxu0 0.0
        %3184 = vmatpush.msra.mxu0 0.0
        %3185 = vmatpush.msra.mxu0 0.0
        %3186 = vmatpush.msra.mxu0 %v3028
        %3187 = vmatpush.msra.mxu0 %v3020
        %3188 = vmatmul.f32.gmra.mxu0 %v3030
        %v3189 = vpop.f32.mrf.mxu0
        %v3190 = vadd.f32 0.0, %v3189
        %3191 = vdwg.mxu0
        %v3192 = vadd.f32 %v3004, %v3050
        %v3193 = vadd.f32 %v3005, %v3070
        %v3194 = vadd.f32 %v3006, %v3090
        %v3195 = vadd.f32 %v3007, %v3110
        %v3196 = vadd.f32 %v3008, %v3130
        %v3197 = vadd.f32 %v3009, %v3150
        %v3198 = vadd.f32 %v3010, %v3170
        %v3199 = vadd.f32 %v3011, %v3190
        %s3200 = scalar_lea.vmem [#allocation16], 896
        %v3201 = vld [vmem:[%s3200] sm:$0xff]
        %v3202 = vld [vmem:[%s3200 + $0x8] sm:$0xff]
        %v3203 = vld [vmem:[%s3200 + $0x10] sm:$0xff]
        %v3204 = vld [vmem:[%s3200 + $0x18] sm:$0xff]
        %v3205 = vld [vmem:[%s3200 + $0x20] sm:$0xff]
        %v3206 = vld [vmem:[%s3200 + $0x28] sm:$0xff]
        %v3207 = vld [vmem:[%s3200 + $0x30] sm:$0xff]
        %v3208 = vld [vmem:[%s3200 + $0x38] sm:$0xff]
        %v3209 = vld [vmem:[%s3200 + $0x40] sm:$0xff]
        %v3210 = vld [vmem:[%s3200 + $0x48] sm:$0xff]
        %v3211 = vld [vmem:[%s3200 + $0x50] sm:$0xff]
        %v3212 = vld [vmem:[%s3200 + $0x58] sm:$0xff]
        %v3213 = vld [vmem:[%s3200 + $0x60] sm:$0xff]
        %v3214 = vld [vmem:[%s3200 + $0x68] sm:$0xff]
        %v3215 = vld [vmem:[%s3200 + $0x70] sm:$0xff]
        %v3216 = vld [vmem:[%s3200 + $0x78] sm:$0xff]
        %v3217 = vrot.slane %v1897, 7
        %v3218 = vsel %vm1359, %v3217, 0
        %3220 = vmatpush.msra.mxu0 0.0
        %3221 = vmatpush.msra.mxu0 0.0
        %3222 = vmatpush.msra.mxu0 0.0
        %3223 = vmatpush.msra.mxu0 0.0
        %3224 = vmatpush.msra.mxu0 0.0
        %3225 = vmatpush.msra.mxu0 0.0
        %3226 = vmatpush.msra.mxu0 0.0
        %3227 = vmatpush.msra.mxu0 0.0
        %3228 = vmatpush.msra.mxu0 0.0
        %3229 = vmatpush.msra.mxu0 0.0
        %3230 = vmatpush.msra.mxu0 0.0
        %3231 = vmatpush.msra.mxu0 0.0
        %3232 = vmatpush.msra.mxu0 0.0
        %3233 = vmatpush.msra.mxu0 0.0
        %3234 = vmatpush.msra.mxu0 %v3209
        %3235 = vmatpush.msra.mxu0 %v3201
        %3236 = vmatmul.f32.gmra.mxu0 %v3218
        %v3237 = vpop.f32.mrf.mxu0
        %v3238 = vadd.f32 0.0, %v3237
        %3239 = vdwg.mxu0
        %3240 = vmatpush.msra.mxu0 0.0
        %3241 = vmatpush.msra.mxu0 0.0
        %3242 = vmatpush.msra.mxu0 0.0
        %3243 = vmatpush.msra.mxu0 0.0
        %3244 = vmatpush.msra.mxu0 0.0
        %3245 = vmatpush.msra.mxu0 0.0
        %3246 = vmatpush.msra.mxu0 0.0
        %3247 = vmatpush.msra.mxu0 0.0
        %3248 = vmatpush.msra.mxu0 0.0
        %3249 = vmatpush.msra.mxu0 0.0
        %3250 = vmatpush.msra.mxu0 0.0
        %3251 = vmatpush.msra.mxu0 0.0
        %3252 = vmatpush.msra.mxu0 0.0
        %3253 = vmatpush.msra.mxu0 0.0
        %3254 = vmatpush.msra.mxu0 %v3210
        %3255 = vmatpush.msra.mxu0 %v3202
        %3256 = vmatmul.f32.gmra.mxu0 %v3218
        %v3257 = vpop.f32.mrf.mxu0
        %v3258 = vadd.f32 0.0, %v3257
        %3259 = vdwg.mxu0
        %3260 = vmatpush.msra.mxu0 0.0
        %3261 = vmatpush.msra.mxu0 0.0
        %3262 = vmatpush.msra.mxu0 0.0
        %3263 = vmatpush.msra.mxu0 0.0
        %3264 = vmatpush.msra.mxu0 0.0
        %3265 = vmatpush.msra.mxu0 0.0
        %3266 = vmatpush.msra.mxu0 0.0
        %3267 = vmatpush.msra.mxu0 0.0
        %3268 = vmatpush.msra.mxu0 0.0
        %3269 = vmatpush.msra.mxu0 0.0
        %3270 = vmatpush.msra.mxu0 0.0
        %3271 = vmatpush.msra.mxu0 0.0
        %3272 = vmatpush.msra.mxu0 0.0
        %3273 = vmatpush.msra.mxu0 0.0
        %3274 = vmatpush.msra.mxu0 %v3211
        %3275 = vmatpush.msra.mxu0 %v3203
        %3276 = vmatmul.f32.gmra.mxu0 %v3218
        %v3277 = vpop.f32.mrf.mxu0
        %v3278 = vadd.f32 0.0, %v3277
        %3279 = vdwg.mxu0
        %3280 = vmatpush.msra.mxu0 0.0
        %3281 = vmatpush.msra.mxu0 0.0
        %3282 = vmatpush.msra.mxu0 0.0
        %3283 = vmatpush.msra.mxu0 0.0
        %3284 = vmatpush.msra.mxu0 0.0
        %3285 = vmatpush.msra.mxu0 0.0
        %3286 = vmatpush.msra.mxu0 0.0
        %3287 = vmatpush.msra.mxu0 0.0
        %3288 = vmatpush.msra.mxu0 0.0
        %3289 = vmatpush.msra.mxu0 0.0
        %3290 = vmatpush.msra.mxu0 0.0
        %3291 = vmatpush.msra.mxu0 0.0
        %3292 = vmatpush.msra.mxu0 0.0
        %3293 = vmatpush.msra.mxu0 0.0
        %3294 = vmatpush.msra.mxu0 %v3212
        %3295 = vmatpush.msra.mxu0 %v3204
        %3296 = vmatmul.f32.gmra.mxu0 %v3218
        %v3297 = vpop.f32.mrf.mxu0
        %v3298 = vadd.f32 0.0, %v3297
        %3299 = vdwg.mxu0
        %3300 = vmatpush.msra.mxu0 0.0
        %3301 = vmatpush.msra.mxu0 0.0
        %3302 = vmatpush.msra.mxu0 0.0
        %3303 = vmatpush.msra.mxu0 0.0
        %3304 = vmatpush.msra.mxu0 0.0
        %3305 = vmatpush.msra.mxu0 0.0
        %3306 = vmatpush.msra.mxu0 0.0
        %3307 = vmatpush.msra.mxu0 0.0
        %3308 = vmatpush.msra.mxu0 0.0
        %3309 = vmatpush.msra.mxu0 0.0
        %3310 = vmatpush.msra.mxu0 0.0
        %3311 = vmatpush.msra.mxu0 0.0
        %3312 = vmatpush.msra.mxu0 0.0
        %3313 = vmatpush.msra.mxu0 0.0
        %3314 = vmatpush.msra.mxu0 %v3213
        %3315 = vmatpush.msra.mxu0 %v3205
        %3316 = vmatmul.f32.gmra.mxu0 %v3218
        %v3317 = vpop.f32.mrf.mxu0
        %v3318 = vadd.f32 0.0, %v3317
        %3319 = vdwg.mxu0
        %3320 = vmatpush.msra.mxu0 0.0
        %3321 = vmatpush.msra.mxu0 0.0
        %3322 = vmatpush.msra.mxu0 0.0
        %3323 = vmatpush.msra.mxu0 0.0
        %3324 = vmatpush.msra.mxu0 0.0
        %3325 = vmatpush.msra.mxu0 0.0
        %3326 = vmatpush.msra.mxu0 0.0
        %3327 = vmatpush.msra.mxu0 0.0
        %3328 = vmatpush.msra.mxu0 0.0
        %3329 = vmatpush.msra.mxu0 0.0
        %3330 = vmatpush.msra.mxu0 0.0
        %3331 = vmatpush.msra.mxu0 0.0
        %3332 = vmatpush.msra.mxu0 0.0
        %3333 = vmatpush.msra.mxu0 0.0
        %3334 = vmatpush.msra.mxu0 %v3214
        %3335 = vmatpush.msra.mxu0 %v3206
        %3336 = vmatmul.f32.gmra.mxu0 %v3218
        %v3337 = vpop.f32.mrf.mxu0
        %v3338 = vadd.f32 0.0, %v3337
        %3339 = vdwg.mxu0
        %3340 = vmatpush.msra.mxu0 0.0
        %3341 = vmatpush.msra.mxu0 0.0
        %3342 = vmatpush.msra.mxu0 0.0
        %3343 = vmatpush.msra.mxu0 0.0
        %3344 = vmatpush.msra.mxu0 0.0
        %3345 = vmatpush.msra.mxu0 0.0
        %3346 = vmatpush.msra.mxu0 0.0
        %3347 = vmatpush.msra.mxu0 0.0
        %3348 = vmatpush.msra.mxu0 0.0
        %3349 = vmatpush.msra.mxu0 0.0
        %3350 = vmatpush.msra.mxu0 0.0
        %3351 = vmatpush.msra.mxu0 0.0
        %3352 = vmatpush.msra.mxu0 0.0
        %3353 = vmatpush.msra.mxu0 0.0
        %3354 = vmatpush.msra.mxu0 %v3215
        %3355 = vmatpush.msra.mxu0 %v3207
        %3356 = vmatmul.f32.gmra.mxu0 %v3218
        %v3357 = vpop.f32.mrf.mxu0
        %v3358 = vadd.f32 0.0, %v3357
        %3359 = vdwg.mxu0
        %3360 = vmatpush.msra.mxu0 0.0
        %3361 = vmatpush.msra.mxu0 0.0
        %3362 = vmatpush.msra.mxu0 0.0
        %3363 = vmatpush.msra.mxu0 0.0
        %3364 = vmatpush.msra.mxu0 0.0
        %3365 = vmatpush.msra.mxu0 0.0
        %3366 = vmatpush.msra.mxu0 0.0
        %3367 = vmatpush.msra.mxu0 0.0
        %3368 = vmatpush.msra.mxu0 0.0
        %3369 = vmatpush.msra.mxu0 0.0
        %3370 = vmatpush.msra.mxu0 0.0
        %3371 = vmatpush.msra.mxu0 0.0
        %3372 = vmatpush.msra.mxu0 0.0
        %3373 = vmatpush.msra.mxu0 0.0
        %3374 = vmatpush.msra.mxu0 %v3216
        %3375 = vmatpush.msra.mxu0 %v3208
        %3376 = vmatmul.f32.gmra.mxu0 %v3218
        %v3377 = vpop.f32.mrf.mxu0
        %v3378 = vadd.f32 0.0, %v3377
        %3379 = vdwg.mxu0
        %v3380 = vadd.f32 %v3192, %v3238
        %v3381 = vadd.f32 %v3193, %v3258
        %v3382 = vadd.f32 %v3194, %v3278
        %v3383 = vadd.f32 %v3195, %v3298
        %v3384 = vadd.f32 %v3196, %v3318
        %v3385 = vadd.f32 %v3197, %v3338
        %v3386 = vadd.f32 %v3198, %v3358
        %v3387 = vadd.f32 %v3199, %v3378
        %s3388 = scalar_lea.vmem [#allocation16], 1024
        %v3389 = vld [vmem:[%s3388] sm:$0xff]
        %v3390 = vld [vmem:[%s3388 + $0x8] sm:$0xff]
        %v3391 = vld [vmem:[%s3388 + $0x10] sm:$0xff]
        %v3392 = vld [vmem:[%s3388 + $0x18] sm:$0xff]
        %v3393 = vld [vmem:[%s3388 + $0x20] sm:$0xff]
        %v3394 = vld [vmem:[%s3388 + $0x28] sm:$0xff]
        %v3395 = vld [vmem:[%s3388 + $0x30] sm:$0xff]
        %v3396 = vld [vmem:[%s3388 + $0x38] sm:$0xff]
        %v3397 = vld [vmem:[%s3388 + $0x40] sm:$0xff]
        %v3398 = vld [vmem:[%s3388 + $0x48] sm:$0xff]
        %v3399 = vld [vmem:[%s3388 + $0x50] sm:$0xff]
        %v3400 = vld [vmem:[%s3388 + $0x58] sm:$0xff]
        %v3401 = vld [vmem:[%s3388 + $0x60] sm:$0xff]
        %v3402 = vld [vmem:[%s3388 + $0x68] sm:$0xff]
        %v3403 = vld [vmem:[%s3388 + $0x70] sm:$0xff]
        %v3404 = vld [vmem:[%s3388 + $0x78] sm:$0xff]
        %v3406 = vsel %vm1359, %v1898, 0
        %3408 = vmatpush.msra.mxu0 0.0
        %3409 = vmatpush.msra.mxu0 0.0
        %3410 = vmatpush.msra.mxu0 0.0
        %3411 = vmatpush.msra.mxu0 0.0
        %3412 = vmatpush.msra.mxu0 0.0
        %3413 = vmatpush.msra.mxu0 0.0
        %3414 = vmatpush.msra.mxu0 0.0
        %3415 = vmatpush.msra.mxu0 0.0
        %3416 = vmatpush.msra.mxu0 0.0
        %3417 = vmatpush.msra.mxu0 0.0
        %3418 = vmatpush.msra.mxu0 0.0
        %3419 = vmatpush.msra.mxu0 0.0
        %3420 = vmatpush.msra.mxu0 0.0
        %3421 = vmatpush.msra.mxu0 0.0
        %3422 = vmatpush.msra.mxu0 %v3397
        %3423 = vmatpush.msra.mxu0 %v3389
        %3424 = vmatmul.f32.gmra.mxu0 %v3406
        %v3425 = vpop.f32.mrf.mxu0
        %v3426 = vadd.f32 0.0, %v3425
        %3427 = vdwg.mxu0
        %3428 = vmatpush.msra.mxu0 0.0
        %3429 = vmatpush.msra.mxu0 0.0
        %3430 = vmatpush.msra.mxu0 0.0
        %3431 = vmatpush.msra.mxu0 0.0
        %3432 = vmatpush.msra.mxu0 0.0
        %3433 = vmatpush.msra.mxu0 0.0
        %3434 = vmatpush.msra.mxu0 0.0
        %3435 = vmatpush.msra.mxu0 0.0
        %3436 = vmatpush.msra.mxu0 0.0
        %3437 = vmatpush.msra.mxu0 0.0
        %3438 = vmatpush.msra.mxu0 0.0
        %3439 = vmatpush.msra.mxu0 0.0
        %3440 = vmatpush.msra.mxu0 0.0
        %3441 = vmatpush.msra.mxu0 0.0
        %3442 = vmatpush.msra.mxu0 %v3398
        %3443 = vmatpush.msra.mxu0 %v3390
        %3444 = vmatmul.f32.gmra.mxu0 %v3406
        %v3445 = vpop.f32.mrf.mxu0
        %v3446 = vadd.f32 0.0, %v3445
        %3447 = vdwg.mxu0
        %3448 = vmatpush.msra.mxu0 0.0
        %3449 = vmatpush.msra.mxu0 0.0
        %3450 = vmatpush.msra.mxu0 0.0
        %3451 = vmatpush.msra.mxu0 0.0
        %3452 = vmatpush.msra.mxu0 0.0
        %3453 = vmatpush.msra.mxu0 0.0
        %3454 = vmatpush.msra.mxu0 0.0
        %3455 = vmatpush.msra.mxu0 0.0
        %3456 = vmatpush.msra.mxu0 0.0
        %3457 = vmatpush.msra.mxu0 0.0
        %3458 = vmatpush.msra.mxu0 0.0
        %3459 = vmatpush.msra.mxu0 0.0
        %3460 = vmatpush.msra.mxu0 0.0
        %3461 = vmatpush.msra.mxu0 0.0
        %3462 = vmatpush.msra.mxu0 %v3399
        %3463 = vmatpush.msra.mxu0 %v3391
        %3464 = vmatmul.f32.gmra.mxu0 %v3406
        %v3465 = vpop.f32.mrf.mxu0
        %v3466 = vadd.f32 0.0, %v3465
        %3467 = vdwg.mxu0
        %3468 = vmatpush.msra.mxu0 0.0
        %3469 = vmatpush.msra.mxu0 0.0
        %3470 = vmatpush.msra.mxu0 0.0
        %3471 = vmatpush.msra.mxu0 0.0
        %3472 = vmatpush.msra.mxu0 0.0
        %3473 = vmatpush.msra.mxu0 0.0
        %3474 = vmatpush.msra.mxu0 0.0
        %3475 = vmatpush.msra.mxu0 0.0
        %3476 = vmatpush.msra.mxu0 0.0
        %3477 = vmatpush.msra.mxu0 0.0
        %3478 = vmatpush.msra.mxu0 0.0
        %3479 = vmatpush.msra.mxu0 0.0
        %3480 = vmatpush.msra.mxu0 0.0
        %3481 = vmatpush.msra.mxu0 0.0
        %3482 = vmatpush.msra.mxu0 %v3400
        %3483 = vmatpush.msra.mxu0 %v3392
        %3484 = vmatmul.f32.gmra.mxu0 %v3406
        %v3485 = vpop.f32.mrf.mxu0
        %v3486 = vadd.f32 0.0, %v3485
        %3487 = vdwg.mxu0
        %3488 = vmatpush.msra.mxu0 0.0
        %3489 = vmatpush.msra.mxu0 0.0
        %3490 = vmatpush.msra.mxu0 0.0
        %3491 = vmatpush.msra.mxu0 0.0
        %3492 = vmatpush.msra.mxu0 0.0
        %3493 = vmatpush.msra.mxu0 0.0
        %3494 = vmatpush.msra.mxu0 0.0
        %3495 = vmatpush.msra.mxu0 0.0
        %3496 = vmatpush.msra.mxu0 0.0
        %3497 = vmatpush.msra.mxu0 0.0
        %3498 = vmatpush.msra.mxu0 0.0
        %3499 = vmatpush.msra.mxu0 0.0
        %3500 = vmatpush.msra.mxu0 0.0
        %3501 = vmatpush.msra.mxu0 0.0
        %3502 = vmatpush.msra.mxu0 %v3401
        %3503 = vmatpush.msra.mxu0 %v3393
        %3504 = vmatmul.f32.gmra.mxu0 %v3406
        %v3505 = vpop.f32.mrf.mxu0
        %v3506 = vadd.f32 0.0, %v3505
        %3507 = vdwg.mxu0
        %3508 = vmatpush.msra.mxu0 0.0
        %3509 = vmatpush.msra.mxu0 0.0
        %3510 = vmatpush.msra.mxu0 0.0
        %3511 = vmatpush.msra.mxu0 0.0
        %3512 = vmatpush.msra.mxu0 0.0
        %3513 = vmatpush.msra.mxu0 0.0
        %3514 = vmatpush.msra.mxu0 0.0
        %3515 = vmatpush.msra.mxu0 0.0
        %3516 = vmatpush.msra.mxu0 0.0
        %3517 = vmatpush.msra.mxu0 0.0
        %3518 = vmatpush.msra.mxu0 0.0
        %3519 = vmatpush.msra.mxu0 0.0
        %3520 = vmatpush.msra.mxu0 0.0
        %3521 = vmatpush.msra.mxu0 0.0
        %3522 = vmatpush.msra.mxu0 %v3402
        %3523 = vmatpush.msra.mxu0 %v3394
        %3524 = vmatmul.f32.gmra.mxu0 %v3406
        %v3525 = vpop.f32.mrf.mxu0
        %v3526 = vadd.f32 0.0, %v3525
        %3527 = vdwg.mxu0
        %3528 = vmatpush.msra.mxu0 0.0
        %3529 = vmatpush.msra.mxu0 0.0
        %3530 = vmatpush.msra.mxu0 0.0
        %3531 = vmatpush.msra.mxu0 0.0
        %3532 = vmatpush.msra.mxu0 0.0
        %3533 = vmatpush.msra.mxu0 0.0
        %3534 = vmatpush.msra.mxu0 0.0
        %3535 = vmatpush.msra.mxu0 0.0
        %3536 = vmatpush.msra.mxu0 0.0
        %3537 = vmatpush.msra.mxu0 0.0
        %3538 = vmatpush.msra.mxu0 0.0
        %3539 = vmatpush.msra.mxu0 0.0
        %3540 = vmatpush.msra.mxu0 0.0
        %3541 = vmatpush.msra.mxu0 0.0
        %3542 = vmatpush.msra.mxu0 %v3403
        %3543 = vmatpush.msra.mxu0 %v3395
        %3544 = vmatmul.f32.gmra.mxu0 %v3406
        %v3545 = vpop.f32.mrf.mxu0
        %v3546 = vadd.f32 0.0, %v3545
        %3547 = vdwg.mxu0
        %3548 = vmatpush.msra.mxu0 0.0
        %3549 = vmatpush.msra.mxu0 0.0
        %3550 = vmatpush.msra.mxu0 0.0
        %3551 = vmatpush.msra.mxu0 0.0
        %3552 = vmatpush.msra.mxu0 0.0
        %3553 = vmatpush.msra.mxu0 0.0
        %3554 = vmatpush.msra.mxu0 0.0
        %3555 = vmatpush.msra.mxu0 0.0
        %3556 = vmatpush.msra.mxu0 0.0
        %3557 = vmatpush.msra.mxu0 0.0
        %3558 = vmatpush.msra.mxu0 0.0
        %3559 = vmatpush.msra.mxu0 0.0
        %3560 = vmatpush.msra.mxu0 0.0
        %3561 = vmatpush.msra.mxu0 0.0
        %3562 = vmatpush.msra.mxu0 %v3404
        %3563 = vmatpush.msra.mxu0 %v3396
        %3564 = vmatmul.f32.gmra.mxu0 %v3406
        %v3565 = vpop.f32.mrf.mxu0
        %v3566 = vadd.f32 0.0, %v3565
        %3567 = vdwg.mxu0
        %v3568 = vadd.f32 %v3380, %v3426
        %v3569 = vadd.f32 %v3381, %v3446
        %v3570 = vadd.f32 %v3382, %v3466
        %v3571 = vadd.f32 %v3383, %v3486
        %v3572 = vadd.f32 %v3384, %v3506
        %v3573 = vadd.f32 %v3385, %v3526
        %v3574 = vadd.f32 %v3386, %v3546
        %v3575 = vadd.f32 %v3387, %v3566
        %s3576 = scalar_lea.vmem [#allocation16], 1152
        %v3577 = vld [vmem:[%s3576] sm:$0xff]
        %v3578 = vld [vmem:[%s3576 + $0x8] sm:$0xff]
        %v3579 = vld [vmem:[%s3576 + $0x10] sm:$0xff]
        %v3580 = vld [vmem:[%s3576 + $0x18] sm:$0xff]
        %v3581 = vld [vmem:[%s3576 + $0x20] sm:$0xff]
        %v3582 = vld [vmem:[%s3576 + $0x28] sm:$0xff]
        %v3583 = vld [vmem:[%s3576 + $0x30] sm:$0xff]
        %v3584 = vld [vmem:[%s3576 + $0x38] sm:$0xff]
        %v3585 = vld [vmem:[%s3576 + $0x40] sm:$0xff]
        %v3586 = vld [vmem:[%s3576 + $0x48] sm:$0xff]
        %v3587 = vld [vmem:[%s3576 + $0x50] sm:$0xff]
        %v3588 = vld [vmem:[%s3576 + $0x58] sm:$0xff]
        %v3589 = vld [vmem:[%s3576 + $0x60] sm:$0xff]
        %v3590 = vld [vmem:[%s3576 + $0x68] sm:$0xff]
        %v3591 = vld [vmem:[%s3576 + $0x70] sm:$0xff]
        %v3592 = vld [vmem:[%s3576 + $0x78] sm:$0xff]
        %v3593 = vrot.slane %v1898, 1
        %v3594 = vsel %vm1359, %v3593, 0
        %3596 = vmatpush.msra.mxu0 0.0
        %3597 = vmatpush.msra.mxu0 0.0
        %3598 = vmatpush.msra.mxu0 0.0
        %3599 = vmatpush.msra.mxu0 0.0
        %3600 = vmatpush.msra.mxu0 0.0
        %3601 = vmatpush.msra.mxu0 0.0
        %3602 = vmatpush.msra.mxu0 0.0
        %3603 = vmatpush.msra.mxu0 0.0
        %3604 = vmatpush.msra.mxu0 0.0
        %3605 = vmatpush.msra.mxu0 0.0
        %3606 = vmatpush.msra.mxu0 0.0
        %3607 = vmatpush.msra.mxu0 0.0
        %3608 = vmatpush.msra.mxu0 0.0
        %3609 = vmatpush.msra.mxu0 0.0
        %3610 = vmatpush.msra.mxu0 %v3585
        %3611 = vmatpush.msra.mxu0 %v3577
        %3612 = vmatmul.f32.gmra.mxu0 %v3594
        %v3613 = vpop.f32.mrf.mxu0
        %v3614 = vadd.f32 0.0, %v3613
        %3615 = vdwg.mxu0
        %3616 = vmatpush.msra.mxu0 0.0
        %3617 = vmatpush.msra.mxu0 0.0
        %3618 = vmatpush.msra.mxu0 0.0
        %3619 = vmatpush.msra.mxu0 0.0
        %3620 = vmatpush.msra.mxu0 0.0
        %3621 = vmatpush.msra.mxu0 0.0
        %3622 = vmatpush.msra.mxu0 0.0
        %3623 = vmatpush.msra.mxu0 0.0
        %3624 = vmatpush.msra.mxu0 0.0
        %3625 = vmatpush.msra.mxu0 0.0
        %3626 = vmatpush.msra.mxu0 0.0
        %3627 = vmatpush.msra.mxu0 0.0
        %3628 = vmatpush.msra.mxu0 0.0
        %3629 = vmatpush.msra.mxu0 0.0
        %3630 = vmatpush.msra.mxu0 %v3586
        %3631 = vmatpush.msra.mxu0 %v3578
        %3632 = vmatmul.f32.gmra.mxu0 %v3594
        %v3633 = vpop.f32.mrf.mxu0
        %v3634 = vadd.f32 0.0, %v3633
        %3635 = vdwg.mxu0
        %3636 = vmatpush.msra.mxu0 0.0
        %3637 = vmatpush.msra.mxu0 0.0
        %3638 = vmatpush.msra.mxu0 0.0
        %3639 = vmatpush.msra.mxu0 0.0
        %3640 = vmatpush.msra.mxu0 0.0
        %3641 = vmatpush.msra.mxu0 0.0
        %3642 = vmatpush.msra.mxu0 0.0
        %3643 = vmatpush.msra.mxu0 0.0
        %3644 = vmatpush.msra.mxu0 0.0
        %3645 = vmatpush.msra.mxu0 0.0
        %3646 = vmatpush.msra.mxu0 0.0
        %3647 = vmatpush.msra.mxu0 0.0
        %3648 = vmatpush.msra.mxu0 0.0
        %3649 = vmatpush.msra.mxu0 0.0
        %3650 = vmatpush.msra.mxu0 %v3587
        %3651 = vmatpush.msra.mxu0 %v3579
        %3652 = vmatmul.f32.gmra.mxu0 %v3594
        %v3653 = vpop.f32.mrf.mxu0
        %v3654 = vadd.f32 0.0, %v3653
        %3655 = vdwg.mxu0
        %3656 = vmatpush.msra.mxu0 0.0
        %3657 = vmatpush.msra.mxu0 0.0
        %3658 = vmatpush.msra.mxu0 0.0
        %3659 = vmatpush.msra.mxu0 0.0
        %3660 = vmatpush.msra.mxu0 0.0
        %3661 = vmatpush.msra.mxu0 0.0
        %3662 = vmatpush.msra.mxu0 0.0
        %3663 = vmatpush.msra.mxu0 0.0
        %3664 = vmatpush.msra.mxu0 0.0
        %3665 = vmatpush.msra.mxu0 0.0
        %3666 = vmatpush.msra.mxu0 0.0
        %3667 = vmatpush.msra.mxu0 0.0
        %3668 = vmatpush.msra.mxu0 0.0
        %3669 = vmatpush.msra.mxu0 0.0
        %3670 = vmatpush.msra.mxu0 %v3588
        %3671 = vmatpush.msra.mxu0 %v3580
        %3672 = vmatmul.f32.gmra.mxu0 %v3594
        %v3673 = vpop.f32.mrf.mxu0
        %v3674 = vadd.f32 0.0, %v3673
        %3675 = vdwg.mxu0
        %3676 = vmatpush.msra.mxu0 0.0
        %3677 = vmatpush.msra.mxu0 0.0
        %3678 = vmatpush.msra.mxu0 0.0
        %3679 = vmatpush.msra.mxu0 0.0
        %3680 = vmatpush.msra.mxu0 0.0
        %3681 = vmatpush.msra.mxu0 0.0
        %3682 = vmatpush.msra.mxu0 0.0
        %3683 = vmatpush.msra.mxu0 0.0
        %3684 = vmatpush.msra.mxu0 0.0
        %3685 = vmatpush.msra.mxu0 0.0
        %3686 = vmatpush.msra.mxu0 0.0
        %3687 = vmatpush.msra.mxu0 0.0
        %3688 = vmatpush.msra.mxu0 0.0
        %3689 = vmatpush.msra.mxu0 0.0
        %3690 = vmatpush.msra.mxu0 %v3589
        %3691 = vmatpush.msra.mxu0 %v3581
        %3692 = vmatmul.f32.gmra.mxu0 %v3594
        %v3693 = vpop.f32.mrf.mxu0
        %v3694 = vadd.f32 0.0, %v3693
        %3695 = vdwg.mxu0
        %3696 = vmatpush.msra.mxu0 0.0
        %3697 = vmatpush.msra.mxu0 0.0
        %3698 = vmatpush.msra.mxu0 0.0
        %3699 = vmatpush.msra.mxu0 0.0
        %3700 = vmatpush.msra.mxu0 0.0
        %3701 = vmatpush.msra.mxu0 0.0
        %3702 = vmatpush.msra.mxu0 0.0
        %3703 = vmatpush.msra.mxu0 0.0
        %3704 = vmatpush.msra.mxu0 0.0
        %3705 = vmatpush.msra.mxu0 0.0
        %3706 = vmatpush.msra.mxu0 0.0
        %3707 = vmatpush.msra.mxu0 0.0
        %3708 = vmatpush.msra.mxu0 0.0
        %3709 = vmatpush.msra.mxu0 0.0
        %3710 = vmatpush.msra.mxu0 %v3590
        %3711 = vmatpush.msra.mxu0 %v3582
        %3712 = vmatmul.f32.gmra.mxu0 %v3594
        %v3713 = vpop.f32.mrf.mxu0
        %v3714 = vadd.f32 0.0, %v3713
        %3715 = vdwg.mxu0
        %3716 = vmatpush.msra.mxu0 0.0
        %3717 = vmatpush.msra.mxu0 0.0
        %3718 = vmatpush.msra.mxu0 0.0
        %3719 = vmatpush.msra.mxu0 0.0
        %3720 = vmatpush.msra.mxu0 0.0
        %3721 = vmatpush.msra.mxu0 0.0
        %3722 = vmatpush.msra.mxu0 0.0
        %3723 = vmatpush.msra.mxu0 0.0
        %3724 = vmatpush.msra.mxu0 0.0
        %3725 = vmatpush.msra.mxu0 0.0
        %3726 = vmatpush.msra.mxu0 0.0
        %3727 = vmatpush.msra.mxu0 0.0
        %3728 = vmatpush.msra.mxu0 0.0
        %3729 = vmatpush.msra.mxu0 0.0
        %3730 = vmatpush.msra.mxu0 %v3591
        %3731 = vmatpush.msra.mxu0 %v3583
        %3732 = vmatmul.f32.gmra.mxu0 %v3594
        %v3733 = vpop.f32.mrf.mxu0
        %v3734 = vadd.f32 0.0, %v3733
        %3735 = vdwg.mxu0
        %3736 = vmatpush.msra.mxu0 0.0
        %3737 = vmatpush.msra.mxu0 0.0
        %3738 = vmatpush.msra.mxu0 0.0
        %3739 = vmatpush.msra.mxu0 0.0
        %3740 = vmatpush.msra.mxu0 0.0
        %3741 = vmatpush.msra.mxu0 0.0
        %3742 = vmatpush.msra.mxu0 0.0
        %3743 = vmatpush.msra.mxu0 0.0
        %3744 = vmatpush.msra.mxu0 0.0
        %3745 = vmatpush.msra.mxu0 0.0
        %3746 = vmatpush.msra.mxu0 0.0
        %3747 = vmatpush.msra.mxu0 0.0
        %3748 = vmatpush.msra.mxu0 0.0
        %3749 = vmatpush.msra.mxu0 0.0
        %3750 = vmatpush.msra.mxu0 %v3592
        %3751 = vmatpush.msra.mxu0 %v3584
        %3752 = vmatmul.f32.gmra.mxu0 %v3594
        %v3753 = vpop.f32.mrf.mxu0
        %v3754 = vadd.f32 0.0, %v3753
        %3755 = vdwg.mxu0
        %v3756 = vadd.f32 %v3568, %v3614
        %v3757 = vadd.f32 %v3569, %v3634
        %v3758 = vadd.f32 %v3570, %v3654
        %v3759 = vadd.f32 %v3571, %v3674
        %v3760 = vadd.f32 %v3572, %v3694
        %v3761 = vadd.f32 %v3573, %v3714
        %v3762 = vadd.f32 %v3574, %v3734
        %v3763 = vadd.f32 %v3575, %v3754
        %s3764 = scalar_lea.vmem [#allocation16], 1280
        %v3765 = vld [vmem:[%s3764] sm:$0xff]
        %v3766 = vld [vmem:[%s3764 + $0x8] sm:$0xff]
        %v3767 = vld [vmem:[%s3764 + $0x10] sm:$0xff]
        %v3768 = vld [vmem:[%s3764 + $0x18] sm:$0xff]
        %v3769 = vld [vmem:[%s3764 + $0x20] sm:$0xff]
        %v3770 = vld [vmem:[%s3764 + $0x28] sm:$0xff]
        %v3771 = vld [vmem:[%s3764 + $0x30] sm:$0xff]
        %v3772 = vld [vmem:[%s3764 + $0x38] sm:$0xff]
        %v3773 = vld [vmem:[%s3764 + $0x40] sm:$0xff]
        %v3774 = vld [vmem:[%s3764 + $0x48] sm:$0xff]
        %v3775 = vld [vmem:[%s3764 + $0x50] sm:$0xff]
        %v3776 = vld [vmem:[%s3764 + $0x58] sm:$0xff]
        %v3777 = vld [vmem:[%s3764 + $0x60] sm:$0xff]
        %v3778 = vld [vmem:[%s3764 + $0x68] sm:$0xff]
        %v3779 = vld [vmem:[%s3764 + $0x70] sm:$0xff]
        %v3780 = vld [vmem:[%s3764 + $0x78] sm:$0xff]
        %v3781 = vrot.slane %v1898, 2
        %v3782 = vsel %vm1359, %v3781, 0
        %3784 = vmatpush.msra.mxu0 0.0
        %3785 = vmatpush.msra.mxu0 0.0
        %3786 = vmatpush.msra.mxu0 0.0
        %3787 = vmatpush.msra.mxu0 0.0
        %3788 = vmatpush.msra.mxu0 0.0
        %3789 = vmatpush.msra.mxu0 0.0
        %3790 = vmatpush.msra.mxu0 0.0
        %3791 = vmatpush.msra.mxu0 0.0
        %3792 = vmatpush.msra.mxu0 0.0
        %3793 = vmatpush.msra.mxu0 0.0
        %3794 = vmatpush.msra.mxu0 0.0
        %3795 = vmatpush.msra.mxu0 0.0
        %3796 = vmatpush.msra.mxu0 0.0
        %3797 = vmatpush.msra.mxu0 0.0
        %3798 = vmatpush.msra.mxu0 %v3773
        %3799 = vmatpush.msra.mxu0 %v3765
        %3800 = vmatmul.f32.gmra.mxu0 %v3782
        %v3801 = vpop.f32.mrf.mxu0
        %v3802 = vadd.f32 0.0, %v3801
        %3803 = vdwg.mxu0
        %3804 = vmatpush.msra.mxu0 0.0
        %3805 = vmatpush.msra.mxu0 0.0
        %3806 = vmatpush.msra.mxu0 0.0
        %3807 = vmatpush.msra.mxu0 0.0
        %3808 = vmatpush.msra.mxu0 0.0
        %3809 = vmatpush.msra.mxu0 0.0
        %3810 = vmatpush.msra.mxu0 0.0
        %3811 = vmatpush.msra.mxu0 0.0
        %3812 = vmatpush.msra.mxu0 0.0
        %3813 = vmatpush.msra.mxu0 0.0
        %3814 = vmatpush.msra.mxu0 0.0
        %3815 = vmatpush.msra.mxu0 0.0
        %3816 = vmatpush.msra.mxu0 0.0
        %3817 = vmatpush.msra.mxu0 0.0
        %3818 = vmatpush.msra.mxu0 %v3774
        %3819 = vmatpush.msra.mxu0 %v3766
        %3820 = vmatmul.f32.gmra.mxu0 %v3782
        %v3821 = vpop.f32.mrf.mxu0
        %v3822 = vadd.f32 0.0, %v3821
        %3823 = vdwg.mxu0
        %3824 = vmatpush.msra.mxu0 0.0
        %3825 = vmatpush.msra.mxu0 0.0
        %3826 = vmatpush.msra.mxu0 0.0
        %3827 = vmatpush.msra.mxu0 0.0
        %3828 = vmatpush.msra.mxu0 0.0
        %3829 = vmatpush.msra.mxu0 0.0
        %3830 = vmatpush.msra.mxu0 0.0
        %3831 = vmatpush.msra.mxu0 0.0
        %3832 = vmatpush.msra.mxu0 0.0
        %3833 = vmatpush.msra.mxu0 0.0
        %3834 = vmatpush.msra.mxu0 0.0
        %3835 = vmatpush.msra.mxu0 0.0
        %3836 = vmatpush.msra.mxu0 0.0
        %3837 = vmatpush.msra.mxu0 0.0
        %3838 = vmatpush.msra.mxu0 %v3775
        %3839 = vmatpush.msra.mxu0 %v3767
        %3840 = vmatmul.f32.gmra.mxu0 %v3782
        %v3841 = vpop.f32.mrf.mxu0
        %v3842 = vadd.f32 0.0, %v3841
        %3843 = vdwg.mxu0
        %3844 = vmatpush.msra.mxu0 0.0
        %3845 = vmatpush.msra.mxu0 0.0
        %3846 = vmatpush.msra.mxu0 0.0
        %3847 = vmatpush.msra.mxu0 0.0
        %3848 = vmatpush.msra.mxu0 0.0
        %3849 = vmatpush.msra.mxu0 0.0
        %3850 = vmatpush.msra.mxu0 0.0
        %3851 = vmatpush.msra.mxu0 0.0
        %3852 = vmatpush.msra.mxu0 0.0
        %3853 = vmatpush.msra.mxu0 0.0
        %3854 = vmatpush.msra.mxu0 0.0
        %3855 = vmatpush.msra.mxu0 0.0
        %3856 = vmatpush.msra.mxu0 0.0
        %3857 = vmatpush.msra.mxu0 0.0
        %3858 = vmatpush.msra.mxu0 %v3776
        %3859 = vmatpush.msra.mxu0 %v3768
        %3860 = vmatmul.f32.gmra.mxu0 %v3782
        %v3861 = vpop.f32.mrf.mxu0
        %v3862 = vadd.f32 0.0, %v3861
        %3863 = vdwg.mxu0
        %3864 = vmatpush.msra.mxu0 0.0
        %3865 = vmatpush.msra.mxu0 0.0
        %3866 = vmatpush.msra.mxu0 0.0
        %3867 = vmatpush.msra.mxu0 0.0
        %3868 = vmatpush.msra.mxu0 0.0
        %3869 = vmatpush.msra.mxu0 0.0
        %3870 = vmatpush.msra.mxu0 0.0
        %3871 = vmatpush.msra.mxu0 0.0
        %3872 = vmatpush.msra.mxu0 0.0
        %3873 = vmatpush.msra.mxu0 0.0
        %3874 = vmatpush.msra.mxu0 0.0
        %3875 = vmatpush.msra.mxu0 0.0
        %3876 = vmatpush.msra.mxu0 0.0
        %3877 = vmatpush.msra.mxu0 0.0
        %3878 = vmatpush.msra.mxu0 %v3777
        %3879 = vmatpush.msra.mxu0 %v3769
        %3880 = vmatmul.f32.gmra.mxu0 %v3782
        %v3881 = vpop.f32.mrf.mxu0
        %v3882 = vadd.f32 0.0, %v3881
        %3883 = vdwg.mxu0
        %3884 = vmatpush.msra.mxu0 0.0
        %3885 = vmatpush.msra.mxu0 0.0
        %3886 = vmatpush.msra.mxu0 0.0
        %3887 = vmatpush.msra.mxu0 0.0
        %3888 = vmatpush.msra.mxu0 0.0
        %3889 = vmatpush.msra.mxu0 0.0
        %3890 = vmatpush.msra.mxu0 0.0
        %3891 = vmatpush.msra.mxu0 0.0
        %3892 = vmatpush.msra.mxu0 0.0
        %3893 = vmatpush.msra.mxu0 0.0
        %3894 = vmatpush.msra.mxu0 0.0
        %3895 = vmatpush.msra.mxu0 0.0
        %3896 = vmatpush.msra.mxu0 0.0
        %3897 = vmatpush.msra.mxu0 0.0
        %3898 = vmatpush.msra.mxu0 %v3778
        %3899 = vmatpush.msra.mxu0 %v3770
        %3900 = vmatmul.f32.gmra.mxu0 %v3782
        %v3901 = vpop.f32.mrf.mxu0
        %v3902 = vadd.f32 0.0, %v3901
        %3903 = vdwg.mxu0
        %3904 = vmatpush.msra.mxu0 0.0
        %3905 = vmatpush.msra.mxu0 0.0
        %3906 = vmatpush.msra.mxu0 0.0
        %3907 = vmatpush.msra.mxu0 0.0
        %3908 = vmatpush.msra.mxu0 0.0
        %3909 = vmatpush.msra.mxu0 0.0
        %3910 = vmatpush.msra.mxu0 0.0
        %3911 = vmatpush.msra.mxu0 0.0
        %3912 = vmatpush.msra.mxu0 0.0
        %3913 = vmatpush.msra.mxu0 0.0
        %3914 = vmatpush.msra.mxu0 0.0
        %3915 = vmatpush.msra.mxu0 0.0
        %3916 = vmatpush.msra.mxu0 0.0
        %3917 = vmatpush.msra.mxu0 0.0
        %3918 = vmatpush.msra.mxu0 %v3779
        %3919 = vmatpush.msra.mxu0 %v3771
        %3920 = vmatmul.f32.gmra.mxu0 %v3782
        %v3921 = vpop.f32.mrf.mxu0
        %v3922 = vadd.f32 0.0, %v3921
        %3923 = vdwg.mxu0
        %3924 = vmatpush.msra.mxu0 0.0
        %3925 = vmatpush.msra.mxu0 0.0
        %3926 = vmatpush.msra.mxu0 0.0
        %3927 = vmatpush.msra.mxu0 0.0
        %3928 = vmatpush.msra.mxu0 0.0
        %3929 = vmatpush.msra.mxu0 0.0
        %3930 = vmatpush.msra.mxu0 0.0
        %3931 = vmatpush.msra.mxu0 0.0
        %3932 = vmatpush.msra.mxu0 0.0
        %3933 = vmatpush.msra.mxu0 0.0
        %3934 = vmatpush.msra.mxu0 0.0
        %3935 = vmatpush.msra.mxu0 0.0
        %3936 = vmatpush.msra.mxu0 0.0
        %3937 = vmatpush.msra.mxu0 0.0
        %3938 = vmatpush.msra.mxu0 %v3780
        %3939 = vmatpush.msra.mxu0 %v3772
        %3940 = vmatmul.f32.gmra.mxu0 %v3782
        %v3941 = vpop.f32.mrf.mxu0
        %v3942 = vadd.f32 0.0, %v3941
        %3943 = vdwg.mxu0
        %v3944 = vadd.f32 %v3756, %v3802
        %v3945 = vadd.f32 %v3757, %v3822
        %v3946 = vadd.f32 %v3758, %v3842
        %v3947 = vadd.f32 %v3759, %v3862
        %v3948 = vadd.f32 %v3760, %v3882
        %v3949 = vadd.f32 %v3761, %v3902
        %v3950 = vadd.f32 %v3762, %v3922
        %v3951 = vadd.f32 %v3763, %v3942
        %s3952 = scalar_lea.vmem [#allocation16], 1408
        %v3953 = vld [vmem:[%s3952] sm:$0xff]
        %v3954 = vld [vmem:[%s3952 + $0x8] sm:$0xff]
        %v3955 = vld [vmem:[%s3952 + $0x10] sm:$0xff]
        %v3956 = vld [vmem:[%s3952 + $0x18] sm:$0xff]
        %v3957 = vld [vmem:[%s3952 + $0x20] sm:$0xff]
        %v3958 = vld [vmem:[%s3952 + $0x28] sm:$0xff]
        %v3959 = vld [vmem:[%s3952 + $0x30] sm:$0xff]
        %v3960 = vld [vmem:[%s3952 + $0x38] sm:$0xff]
        %v3961 = vld [vmem:[%s3952 + $0x40] sm:$0xff]
        %v3962 = vld [vmem:[%s3952 + $0x48] sm:$0xff]
        %v3963 = vld [vmem:[%s3952 + $0x50] sm:$0xff]
        %v3964 = vld [vmem:[%s3952 + $0x58] sm:$0xff]
        %v3965 = vld [vmem:[%s3952 + $0x60] sm:$0xff]
        %v3966 = vld [vmem:[%s3952 + $0x68] sm:$0xff]
        %v3967 = vld [vmem:[%s3952 + $0x70] sm:$0xff]
        %v3968 = vld [vmem:[%s3952 + $0x78] sm:$0xff]
        %v3969 = vrot.slane %v1898, 3
        %v3970 = vsel %vm1359, %v3969, 0
        %3972 = vmatpush.msra.mxu0 0.0
        %3973 = vmatpush.msra.mxu0 0.0
        %3974 = vmatpush.msra.mxu0 0.0
        %3975 = vmatpush.msra.mxu0 0.0
        %3976 = vmatpush.msra.mxu0 0.0
        %3977 = vmatpush.msra.mxu0 0.0
        %3978 = vmatpush.msra.mxu0 0.0
        %3979 = vmatpush.msra.mxu0 0.0
        %3980 = vmatpush.msra.mxu0 0.0
        %3981 = vmatpush.msra.mxu0 0.0
        %3982 = vmatpush.msra.mxu0 0.0
        %3983 = vmatpush.msra.mxu0 0.0
        %3984 = vmatpush.msra.mxu0 0.0
        %3985 = vmatpush.msra.mxu0 0.0
        %3986 = vmatpush.msra.mxu0 %v3961
        %3987 = vmatpush.msra.mxu0 %v3953
        %3988 = vmatmul.f32.gmra.mxu0 %v3970
        %v3989 = vpop.f32.mrf.mxu0
        %v3990 = vadd.f32 0.0, %v3989
        %3991 = vdwg.mxu0
        %3992 = vmatpush.msra.mxu0 0.0
        %3993 = vmatpush.msra.mxu0 0.0
        %3994 = vmatpush.msra.mxu0 0.0
        %3995 = vmatpush.msra.mxu0 0.0
        %3996 = vmatpush.msra.mxu0 0.0
        %3997 = vmatpush.msra.mxu0 0.0
        %3998 = vmatpush.msra.mxu0 0.0
        %3999 = vmatpush.msra.mxu0 0.0
        %4000 = vmatpush.msra.mxu0 0.0
        %4001 = vmatpush.msra.mxu0 0.0
        %4002 = vmatpush.msra.mxu0 0.0
        %4003 = vmatpush.msra.mxu0 0.0
        %4004 = vmatpush.msra.mxu0 0.0
        %4005 = vmatpush.msra.mxu0 0.0
        %4006 = vmatpush.msra.mxu0 %v3962
        %4007 = vmatpush.msra.mxu0 %v3954
        %4008 = vmatmul.f32.gmra.mxu0 %v3970
        %v4009 = vpop.f32.mrf.mxu0
        %v4010 = vadd.f32 0.0, %v4009
        %4011 = vdwg.mxu0
        %4012 = vmatpush.msra.mxu0 0.0
        %4013 = vmatpush.msra.mxu0 0.0
        %4014 = vmatpush.msra.mxu0 0.0
        %4015 = vmatpush.msra.mxu0 0.0
        %4016 = vmatpush.msra.mxu0 0.0
        %4017 = vmatpush.msra.mxu0 0.0
        %4018 = vmatpush.msra.mxu0 0.0
        %4019 = vmatpush.msra.mxu0 0.0
        %4020 = vmatpush.msra.mxu0 0.0
        %4021 = vmatpush.msra.mxu0 0.0
        %4022 = vmatpush.msra.mxu0 0.0
        %4023 = vmatpush.msra.mxu0 0.0
        %4024 = vmatpush.msra.mxu0 0.0
        %4025 = vmatpush.msra.mxu0 0.0
        %4026 = vmatpush.msra.mxu0 %v3963
        %4027 = vmatpush.msra.mxu0 %v3955
        %4028 = vmatmul.f32.gmra.mxu0 %v3970
        %v4029 = vpop.f32.mrf.mxu0
        %v4030 = vadd.f32 0.0, %v4029
        %4031 = vdwg.mxu0
        %4032 = vmatpush.msra.mxu0 0.0
        %4033 = vmatpush.msra.mxu0 0.0
        %4034 = vmatpush.msra.mxu0 0.0
        %4035 = vmatpush.msra.mxu0 0.0
        %4036 = vmatpush.msra.mxu0 0.0
        %4037 = vmatpush.msra.mxu0 0.0
        %4038 = vmatpush.msra.mxu0 0.0
        %4039 = vmatpush.msra.mxu0 0.0
        %4040 = vmatpush.msra.mxu0 0.0
        %4041 = vmatpush.msra.mxu0 0.0
        %4042 = vmatpush.msra.mxu0 0.0
        %4043 = vmatpush.msra.mxu0 0.0
        %4044 = vmatpush.msra.mxu0 0.0
        %4045 = vmatpush.msra.mxu0 0.0
        %4046 = vmatpush.msra.mxu0 %v3964
        %4047 = vmatpush.msra.mxu0 %v3956
        %4048 = vmatmul.f32.gmra.mxu0 %v3970
        %v4049 = vpop.f32.mrf.mxu0
        %v4050 = vadd.f32 0.0, %v4049
        %4051 = vdwg.mxu0
        %4052 = vmatpush.msra.mxu0 0.0
        %4053 = vmatpush.msra.mxu0 0.0
        %4054 = vmatpush.msra.mxu0 0.0
        %4055 = vmatpush.msra.mxu0 0.0
        %4056 = vmatpush.msra.mxu0 0.0
        %4057 = vmatpush.msra.mxu0 0.0
        %4058 = vmatpush.msra.mxu0 0.0
        %4059 = vmatpush.msra.mxu0 0.0
        %4060 = vmatpush.msra.mxu0 0.0
        %4061 = vmatpush.msra.mxu0 0.0
        %4062 = vmatpush.msra.mxu0 0.0
        %4063 = vmatpush.msra.mxu0 0.0
        %4064 = vmatpush.msra.mxu0 0.0
        %4065 = vmatpush.msra.mxu0 0.0
        %4066 = vmatpush.msra.mxu0 %v3965
        %4067 = vmatpush.msra.mxu0 %v3957
        %4068 = vmatmul.f32.gmra.mxu0 %v3970
        %v4069 = vpop.f32.mrf.mxu0
        %v4070 = vadd.f32 0.0, %v4069
        %4071 = vdwg.mxu0
        %4072 = vmatpush.msra.mxu0 0.0
        %4073 = vmatpush.msra.mxu0 0.0
        %4074 = vmatpush.msra.mxu0 0.0
        %4075 = vmatpush.msra.mxu0 0.0
        %4076 = vmatpush.msra.mxu0 0.0
        %4077 = vmatpush.msra.mxu0 0.0
        %4078 = vmatpush.msra.mxu0 0.0
        %4079 = vmatpush.msra.mxu0 0.0
        %4080 = vmatpush.msra.mxu0 0.0
        %4081 = vmatpush.msra.mxu0 0.0
        %4082 = vmatpush.msra.mxu0 0.0
        %4083 = vmatpush.msra.mxu0 0.0
        %4084 = vmatpush.msra.mxu0 0.0
        %4085 = vmatpush.msra.mxu0 0.0
        %4086 = vmatpush.msra.mxu0 %v3966
        %4087 = vmatpush.msra.mxu0 %v3958
        %4088 = vmatmul.f32.gmra.mxu0 %v3970
        %v4089 = vpop.f32.mrf.mxu0
        %v4090 = vadd.f32 0.0, %v4089
        %4091 = vdwg.mxu0
        %4092 = vmatpush.msra.mxu0 0.0
        %4093 = vmatpush.msra.mxu0 0.0
        %4094 = vmatpush.msra.mxu0 0.0
        %4095 = vmatpush.msra.mxu0 0.0
        %4096 = vmatpush.msra.mxu0 0.0
        %4097 = vmatpush.msra.mxu0 0.0
        %4098 = vmatpush.msra.mxu0 0.0
        %4099 = vmatpush.msra.mxu0 0.0
        %4100 = vmatpush.msra.mxu0 0.0
        %4101 = vmatpush.msra.mxu0 0.0
        %4102 = vmatpush.msra.mxu0 0.0
        %4103 = vmatpush.msra.mxu0 0.0
        %4104 = vmatpush.msra.mxu0 0.0
        %4105 = vmatpush.msra.mxu0 0.0
        %4106 = vmatpush.msra.mxu0 %v3967
        %4107 = vmatpush.msra.mxu0 %v3959
        %4108 = vmatmul.f32.gmra.mxu0 %v3970
        %v4109 = vpop.f32.mrf.mxu0
        %v4110 = vadd.f32 0.0, %v4109
        %4111 = vdwg.mxu0
        %4112 = vmatpush.msra.mxu0 0.0
        %4113 = vmatpush.msra.mxu0 0.0
        %4114 = vmatpush.msra.mxu0 0.0
        %4115 = vmatpush.msra.mxu0 0.0
        %4116 = vmatpush.msra.mxu0 0.0
        %4117 = vmatpush.msra.mxu0 0.0
        %4118 = vmatpush.msra.mxu0 0.0
        %4119 = vmatpush.msra.mxu0 0.0
        %4120 = vmatpush.msra.mxu0 0.0
        %4121 = vmatpush.msra.mxu0 0.0
        %4122 = vmatpush.msra.mxu0 0.0
        %4123 = vmatpush.msra.mxu0 0.0
        %4124 = vmatpush.msra.mxu0 0.0
        %4125 = vmatpush.msra.mxu0 0.0
        %4126 = vmatpush.msra.mxu0 %v3968
        %4127 = vmatpush.msra.mxu0 %v3960
        %4128 = vmatmul.f32.gmra.mxu0 %v3970
        %v4129 = vpop.f32.mrf.mxu0
        %v4130 = vadd.f32 0.0, %v4129
        %4131 = vdwg.mxu0
        %v4132 = vadd.f32 %v3944, %v3990
        %v4133 = vadd.f32 %v3945, %v4010
        %v4134 = vadd.f32 %v3946, %v4030
        %v4135 = vadd.f32 %v3947, %v4050
        %v4136 = vadd.f32 %v3948, %v4070
        %v4137 = vadd.f32 %v3949, %v4090
        %v4138 = vadd.f32 %v3950, %v4110
        %v4139 = vadd.f32 %v3951, %v4130
        %s4140 = scalar_lea.vmem [#allocation16], 1536
        %v4141 = vld [vmem:[%s4140] sm:$0xff]
        %v4142 = vld [vmem:[%s4140 + $0x8] sm:$0xff]
        %v4143 = vld [vmem:[%s4140 + $0x10] sm:$0xff]
        %v4144 = vld [vmem:[%s4140 + $0x18] sm:$0xff]
        %v4145 = vld [vmem:[%s4140 + $0x20] sm:$0xff]
        %v4146 = vld [vmem:[%s4140 + $0x28] sm:$0xff]
        %v4147 = vld [vmem:[%s4140 + $0x30] sm:$0xff]
        %v4148 = vld [vmem:[%s4140 + $0x38] sm:$0xff]
        %v4149 = vld [vmem:[%s4140 + $0x40] sm:$0xff]
        %v4150 = vld [vmem:[%s4140 + $0x48] sm:$0xff]
        %v4151 = vld [vmem:[%s4140 + $0x50] sm:$0xff]
        %v4152 = vld [vmem:[%s4140 + $0x58] sm:$0xff]
        %v4153 = vld [vmem:[%s4140 + $0x60] sm:$0xff]
        %v4154 = vld [vmem:[%s4140 + $0x68] sm:$0xff]
        %v4155 = vld [vmem:[%s4140 + $0x70] sm:$0xff]
        %v4156 = vld [vmem:[%s4140 + $0x78] sm:$0xff]
        %v4157 = vrot.slane %v1898, 4
        %v4158 = vsel %vm1359, %v4157, 0
        %4160 = vmatpush.msra.mxu0 0.0
        %4161 = vmatpush.msra.mxu0 0.0
        %4162 = vmatpush.msra.mxu0 0.0
        %4163 = vmatpush.msra.mxu0 0.0
        %4164 = vmatpush.msra.mxu0 0.0
        %4165 = vmatpush.msra.mxu0 0.0
        %4166 = vmatpush.msra.mxu0 0.0
        %4167 = vmatpush.msra.mxu0 0.0
        %4168 = vmatpush.msra.mxu0 0.0
        %4169 = vmatpush.msra.mxu0 0.0
        %4170 = vmatpush.msra.mxu0 0.0
        %4171 = vmatpush.msra.mxu0 0.0
        %4172 = vmatpush.msra.mxu0 0.0
        %4173 = vmatpush.msra.mxu0 0.0
        %4174 = vmatpush.msra.mxu0 %v4149
        %4175 = vmatpush.msra.mxu0 %v4141
        %4176 = vmatmul.f32.gmra.mxu0 %v4158
        %v4177 = vpop.f32.mrf.mxu0
        %v4178 = vadd.f32 0.0, %v4177
        %4179 = vdwg.mxu0
        %4180 = vmatpush.msra.mxu0 0.0
        %4181 = vmatpush.msra.mxu0 0.0
        %4182 = vmatpush.msra.mxu0 0.0
        %4183 = vmatpush.msra.mxu0 0.0
        %4184 = vmatpush.msra.mxu0 0.0
        %4185 = vmatpush.msra.mxu0 0.0
        %4186 = vmatpush.msra.mxu0 0.0
        %4187 = vmatpush.msra.mxu0 0.0
        %4188 = vmatpush.msra.mxu0 0.0
        %4189 = vmatpush.msra.mxu0 0.0
        %4190 = vmatpush.msra.mxu0 0.0
        %4191 = vmatpush.msra.mxu0 0.0
        %4192 = vmatpush.msra.mxu0 0.0
        %4193 = vmatpush.msra.mxu0 0.0
        %4194 = vmatpush.msra.mxu0 %v4150
        %4195 = vmatpush.msra.mxu0 %v4142
        %4196 = vmatmul.f32.gmra.mxu0 %v4158
        %v4197 = vpop.f32.mrf.mxu0
        %v4198 = vadd.f32 0.0, %v4197
        %4199 = vdwg.mxu0
        %4200 = vmatpush.msra.mxu0 0.0
        %4201 = vmatpush.msra.mxu0 0.0
        %4202 = vmatpush.msra.mxu0 0.0
        %4203 = vmatpush.msra.mxu0 0.0
        %4204 = vmatpush.msra.mxu0 0.0
        %4205 = vmatpush.msra.mxu0 0.0
        %4206 = vmatpush.msra.mxu0 0.0
        %4207 = vmatpush.msra.mxu0 0.0
        %4208 = vmatpush.msra.mxu0 0.0
        %4209 = vmatpush.msra.mxu0 0.0
        %4210 = vmatpush.msra.mxu0 0.0
        %4211 = vmatpush.msra.mxu0 0.0
        %4212 = vmatpush.msra.mxu0 0.0
        %4213 = vmatpush.msra.mxu0 0.0
        %4214 = vmatpush.msra.mxu0 %v4151
        %4215 = vmatpush.msra.mxu0 %v4143
        %4216 = vmatmul.f32.gmra.mxu0 %v4158
        %v4217 = vpop.f32.mrf.mxu0
        %v4218 = vadd.f32 0.0, %v4217
        %4219 = vdwg.mxu0
        %4220 = vmatpush.msra.mxu0 0.0
        %4221 = vmatpush.msra.mxu0 0.0
        %4222 = vmatpush.msra.mxu0 0.0
        %4223 = vmatpush.msra.mxu0 0.0
        %4224 = vmatpush.msra.mxu0 0.0
        %4225 = vmatpush.msra.mxu0 0.0
        %4226 = vmatpush.msra.mxu0 0.0
        %4227 = vmatpush.msra.mxu0 0.0
        %4228 = vmatpush.msra.mxu0 0.0
        %4229 = vmatpush.msra.mxu0 0.0
        %4230 = vmatpush.msra.mxu0 0.0
        %4231 = vmatpush.msra.mxu0 0.0
        %4232 = vmatpush.msra.mxu0 0.0
        %4233 = vmatpush.msra.mxu0 0.0
        %4234 = vmatpush.msra.mxu0 %v4152
        %4235 = vmatpush.msra.mxu0 %v4144
        %4236 = vmatmul.f32.gmra.mxu0 %v4158
        %v4237 = vpop.f32.mrf.mxu0
        %v4238 = vadd.f32 0.0, %v4237
        %4239 = vdwg.mxu0
        %4240 = vmatpush.msra.mxu0 0.0
        %4241 = vmatpush.msra.mxu0 0.0
        %4242 = vmatpush.msra.mxu0 0.0
        %4243 = vmatpush.msra.mxu0 0.0
        %4244 = vmatpush.msra.mxu0 0.0
        %4245 = vmatpush.msra.mxu0 0.0
        %4246 = vmatpush.msra.mxu0 0.0
        %4247 = vmatpush.msra.mxu0 0.0
        %4248 = vmatpush.msra.mxu0 0.0
        %4249 = vmatpush.msra.mxu0 0.0
        %4250 = vmatpush.msra.mxu0 0.0
        %4251 = vmatpush.msra.mxu0 0.0
        %4252 = vmatpush.msra.mxu0 0.0
        %4253 = vmatpush.msra.mxu0 0.0
        %4254 = vmatpush.msra.mxu0 %v4153
        %4255 = vmatpush.msra.mxu0 %v4145
        %4256 = vmatmul.f32.gmra.mxu0 %v4158
        %v4257 = vpop.f32.mrf.mxu0
        %v4258 = vadd.f32 0.0, %v4257
        %4259 = vdwg.mxu0
        %4260 = vmatpush.msra.mxu0 0.0
        %4261 = vmatpush.msra.mxu0 0.0
        %4262 = vmatpush.msra.mxu0 0.0
        %4263 = vmatpush.msra.mxu0 0.0
        %4264 = vmatpush.msra.mxu0 0.0
        %4265 = vmatpush.msra.mxu0 0.0
        %4266 = vmatpush.msra.mxu0 0.0
        %4267 = vmatpush.msra.mxu0 0.0
        %4268 = vmatpush.msra.mxu0 0.0
        %4269 = vmatpush.msra.mxu0 0.0
        %4270 = vmatpush.msra.mxu0 0.0
        %4271 = vmatpush.msra.mxu0 0.0
        %4272 = vmatpush.msra.mxu0 0.0
        %4273 = vmatpush.msra.mxu0 0.0
        %4274 = vmatpush.msra.mxu0 %v4154
        %4275 = vmatpush.msra.mxu0 %v4146
        %4276 = vmatmul.f32.gmra.mxu0 %v4158
        %v4277 = vpop.f32.mrf.mxu0
        %v4278 = vadd.f32 0.0, %v4277
        %4279 = vdwg.mxu0
        %4280 = vmatpush.msra.mxu0 0.0
        %4281 = vmatpush.msra.mxu0 0.0
        %4282 = vmatpush.msra.mxu0 0.0
        %4283 = vmatpush.msra.mxu0 0.0
        %4284 = vmatpush.msra.mxu0 0.0
        %4285 = vmatpush.msra.mxu0 0.0
        %4286 = vmatpush.msra.mxu0 0.0
        %4287 = vmatpush.msra.mxu0 0.0
        %4288 = vmatpush.msra.mxu0 0.0
        %4289 = vmatpush.msra.mxu0 0.0
        %4290 = vmatpush.msra.mxu0 0.0
        %4291 = vmatpush.msra.mxu0 0.0
        %4292 = vmatpush.msra.mxu0 0.0
        %4293 = vmatpush.msra.mxu0 0.0
        %4294 = vmatpush.msra.mxu0 %v4155
        %4295 = vmatpush.msra.mxu0 %v4147
        %4296 = vmatmul.f32.gmra.mxu0 %v4158
        %v4297 = vpop.f32.mrf.mxu0
        %v4298 = vadd.f32 0.0, %v4297
        %4299 = vdwg.mxu0
        %4300 = vmatpush.msra.mxu0 0.0
        %4301 = vmatpush.msra.mxu0 0.0
        %4302 = vmatpush.msra.mxu0 0.0
        %4303 = vmatpush.msra.mxu0 0.0
        %4304 = vmatpush.msra.mxu0 0.0
        %4305 = vmatpush.msra.mxu0 0.0
        %4306 = vmatpush.msra.mxu0 0.0
        %4307 = vmatpush.msra.mxu0 0.0
        %4308 = vmatpush.msra.mxu0 0.0
        %4309 = vmatpush.msra.mxu0 0.0
        %4310 = vmatpush.msra.mxu0 0.0
        %4311 = vmatpush.msra.mxu0 0.0
        %4312 = vmatpush.msra.mxu0 0.0
        %4313 = vmatpush.msra.mxu0 0.0
        %4314 = vmatpush.msra.mxu0 %v4156
        %4315 = vmatpush.msra.mxu0 %v4148
        %4316 = vmatmul.f32.gmra.mxu0 %v4158
        %v4317 = vpop.f32.mrf.mxu0
        %v4318 = vadd.f32 0.0, %v4317
        %4319 = vdwg.mxu0
        %v4320 = vadd.f32 %v4132, %v4178
        %v4321 = vadd.f32 %v4133, %v4198
        %v4322 = vadd.f32 %v4134, %v4218
        %v4323 = vadd.f32 %v4135, %v4238
        %v4324 = vadd.f32 %v4136, %v4258
        %v4325 = vadd.f32 %v4137, %v4278
        %v4326 = vadd.f32 %v4138, %v4298
        %v4327 = vadd.f32 %v4139, %v4318
        %s4328 = scalar_lea.vmem [#allocation16], 1664
        %v4329 = vld [vmem:[%s4328] sm:$0xff]
        %v4330 = vld [vmem:[%s4328 + $0x8] sm:$0xff]
        %v4331 = vld [vmem:[%s4328 + $0x10] sm:$0xff]
        %v4332 = vld [vmem:[%s4328 + $0x18] sm:$0xff]
        %v4333 = vld [vmem:[%s4328 + $0x20] sm:$0xff]
        %v4334 = vld [vmem:[%s4328 + $0x28] sm:$0xff]
        %v4335 = vld [vmem:[%s4328 + $0x30] sm:$0xff]
        %v4336 = vld [vmem:[%s4328 + $0x38] sm:$0xff]
        %v4337 = vld [vmem:[%s4328 + $0x40] sm:$0xff]
        %v4338 = vld [vmem:[%s4328 + $0x48] sm:$0xff]
        %v4339 = vld [vmem:[%s4328 + $0x50] sm:$0xff]
        %v4340 = vld [vmem:[%s4328 + $0x58] sm:$0xff]
        %v4341 = vld [vmem:[%s4328 + $0x60] sm:$0xff]
        %v4342 = vld [vmem:[%s4328 + $0x68] sm:$0xff]
        %v4343 = vld [vmem:[%s4328 + $0x70] sm:$0xff]
        %v4344 = vld [vmem:[%s4328 + $0x78] sm:$0xff]
        %v4345 = vrot.slane %v1898, 5
        %v4346 = vsel %vm1359, %v4345, 0
        %4348 = vmatpush.msra.mxu0 0.0
        %4349 = vmatpush.msra.mxu0 0.0
        %4350 = vmatpush.msra.mxu0 0.0
        %4351 = vmatpush.msra.mxu0 0.0
        %4352 = vmatpush.msra.mxu0 0.0
        %4353 = vmatpush.msra.mxu0 0.0
        %4354 = vmatpush.msra.mxu0 0.0
        %4355 = vmatpush.msra.mxu0 0.0
        %4356 = vmatpush.msra.mxu0 0.0
        %4357 = vmatpush.msra.mxu0 0.0
        %4358 = vmatpush.msra.mxu0 0.0
        %4359 = vmatpush.msra.mxu0 0.0
        %4360 = vmatpush.msra.mxu0 0.0
        %4361 = vmatpush.msra.mxu0 0.0
        %4362 = vmatpush.msra.mxu0 %v4337
        %4363 = vmatpush.msra.mxu0 %v4329
        %4364 = vmatmul.f32.gmra.mxu0 %v4346
        %v4365 = vpop.f32.mrf.mxu0
        %v4366 = vadd.f32 0.0, %v4365
        %4367 = vdwg.mxu0
        %4368 = vmatpush.msra.mxu0 0.0
        %4369 = vmatpush.msra.mxu0 0.0
        %4370 = vmatpush.msra.mxu0 0.0
        %4371 = vmatpush.msra.mxu0 0.0
        %4372 = vmatpush.msra.mxu0 0.0
        %4373 = vmatpush.msra.mxu0 0.0
        %4374 = vmatpush.msra.mxu0 0.0
        %4375 = vmatpush.msra.mxu0 0.0
        %4376 = vmatpush.msra.mxu0 0.0
        %4377 = vmatpush.msra.mxu0 0.0
        %4378 = vmatpush.msra.mxu0 0.0
        %4379 = vmatpush.msra.mxu0 0.0
        %4380 = vmatpush.msra.mxu0 0.0
        %4381 = vmatpush.msra.mxu0 0.0
        %4382 = vmatpush.msra.mxu0 %v4338
        %4383 = vmatpush.msra.mxu0 %v4330
        %4384 = vmatmul.f32.gmra.mxu0 %v4346
        %v4385 = vpop.f32.mrf.mxu0
        %v4386 = vadd.f32 0.0, %v4385
        %4387 = vdwg.mxu0
        %4388 = vmatpush.msra.mxu0 0.0
        %4389 = vmatpush.msra.mxu0 0.0
        %4390 = vmatpush.msra.mxu0 0.0
        %4391 = vmatpush.msra.mxu0 0.0
        %4392 = vmatpush.msra.mxu0 0.0
        %4393 = vmatpush.msra.mxu0 0.0
        %4394 = vmatpush.msra.mxu0 0.0
        %4395 = vmatpush.msra.mxu0 0.0
        %4396 = vmatpush.msra.mxu0 0.0
        %4397 = vmatpush.msra.mxu0 0.0
        %4398 = vmatpush.msra.mxu0 0.0
        %4399 = vmatpush.msra.mxu0 0.0
        %4400 = vmatpush.msra.mxu0 0.0
        %4401 = vmatpush.msra.mxu0 0.0
        %4402 = vmatpush.msra.mxu0 %v4339
        %4403 = vmatpush.msra.mxu0 %v4331
        %4404 = vmatmul.f32.gmra.mxu0 %v4346
        %v4405 = vpop.f32.mrf.mxu0
        %v4406 = vadd.f32 0.0, %v4405
        %4407 = vdwg.mxu0
        %4408 = vmatpush.msra.mxu0 0.0
        %4409 = vmatpush.msra.mxu0 0.0
        %4410 = vmatpush.msra.mxu0 0.0
        %4411 = vmatpush.msra.mxu0 0.0
        %4412 = vmatpush.msra.mxu0 0.0
        %4413 = vmatpush.msra.mxu0 0.0
        %4414 = vmatpush.msra.mxu0 0.0
        %4415 = vmatpush.msra.mxu0 0.0
        %4416 = vmatpush.msra.mxu0 0.0
        %4417 = vmatpush.msra.mxu0 0.0
        %4418 = vmatpush.msra.mxu0 0.0
        %4419 = vmatpush.msra.mxu0 0.0
        %4420 = vmatpush.msra.mxu0 0.0
        %4421 = vmatpush.msra.mxu0 0.0
        %4422 = vmatpush.msra.mxu0 %v4340
        %4423 = vmatpush.msra.mxu0 %v4332
        %4424 = vmatmul.f32.gmra.mxu0 %v4346
        %v4425 = vpop.f32.mrf.mxu0
        %v4426 = vadd.f32 0.0, %v4425
        %4427 = vdwg.mxu0
        %4428 = vmatpush.msra.mxu0 0.0
        %4429 = vmatpush.msra.mxu0 0.0
        %4430 = vmatpush.msra.mxu0 0.0
        %4431 = vmatpush.msra.mxu0 0.0
        %4432 = vmatpush.msra.mxu0 0.0
        %4433 = vmatpush.msra.mxu0 0.0
        %4434 = vmatpush.msra.mxu0 0.0
        %4435 = vmatpush.msra.mxu0 0.0
        %4436 = vmatpush.msra.mxu0 0.0
        %4437 = vmatpush.msra.mxu0 0.0
        %4438 = vmatpush.msra.mxu0 0.0
        %4439 = vmatpush.msra.mxu0 0.0
        %4440 = vmatpush.msra.mxu0 0.0
        %4441 = vmatpush.msra.mxu0 0.0
        %4442 = vmatpush.msra.mxu0 %v4341
        %4443 = vmatpush.msra.mxu0 %v4333
        %4444 = vmatmul.f32.gmra.mxu0 %v4346
        %v4445 = vpop.f32.mrf.mxu0
        %v4446 = vadd.f32 0.0, %v4445
        %4447 = vdwg.mxu0
        %4448 = vmatpush.msra.mxu0 0.0
        %4449 = vmatpush.msra.mxu0 0.0
        %4450 = vmatpush.msra.mxu0 0.0
        %4451 = vmatpush.msra.mxu0 0.0
        %4452 = vmatpush.msra.mxu0 0.0
        %4453 = vmatpush.msra.mxu0 0.0
        %4454 = vmatpush.msra.mxu0 0.0
        %4455 = vmatpush.msra.mxu0 0.0
        %4456 = vmatpush.msra.mxu0 0.0
        %4457 = vmatpush.msra.mxu0 0.0
        %4458 = vmatpush.msra.mxu0 0.0
        %4459 = vmatpush.msra.mxu0 0.0
        %4460 = vmatpush.msra.mxu0 0.0
        %4461 = vmatpush.msra.mxu0 0.0
        %4462 = vmatpush.msra.mxu0 %v4342
        %4463 = vmatpush.msra.mxu0 %v4334
        %4464 = vmatmul.f32.gmra.mxu0 %v4346
        %v4465 = vpop.f32.mrf.mxu0
        %v4466 = vadd.f32 0.0, %v4465
        %4467 = vdwg.mxu0
        %4468 = vmatpush.msra.mxu0 0.0
        %4469 = vmatpush.msra.mxu0 0.0
        %4470 = vmatpush.msra.mxu0 0.0
        %4471 = vmatpush.msra.mxu0 0.0
        %4472 = vmatpush.msra.mxu0 0.0
        %4473 = vmatpush.msra.mxu0 0.0
        %4474 = vmatpush.msra.mxu0 0.0
        %4475 = vmatpush.msra.mxu0 0.0
        %4476 = vmatpush.msra.mxu0 0.0
        %4477 = vmatpush.msra.mxu0 0.0
        %4478 = vmatpush.msra.mxu0 0.0
        %4479 = vmatpush.msra.mxu0 0.0
        %4480 = vmatpush.msra.mxu0 0.0
        %4481 = vmatpush.msra.mxu0 0.0
        %4482 = vmatpush.msra.mxu0 %v4343
        %4483 = vmatpush.msra.mxu0 %v4335
        %4484 = vmatmul.f32.gmra.mxu0 %v4346
        %v4485 = vpop.f32.mrf.mxu0
        %v4486 = vadd.f32 0.0, %v4485
        %4487 = vdwg.mxu0
        %4488 = vmatpush.msra.mxu0 0.0
        %4489 = vmatpush.msra.mxu0 0.0
        %4490 = vmatpush.msra.mxu0 0.0
        %4491 = vmatpush.msra.mxu0 0.0
        %4492 = vmatpush.msra.mxu0 0.0
        %4493 = vmatpush.msra.mxu0 0.0
        %4494 = vmatpush.msra.mxu0 0.0
        %4495 = vmatpush.msra.mxu0 0.0
        %4496 = vmatpush.msra.mxu0 0.0
        %4497 = vmatpush.msra.mxu0 0.0
        %4498 = vmatpush.msra.mxu0 0.0
        %4499 = vmatpush.msra.mxu0 0.0
        %4500 = vmatpush.msra.mxu0 0.0
        %4501 = vmatpush.msra.mxu0 0.0
        %4502 = vmatpush.msra.mxu0 %v4344
        %4503 = vmatpush.msra.mxu0 %v4336
        %4504 = vmatmul.f32.gmra.mxu0 %v4346
        %v4505 = vpop.f32.mrf.mxu0
        %v4506 = vadd.f32 0.0, %v4505
        %4507 = vdwg.mxu0
        %v4508 = vadd.f32 %v4320, %v4366
        %v4509 = vadd.f32 %v4321, %v4386
        %v4510 = vadd.f32 %v4322, %v4406
        %v4511 = vadd.f32 %v4323, %v4426
        %v4512 = vadd.f32 %v4324, %v4446
        %v4513 = vadd.f32 %v4325, %v4466
        %v4514 = vadd.f32 %v4326, %v4486
        %v4515 = vadd.f32 %v4327, %v4506
        %s4516 = scalar_lea.vmem [#allocation16], 1792
        %v4517 = vld [vmem:[%s4516] sm:$0xff]
        %v4518 = vld [vmem:[%s4516 + $0x8] sm:$0xff]
        %v4519 = vld [vmem:[%s4516 + $0x10] sm:$0xff]
        %v4520 = vld [vmem:[%s4516 + $0x18] sm:$0xff]
        %v4521 = vld [vmem:[%s4516 + $0x20] sm:$0xff]
        %v4522 = vld [vmem:[%s4516 + $0x28] sm:$0xff]
        %v4523 = vld [vmem:[%s4516 + $0x30] sm:$0xff]
        %v4524 = vld [vmem:[%s4516 + $0x38] sm:$0xff]
        %v4525 = vld [vmem:[%s4516 + $0x40] sm:$0xff]
        %v4526 = vld [vmem:[%s4516 + $0x48] sm:$0xff]
        %v4527 = vld [vmem:[%s4516 + $0x50] sm:$0xff]
        %v4528 = vld [vmem:[%s4516 + $0x58] sm:$0xff]
        %v4529 = vld [vmem:[%s4516 + $0x60] sm:$0xff]
        %v4530 = vld [vmem:[%s4516 + $0x68] sm:$0xff]
        %v4531 = vld [vmem:[%s4516 + $0x70] sm:$0xff]
        %v4532 = vld [vmem:[%s4516 + $0x78] sm:$0xff]
        %v4533 = vrot.slane %v1898, 6
        %v4534 = vsel %vm1359, %v4533, 0
        %4536 = vmatpush.msra.mxu0 0.0
        %4537 = vmatpush.msra.mxu0 0.0
        %4538 = vmatpush.msra.mxu0 0.0
        %4539 = vmatpush.msra.mxu0 0.0
        %4540 = vmatpush.msra.mxu0 0.0
        %4541 = vmatpush.msra.mxu0 0.0
        %4542 = vmatpush.msra.mxu0 0.0
        %4543 = vmatpush.msra.mxu0 0.0
        %4544 = vmatpush.msra.mxu0 0.0
        %4545 = vmatpush.msra.mxu0 0.0
        %4546 = vmatpush.msra.mxu0 0.0
        %4547 = vmatpush.msra.mxu0 0.0
        %4548 = vmatpush.msra.mxu0 0.0
        %4549 = vmatpush.msra.mxu0 0.0
        %4550 = vmatpush.msra.mxu0 %v4525
        %4551 = vmatpush.msra.mxu0 %v4517
        %4552 = vmatmul.f32.gmra.mxu0 %v4534
        %v4553 = vpop.f32.mrf.mxu0
        %v4554 = vadd.f32 0.0, %v4553
        %4555 = vdwg.mxu0
        %4556 = vmatpush.msra.mxu0 0.0
        %4557 = vmatpush.msra.mxu0 0.0
        %4558 = vmatpush.msra.mxu0 0.0
        %4559 = vmatpush.msra.mxu0 0.0
        %4560 = vmatpush.msra.mxu0 0.0
        %4561 = vmatpush.msra.mxu0 0.0
        %4562 = vmatpush.msra.mxu0 0.0
        %4563 = vmatpush.msra.mxu0 0.0
        %4564 = vmatpush.msra.mxu0 0.0
        %4565 = vmatpush.msra.mxu0 0.0
        %4566 = vmatpush.msra.mxu0 0.0
        %4567 = vmatpush.msra.mxu0 0.0
        %4568 = vmatpush.msra.mxu0 0.0
        %4569 = vmatpush.msra.mxu0 0.0
        %4570 = vmatpush.msra.mxu0 %v4526
        %4571 = vmatpush.msra.mxu0 %v4518
        %4572 = vmatmul.f32.gmra.mxu0 %v4534
        %v4573 = vpop.f32.mrf.mxu0
        %v4574 = vadd.f32 0.0, %v4573
        %4575 = vdwg.mxu0
        %4576 = vmatpush.msra.mxu0 0.0
        %4577 = vmatpush.msra.mxu0 0.0
        %4578 = vmatpush.msra.mxu0 0.0
        %4579 = vmatpush.msra.mxu0 0.0
        %4580 = vmatpush.msra.mxu0 0.0
        %4581 = vmatpush.msra.mxu0 0.0
        %4582 = vmatpush.msra.mxu0 0.0
        %4583 = vmatpush.msra.mxu0 0.0
        %4584 = vmatpush.msra.mxu0 0.0
        %4585 = vmatpush.msra.mxu0 0.0
        %4586 = vmatpush.msra.mxu0 0.0
        %4587 = vmatpush.msra.mxu0 0.0
        %4588 = vmatpush.msra.mxu0 0.0
        %4589 = vmatpush.msra.mxu0 0.0
        %4590 = vmatpush.msra.mxu0 %v4527
        %4591 = vmatpush.msra.mxu0 %v4519
        %4592 = vmatmul.f32.gmra.mxu0 %v4534
        %v4593 = vpop.f32.mrf.mxu0
        %v4594 = vadd.f32 0.0, %v4593
        %4595 = vdwg.mxu0
        %4596 = vmatpush.msra.mxu0 0.0
        %4597 = vmatpush.msra.mxu0 0.0
        %4598 = vmatpush.msra.mxu0 0.0
        %4599 = vmatpush.msra.mxu0 0.0
        %4600 = vmatpush.msra.mxu0 0.0
        %4601 = vmatpush.msra.mxu0 0.0
        %4602 = vmatpush.msra.mxu0 0.0
        %4603 = vmatpush.msra.mxu0 0.0
        %4604 = vmatpush.msra.mxu0 0.0
        %4605 = vmatpush.msra.mxu0 0.0
        %4606 = vmatpush.msra.mxu0 0.0
        %4607 = vmatpush.msra.mxu0 0.0
        %4608 = vmatpush.msra.mxu0 0.0
        %4609 = vmatpush.msra.mxu0 0.0
        %4610 = vmatpush.msra.mxu0 %v4528
        %4611 = vmatpush.msra.mxu0 %v4520
        %4612 = vmatmul.f32.gmra.mxu0 %v4534
        %v4613 = vpop.f32.mrf.mxu0
        %v4614 = vadd.f32 0.0, %v4613
        %4615 = vdwg.mxu0
        %4616 = vmatpush.msra.mxu0 0.0
        %4617 = vmatpush.msra.mxu0 0.0
        %4618 = vmatpush.msra.mxu0 0.0
        %4619 = vmatpush.msra.mxu0 0.0
        %4620 = vmatpush.msra.mxu0 0.0
        %4621 = vmatpush.msra.mxu0 0.0
        %4622 = vmatpush.msra.mxu0 0.0
        %4623 = vmatpush.msra.mxu0 0.0
        %4624 = vmatpush.msra.mxu0 0.0
        %4625 = vmatpush.msra.mxu0 0.0
        %4626 = vmatpush.msra.mxu0 0.0
        %4627 = vmatpush.msra.mxu0 0.0
        %4628 = vmatpush.msra.mxu0 0.0
        %4629 = vmatpush.msra.mxu0 0.0
        %4630 = vmatpush.msra.mxu0 %v4529
        %4631 = vmatpush.msra.mxu0 %v4521
        %4632 = vmatmul.f32.gmra.mxu0 %v4534
        %v4633 = vpop.f32.mrf.mxu0
        %v4634 = vadd.f32 0.0, %v4633
        %4635 = vdwg.mxu0
        %4636 = vmatpush.msra.mxu0 0.0
        %4637 = vmatpush.msra.mxu0 0.0
        %4638 = vmatpush.msra.mxu0 0.0
        %4639 = vmatpush.msra.mxu0 0.0
        %4640 = vmatpush.msra.mxu0 0.0
        %4641 = vmatpush.msra.mxu0 0.0
        %4642 = vmatpush.msra.mxu0 0.0
        %4643 = vmatpush.msra.mxu0 0.0
        %4644 = vmatpush.msra.mxu0 0.0
        %4645 = vmatpush.msra.mxu0 0.0
        %4646 = vmatpush.msra.mxu0 0.0
        %4647 = vmatpush.msra.mxu0 0.0
        %4648 = vmatpush.msra.mxu0 0.0
        %4649 = vmatpush.msra.mxu0 0.0
        %4650 = vmatpush.msra.mxu0 %v4530
        %4651 = vmatpush.msra.mxu0 %v4522
        %4652 = vmatmul.f32.gmra.mxu0 %v4534
        %v4653 = vpop.f32.mrf.mxu0
        %v4654 = vadd.f32 0.0, %v4653
        %4655 = vdwg.mxu0
        %4656 = vmatpush.msra.mxu0 0.0
        %4657 = vmatpush.msra.mxu0 0.0
        %4658 = vmatpush.msra.mxu0 0.0
        %4659 = vmatpush.msra.mxu0 0.0
        %4660 = vmatpush.msra.mxu0 0.0
        %4661 = vmatpush.msra.mxu0 0.0
        %4662 = vmatpush.msra.mxu0 0.0
        %4663 = vmatpush.msra.mxu0 0.0
        %4664 = vmatpush.msra.mxu0 0.0
        %4665 = vmatpush.msra.mxu0 0.0
        %4666 = vmatpush.msra.mxu0 0.0
        %4667 = vmatpush.msra.mxu0 0.0
        %4668 = vmatpush.msra.mxu0 0.0
        %4669 = vmatpush.msra.mxu0 0.0
        %4670 = vmatpush.msra.mxu0 %v4531
        %4671 = vmatpush.msra.mxu0 %v4523
        %4672 = vmatmul.f32.gmra.mxu0 %v4534
        %v4673 = vpop.f32.mrf.mxu0
        %v4674 = vadd.f32 0.0, %v4673
        %4675 = vdwg.mxu0
        %4676 = vmatpush.msra.mxu0 0.0
        %4677 = vmatpush.msra.mxu0 0.0
        %4678 = vmatpush.msra.mxu0 0.0
        %4679 = vmatpush.msra.mxu0 0.0
        %4680 = vmatpush.msra.mxu0 0.0
        %4681 = vmatpush.msra.mxu0 0.0
        %4682 = vmatpush.msra.mxu0 0.0
        %4683 = vmatpush.msra.mxu0 0.0
        %4684 = vmatpush.msra.mxu0 0.0
        %4685 = vmatpush.msra.mxu0 0.0
        %4686 = vmatpush.msra.mxu0 0.0
        %4687 = vmatpush.msra.mxu0 0.0
        %4688 = vmatpush.msra.mxu0 0.0
        %4689 = vmatpush.msra.mxu0 0.0
        %4690 = vmatpush.msra.mxu0 %v4532
        %4691 = vmatpush.msra.mxu0 %v4524
        %4692 = vmatmul.f32.gmra.mxu0 %v4534
        %v4693 = vpop.f32.mrf.mxu0
        %v4694 = vadd.f32 0.0, %v4693
        %4695 = vdwg.mxu0
        %v4696 = vadd.f32 %v4508, %v4554
        %v4697 = vadd.f32 %v4509, %v4574
        %v4698 = vadd.f32 %v4510, %v4594
        %v4699 = vadd.f32 %v4511, %v4614
        %v4700 = vadd.f32 %v4512, %v4634
        %v4701 = vadd.f32 %v4513, %v4654
        %v4702 = vadd.f32 %v4514, %v4674
        %v4703 = vadd.f32 %v4515, %v4694
        %s4704 = scalar_lea.vmem [#allocation16], 1920
        %v4705 = vld [vmem:[%s4704] sm:$0xff]
        %v4706 = vld [vmem:[%s4704 + $0x8] sm:$0xff]
        %v4707 = vld [vmem:[%s4704 + $0x10] sm:$0xff]
        %v4708 = vld [vmem:[%s4704 + $0x18] sm:$0xff]
        %v4709 = vld [vmem:[%s4704 + $0x20] sm:$0xff]
        %v4710 = vld [vmem:[%s4704 + $0x28] sm:$0xff]
        %v4711 = vld [vmem:[%s4704 + $0x30] sm:$0xff]
        %v4712 = vld [vmem:[%s4704 + $0x38] sm:$0xff]
        %v4713 = vld [vmem:[%s4704 + $0x40] sm:$0xff]
        %v4714 = vld [vmem:[%s4704 + $0x48] sm:$0xff]
        %v4715 = vld [vmem:[%s4704 + $0x50] sm:$0xff]
        %v4716 = vld [vmem:[%s4704 + $0x58] sm:$0xff]
        %v4717 = vld [vmem:[%s4704 + $0x60] sm:$0xff]
        %v4718 = vld [vmem:[%s4704 + $0x68] sm:$0xff]
        %v4719 = vld [vmem:[%s4704 + $0x70] sm:$0xff]
        %v4720 = vld [vmem:[%s4704 + $0x78] sm:$0xff]
        %v4721 = vrot.slane %v1898, 7
        %v4722 = vsel %vm1359, %v4721, 0
        %4724 = vmatpush.msra.mxu0 0.0
        %4725 = vmatpush.msra.mxu0 0.0
        %4726 = vmatpush.msra.mxu0 0.0
        %4727 = vmatpush.msra.mxu0 0.0
        %4728 = vmatpush.msra.mxu0 0.0
        %4729 = vmatpush.msra.mxu0 0.0
        %4730 = vmatpush.msra.mxu0 0.0
        %4731 = vmatpush.msra.mxu0 0.0
        %4732 = vmatpush.msra.mxu0 0.0
        %4733 = vmatpush.msra.mxu0 0.0
        %4734 = vmatpush.msra.mxu0 0.0
        %4735 = vmatpush.msra.mxu0 0.0
        %4736 = vmatpush.msra.mxu0 0.0
        %4737 = vmatpush.msra.mxu0 0.0
        %4738 = vmatpush.msra.mxu0 %v4713
        %4739 = vmatpush.msra.mxu0 %v4705
        %4740 = vmatmul.f32.gmra.mxu0 %v4722
        %v4741 = vpop.f32.mrf.mxu0
        %v4742 = vadd.f32 0.0, %v4741
        %4743 = vdwg.mxu0
        %4744 = vmatpush.msra.mxu0 0.0
        %4745 = vmatpush.msra.mxu0 0.0
        %4746 = vmatpush.msra.mxu0 0.0
        %4747 = vmatpush.msra.mxu0 0.0
        %4748 = vmatpush.msra.mxu0 0.0
        %4749 = vmatpush.msra.mxu0 0.0
        %4750 = vmatpush.msra.mxu0 0.0
        %4751 = vmatpush.msra.mxu0 0.0
        %4752 = vmatpush.msra.mxu0 0.0
        %4753 = vmatpush.msra.mxu0 0.0
        %4754 = vmatpush.msra.mxu0 0.0
        %4755 = vmatpush.msra.mxu0 0.0
        %4756 = vmatpush.msra.mxu0 0.0
        %4757 = vmatpush.msra.mxu0 0.0
        %4758 = vmatpush.msra.mxu0 %v4714
        %4759 = vmatpush.msra.mxu0 %v4706
        %4760 = vmatmul.f32.gmra.mxu0 %v4722
        %v4761 = vpop.f32.mrf.mxu0
        %v4762 = vadd.f32 0.0, %v4761
        %4763 = vdwg.mxu0
        %4764 = vmatpush.msra.mxu0 0.0
        %4765 = vmatpush.msra.mxu0 0.0
        %4766 = vmatpush.msra.mxu0 0.0
        %4767 = vmatpush.msra.mxu0 0.0
        %4768 = vmatpush.msra.mxu0 0.0
        %4769 = vmatpush.msra.mxu0 0.0
        %4770 = vmatpush.msra.mxu0 0.0
        %4771 = vmatpush.msra.mxu0 0.0
        %4772 = vmatpush.msra.mxu0 0.0
        %4773 = vmatpush.msra.mxu0 0.0
        %4774 = vmatpush.msra.mxu0 0.0
        %4775 = vmatpush.msra.mxu0 0.0
        %4776 = vmatpush.msra.mxu0 0.0
        %4777 = vmatpush.msra.mxu0 0.0
        %4778 = vmatpush.msra.mxu0 %v4715
        %4779 = vmatpush.msra.mxu0 %v4707
        %4780 = vmatmul.f32.gmra.mxu0 %v4722
        %v4781 = vpop.f32.mrf.mxu0
        %v4782 = vadd.f32 0.0, %v4781
        %4783 = vdwg.mxu0
        %4784 = vmatpush.msra.mxu0 0.0
        %4785 = vmatpush.msra.mxu0 0.0
        %4786 = vmatpush.msra.mxu0 0.0
        %4787 = vmatpush.msra.mxu0 0.0
        %4788 = vmatpush.msra.mxu0 0.0
        %4789 = vmatpush.msra.mxu0 0.0
        %4790 = vmatpush.msra.mxu0 0.0
        %4791 = vmatpush.msra.mxu0 0.0
        %4792 = vmatpush.msra.mxu0 0.0
        %4793 = vmatpush.msra.mxu0 0.0
        %4794 = vmatpush.msra.mxu0 0.0
        %4795 = vmatpush.msra.mxu0 0.0
        %4796 = vmatpush.msra.mxu0 0.0
        %4797 = vmatpush.msra.mxu0 0.0
        %4798 = vmatpush.msra.mxu0 %v4716
        %4799 = vmatpush.msra.mxu0 %v4708
        %4800 = vmatmul.f32.gmra.mxu0 %v4722
        %v4801 = vpop.f32.mrf.mxu0
        %v4802 = vadd.f32 0.0, %v4801
        %4803 = vdwg.mxu0
        %4804 = vmatpush.msra.mxu0 0.0
        %4805 = vmatpush.msra.mxu0 0.0
        %4806 = vmatpush.msra.mxu0 0.0
        %4807 = vmatpush.msra.mxu0 0.0
        %4808 = vmatpush.msra.mxu0 0.0
        %4809 = vmatpush.msra.mxu0 0.0
        %4810 = vmatpush.msra.mxu0 0.0
        %4811 = vmatpush.msra.mxu0 0.0
        %4812 = vmatpush.msra.mxu0 0.0
        %4813 = vmatpush.msra.mxu0 0.0
        %4814 = vmatpush.msra.mxu0 0.0
        %4815 = vmatpush.msra.mxu0 0.0
        %4816 = vmatpush.msra.mxu0 0.0
        %4817 = vmatpush.msra.mxu0 0.0
        %4818 = vmatpush.msra.mxu0 %v4717
        %4819 = vmatpush.msra.mxu0 %v4709
        %4820 = vmatmul.f32.gmra.mxu0 %v4722
        %v4821 = vpop.f32.mrf.mxu0
        %v4822 = vadd.f32 0.0, %v4821
        %4823 = vdwg.mxu0
        %4824 = vmatpush.msra.mxu0 0.0
        %4825 = vmatpush.msra.mxu0 0.0
        %4826 = vmatpush.msra.mxu0 0.0
        %4827 = vmatpush.msra.mxu0 0.0
        %4828 = vmatpush.msra.mxu0 0.0
        %4829 = vmatpush.msra.mxu0 0.0
        %4830 = vmatpush.msra.mxu0 0.0
        %4831 = vmatpush.msra.mxu0 0.0
        %4832 = vmatpush.msra.mxu0 0.0
        %4833 = vmatpush.msra.mxu0 0.0
        %4834 = vmatpush.msra.mxu0 0.0
        %4835 = vmatpush.msra.mxu0 0.0
        %4836 = vmatpush.msra.mxu0 0.0
        %4837 = vmatpush.msra.mxu0 0.0
        %4838 = vmatpush.msra.mxu0 %v4718
        %4839 = vmatpush.msra.mxu0 %v4710
        %4840 = vmatmul.f32.gmra.mxu0 %v4722
        %v4841 = vpop.f32.mrf.mxu0
        %v4842 = vadd.f32 0.0, %v4841
        %4843 = vdwg.mxu0
        %4844 = vmatpush.msra.mxu0 0.0
        %4845 = vmatpush.msra.mxu0 0.0
        %4846 = vmatpush.msra.mxu0 0.0
        %4847 = vmatpush.msra.mxu0 0.0
        %4848 = vmatpush.msra.mxu0 0.0
        %4849 = vmatpush.msra.mxu0 0.0
        %4850 = vmatpush.msra.mxu0 0.0
        %4851 = vmatpush.msra.mxu0 0.0
        %4852 = vmatpush.msra.mxu0 0.0
        %4853 = vmatpush.msra.mxu0 0.0
        %4854 = vmatpush.msra.mxu0 0.0
        %4855 = vmatpush.msra.mxu0 0.0
        %4856 = vmatpush.msra.mxu0 0.0
        %4857 = vmatpush.msra.mxu0 0.0
        %4858 = vmatpush.msra.mxu0 %v4719
        %4859 = vmatpush.msra.mxu0 %v4711
        %4860 = vmatmul.f32.gmra.mxu0 %v4722
        %v4861 = vpop.f32.mrf.mxu0
        %v4862 = vadd.f32 0.0, %v4861
        %4863 = vdwg.mxu0
        %4864 = vmatpush.msra.mxu0 0.0
        %4865 = vmatpush.msra.mxu0 0.0
        %4866 = vmatpush.msra.mxu0 0.0
        %4867 = vmatpush.msra.mxu0 0.0
        %4868 = vmatpush.msra.mxu0 0.0
        %4869 = vmatpush.msra.mxu0 0.0
        %4870 = vmatpush.msra.mxu0 0.0
        %4871 = vmatpush.msra.mxu0 0.0
        %4872 = vmatpush.msra.mxu0 0.0
        %4873 = vmatpush.msra.mxu0 0.0
        %4874 = vmatpush.msra.mxu0 0.0
        %4875 = vmatpush.msra.mxu0 0.0
        %4876 = vmatpush.msra.mxu0 0.0
        %4877 = vmatpush.msra.mxu0 0.0
        %4878 = vmatpush.msra.mxu0 %v4720
        %4879 = vmatpush.msra.mxu0 %v4712
        %4880 = vmatmul.f32.gmra.mxu0 %v4722
        %v4881 = vpop.f32.mrf.mxu0
        %v4882 = vadd.f32 0.0, %v4881
        %4883 = vdwg.mxu0
        %v4884 = vadd.f32 %v4696, %v4742
        %v4885 = vadd.f32 %v4697, %v4762
        %v4886 = vadd.f32 %v4698, %v4782
        %v4887 = vadd.f32 %v4699, %v4802
        %v4888 = vadd.f32 %v4700, %v4822
        %v4889 = vadd.f32 %v4701, %v4842
        %v4890 = vadd.f32 %v4702, %v4862
        %v4891 = vadd.f32 %v4703, %v4882
        %s4892 = scalar_lea.vmem [#allocation16], 2048
        %v4893 = vld [vmem:[%s4892] sm:$0xff]
        %v4894 = vld [vmem:[%s4892 + $0x8] sm:$0xff]
        %v4895 = vld [vmem:[%s4892 + $0x10] sm:$0xff]
        %v4896 = vld [vmem:[%s4892 + $0x18] sm:$0xff]
        %v4897 = vld [vmem:[%s4892 + $0x20] sm:$0xff]
        %v4898 = vld [vmem:[%s4892 + $0x28] sm:$0xff]
        %v4899 = vld [vmem:[%s4892 + $0x30] sm:$0xff]
        %v4900 = vld [vmem:[%s4892 + $0x38] sm:$0xff]
        %v4901 = vld [vmem:[%s4892 + $0x40] sm:$0xff]
        %v4902 = vld [vmem:[%s4892 + $0x48] sm:$0xff]
        %v4903 = vld [vmem:[%s4892 + $0x50] sm:$0xff]
        %v4904 = vld [vmem:[%s4892 + $0x58] sm:$0xff]
        %v4905 = vld [vmem:[%s4892 + $0x60] sm:$0xff]
        %v4906 = vld [vmem:[%s4892 + $0x68] sm:$0xff]
        %v4907 = vld [vmem:[%s4892 + $0x70] sm:$0xff]
        %v4908 = vld [vmem:[%s4892 + $0x78] sm:$0xff]
        %v4910 = vsel %vm1359, %v1899, 0
        %4912 = vmatpush.msra.mxu0 0.0
        %4913 = vmatpush.msra.mxu0 0.0
        %4914 = vmatpush.msra.mxu0 0.0
        %4915 = vmatpush.msra.mxu0 0.0
        %4916 = vmatpush.msra.mxu0 0.0
        %4917 = vmatpush.msra.mxu0 0.0
        %4918 = vmatpush.msra.mxu0 0.0
        %4919 = vmatpush.msra.mxu0 0.0
        %4920 = vmatpush.msra.mxu0 0.0
        %4921 = vmatpush.msra.mxu0 0.0
        %4922 = vmatpush.msra.mxu0 0.0
        %4923 = vmatpush.msra.mxu0 0.0
        %4924 = vmatpush.msra.mxu0 0.0
        %4925 = vmatpush.msra.mxu0 0.0
        %4926 = vmatpush.msra.mxu0 %v4901
        %4927 = vmatpush.msra.mxu0 %v4893
        %4928 = vmatmul.f32.gmra.mxu0 %v4910
        %v4929 = vpop.f32.mrf.mxu0
        %v4930 = vadd.f32 0.0, %v4929
        %4931 = vdwg.mxu0
        %4932 = vmatpush.msra.mxu0 0.0
        %4933 = vmatpush.msra.mxu0 0.0
        %4934 = vmatpush.msra.mxu0 0.0
        %4935 = vmatpush.msra.mxu0 0.0
        %4936 = vmatpush.msra.mxu0 0.0
        %4937 = vmatpush.msra.mxu0 0.0
        %4938 = vmatpush.msra.mxu0 0.0
        %4939 = vmatpush.msra.mxu0 0.0
        %4940 = vmatpush.msra.mxu0 0.0
        %4941 = vmatpush.msra.mxu0 0.0
        %4942 = vmatpush.msra.mxu0 0.0
        %4943 = vmatpush.msra.mxu0 0.0
        %4944 = vmatpush.msra.mxu0 0.0
        %4945 = vmatpush.msra.mxu0 0.0
        %4946 = vmatpush.msra.mxu0 %v4902
        %4947 = vmatpush.msra.mxu0 %v4894
        %4948 = vmatmul.f32.gmra.mxu0 %v4910
        %v4949 = vpop.f32.mrf.mxu0
        %v4950 = vadd.f32 0.0, %v4949
        %4951 = vdwg.mxu0
        %4952 = vmatpush.msra.mxu0 0.0
        %4953 = vmatpush.msra.mxu0 0.0
        %4954 = vmatpush.msra.mxu0 0.0
        %4955 = vmatpush.msra.mxu0 0.0
        %4956 = vmatpush.msra.mxu0 0.0
        %4957 = vmatpush.msra.mxu0 0.0
        %4958 = vmatpush.msra.mxu0 0.0
        %4959 = vmatpush.msra.mxu0 0.0
        %4960 = vmatpush.msra.mxu0 0.0
        %4961 = vmatpush.msra.mxu0 0.0
        %4962 = vmatpush.msra.mxu0 0.0
        %4963 = vmatpush.msra.mxu0 0.0
        %4964 = vmatpush.msra.mxu0 0.0
        %4965 = vmatpush.msra.mxu0 0.0
        %4966 = vmatpush.msra.mxu0 %v4903
        %4967 = vmatpush.msra.mxu0 %v4895
        %4968 = vmatmul.f32.gmra.mxu0 %v4910
        %v4969 = vpop.f32.mrf.mxu0
        %v4970 = vadd.f32 0.0, %v4969
        %4971 = vdwg.mxu0
        %4972 = vmatpush.msra.mxu0 0.0
        %4973 = vmatpush.msra.mxu0 0.0
        %4974 = vmatpush.msra.mxu0 0.0
        %4975 = vmatpush.msra.mxu0 0.0
        %4976 = vmatpush.msra.mxu0 0.0
        %4977 = vmatpush.msra.mxu0 0.0
        %4978 = vmatpush.msra.mxu0 0.0
        %4979 = vmatpush.msra.mxu0 0.0
        %4980 = vmatpush.msra.mxu0 0.0
        %4981 = vmatpush.msra.mxu0 0.0
        %4982 = vmatpush.msra.mxu0 0.0
        %4983 = vmatpush.msra.mxu0 0.0
        %4984 = vmatpush.msra.mxu0 0.0
        %4985 = vmatpush.msra.mxu0 0.0
        %4986 = vmatpush.msra.mxu0 %v4904
        %4987 = vmatpush.msra.mxu0 %v4896
        %4988 = vmatmul.f32.gmra.mxu0 %v4910
        %v4989 = vpop.f32.mrf.mxu0
        %v4990 = vadd.f32 0.0, %v4989
        %4991 = vdwg.mxu0
        %4992 = vmatpush.msra.mxu0 0.0
        %4993 = vmatpush.msra.mxu0 0.0
        %4994 = vmatpush.msra.mxu0 0.0
        %4995 = vmatpush.msra.mxu0 0.0
        %4996 = vmatpush.msra.mxu0 0.0
        %4997 = vmatpush.msra.mxu0 0.0
        %4998 = vmatpush.msra.mxu0 0.0
        %4999 = vmatpush.msra.mxu0 0.0
        %5000 = vmatpush.msra.mxu0 0.0
        %5001 = vmatpush.msra.mxu0 0.0
        %5002 = vmatpush.msra.mxu0 0.0
        %5003 = vmatpush.msra.mxu0 0.0
        %5004 = vmatpush.msra.mxu0 0.0
        %5005 = vmatpush.msra.mxu0 0.0
        %5006 = vmatpush.msra.mxu0 %v4905
        %5007 = vmatpush.msra.mxu0 %v4897
        %5008 = vmatmul.f32.gmra.mxu0 %v4910
        %v5009 = vpop.f32.mrf.mxu0
        %v5010 = vadd.f32 0.0, %v5009
        %5011 = vdwg.mxu0
        %5012 = vmatpush.msra.mxu0 0.0
        %5013 = vmatpush.msra.mxu0 0.0
        %5014 = vmatpush.msra.mxu0 0.0
        %5015 = vmatpush.msra.mxu0 0.0
        %5016 = vmatpush.msra.mxu0 0.0
        %5017 = vmatpush.msra.mxu0 0.0
        %5018 = vmatpush.msra.mxu0 0.0
        %5019 = vmatpush.msra.mxu0 0.0
        %5020 = vmatpush.msra.mxu0 0.0
        %5021 = vmatpush.msra.mxu0 0.0
        %5022 = vmatpush.msra.mxu0 0.0
        %5023 = vmatpush.msra.mxu0 0.0
        %5024 = vmatpush.msra.mxu0 0.0
        %5025 = vmatpush.msra.mxu0 0.0
        %5026 = vmatpush.msra.mxu0 %v4906
        %5027 = vmatpush.msra.mxu0 %v4898
        %5028 = vmatmul.f32.gmra.mxu0 %v4910
        %v5029 = vpop.f32.mrf.mxu0
        %v5030 = vadd.f32 0.0, %v5029
        %5031 = vdwg.mxu0
        %5032 = vmatpush.msra.mxu0 0.0
        %5033 = vmatpush.msra.mxu0 0.0
        %5034 = vmatpush.msra.mxu0 0.0
        %5035 = vmatpush.msra.mxu0 0.0
        %5036 = vmatpush.msra.mxu0 0.0
        %5037 = vmatpush.msra.mxu0 0.0
        %5038 = vmatpush.msra.mxu0 0.0
        %5039 = vmatpush.msra.mxu0 0.0
        %5040 = vmatpush.msra.mxu0 0.0
        %5041 = vmatpush.msra.mxu0 0.0
        %5042 = vmatpush.msra.mxu0 0.0
        %5043 = vmatpush.msra.mxu0 0.0
        %5044 = vmatpush.msra.mxu0 0.0
        %5045 = vmatpush.msra.mxu0 0.0
        %5046 = vmatpush.msra.mxu0 %v4907
        %5047 = vmatpush.msra.mxu0 %v4899
        %5048 = vmatmul.f32.gmra.mxu0 %v4910
        %v5049 = vpop.f32.mrf.mxu0
        %v5050 = vadd.f32 0.0, %v5049
        %5051 = vdwg.mxu0
        %5052 = vmatpush.msra.mxu0 0.0
        %5053 = vmatpush.msra.mxu0 0.0
        %5054 = vmatpush.msra.mxu0 0.0
        %5055 = vmatpush.msra.mxu0 0.0
        %5056 = vmatpush.msra.mxu0 0.0
        %5057 = vmatpush.msra.mxu0 0.0
        %5058 = vmatpush.msra.mxu0 0.0
        %5059 = vmatpush.msra.mxu0 0.0
        %5060 = vmatpush.msra.mxu0 0.0
        %5061 = vmatpush.msra.mxu0 0.0
        %5062 = vmatpush.msra.mxu0 0.0
        %5063 = vmatpush.msra.mxu0 0.0
        %5064 = vmatpush.msra.mxu0 0.0
        %5065 = vmatpush.msra.mxu0 0.0
        %5066 = vmatpush.msra.mxu0 %v4908
        %5067 = vmatpush.msra.mxu0 %v4900
        %5068 = vmatmul.f32.gmra.mxu0 %v4910
        %v5069 = vpop.f32.mrf.mxu0
        %v5070 = vadd.f32 0.0, %v5069
        %5071 = vdwg.mxu0
        %v5072 = vadd.f32 %v4884, %v4930
        %v5073 = vadd.f32 %v4885, %v4950
        %v5074 = vadd.f32 %v4886, %v4970
        %v5075 = vadd.f32 %v4887, %v4990
        %v5076 = vadd.f32 %v4888, %v5010
        %v5077 = vadd.f32 %v4889, %v5030
        %v5078 = vadd.f32 %v4890, %v5050
        %v5079 = vadd.f32 %v4891, %v5070
        %s5080 = scalar_lea.vmem [#allocation16], 2176
        %v5081 = vld [vmem:[%s5080] sm:$0xff]
        %v5082 = vld [vmem:[%s5080 + $0x8] sm:$0xff]
        %v5083 = vld [vmem:[%s5080 + $0x10] sm:$0xff]
        %v5084 = vld [vmem:[%s5080 + $0x18] sm:$0xff]
        %v5085 = vld [vmem:[%s5080 + $0x20] sm:$0xff]
        %v5086 = vld [vmem:[%s5080 + $0x28] sm:$0xff]
        %v5087 = vld [vmem:[%s5080 + $0x30] sm:$0xff]
        %v5088 = vld [vmem:[%s5080 + $0x38] sm:$0xff]
        %v5089 = vld [vmem:[%s5080 + $0x40] sm:$0xff]
        %v5090 = vld [vmem:[%s5080 + $0x48] sm:$0xff]
        %v5091 = vld [vmem:[%s5080 + $0x50] sm:$0xff]
        %v5092 = vld [vmem:[%s5080 + $0x58] sm:$0xff]
        %v5093 = vld [vmem:[%s5080 + $0x60] sm:$0xff]
        %v5094 = vld [vmem:[%s5080 + $0x68] sm:$0xff]
        %v5095 = vld [vmem:[%s5080 + $0x70] sm:$0xff]
        %v5096 = vld [vmem:[%s5080 + $0x78] sm:$0xff]
        %v5097 = vrot.slane %v1899, 1
        %v5098 = vsel %vm1359, %v5097, 0
        %5100 = vmatpush.msra.mxu0 0.0
        %5101 = vmatpush.msra.mxu0 0.0
        %5102 = vmatpush.msra.mxu0 0.0
        %5103 = vmatpush.msra.mxu0 0.0
        %5104 = vmatpush.msra.mxu0 0.0
        %5105 = vmatpush.msra.mxu0 0.0
        %5106 = vmatpush.msra.mxu0 0.0
        %5107 = vmatpush.msra.mxu0 0.0
        %5108 = vmatpush.msra.mxu0 0.0
        %5109 = vmatpush.msra.mxu0 0.0
        %5110 = vmatpush.msra.mxu0 0.0
        %5111 = vmatpush.msra.mxu0 0.0
        %5112 = vmatpush.msra.mxu0 0.0
        %5113 = vmatpush.msra.mxu0 0.0
        %5114 = vmatpush.msra.mxu0 %v5089
        %5115 = vmatpush.msra.mxu0 %v5081
        %5116 = vmatmul.f32.gmra.mxu0 %v5098
        %v5117 = vpop.f32.mrf.mxu0
        %v5118 = vadd.f32 0.0, %v5117
        %5119 = vdwg.mxu0
        %5120 = vmatpush.msra.mxu0 0.0
        %5121 = vmatpush.msra.mxu0 0.0
        %5122 = vmatpush.msra.mxu0 0.0
        %5123 = vmatpush.msra.mxu0 0.0
        %5124 = vmatpush.msra.mxu0 0.0
        %5125 = vmatpush.msra.mxu0 0.0
        %5126 = vmatpush.msra.mxu0 0.0
        %5127 = vmatpush.msra.mxu0 0.0
        %5128 = vmatpush.msra.mxu0 0.0
        %5129 = vmatpush.msra.mxu0 0.0
        %5130 = vmatpush.msra.mxu0 0.0
        %5131 = vmatpush.msra.mxu0 0.0
        %5132 = vmatpush.msra.mxu0 0.0
        %5133 = vmatpush.msra.mxu0 0.0
        %5134 = vmatpush.msra.mxu0 %v5090
        %5135 = vmatpush.msra.mxu0 %v5082
        %5136 = vmatmul.f32.gmra.mxu0 %v5098
        %v5137 = vpop.f32.mrf.mxu0
        %v5138 = vadd.f32 0.0, %v5137
        %5139 = vdwg.mxu0
        %5140 = vmatpush.msra.mxu0 0.0
        %5141 = vmatpush.msra.mxu0 0.0
        %5142 = vmatpush.msra.mxu0 0.0
        %5143 = vmatpush.msra.mxu0 0.0
        %5144 = vmatpush.msra.mxu0 0.0
        %5145 = vmatpush.msra.mxu0 0.0
        %5146 = vmatpush.msra.mxu0 0.0
        %5147 = vmatpush.msra.mxu0 0.0
        %5148 = vmatpush.msra.mxu0 0.0
        %5149 = vmatpush.msra.mxu0 0.0
        %5150 = vmatpush.msra.mxu0 0.0
        %5151 = vmatpush.msra.mxu0 0.0
        %5152 = vmatpush.msra.mxu0 0.0
        %5153 = vmatpush.msra.mxu0 0.0
        %5154 = vmatpush.msra.mxu0 %v5091
        %5155 = vmatpush.msra.mxu0 %v5083
        %5156 = vmatmul.f32.gmra.mxu0 %v5098
        %v5157 = vpop.f32.mrf.mxu0
        %v5158 = vadd.f32 0.0, %v5157
        %5159 = vdwg.mxu0
        %5160 = vmatpush.msra.mxu0 0.0
        %5161 = vmatpush.msra.mxu0 0.0
        %5162 = vmatpush.msra.mxu0 0.0
        %5163 = vmatpush.msra.mxu0 0.0
        %5164 = vmatpush.msra.mxu0 0.0
        %5165 = vmatpush.msra.mxu0 0.0
        %5166 = vmatpush.msra.mxu0 0.0
        %5167 = vmatpush.msra.mxu0 0.0
        %5168 = vmatpush.msra.mxu0 0.0
        %5169 = vmatpush.msra.mxu0 0.0
        %5170 = vmatpush.msra.mxu0 0.0
        %5171 = vmatpush.msra.mxu0 0.0
        %5172 = vmatpush.msra.mxu0 0.0
        %5173 = vmatpush.msra.mxu0 0.0
        %5174 = vmatpush.msra.mxu0 %v5092
        %5175 = vmatpush.msra.mxu0 %v5084
        %5176 = vmatmul.f32.gmra.mxu0 %v5098
        %v5177 = vpop.f32.mrf.mxu0
        %v5178 = vadd.f32 0.0, %v5177
        %5179 = vdwg.mxu0
        %5180 = vmatpush.msra.mxu0 0.0
        %5181 = vmatpush.msra.mxu0 0.0
        %5182 = vmatpush.msra.mxu0 0.0
        %5183 = vmatpush.msra.mxu0 0.0
        %5184 = vmatpush.msra.mxu0 0.0
        %5185 = vmatpush.msra.mxu0 0.0
        %5186 = vmatpush.msra.mxu0 0.0
        %5187 = vmatpush.msra.mxu0 0.0
        %5188 = vmatpush.msra.mxu0 0.0
        %5189 = vmatpush.msra.mxu0 0.0
        %5190 = vmatpush.msra.mxu0 0.0
        %5191 = vmatpush.msra.mxu0 0.0
        %5192 = vmatpush.msra.mxu0 0.0
        %5193 = vmatpush.msra.mxu0 0.0
        %5194 = vmatpush.msra.mxu0 %v5093
        %5195 = vmatpush.msra.mxu0 %v5085
        %5196 = vmatmul.f32.gmra.mxu0 %v5098
        %v5197 = vpop.f32.mrf.mxu0
        %v5198 = vadd.f32 0.0, %v5197
        %5199 = vdwg.mxu0
        %5200 = vmatpush.msra.mxu0 0.0
        %5201 = vmatpush.msra.mxu0 0.0
        %5202 = vmatpush.msra.mxu0 0.0
        %5203 = vmatpush.msra.mxu0 0.0
        %5204 = vmatpush.msra.mxu0 0.0
        %5205 = vmatpush.msra.mxu0 0.0
        %5206 = vmatpush.msra.mxu0 0.0
        %5207 = vmatpush.msra.mxu0 0.0
        %5208 = vmatpush.msra.mxu0 0.0
        %5209 = vmatpush.msra.mxu0 0.0
        %5210 = vmatpush.msra.mxu0 0.0
        %5211 = vmatpush.msra.mxu0 0.0
        %5212 = vmatpush.msra.mxu0 0.0
        %5213 = vmatpush.msra.mxu0 0.0
        %5214 = vmatpush.msra.mxu0 %v5094
        %5215 = vmatpush.msra.mxu0 %v5086
        %5216 = vmatmul.f32.gmra.mxu0 %v5098
        %v5217 = vpop.f32.mrf.mxu0
        %v5218 = vadd.f32 0.0, %v5217
        %5219 = vdwg.mxu0
        %5220 = vmatpush.msra.mxu0 0.0
        %5221 = vmatpush.msra.mxu0 0.0
        %5222 = vmatpush.msra.mxu0 0.0
        %5223 = vmatpush.msra.mxu0 0.0
        %5224 = vmatpush.msra.mxu0 0.0
        %5225 = vmatpush.msra.mxu0 0.0
        %5226 = vmatpush.msra.mxu0 0.0
        %5227 = vmatpush.msra.mxu0 0.0
        %5228 = vmatpush.msra.mxu0 0.0
        %5229 = vmatpush.msra.mxu0 0.0
        %5230 = vmatpush.msra.mxu0 0.0
        %5231 = vmatpush.msra.mxu0 0.0
        %5232 = vmatpush.msra.mxu0 0.0
        %5233 = vmatpush.msra.mxu0 0.0
        %5234 = vmatpush.msra.mxu0 %v5095
        %5235 = vmatpush.msra.mxu0 %v5087
        %5236 = vmatmul.f32.gmra.mxu0 %v5098
        %v5237 = vpop.f32.mrf.mxu0
        %v5238 = vadd.f32 0.0, %v5237
        %5239 = vdwg.mxu0
        %5240 = vmatpush.msra.mxu0 0.0
        %5241 = vmatpush.msra.mxu0 0.0
        %5242 = vmatpush.msra.mxu0 0.0
        %5243 = vmatpush.msra.mxu0 0.0
        %5244 = vmatpush.msra.mxu0 0.0
        %5245 = vmatpush.msra.mxu0 0.0
        %5246 = vmatpush.msra.mxu0 0.0
        %5247 = vmatpush.msra.mxu0 0.0
        %5248 = vmatpush.msra.mxu0 0.0
        %5249 = vmatpush.msra.mxu0 0.0
        %5250 = vmatpush.msra.mxu0 0.0
        %5251 = vmatpush.msra.mxu0 0.0
        %5252 = vmatpush.msra.mxu0 0.0
        %5253 = vmatpush.msra.mxu0 0.0
        %5254 = vmatpush.msra.mxu0 %v5096
        %5255 = vmatpush.msra.mxu0 %v5088
        %5256 = vmatmul.f32.gmra.mxu0 %v5098
        %v5257 = vpop.f32.mrf.mxu0
        %v5258 = vadd.f32 0.0, %v5257
        %5259 = vdwg.mxu0
        %v5260 = vadd.f32 %v5072, %v5118
        %v5261 = vadd.f32 %v5073, %v5138
        %v5262 = vadd.f32 %v5074, %v5158
        %v5263 = vadd.f32 %v5075, %v5178
        %v5264 = vadd.f32 %v5076, %v5198
        %v5265 = vadd.f32 %v5077, %v5218
        %v5266 = vadd.f32 %v5078, %v5238
        %v5267 = vadd.f32 %v5079, %v5258
        %s5268 = scalar_lea.vmem [#allocation16], 2304
        %v5269 = vld [vmem:[%s5268] sm:$0xff]
        %v5270 = vld [vmem:[%s5268 + $0x8] sm:$0xff]
        %v5271 = vld [vmem:[%s5268 + $0x10] sm:$0xff]
        %v5272 = vld [vmem:[%s5268 + $0x18] sm:$0xff]
        %v5273 = vld [vmem:[%s5268 + $0x20] sm:$0xff]
        %v5274 = vld [vmem:[%s5268 + $0x28] sm:$0xff]
        %v5275 = vld [vmem:[%s5268 + $0x30] sm:$0xff]
        %v5276 = vld [vmem:[%s5268 + $0x38] sm:$0xff]
        %v5277 = vld [vmem:[%s5268 + $0x40] sm:$0xff]
        %v5278 = vld [vmem:[%s5268 + $0x48] sm:$0xff]
        %v5279 = vld [vmem:[%s5268 + $0x50] sm:$0xff]
        %v5280 = vld [vmem:[%s5268 + $0x58] sm:$0xff]
        %v5281 = vld [vmem:[%s5268 + $0x60] sm:$0xff]
        %v5282 = vld [vmem:[%s5268 + $0x68] sm:$0xff]
        %v5283 = vld [vmem:[%s5268 + $0x70] sm:$0xff]
        %v5284 = vld [vmem:[%s5268 + $0x78] sm:$0xff]
        %v5285 = vrot.slane %v1899, 2
        %v5286 = vsel %vm1359, %v5285, 0
        %5288 = vmatpush.msra.mxu0 0.0
        %5289 = vmatpush.msra.mxu0 0.0
        %5290 = vmatpush.msra.mxu0 0.0
        %5291 = vmatpush.msra.mxu0 0.0
        %5292 = vmatpush.msra.mxu0 0.0
        %5293 = vmatpush.msra.mxu0 0.0
        %5294 = vmatpush.msra.mxu0 0.0
        %5295 = vmatpush.msra.mxu0 0.0
        %5296 = vmatpush.msra.mxu0 0.0
        %5297 = vmatpush.msra.mxu0 0.0
        %5298 = vmatpush.msra.mxu0 0.0
        %5299 = vmatpush.msra.mxu0 0.0
        %5300 = vmatpush.msra.mxu0 0.0
        %5301 = vmatpush.msra.mxu0 0.0
        %5302 = vmatpush.msra.mxu0 %v5277
        %5303 = vmatpush.msra.mxu0 %v5269
        %5304 = vmatmul.f32.gmra.mxu0 %v5286
        %v5305 = vpop.f32.mrf.mxu0
        %v5306 = vadd.f32 0.0, %v5305
        %5307 = vdwg.mxu0
        %5308 = vmatpush.msra.mxu0 0.0
        %5309 = vmatpush.msra.mxu0 0.0
        %5310 = vmatpush.msra.mxu0 0.0
        %5311 = vmatpush.msra.mxu0 0.0
        %5312 = vmatpush.msra.mxu0 0.0
        %5313 = vmatpush.msra.mxu0 0.0
        %5314 = vmatpush.msra.mxu0 0.0
        %5315 = vmatpush.msra.mxu0 0.0
        %5316 = vmatpush.msra.mxu0 0.0
        %5317 = vmatpush.msra.mxu0 0.0
        %5318 = vmatpush.msra.mxu0 0.0
        %5319 = vmatpush.msra.mxu0 0.0
        %5320 = vmatpush.msra.mxu0 0.0
        %5321 = vmatpush.msra.mxu0 0.0
        %5322 = vmatpush.msra.mxu0 %v5278
        %5323 = vmatpush.msra.mxu0 %v5270
        %5324 = vmatmul.f32.gmra.mxu0 %v5286
        %v5325 = vpop.f32.mrf.mxu0
        %v5326 = vadd.f32 0.0, %v5325
        %5327 = vdwg.mxu0
        %5328 = vmatpush.msra.mxu0 0.0
        %5329 = vmatpush.msra.mxu0 0.0
        %5330 = vmatpush.msra.mxu0 0.0
        %5331 = vmatpush.msra.mxu0 0.0
        %5332 = vmatpush.msra.mxu0 0.0
        %5333 = vmatpush.msra.mxu0 0.0
        %5334 = vmatpush.msra.mxu0 0.0
        %5335 = vmatpush.msra.mxu0 0.0
        %5336 = vmatpush.msra.mxu0 0.0
        %5337 = vmatpush.msra.mxu0 0.0
        %5338 = vmatpush.msra.mxu0 0.0
        %5339 = vmatpush.msra.mxu0 0.0
        %5340 = vmatpush.msra.mxu0 0.0
        %5341 = vmatpush.msra.mxu0 0.0
        %5342 = vmatpush.msra.mxu0 %v5279
        %5343 = vmatpush.msra.mxu0 %v5271
        %5344 = vmatmul.f32.gmra.mxu0 %v5286
        %v5345 = vpop.f32.mrf.mxu0
        %v5346 = vadd.f32 0.0, %v5345
        %5347 = vdwg.mxu0
        %5348 = vmatpush.msra.mxu0 0.0
        %5349 = vmatpush.msra.mxu0 0.0
        %5350 = vmatpush.msra.mxu0 0.0
        %5351 = vmatpush.msra.mxu0 0.0
        %5352 = vmatpush.msra.mxu0 0.0
        %5353 = vmatpush.msra.mxu0 0.0
        %5354 = vmatpush.msra.mxu0 0.0
        %5355 = vmatpush.msra.mxu0 0.0
        %5356 = vmatpush.msra.mxu0 0.0
        %5357 = vmatpush.msra.mxu0 0.0
        %5358 = vmatpush.msra.mxu0 0.0
        %5359 = vmatpush.msra.mxu0 0.0
        %5360 = vmatpush.msra.mxu0 0.0
        %5361 = vmatpush.msra.mxu0 0.0
        %5362 = vmatpush.msra.mxu0 %v5280
        %5363 = vmatpush.msra.mxu0 %v5272
        %5364 = vmatmul.f32.gmra.mxu0 %v5286
        %v5365 = vpop.f32.mrf.mxu0
        %v5366 = vadd.f32 0.0, %v5365
        %5367 = vdwg.mxu0
        %5368 = vmatpush.msra.mxu0 0.0
        %5369 = vmatpush.msra.mxu0 0.0
        %5370 = vmatpush.msra.mxu0 0.0
        %5371 = vmatpush.msra.mxu0 0.0
        %5372 = vmatpush.msra.mxu0 0.0
        %5373 = vmatpush.msra.mxu0 0.0
        %5374 = vmatpush.msra.mxu0 0.0
        %5375 = vmatpush.msra.mxu0 0.0
        %5376 = vmatpush.msra.mxu0 0.0
        %5377 = vmatpush.msra.mxu0 0.0
        %5378 = vmatpush.msra.mxu0 0.0
        %5379 = vmatpush.msra.mxu0 0.0
        %5380 = vmatpush.msra.mxu0 0.0
        %5381 = vmatpush.msra.mxu0 0.0
        %5382 = vmatpush.msra.mxu0 %v5281
        %5383 = vmatpush.msra.mxu0 %v5273
        %5384 = vmatmul.f32.gmra.mxu0 %v5286
        %v5385 = vpop.f32.mrf.mxu0
        %v5386 = vadd.f32 0.0, %v5385
        %5387 = vdwg.mxu0
        %5388 = vmatpush.msra.mxu0 0.0
        %5389 = vmatpush.msra.mxu0 0.0
        %5390 = vmatpush.msra.mxu0 0.0
        %5391 = vmatpush.msra.mxu0 0.0
        %5392 = vmatpush.msra.mxu0 0.0
        %5393 = vmatpush.msra.mxu0 0.0
        %5394 = vmatpush.msra.mxu0 0.0
        %5395 = vmatpush.msra.mxu0 0.0
        %5396 = vmatpush.msra.mxu0 0.0
        %5397 = vmatpush.msra.mxu0 0.0
        %5398 = vmatpush.msra.mxu0 0.0
        %5399 = vmatpush.msra.mxu0 0.0
        %5400 = vmatpush.msra.mxu0 0.0
        %5401 = vmatpush.msra.mxu0 0.0
        %5402 = vmatpush.msra.mxu0 %v5282
        %5403 = vmatpush.msra.mxu0 %v5274
        %5404 = vmatmul.f32.gmra.mxu0 %v5286
        %v5405 = vpop.f32.mrf.mxu0
        %v5406 = vadd.f32 0.0, %v5405
        %5407 = vdwg.mxu0
        %5408 = vmatpush.msra.mxu0 0.0
        %5409 = vmatpush.msra.mxu0 0.0
        %5410 = vmatpush.msra.mxu0 0.0
        %5411 = vmatpush.msra.mxu0 0.0
        %5412 = vmatpush.msra.mxu0 0.0
        %5413 = vmatpush.msra.mxu0 0.0
        %5414 = vmatpush.msra.mxu0 0.0
        %5415 = vmatpush.msra.mxu0 0.0
        %5416 = vmatpush.msra.mxu0 0.0
        %5417 = vmatpush.msra.mxu0 0.0
        %5418 = vmatpush.msra.mxu0 0.0
        %5419 = vmatpush.msra.mxu0 0.0
        %5420 = vmatpush.msra.mxu0 0.0
        %5421 = vmatpush.msra.mxu0 0.0
        %5422 = vmatpush.msra.mxu0 %v5283
        %5423 = vmatpush.msra.mxu0 %v5275
        %5424 = vmatmul.f32.gmra.mxu0 %v5286
        %v5425 = vpop.f32.mrf.mxu0
        %v5426 = vadd.f32 0.0, %v5425
        %5427 = vdwg.mxu0
        %5428 = vmatpush.msra.mxu0 0.0
        %5429 = vmatpush.msra.mxu0 0.0
        %5430 = vmatpush.msra.mxu0 0.0
        %5431 = vmatpush.msra.mxu0 0.0
        %5432 = vmatpush.msra.mxu0 0.0
        %5433 = vmatpush.msra.mxu0 0.0
        %5434 = vmatpush.msra.mxu0 0.0
        %5435 = vmatpush.msra.mxu0 0.0
        %5436 = vmatpush.msra.mxu0 0.0
        %5437 = vmatpush.msra.mxu0 0.0
        %5438 = vmatpush.msra.mxu0 0.0
        %5439 = vmatpush.msra.mxu0 0.0
        %5440 = vmatpush.msra.mxu0 0.0
        %5441 = vmatpush.msra.mxu0 0.0
        %5442 = vmatpush.msra.mxu0 %v5284
        %5443 = vmatpush.msra.mxu0 %v5276
        %5444 = vmatmul.f32.gmra.mxu0 %v5286
        %v5445 = vpop.f32.mrf.mxu0
        %v5446 = vadd.f32 0.0, %v5445
        %5447 = vdwg.mxu0
        %v5448 = vadd.f32 %v5260, %v5306
        %v5449 = vadd.f32 %v5261, %v5326
        %v5450 = vadd.f32 %v5262, %v5346
        %v5451 = vadd.f32 %v5263, %v5366
        %v5452 = vadd.f32 %v5264, %v5386
        %v5453 = vadd.f32 %v5265, %v5406
        %v5454 = vadd.f32 %v5266, %v5426
        %v5455 = vadd.f32 %v5267, %v5446
        %s5456 = scalar_lea.vmem [#allocation16], 2432
        %v5457 = vld [vmem:[%s5456] sm:$0xff]
        %v5458 = vld [vmem:[%s5456 + $0x8] sm:$0xff]
        %v5459 = vld [vmem:[%s5456 + $0x10] sm:$0xff]
        %v5460 = vld [vmem:[%s5456 + $0x18] sm:$0xff]
        %v5461 = vld [vmem:[%s5456 + $0x20] sm:$0xff]
        %v5462 = vld [vmem:[%s5456 + $0x28] sm:$0xff]
        %v5463 = vld [vmem:[%s5456 + $0x30] sm:$0xff]
        %v5464 = vld [vmem:[%s5456 + $0x38] sm:$0xff]
        %v5465 = vld [vmem:[%s5456 + $0x40] sm:$0xff]
        %v5466 = vld [vmem:[%s5456 + $0x48] sm:$0xff]
        %v5467 = vld [vmem:[%s5456 + $0x50] sm:$0xff]
        %v5468 = vld [vmem:[%s5456 + $0x58] sm:$0xff]
        %v5469 = vld [vmem:[%s5456 + $0x60] sm:$0xff]
        %v5470 = vld [vmem:[%s5456 + $0x68] sm:$0xff]
        %v5471 = vld [vmem:[%s5456 + $0x70] sm:$0xff]
        %v5472 = vld [vmem:[%s5456 + $0x78] sm:$0xff]
        %v5473 = vrot.slane %v1899, 3
        %v5474 = vsel %vm1359, %v5473, 0
        %5476 = vmatpush.msra.mxu0 0.0
        %5477 = vmatpush.msra.mxu0 0.0
        %5478 = vmatpush.msra.mxu0 0.0
        %5479 = vmatpush.msra.mxu0 0.0
        %5480 = vmatpush.msra.mxu0 0.0
        %5481 = vmatpush.msra.mxu0 0.0
        %5482 = vmatpush.msra.mxu0 0.0
        %5483 = vmatpush.msra.mxu0 0.0
        %5484 = vmatpush.msra.mxu0 0.0
        %5485 = vmatpush.msra.mxu0 0.0
        %5486 = vmatpush.msra.mxu0 0.0
        %5487 = vmatpush.msra.mxu0 0.0
        %5488 = vmatpush.msra.mxu0 0.0
        %5489 = vmatpush.msra.mxu0 0.0
        %5490 = vmatpush.msra.mxu0 %v5465
        %5491 = vmatpush.msra.mxu0 %v5457
        %5492 = vmatmul.f32.gmra.mxu0 %v5474
        %v5493 = vpop.f32.mrf.mxu0
        %v5494 = vadd.f32 0.0, %v5493
        %5495 = vdwg.mxu0
        %5496 = vmatpush.msra.mxu0 0.0
        %5497 = vmatpush.msra.mxu0 0.0
        %5498 = vmatpush.msra.mxu0 0.0
        %5499 = vmatpush.msra.mxu0 0.0
        %5500 = vmatpush.msra.mxu0 0.0
        %5501 = vmatpush.msra.mxu0 0.0
        %5502 = vmatpush.msra.mxu0 0.0
        %5503 = vmatpush.msra.mxu0 0.0
        %5504 = vmatpush.msra.mxu0 0.0
        %5505 = vmatpush.msra.mxu0 0.0
        %5506 = vmatpush.msra.mxu0 0.0
        %5507 = vmatpush.msra.mxu0 0.0
        %5508 = vmatpush.msra.mxu0 0.0
        %5509 = vmatpush.msra.mxu0 0.0
        %5510 = vmatpush.msra.mxu0 %v5466
        %5511 = vmatpush.msra.mxu0 %v5458
        %5512 = vmatmul.f32.gmra.mxu0 %v5474
        %v5513 = vpop.f32.mrf.mxu0
        %v5514 = vadd.f32 0.0, %v5513
        %5515 = vdwg.mxu0
        %5516 = vmatpush.msra.mxu0 0.0
        %5517 = vmatpush.msra.mxu0 0.0
        %5518 = vmatpush.msra.mxu0 0.0
        %5519 = vmatpush.msra.mxu0 0.0
        %5520 = vmatpush.msra.mxu0 0.0
        %5521 = vmatpush.msra.mxu0 0.0
        %5522 = vmatpush.msra.mxu0 0.0
        %5523 = vmatpush.msra.mxu0 0.0
        %5524 = vmatpush.msra.mxu0 0.0
        %5525 = vmatpush.msra.mxu0 0.0
        %5526 = vmatpush.msra.mxu0 0.0
        %5527 = vmatpush.msra.mxu0 0.0
        %5528 = vmatpush.msra.mxu0 0.0
        %5529 = vmatpush.msra.mxu0 0.0
        %5530 = vmatpush.msra.mxu0 %v5467
        %5531 = vmatpush.msra.mxu0 %v5459
        %5532 = vmatmul.f32.gmra.mxu0 %v5474
        %v5533 = vpop.f32.mrf.mxu0
        %v5534 = vadd.f32 0.0, %v5533
        %5535 = vdwg.mxu0
        %5536 = vmatpush.msra.mxu0 0.0
        %5537 = vmatpush.msra.mxu0 0.0
        %5538 = vmatpush.msra.mxu0 0.0
        %5539 = vmatpush.msra.mxu0 0.0
        %5540 = vmatpush.msra.mxu0 0.0
        %5541 = vmatpush.msra.mxu0 0.0
        %5542 = vmatpush.msra.mxu0 0.0
        %5543 = vmatpush.msra.mxu0 0.0
        %5544 = vmatpush.msra.mxu0 0.0
        %5545 = vmatpush.msra.mxu0 0.0
        %5546 = vmatpush.msra.mxu0 0.0
        %5547 = vmatpush.msra.mxu0 0.0
        %5548 = vmatpush.msra.mxu0 0.0
        %5549 = vmatpush.msra.mxu0 0.0
        %5550 = vmatpush.msra.mxu0 %v5468
        %5551 = vmatpush.msra.mxu0 %v5460
        %5552 = vmatmul.f32.gmra.mxu0 %v5474
        %v5553 = vpop.f32.mrf.mxu0
        %v5554 = vadd.f32 0.0, %v5553
        %5555 = vdwg.mxu0
        %5556 = vmatpush.msra.mxu0 0.0
        %5557 = vmatpush.msra.mxu0 0.0
        %5558 = vmatpush.msra.mxu0 0.0
        %5559 = vmatpush.msra.mxu0 0.0
        %5560 = vmatpush.msra.mxu0 0.0
        %5561 = vmatpush.msra.mxu0 0.0
        %5562 = vmatpush.msra.mxu0 0.0
        %5563 = vmatpush.msra.mxu0 0.0
        %5564 = vmatpush.msra.mxu0 0.0
        %5565 = vmatpush.msra.mxu0 0.0
        %5566 = vmatpush.msra.mxu0 0.0
        %5567 = vmatpush.msra.mxu0 0.0
        %5568 = vmatpush.msra.mxu0 0.0
        %5569 = vmatpush.msra.mxu0 0.0
        %5570 = vmatpush.msra.mxu0 %v5469
        %5571 = vmatpush.msra.mxu0 %v5461
        %5572 = vmatmul.f32.gmra.mxu0 %v5474
        %v5573 = vpop.f32.mrf.mxu0
        %v5574 = vadd.f32 0.0, %v5573
        %5575 = vdwg.mxu0
        %5576 = vmatpush.msra.mxu0 0.0
        %5577 = vmatpush.msra.mxu0 0.0
        %5578 = vmatpush.msra.mxu0 0.0
        %5579 = vmatpush.msra.mxu0 0.0
        %5580 = vmatpush.msra.mxu0 0.0
        %5581 = vmatpush.msra.mxu0 0.0
        %5582 = vmatpush.msra.mxu0 0.0
        %5583 = vmatpush.msra.mxu0 0.0
        %5584 = vmatpush.msra.mxu0 0.0
        %5585 = vmatpush.msra.mxu0 0.0
        %5586 = vmatpush.msra.mxu0 0.0
        %5587 = vmatpush.msra.mxu0 0.0
        %5588 = vmatpush.msra.mxu0 0.0
        %5589 = vmatpush.msra.mxu0 0.0
        %5590 = vmatpush.msra.mxu0 %v5470
        %5591 = vmatpush.msra.mxu0 %v5462
        %5592 = vmatmul.f32.gmra.mxu0 %v5474
        %v5593 = vpop.f32.mrf.mxu0
        %v5594 = vadd.f32 0.0, %v5593
        %5595 = vdwg.mxu0
        %5596 = vmatpush.msra.mxu0 0.0
        %5597 = vmatpush.msra.mxu0 0.0
        %5598 = vmatpush.msra.mxu0 0.0
        %5599 = vmatpush.msra.mxu0 0.0
        %5600 = vmatpush.msra.mxu0 0.0
        %5601 = vmatpush.msra.mxu0 0.0
        %5602 = vmatpush.msra.mxu0 0.0
        %5603 = vmatpush.msra.mxu0 0.0
        %5604 = vmatpush.msra.mxu0 0.0
        %5605 = vmatpush.msra.mxu0 0.0
        %5606 = vmatpush.msra.mxu0 0.0
        %5607 = vmatpush.msra.mxu0 0.0
        %5608 = vmatpush.msra.mxu0 0.0
        %5609 = vmatpush.msra.mxu0 0.0
        %5610 = vmatpush.msra.mxu0 %v5471
        %5611 = vmatpush.msra.mxu0 %v5463
        %5612 = vmatmul.f32.gmra.mxu0 %v5474
        %v5613 = vpop.f32.mrf.mxu0
        %v5614 = vadd.f32 0.0, %v5613
        %5615 = vdwg.mxu0
        %5616 = vmatpush.msra.mxu0 0.0
        %5617 = vmatpush.msra.mxu0 0.0
        %5618 = vmatpush.msra.mxu0 0.0
        %5619 = vmatpush.msra.mxu0 0.0
        %5620 = vmatpush.msra.mxu0 0.0
        %5621 = vmatpush.msra.mxu0 0.0
        %5622 = vmatpush.msra.mxu0 0.0
        %5623 = vmatpush.msra.mxu0 0.0
        %5624 = vmatpush.msra.mxu0 0.0
        %5625 = vmatpush.msra.mxu0 0.0
        %5626 = vmatpush.msra.mxu0 0.0
        %5627 = vmatpush.msra.mxu0 0.0
        %5628 = vmatpush.msra.mxu0 0.0
        %5629 = vmatpush.msra.mxu0 0.0
        %5630 = vmatpush.msra.mxu0 %v5472
        %5631 = vmatpush.msra.mxu0 %v5464
        %5632 = vmatmul.f32.gmra.mxu0 %v5474
        %v5633 = vpop.f32.mrf.mxu0
        %v5634 = vadd.f32 0.0, %v5633
        %5635 = vdwg.mxu0
        %v5636 = vadd.f32 %v5448, %v5494
        %v5637 = vadd.f32 %v5449, %v5514
        %v5638 = vadd.f32 %v5450, %v5534
        %v5639 = vadd.f32 %v5451, %v5554
        %v5640 = vadd.f32 %v5452, %v5574
        %v5641 = vadd.f32 %v5453, %v5594
        %v5642 = vadd.f32 %v5454, %v5614
        %v5643 = vadd.f32 %v5455, %v5634
        %s5644 = scalar_lea.vmem [#allocation16], 2560
        %v5645 = vld [vmem:[%s5644] sm:$0xff]
        %v5646 = vld [vmem:[%s5644 + $0x8] sm:$0xff]
        %v5647 = vld [vmem:[%s5644 + $0x10] sm:$0xff]
        %v5648 = vld [vmem:[%s5644 + $0x18] sm:$0xff]
        %v5649 = vld [vmem:[%s5644 + $0x20] sm:$0xff]
        %v5650 = vld [vmem:[%s5644 + $0x28] sm:$0xff]
        %v5651 = vld [vmem:[%s5644 + $0x30] sm:$0xff]
        %v5652 = vld [vmem:[%s5644 + $0x38] sm:$0xff]
        %v5653 = vld [vmem:[%s5644 + $0x40] sm:$0xff]
        %v5654 = vld [vmem:[%s5644 + $0x48] sm:$0xff]
        %v5655 = vld [vmem:[%s5644 + $0x50] sm:$0xff]
        %v5656 = vld [vmem:[%s5644 + $0x58] sm:$0xff]
        %v5657 = vld [vmem:[%s5644 + $0x60] sm:$0xff]
        %v5658 = vld [vmem:[%s5644 + $0x68] sm:$0xff]
        %v5659 = vld [vmem:[%s5644 + $0x70] sm:$0xff]
        %v5660 = vld [vmem:[%s5644 + $0x78] sm:$0xff]
        %v5661 = vrot.slane %v1899, 4
        %v5662 = vsel %vm1359, %v5661, 0
        %5664 = vmatpush.msra.mxu0 0.0
        %5665 = vmatpush.msra.mxu0 0.0
        %5666 = vmatpush.msra.mxu0 0.0
        %5667 = vmatpush.msra.mxu0 0.0
        %5668 = vmatpush.msra.mxu0 0.0
        %5669 = vmatpush.msra.mxu0 0.0
        %5670 = vmatpush.msra.mxu0 0.0
        %5671 = vmatpush.msra.mxu0 0.0
        %5672 = vmatpush.msra.mxu0 0.0
        %5673 = vmatpush.msra.mxu0 0.0
        %5674 = vmatpush.msra.mxu0 0.0
        %5675 = vmatpush.msra.mxu0 0.0
        %5676 = vmatpush.msra.mxu0 0.0
        %5677 = vmatpush.msra.mxu0 0.0
        %5678 = vmatpush.msra.mxu0 %v5653
        %5679 = vmatpush.msra.mxu0 %v5645
        %5680 = vmatmul.f32.gmra.mxu0 %v5662
        %v5681 = vpop.f32.mrf.mxu0
        %v5682 = vadd.f32 0.0, %v5681
        %5683 = vdwg.mxu0
        %5684 = vmatpush.msra.mxu0 0.0
        %5685 = vmatpush.msra.mxu0 0.0
        %5686 = vmatpush.msra.mxu0 0.0
        %5687 = vmatpush.msra.mxu0 0.0
        %5688 = vmatpush.msra.mxu0 0.0
        %5689 = vmatpush.msra.mxu0 0.0
        %5690 = vmatpush.msra.mxu0 0.0
        %5691 = vmatpush.msra.mxu0 0.0
        %5692 = vmatpush.msra.mxu0 0.0
        %5693 = vmatpush.msra.mxu0 0.0
        %5694 = vmatpush.msra.mxu0 0.0
        %5695 = vmatpush.msra.mxu0 0.0
        %5696 = vmatpush.msra.mxu0 0.0
        %5697 = vmatpush.msra.mxu0 0.0
        %5698 = vmatpush.msra.mxu0 %v5654
        %5699 = vmatpush.msra.mxu0 %v5646
        %5700 = vmatmul.f32.gmra.mxu0 %v5662
        %v5701 = vpop.f32.mrf.mxu0
        %v5702 = vadd.f32 0.0, %v5701
        %5703 = vdwg.mxu0
        %5704 = vmatpush.msra.mxu0 0.0
        %5705 = vmatpush.msra.mxu0 0.0
        %5706 = vmatpush.msra.mxu0 0.0
        %5707 = vmatpush.msra.mxu0 0.0
        %5708 = vmatpush.msra.mxu0 0.0
        %5709 = vmatpush.msra.mxu0 0.0
        %5710 = vmatpush.msra.mxu0 0.0
        %5711 = vmatpush.msra.mxu0 0.0
        %5712 = vmatpush.msra.mxu0 0.0
        %5713 = vmatpush.msra.mxu0 0.0
        %5714 = vmatpush.msra.mxu0 0.0
        %5715 = vmatpush.msra.mxu0 0.0
        %5716 = vmatpush.msra.mxu0 0.0
        %5717 = vmatpush.msra.mxu0 0.0
        %5718 = vmatpush.msra.mxu0 %v5655
        %5719 = vmatpush.msra.mxu0 %v5647
        %5720 = vmatmul.f32.gmra.mxu0 %v5662
        %v5721 = vpop.f32.mrf.mxu0
        %v5722 = vadd.f32 0.0, %v5721
        %5723 = vdwg.mxu0
        %5724 = vmatpush.msra.mxu0 0.0
        %5725 = vmatpush.msra.mxu0 0.0
        %5726 = vmatpush.msra.mxu0 0.0
        %5727 = vmatpush.msra.mxu0 0.0
        %5728 = vmatpush.msra.mxu0 0.0
        %5729 = vmatpush.msra.mxu0 0.0
        %5730 = vmatpush.msra.mxu0 0.0
        %5731 = vmatpush.msra.mxu0 0.0
        %5732 = vmatpush.msra.mxu0 0.0
        %5733 = vmatpush.msra.mxu0 0.0
        %5734 = vmatpush.msra.mxu0 0.0
        %5735 = vmatpush.msra.mxu0 0.0
        %5736 = vmatpush.msra.mxu0 0.0
        %5737 = vmatpush.msra.mxu0 0.0
        %5738 = vmatpush.msra.mxu0 %v5656
        %5739 = vmatpush.msra.mxu0 %v5648
        %5740 = vmatmul.f32.gmra.mxu0 %v5662
        %v5741 = vpop.f32.mrf.mxu0
        %v5742 = vadd.f32 0.0, %v5741
        %5743 = vdwg.mxu0
        %5744 = vmatpush.msra.mxu0 0.0
        %5745 = vmatpush.msra.mxu0 0.0
        %5746 = vmatpush.msra.mxu0 0.0
        %5747 = vmatpush.msra.mxu0 0.0
        %5748 = vmatpush.msra.mxu0 0.0
        %5749 = vmatpush.msra.mxu0 0.0
        %5750 = vmatpush.msra.mxu0 0.0
        %5751 = vmatpush.msra.mxu0 0.0
        %5752 = vmatpush.msra.mxu0 0.0
        %5753 = vmatpush.msra.mxu0 0.0
        %5754 = vmatpush.msra.mxu0 0.0
        %5755 = vmatpush.msra.mxu0 0.0
        %5756 = vmatpush.msra.mxu0 0.0
        %5757 = vmatpush.msra.mxu0 0.0
        %5758 = vmatpush.msra.mxu0 %v5657
        %5759 = vmatpush.msra.mxu0 %v5649
        %5760 = vmatmul.f32.gmra.mxu0 %v5662
        %v5761 = vpop.f32.mrf.mxu0
        %v5762 = vadd.f32 0.0, %v5761
        %5763 = vdwg.mxu0
        %5764 = vmatpush.msra.mxu0 0.0
        %5765 = vmatpush.msra.mxu0 0.0
        %5766 = vmatpush.msra.mxu0 0.0
        %5767 = vmatpush.msra.mxu0 0.0
        %5768 = vmatpush.msra.mxu0 0.0
        %5769 = vmatpush.msra.mxu0 0.0
        %5770 = vmatpush.msra.mxu0 0.0
        %5771 = vmatpush.msra.mxu0 0.0
        %5772 = vmatpush.msra.mxu0 0.0
        %5773 = vmatpush.msra.mxu0 0.0
        %5774 = vmatpush.msra.mxu0 0.0
        %5775 = vmatpush.msra.mxu0 0.0
        %5776 = vmatpush.msra.mxu0 0.0
        %5777 = vmatpush.msra.mxu0 0.0
        %5778 = vmatpush.msra.mxu0 %v5658
        %5779 = vmatpush.msra.mxu0 %v5650
        %5780 = vmatmul.f32.gmra.mxu0 %v5662
        %v5781 = vpop.f32.mrf.mxu0
        %v5782 = vadd.f32 0.0, %v5781
        %5783 = vdwg.mxu0
        %5784 = vmatpush.msra.mxu0 0.0
        %5785 = vmatpush.msra.mxu0 0.0
        %5786 = vmatpush.msra.mxu0 0.0
        %5787 = vmatpush.msra.mxu0 0.0
        %5788 = vmatpush.msra.mxu0 0.0
        %5789 = vmatpush.msra.mxu0 0.0
        %5790 = vmatpush.msra.mxu0 0.0
        %5791 = vmatpush.msra.mxu0 0.0
        %5792 = vmatpush.msra.mxu0 0.0
        %5793 = vmatpush.msra.mxu0 0.0
        %5794 = vmatpush.msra.mxu0 0.0
        %5795 = vmatpush.msra.mxu0 0.0
        %5796 = vmatpush.msra.mxu0 0.0
        %5797 = vmatpush.msra.mxu0 0.0
        %5798 = vmatpush.msra.mxu0 %v5659
        %5799 = vmatpush.msra.mxu0 %v5651
        %5800 = vmatmul.f32.gmra.mxu0 %v5662
        %v5801 = vpop.f32.mrf.mxu0
        %v5802 = vadd.f32 0.0, %v5801
        %5803 = vdwg.mxu0
        %5804 = vmatpush.msra.mxu0 0.0
        %5805 = vmatpush.msra.mxu0 0.0
        %5806 = vmatpush.msra.mxu0 0.0
        %5807 = vmatpush.msra.mxu0 0.0
        %5808 = vmatpush.msra.mxu0 0.0
        %5809 = vmatpush.msra.mxu0 0.0
        %5810 = vmatpush.msra.mxu0 0.0
        %5811 = vmatpush.msra.mxu0 0.0
        %5812 = vmatpush.msra.mxu0 0.0
        %5813 = vmatpush.msra.mxu0 0.0
        %5814 = vmatpush.msra.mxu0 0.0
        %5815 = vmatpush.msra.mxu0 0.0
        %5816 = vmatpush.msra.mxu0 0.0
        %5817 = vmatpush.msra.mxu0 0.0
        %5818 = vmatpush.msra.mxu0 %v5660
        %5819 = vmatpush.msra.mxu0 %v5652
        %5820 = vmatmul.f32.gmra.mxu0 %v5662
        %v5821 = vpop.f32.mrf.mxu0
        %v5822 = vadd.f32 0.0, %v5821
        %5823 = vdwg.mxu0
        %v5824 = vadd.f32 %v5636, %v5682
        %v5825 = vadd.f32 %v5637, %v5702
        %v5826 = vadd.f32 %v5638, %v5722
        %v5827 = vadd.f32 %v5639, %v5742
        %v5828 = vadd.f32 %v5640, %v5762
        %v5829 = vadd.f32 %v5641, %v5782
        %v5830 = vadd.f32 %v5642, %v5802
        %v5831 = vadd.f32 %v5643, %v5822
        %s5832 = scalar_lea.vmem [#allocation16], 2688
        %v5833 = vld [vmem:[%s5832] sm:$0xff]
        %v5834 = vld [vmem:[%s5832 + $0x8] sm:$0xff]
        %v5835 = vld [vmem:[%s5832 + $0x10] sm:$0xff]
        %v5836 = vld [vmem:[%s5832 + $0x18] sm:$0xff]
        %v5837 = vld [vmem:[%s5832 + $0x20] sm:$0xff]
        %v5838 = vld [vmem:[%s5832 + $0x28] sm:$0xff]
        %v5839 = vld [vmem:[%s5832 + $0x30] sm:$0xff]
        %v5840 = vld [vmem:[%s5832 + $0x38] sm:$0xff]
        %v5841 = vld [vmem:[%s5832 + $0x40] sm:$0xff]
        %v5842 = vld [vmem:[%s5832 + $0x48] sm:$0xff]
        %v5843 = vld [vmem:[%s5832 + $0x50] sm:$0xff]
        %v5844 = vld [vmem:[%s5832 + $0x58] sm:$0xff]
        %v5845 = vld [vmem:[%s5832 + $0x60] sm:$0xff]
        %v5846 = vld [vmem:[%s5832 + $0x68] sm:$0xff]
        %v5847 = vld [vmem:[%s5832 + $0x70] sm:$0xff]
        %v5848 = vld [vmem:[%s5832 + $0x78] sm:$0xff]
        %v5849 = vrot.slane %v1899, 5
        %v5850 = vsel %vm1359, %v5849, 0
        %5852 = vmatpush.msra.mxu0 0.0
        %5853 = vmatpush.msra.mxu0 0.0
        %5854 = vmatpush.msra.mxu0 0.0
        %5855 = vmatpush.msra.mxu0 0.0
        %5856 = vmatpush.msra.mxu0 0.0
        %5857 = vmatpush.msra.mxu0 0.0
        %5858 = vmatpush.msra.mxu0 0.0
        %5859 = vmatpush.msra.mxu0 0.0
        %5860 = vmatpush.msra.mxu0 0.0
        %5861 = vmatpush.msra.mxu0 0.0
        %5862 = vmatpush.msra.mxu0 0.0
        %5863 = vmatpush.msra.mxu0 0.0
        %5864 = vmatpush.msra.mxu0 0.0
        %5865 = vmatpush.msra.mxu0 0.0
        %5866 = vmatpush.msra.mxu0 %v5841
        %5867 = vmatpush.msra.mxu0 %v5833
        %5868 = vmatmul.f32.gmra.mxu0 %v5850
        %v5869 = vpop.f32.mrf.mxu0
        %v5870 = vadd.f32 0.0, %v5869
        %5871 = vdwg.mxu0
        %5872 = vmatpush.msra.mxu0 0.0
        %5873 = vmatpush.msra.mxu0 0.0
        %5874 = vmatpush.msra.mxu0 0.0
        %5875 = vmatpush.msra.mxu0 0.0
        %5876 = vmatpush.msra.mxu0 0.0
        %5877 = vmatpush.msra.mxu0 0.0
        %5878 = vmatpush.msra.mxu0 0.0
        %5879 = vmatpush.msra.mxu0 0.0
        %5880 = vmatpush.msra.mxu0 0.0
        %5881 = vmatpush.msra.mxu0 0.0
        %5882 = vmatpush.msra.mxu0 0.0
        %5883 = vmatpush.msra.mxu0 0.0
        %5884 = vmatpush.msra.mxu0 0.0
        %5885 = vmatpush.msra.mxu0 0.0
        %5886 = vmatpush.msra.mxu0 %v5842
        %5887 = vmatpush.msra.mxu0 %v5834
        %5888 = vmatmul.f32.gmra.mxu0 %v5850
        %v5889 = vpop.f32.mrf.mxu0
        %v5890 = vadd.f32 0.0, %v5889
        %5891 = vdwg.mxu0
        %5892 = vmatpush.msra.mxu0 0.0
        %5893 = vmatpush.msra.mxu0 0.0
        %5894 = vmatpush.msra.mxu0 0.0
        %5895 = vmatpush.msra.mxu0 0.0
        %5896 = vmatpush.msra.mxu0 0.0
        %5897 = vmatpush.msra.mxu0 0.0
        %5898 = vmatpush.msra.mxu0 0.0
        %5899 = vmatpush.msra.mxu0 0.0
        %5900 = vmatpush.msra.mxu0 0.0
        %5901 = vmatpush.msra.mxu0 0.0
        %5902 = vmatpush.msra.mxu0 0.0
        %5903 = vmatpush.msra.mxu0 0.0
        %5904 = vmatpush.msra.mxu0 0.0
        %5905 = vmatpush.msra.mxu0 0.0
        %5906 = vmatpush.msra.mxu0 %v5843
        %5907 = vmatpush.msra.mxu0 %v5835
        %5908 = vmatmul.f32.gmra.mxu0 %v5850
        %v5909 = vpop.f32.mrf.mxu0
        %v5910 = vadd.f32 0.0, %v5909
        %5911 = vdwg.mxu0
        %5912 = vmatpush.msra.mxu0 0.0
        %5913 = vmatpush.msra.mxu0 0.0
        %5914 = vmatpush.msra.mxu0 0.0
        %5915 = vmatpush.msra.mxu0 0.0
        %5916 = vmatpush.msra.mxu0 0.0
        %5917 = vmatpush.msra.mxu0 0.0
        %5918 = vmatpush.msra.mxu0 0.0
        %5919 = vmatpush.msra.mxu0 0.0
        %5920 = vmatpush.msra.mxu0 0.0
        %5921 = vmatpush.msra.mxu0 0.0
        %5922 = vmatpush.msra.mxu0 0.0
        %5923 = vmatpush.msra.mxu0 0.0
        %5924 = vmatpush.msra.mxu0 0.0
        %5925 = vmatpush.msra.mxu0 0.0
        %5926 = vmatpush.msra.mxu0 %v5844
        %5927 = vmatpush.msra.mxu0 %v5836
        %5928 = vmatmul.f32.gmra.mxu0 %v5850
        %v5929 = vpop.f32.mrf.mxu0
        %v5930 = vadd.f32 0.0, %v5929
        %5931 = vdwg.mxu0
        %5932 = vmatpush.msra.mxu0 0.0
        %5933 = vmatpush.msra.mxu0 0.0
        %5934 = vmatpush.msra.mxu0 0.0
        %5935 = vmatpush.msra.mxu0 0.0
        %5936 = vmatpush.msra.mxu0 0.0
        %5937 = vmatpush.msra.mxu0 0.0
        %5938 = vmatpush.msra.mxu0 0.0
        %5939 = vmatpush.msra.mxu0 0.0
        %5940 = vmatpush.msra.mxu0 0.0
        %5941 = vmatpush.msra.mxu0 0.0
        %5942 = vmatpush.msra.mxu0 0.0
        %5943 = vmatpush.msra.mxu0 0.0
        %5944 = vmatpush.msra.mxu0 0.0
        %5945 = vmatpush.msra.mxu0 0.0
        %5946 = vmatpush.msra.mxu0 %v5845
        %5947 = vmatpush.msra.mxu0 %v5837
        %5948 = vmatmul.f32.gmra.mxu0 %v5850
        %v5949 = vpop.f32.mrf.mxu0
        %v5950 = vadd.f32 0.0, %v5949
        %5951 = vdwg.mxu0
        %5952 = vmatpush.msra.mxu0 0.0
        %5953 = vmatpush.msra.mxu0 0.0
        %5954 = vmatpush.msra.mxu0 0.0
        %5955 = vmatpush.msra.mxu0 0.0
        %5956 = vmatpush.msra.mxu0 0.0
        %5957 = vmatpush.msra.mxu0 0.0
        %5958 = vmatpush.msra.mxu0 0.0
        %5959 = vmatpush.msra.mxu0 0.0
        %5960 = vmatpush.msra.mxu0 0.0
        %5961 = vmatpush.msra.mxu0 0.0
        %5962 = vmatpush.msra.mxu0 0.0
        %5963 = vmatpush.msra.mxu0 0.0
        %5964 = vmatpush.msra.mxu0 0.0
        %5965 = vmatpush.msra.mxu0 0.0
        %5966 = vmatpush.msra.mxu0 %v5846
        %5967 = vmatpush.msra.mxu0 %v5838
        %5968 = vmatmul.f32.gmra.mxu0 %v5850
        %v5969 = vpop.f32.mrf.mxu0
        %v5970 = vadd.f32 0.0, %v5969
        %5971 = vdwg.mxu0
        %5972 = vmatpush.msra.mxu0 0.0
        %5973 = vmatpush.msra.mxu0 0.0
        %5974 = vmatpush.msra.mxu0 0.0
        %5975 = vmatpush.msra.mxu0 0.0
        %5976 = vmatpush.msra.mxu0 0.0
        %5977 = vmatpush.msra.mxu0 0.0
        %5978 = vmatpush.msra.mxu0 0.0
        %5979 = vmatpush.msra.mxu0 0.0
        %5980 = vmatpush.msra.mxu0 0.0
        %5981 = vmatpush.msra.mxu0 0.0
        %5982 = vmatpush.msra.mxu0 0.0
        %5983 = vmatpush.msra.mxu0 0.0
        %5984 = vmatpush.msra.mxu0 0.0
        %5985 = vmatpush.msra.mxu0 0.0
        %5986 = vmatpush.msra.mxu0 %v5847
        %5987 = vmatpush.msra.mxu0 %v5839
        %5988 = vmatmul.f32.gmra.mxu0 %v5850
        %v5989 = vpop.f32.mrf.mxu0
        %v5990 = vadd.f32 0.0, %v5989
        %5991 = vdwg.mxu0
        %5992 = vmatpush.msra.mxu0 0.0
        %5993 = vmatpush.msra.mxu0 0.0
        %5994 = vmatpush.msra.mxu0 0.0
        %5995 = vmatpush.msra.mxu0 0.0
        %5996 = vmatpush.msra.mxu0 0.0
        %5997 = vmatpush.msra.mxu0 0.0
        %5998 = vmatpush.msra.mxu0 0.0
        %5999 = vmatpush.msra.mxu0 0.0
        %6000 = vmatpush.msra.mxu0 0.0
        %6001 = vmatpush.msra.mxu0 0.0
        %6002 = vmatpush.msra.mxu0 0.0
        %6003 = vmatpush.msra.mxu0 0.0
        %6004 = vmatpush.msra.mxu0 0.0
        %6005 = vmatpush.msra.mxu0 0.0
        %6006 = vmatpush.msra.mxu0 %v5848
        %6007 = vmatpush.msra.mxu0 %v5840
        %6008 = vmatmul.f32.gmra.mxu0 %v5850
        %v6009 = vpop.f32.mrf.mxu0
        %v6010 = vadd.f32 0.0, %v6009
        %6011 = vdwg.mxu0
        %v6012 = vadd.f32 %v5824, %v5870
        %v6013 = vadd.f32 %v5825, %v5890
        %v6014 = vadd.f32 %v5826, %v5910
        %v6015 = vadd.f32 %v5827, %v5930
        %v6016 = vadd.f32 %v5828, %v5950
        %v6017 = vadd.f32 %v5829, %v5970
        %v6018 = vadd.f32 %v5830, %v5990
        %v6019 = vadd.f32 %v5831, %v6010
        %s6020 = scalar_lea.vmem [#allocation16], 2816
        %v6021 = vld [vmem:[%s6020] sm:$0xff]
        %v6022 = vld [vmem:[%s6020 + $0x8] sm:$0xff]
        %v6023 = vld [vmem:[%s6020 + $0x10] sm:$0xff]
        %v6024 = vld [vmem:[%s6020 + $0x18] sm:$0xff]
        %v6025 = vld [vmem:[%s6020 + $0x20] sm:$0xff]
        %v6026 = vld [vmem:[%s6020 + $0x28] sm:$0xff]
        %v6027 = vld [vmem:[%s6020 + $0x30] sm:$0xff]
        %v6028 = vld [vmem:[%s6020 + $0x38] sm:$0xff]
        %v6029 = vld [vmem:[%s6020 + $0x40] sm:$0xff]
        %v6030 = vld [vmem:[%s6020 + $0x48] sm:$0xff]
        %v6031 = vld [vmem:[%s6020 + $0x50] sm:$0xff]
        %v6032 = vld [vmem:[%s6020 + $0x58] sm:$0xff]
        %v6033 = vld [vmem:[%s6020 + $0x60] sm:$0xff]
        %v6034 = vld [vmem:[%s6020 + $0x68] sm:$0xff]
        %v6035 = vld [vmem:[%s6020 + $0x70] sm:$0xff]
        %v6036 = vld [vmem:[%s6020 + $0x78] sm:$0xff]
        %v6037 = vrot.slane %v1899, 6
        %v6038 = vsel %vm1359, %v6037, 0
        %6040 = vmatpush.msra.mxu0 0.0
        %6041 = vmatpush.msra.mxu0 0.0
        %6042 = vmatpush.msra.mxu0 0.0
        %6043 = vmatpush.msra.mxu0 0.0
        %6044 = vmatpush.msra.mxu0 0.0
        %6045 = vmatpush.msra.mxu0 0.0
        %6046 = vmatpush.msra.mxu0 0.0
        %6047 = vmatpush.msra.mxu0 0.0
        %6048 = vmatpush.msra.mxu0 0.0
        %6049 = vmatpush.msra.mxu0 0.0
        %6050 = vmatpush.msra.mxu0 0.0
        %6051 = vmatpush.msra.mxu0 0.0
        %6052 = vmatpush.msra.mxu0 0.0
        %6053 = vmatpush.msra.mxu0 0.0
        %6054 = vmatpush.msra.mxu0 %v6029
        %6055 = vmatpush.msra.mxu0 %v6021
        %6056 = vmatmul.f32.gmra.mxu0 %v6038
        %v6057 = vpop.f32.mrf.mxu0
        %v6058 = vadd.f32 0.0, %v6057
        %6059 = vdwg.mxu0
        %6060 = vmatpush.msra.mxu0 0.0
        %6061 = vmatpush.msra.mxu0 0.0
        %6062 = vmatpush.msra.mxu0 0.0
        %6063 = vmatpush.msra.mxu0 0.0
        %6064 = vmatpush.msra.mxu0 0.0
        %6065 = vmatpush.msra.mxu0 0.0
        %6066 = vmatpush.msra.mxu0 0.0
        %6067 = vmatpush.msra.mxu0 0.0
        %6068 = vmatpush.msra.mxu0 0.0
        %6069 = vmatpush.msra.mxu0 0.0
        %6070 = vmatpush.msra.mxu0 0.0
        %6071 = vmatpush.msra.mxu0 0.0
        %6072 = vmatpush.msra.mxu0 0.0
        %6073 = vmatpush.msra.mxu0 0.0
        %6074 = vmatpush.msra.mxu0 %v6030
        %6075 = vmatpush.msra.mxu0 %v6022
        %6076 = vmatmul.f32.gmra.mxu0 %v6038
        %v6077 = vpop.f32.mrf.mxu0
        %v6078 = vadd.f32 0.0, %v6077
        %6079 = vdwg.mxu0
        %6080 = vmatpush.msra.mxu0 0.0
        %6081 = vmatpush.msra.mxu0 0.0
        %6082 = vmatpush.msra.mxu0 0.0
        %6083 = vmatpush.msra.mxu0 0.0
        %6084 = vmatpush.msra.mxu0 0.0
        %6085 = vmatpush.msra.mxu0 0.0
        %6086 = vmatpush.msra.mxu0 0.0
        %6087 = vmatpush.msra.mxu0 0.0
        %6088 = vmatpush.msra.mxu0 0.0
        %6089 = vmatpush.msra.mxu0 0.0
        %6090 = vmatpush.msra.mxu0 0.0
        %6091 = vmatpush.msra.mxu0 0.0
        %6092 = vmatpush.msra.mxu0 0.0
        %6093 = vmatpush.msra.mxu0 0.0
        %6094 = vmatpush.msra.mxu0 %v6031
        %6095 = vmatpush.msra.mxu0 %v6023
        %6096 = vmatmul.f32.gmra.mxu0 %v6038
        %v6097 = vpop.f32.mrf.mxu0
        %v6098 = vadd.f32 0.0, %v6097
        %6099 = vdwg.mxu0
        %6100 = vmatpush.msra.mxu0 0.0
        %6101 = vmatpush.msra.mxu0 0.0
        %6102 = vmatpush.msra.mxu0 0.0
        %6103 = vmatpush.msra.mxu0 0.0
        %6104 = vmatpush.msra.mxu0 0.0
        %6105 = vmatpush.msra.mxu0 0.0
        %6106 = vmatpush.msra.mxu0 0.0
        %6107 = vmatpush.msra.mxu0 0.0
        %6108 = vmatpush.msra.mxu0 0.0
        %6109 = vmatpush.msra.mxu0 0.0
        %6110 = vmatpush.msra.mxu0 0.0
        %6111 = vmatpush.msra.mxu0 0.0
        %6112 = vmatpush.msra.mxu0 0.0
        %6113 = vmatpush.msra.mxu0 0.0
        %6114 = vmatpush.msra.mxu0 %v6032
        %6115 = vmatpush.msra.mxu0 %v6024
        %6116 = vmatmul.f32.gmra.mxu0 %v6038
        %v6117 = vpop.f32.mrf.mxu0
        %v6118 = vadd.f32 0.0, %v6117
        %6119 = vdwg.mxu0
        %6120 = vmatpush.msra.mxu0 0.0
        %6121 = vmatpush.msra.mxu0 0.0
        %6122 = vmatpush.msra.mxu0 0.0
        %6123 = vmatpush.msra.mxu0 0.0
        %6124 = vmatpush.msra.mxu0 0.0
        %6125 = vmatpush.msra.mxu0 0.0
        %6126 = vmatpush.msra.mxu0 0.0
        %6127 = vmatpush.msra.mxu0 0.0
        %6128 = vmatpush.msra.mxu0 0.0
        %6129 = vmatpush.msra.mxu0 0.0
        %6130 = vmatpush.msra.mxu0 0.0
        %6131 = vmatpush.msra.mxu0 0.0
        %6132 = vmatpush.msra.mxu0 0.0
        %6133 = vmatpush.msra.mxu0 0.0
        %6134 = vmatpush.msra.mxu0 %v6033
        %6135 = vmatpush.msra.mxu0 %v6025
        %6136 = vmatmul.f32.gmra.mxu0 %v6038
        %v6137 = vpop.f32.mrf.mxu0
        %v6138 = vadd.f32 0.0, %v6137
        %6139 = vdwg.mxu0
        %6140 = vmatpush.msra.mxu0 0.0
        %6141 = vmatpush.msra.mxu0 0.0
        %6142 = vmatpush.msra.mxu0 0.0
        %6143 = vmatpush.msra.mxu0 0.0
        %6144 = vmatpush.msra.mxu0 0.0
        %6145 = vmatpush.msra.mxu0 0.0
        %6146 = vmatpush.msra.mxu0 0.0
        %6147 = vmatpush.msra.mxu0 0.0
        %6148 = vmatpush.msra.mxu0 0.0
        %6149 = vmatpush.msra.mxu0 0.0
        %6150 = vmatpush.msra.mxu0 0.0
        %6151 = vmatpush.msra.mxu0 0.0
        %6152 = vmatpush.msra.mxu0 0.0
        %6153 = vmatpush.msra.mxu0 0.0
        %6154 = vmatpush.msra.mxu0 %v6034
        %6155 = vmatpush.msra.mxu0 %v6026
        %6156 = vmatmul.f32.gmra.mxu0 %v6038
        %v6157 = vpop.f32.mrf.mxu0
        %v6158 = vadd.f32 0.0, %v6157
        %6159 = vdwg.mxu0
        %6160 = vmatpush.msra.mxu0 0.0
        %6161 = vmatpush.msra.mxu0 0.0
        %6162 = vmatpush.msra.mxu0 0.0
        %6163 = vmatpush.msra.mxu0 0.0
        %6164 = vmatpush.msra.mxu0 0.0
        %6165 = vmatpush.msra.mxu0 0.0
        %6166 = vmatpush.msra.mxu0 0.0
        %6167 = vmatpush.msra.mxu0 0.0
        %6168 = vmatpush.msra.mxu0 0.0
        %6169 = vmatpush.msra.mxu0 0.0
        %6170 = vmatpush.msra.mxu0 0.0
        %6171 = vmatpush.msra.mxu0 0.0
        %6172 = vmatpush.msra.mxu0 0.0
        %6173 = vmatpush.msra.mxu0 0.0
        %6174 = vmatpush.msra.mxu0 %v6035
        %6175 = vmatpush.msra.mxu0 %v6027
        %6176 = vmatmul.f32.gmra.mxu0 %v6038
        %v6177 = vpop.f32.mrf.mxu0
        %v6178 = vadd.f32 0.0, %v6177
        %6179 = vdwg.mxu0
        %6180 = vmatpush.msra.mxu0 0.0
        %6181 = vmatpush.msra.mxu0 0.0
        %6182 = vmatpush.msra.mxu0 0.0
        %6183 = vmatpush.msra.mxu0 0.0
        %6184 = vmatpush.msra.mxu0 0.0
        %6185 = vmatpush.msra.mxu0 0.0
        %6186 = vmatpush.msra.mxu0 0.0
        %6187 = vmatpush.msra.mxu0 0.0
        %6188 = vmatpush.msra.mxu0 0.0
        %6189 = vmatpush.msra.mxu0 0.0
        %6190 = vmatpush.msra.mxu0 0.0
        %6191 = vmatpush.msra.mxu0 0.0
        %6192 = vmatpush.msra.mxu0 0.0
        %6193 = vmatpush.msra.mxu0 0.0
        %6194 = vmatpush.msra.mxu0 %v6036
        %6195 = vmatpush.msra.mxu0 %v6028
        %6196 = vmatmul.f32.gmra.mxu0 %v6038
        %v6197 = vpop.f32.mrf.mxu0
        %v6198 = vadd.f32 0.0, %v6197
        %6199 = vdwg.mxu0
        %v6200 = vadd.f32 %v6012, %v6058
        %v6201 = vadd.f32 %v6013, %v6078
        %v6202 = vadd.f32 %v6014, %v6098
        %v6203 = vadd.f32 %v6015, %v6118
        %v6204 = vadd.f32 %v6016, %v6138
        %v6205 = vadd.f32 %v6017, %v6158
        %v6206 = vadd.f32 %v6018, %v6178
        %v6207 = vadd.f32 %v6019, %v6198
        %s6208 = scalar_lea.vmem [#allocation16], 2944
        %v6209 = vld [vmem:[%s6208] sm:$0xff]
        %v6210 = vld [vmem:[%s6208 + $0x8] sm:$0xff]
        %v6211 = vld [vmem:[%s6208 + $0x10] sm:$0xff]
        %v6212 = vld [vmem:[%s6208 + $0x18] sm:$0xff]
        %v6213 = vld [vmem:[%s6208 + $0x20] sm:$0xff]
        %v6214 = vld [vmem:[%s6208 + $0x28] sm:$0xff]
        %v6215 = vld [vmem:[%s6208 + $0x30] sm:$0xff]
        %v6216 = vld [vmem:[%s6208 + $0x38] sm:$0xff]
        %v6217 = vld [vmem:[%s6208 + $0x40] sm:$0xff]
        %v6218 = vld [vmem:[%s6208 + $0x48] sm:$0xff]
        %v6219 = vld [vmem:[%s6208 + $0x50] sm:$0xff]
        %v6220 = vld [vmem:[%s6208 + $0x58] sm:$0xff]
        %v6221 = vld [vmem:[%s6208 + $0x60] sm:$0xff]
        %v6222 = vld [vmem:[%s6208 + $0x68] sm:$0xff]
        %v6223 = vld [vmem:[%s6208 + $0x70] sm:$0xff]
        %v6224 = vld [vmem:[%s6208 + $0x78] sm:$0xff]
        %v6225 = vrot.slane %v1899, 7
        %v6226 = vsel %vm1359, %v6225, 0
        %6228 = vmatpush.msra.mxu0 0.0
        %6229 = vmatpush.msra.mxu0 0.0
        %6230 = vmatpush.msra.mxu0 0.0
        %6231 = vmatpush.msra.mxu0 0.0
        %6232 = vmatpush.msra.mxu0 0.0
        %6233 = vmatpush.msra.mxu0 0.0
        %6234 = vmatpush.msra.mxu0 0.0
        %6235 = vmatpush.msra.mxu0 0.0
        %6236 = vmatpush.msra.mxu0 0.0
        %6237 = vmatpush.msra.mxu0 0.0
        %6238 = vmatpush.msra.mxu0 0.0
        %6239 = vmatpush.msra.mxu0 0.0
        %6240 = vmatpush.msra.mxu0 0.0
        %6241 = vmatpush.msra.mxu0 0.0
        %6242 = vmatpush.msra.mxu0 %v6217
        %6243 = vmatpush.msra.mxu0 %v6209
        %6244 = vmatmul.f32.gmra.mxu0 %v6226
        %v6245 = vpop.f32.mrf.mxu0
        %v6246 = vadd.f32 0.0, %v6245
        %6247 = vdwg.mxu0
        %6248 = vmatpush.msra.mxu0 0.0
        %6249 = vmatpush.msra.mxu0 0.0
        %6250 = vmatpush.msra.mxu0 0.0
        %6251 = vmatpush.msra.mxu0 0.0
        %6252 = vmatpush.msra.mxu0 0.0
        %6253 = vmatpush.msra.mxu0 0.0
        %6254 = vmatpush.msra.mxu0 0.0
        %6255 = vmatpush.msra.mxu0 0.0
        %6256 = vmatpush.msra.mxu0 0.0
        %6257 = vmatpush.msra.mxu0 0.0
        %6258 = vmatpush.msra.mxu0 0.0
        %6259 = vmatpush.msra.mxu0 0.0
        %6260 = vmatpush.msra.mxu0 0.0
        %6261 = vmatpush.msra.mxu0 0.0
        %6262 = vmatpush.msra.mxu0 %v6218
        %6263 = vmatpush.msra.mxu0 %v6210
        %6264 = vmatmul.f32.gmra.mxu0 %v6226
        %v6265 = vpop.f32.mrf.mxu0
        %v6266 = vadd.f32 0.0, %v6265
        %6267 = vdwg.mxu0
        %6268 = vmatpush.msra.mxu0 0.0
        %6269 = vmatpush.msra.mxu0 0.0
        %6270 = vmatpush.msra.mxu0 0.0
        %6271 = vmatpush.msra.mxu0 0.0
        %6272 = vmatpush.msra.mxu0 0.0
        %6273 = vmatpush.msra.mxu0 0.0
        %6274 = vmatpush.msra.mxu0 0.0
        %6275 = vmatpush.msra.mxu0 0.0
        %6276 = vmatpush.msra.mxu0 0.0
        %6277 = vmatpush.msra.mxu0 0.0
        %6278 = vmatpush.msra.mxu0 0.0
        %6279 = vmatpush.msra.mxu0 0.0
        %6280 = vmatpush.msra.mxu0 0.0
        %6281 = vmatpush.msra.mxu0 0.0
        %6282 = vmatpush.msra.mxu0 %v6219
        %6283 = vmatpush.msra.mxu0 %v6211
        %6284 = vmatmul.f32.gmra.mxu0 %v6226
        %v6285 = vpop.f32.mrf.mxu0
        %v6286 = vadd.f32 0.0, %v6285
        %6287 = vdwg.mxu0
        %6288 = vmatpush.msra.mxu0 0.0
        %6289 = vmatpush.msra.mxu0 0.0
        %6290 = vmatpush.msra.mxu0 0.0
        %6291 = vmatpush.msra.mxu0 0.0
        %6292 = vmatpush.msra.mxu0 0.0
        %6293 = vmatpush.msra.mxu0 0.0
        %6294 = vmatpush.msra.mxu0 0.0
        %6295 = vmatpush.msra.mxu0 0.0
        %6296 = vmatpush.msra.mxu0 0.0
        %6297 = vmatpush.msra.mxu0 0.0
        %6298 = vmatpush.msra.mxu0 0.0
        %6299 = vmatpush.msra.mxu0 0.0
        %6300 = vmatpush.msra.mxu0 0.0
        %6301 = vmatpush.msra.mxu0 0.0
        %6302 = vmatpush.msra.mxu0 %v6220
        %6303 = vmatpush.msra.mxu0 %v6212
        %6304 = vmatmul.f32.gmra.mxu0 %v6226
        %v6305 = vpop.f32.mrf.mxu0
        %v6306 = vadd.f32 0.0, %v6305
        %6307 = vdwg.mxu0
        %6308 = vmatpush.msra.mxu0 0.0
        %6309 = vmatpush.msra.mxu0 0.0
        %6310 = vmatpush.msra.mxu0 0.0
        %6311 = vmatpush.msra.mxu0 0.0
        %6312 = vmatpush.msra.mxu0 0.0
        %6313 = vmatpush.msra.mxu0 0.0
        %6314 = vmatpush.msra.mxu0 0.0
        %6315 = vmatpush.msra.mxu0 0.0
        %6316 = vmatpush.msra.mxu0 0.0
        %6317 = vmatpush.msra.mxu0 0.0
        %6318 = vmatpush.msra.mxu0 0.0
        %6319 = vmatpush.msra.mxu0 0.0
        %6320 = vmatpush.msra.mxu0 0.0
        %6321 = vmatpush.msra.mxu0 0.0
        %6322 = vmatpush.msra.mxu0 %v6221
        %6323 = vmatpush.msra.mxu0 %v6213
        %6324 = vmatmul.f32.gmra.mxu0 %v6226
        %v6325 = vpop.f32.mrf.mxu0
        %v6326 = vadd.f32 0.0, %v6325
        %6327 = vdwg.mxu0
        %6328 = vmatpush.msra.mxu0 0.0
        %6329 = vmatpush.msra.mxu0 0.0
        %6330 = vmatpush.msra.mxu0 0.0
        %6331 = vmatpush.msra.mxu0 0.0
        %6332 = vmatpush.msra.mxu0 0.0
        %6333 = vmatpush.msra.mxu0 0.0
        %6334 = vmatpush.msra.mxu0 0.0
        %6335 = vmatpush.msra.mxu0 0.0
        %6336 = vmatpush.msra.mxu0 0.0
        %6337 = vmatpush.msra.mxu0 0.0
        %6338 = vmatpush.msra.mxu0 0.0
        %6339 = vmatpush.msra.mxu0 0.0
        %6340 = vmatpush.msra.mxu0 0.0
        %6341 = vmatpush.msra.mxu0 0.0
        %6342 = vmatpush.msra.mxu0 %v6222
        %6343 = vmatpush.msra.mxu0 %v6214
        %6344 = vmatmul.f32.gmra.mxu0 %v6226
        %v6345 = vpop.f32.mrf.mxu0
        %v6346 = vadd.f32 0.0, %v6345
        %6347 = vdwg.mxu0
        %6348 = vmatpush.msra.mxu0 0.0
        %6349 = vmatpush.msra.mxu0 0.0
        %6350 = vmatpush.msra.mxu0 0.0
        %6351 = vmatpush.msra.mxu0 0.0
        %6352 = vmatpush.msra.mxu0 0.0
        %6353 = vmatpush.msra.mxu0 0.0
        %6354 = vmatpush.msra.mxu0 0.0
        %6355 = vmatpush.msra.mxu0 0.0
        %6356 = vmatpush.msra.mxu0 0.0
        %6357 = vmatpush.msra.mxu0 0.0
        %6358 = vmatpush.msra.mxu0 0.0
        %6359 = vmatpush.msra.mxu0 0.0
        %6360 = vmatpush.msra.mxu0 0.0
        %6361 = vmatpush.msra.mxu0 0.0
        %6362 = vmatpush.msra.mxu0 %v6223
        %6363 = vmatpush.msra.mxu0 %v6215
        %6364 = vmatmul.f32.gmra.mxu0 %v6226
        %v6365 = vpop.f32.mrf.mxu0
        %v6366 = vadd.f32 0.0, %v6365
        %6367 = vdwg.mxu0
        %6368 = vmatpush.msra.mxu0 0.0
        %6369 = vmatpush.msra.mxu0 0.0
        %6370 = vmatpush.msra.mxu0 0.0
        %6371 = vmatpush.msra.mxu0 0.0
        %6372 = vmatpush.msra.mxu0 0.0
        %6373 = vmatpush.msra.mxu0 0.0
        %6374 = vmatpush.msra.mxu0 0.0
        %6375 = vmatpush.msra.mxu0 0.0
        %6376 = vmatpush.msra.mxu0 0.0
        %6377 = vmatpush.msra.mxu0 0.0
        %6378 = vmatpush.msra.mxu0 0.0
        %6379 = vmatpush.msra.mxu0 0.0
        %6380 = vmatpush.msra.mxu0 0.0
        %6381 = vmatpush.msra.mxu0 0.0
        %6382 = vmatpush.msra.mxu0 %v6224
        %6383 = vmatpush.msra.mxu0 %v6216
        %6384 = vmatmul.f32.gmra.mxu0 %v6226
        %v6385 = vpop.f32.mrf.mxu0
        %v6386 = vadd.f32 0.0, %v6385
        %6387 = vdwg.mxu0
        %v6388 = vadd.f32 %v6200, %v6246
        %v6389 = vadd.f32 %v6201, %v6266
        %v6390 = vadd.f32 %v6202, %v6286
        %v6391 = vadd.f32 %v6203, %v6306
        %v6392 = vadd.f32 %v6204, %v6326
        %v6393 = vadd.f32 %v6205, %v6346
        %v6394 = vadd.f32 %v6206, %v6366
        %v6395 = vadd.f32 %v6207, %v6386
        %s6396 = scalar_lea.vmem [#allocation16], 3072
        %v6397 = vld [vmem:[%s6396] sm:$0xff]
        %v6398 = vld [vmem:[%s6396 + $0x8] sm:$0xff]
        %v6399 = vld [vmem:[%s6396 + $0x10] sm:$0xff]
        %v6400 = vld [vmem:[%s6396 + $0x18] sm:$0xff]
        %v6401 = vld [vmem:[%s6396 + $0x20] sm:$0xff]
        %v6402 = vld [vmem:[%s6396 + $0x28] sm:$0xff]
        %v6403 = vld [vmem:[%s6396 + $0x30] sm:$0xff]
        %v6404 = vld [vmem:[%s6396 + $0x38] sm:$0xff]
        %v6405 = vld [vmem:[%s6396 + $0x40] sm:$0xff]
        %v6406 = vld [vmem:[%s6396 + $0x48] sm:$0xff]
        %v6407 = vld [vmem:[%s6396 + $0x50] sm:$0xff]
        %v6408 = vld [vmem:[%s6396 + $0x58] sm:$0xff]
        %v6409 = vld [vmem:[%s6396 + $0x60] sm:$0xff]
        %v6410 = vld [vmem:[%s6396 + $0x68] sm:$0xff]
        %v6411 = vld [vmem:[%s6396 + $0x70] sm:$0xff]
        %v6412 = vld [vmem:[%s6396 + $0x78] sm:$0xff]
        %v6414 = vsel %vm1359, %v1900, 0
        %6416 = vmatpush.msra.mxu0 0.0
        %6417 = vmatpush.msra.mxu0 0.0
        %6418 = vmatpush.msra.mxu0 0.0
        %6419 = vmatpush.msra.mxu0 0.0
        %6420 = vmatpush.msra.mxu0 0.0
        %6421 = vmatpush.msra.mxu0 0.0
        %6422 = vmatpush.msra.mxu0 0.0
        %6423 = vmatpush.msra.mxu0 0.0
        %6424 = vmatpush.msra.mxu0 0.0
        %6425 = vmatpush.msra.mxu0 0.0
        %6426 = vmatpush.msra.mxu0 0.0
        %6427 = vmatpush.msra.mxu0 0.0
        %6428 = vmatpush.msra.mxu0 0.0
        %6429 = vmatpush.msra.mxu0 0.0
        %6430 = vmatpush.msra.mxu0 %v6405
        %6431 = vmatpush.msra.mxu0 %v6397
        %6432 = vmatmul.f32.gmra.mxu0 %v6414
        %v6433 = vpop.f32.mrf.mxu0
        %v6434 = vadd.f32 0.0, %v6433
        %6435 = vdwg.mxu0
        %6436 = vmatpush.msra.mxu0 0.0
        %6437 = vmatpush.msra.mxu0 0.0
        %6438 = vmatpush.msra.mxu0 0.0
        %6439 = vmatpush.msra.mxu0 0.0
        %6440 = vmatpush.msra.mxu0 0.0
        %6441 = vmatpush.msra.mxu0 0.0
        %6442 = vmatpush.msra.mxu0 0.0
        %6443 = vmatpush.msra.mxu0 0.0
        %6444 = vmatpush.msra.mxu0 0.0
        %6445 = vmatpush.msra.mxu0 0.0
        %6446 = vmatpush.msra.mxu0 0.0
        %6447 = vmatpush.msra.mxu0 0.0
        %6448 = vmatpush.msra.mxu0 0.0
        %6449 = vmatpush.msra.mxu0 0.0
        %6450 = vmatpush.msra.mxu0 %v6406
        %6451 = vmatpush.msra.mxu0 %v6398
        %6452 = vmatmul.f32.gmra.mxu0 %v6414
        %v6453 = vpop.f32.mrf.mxu0
        %v6454 = vadd.f32 0.0, %v6453
        %6455 = vdwg.mxu0
        %6456 = vmatpush.msra.mxu0 0.0
        %6457 = vmatpush.msra.mxu0 0.0
        %6458 = vmatpush.msra.mxu0 0.0
        %6459 = vmatpush.msra.mxu0 0.0
        %6460 = vmatpush.msra.mxu0 0.0
        %6461 = vmatpush.msra.mxu0 0.0
        %6462 = vmatpush.msra.mxu0 0.0
        %6463 = vmatpush.msra.mxu0 0.0
        %6464 = vmatpush.msra.mxu0 0.0
        %6465 = vmatpush.msra.mxu0 0.0
        %6466 = vmatpush.msra.mxu0 0.0
        %6467 = vmatpush.msra.mxu0 0.0
        %6468 = vmatpush.msra.mxu0 0.0
        %6469 = vmatpush.msra.mxu0 0.0
        %6470 = vmatpush.msra.mxu0 %v6407
        %6471 = vmatpush.msra.mxu0 %v6399
        %6472 = vmatmul.f32.gmra.mxu0 %v6414
        %v6473 = vpop.f32.mrf.mxu0
        %v6474 = vadd.f32 0.0, %v6473
        %6475 = vdwg.mxu0
        %6476 = vmatpush.msra.mxu0 0.0
        %6477 = vmatpush.msra.mxu0 0.0
        %6478 = vmatpush.msra.mxu0 0.0
        %6479 = vmatpush.msra.mxu0 0.0
        %6480 = vmatpush.msra.mxu0 0.0
        %6481 = vmatpush.msra.mxu0 0.0
        %6482 = vmatpush.msra.mxu0 0.0
        %6483 = vmatpush.msra.mxu0 0.0
        %6484 = vmatpush.msra.mxu0 0.0
        %6485 = vmatpush.msra.mxu0 0.0
        %6486 = vmatpush.msra.mxu0 0.0
        %6487 = vmatpush.msra.mxu0 0.0
        %6488 = vmatpush.msra.mxu0 0.0
        %6489 = vmatpush.msra.mxu0 0.0
        %6490 = vmatpush.msra.mxu0 %v6408
        %6491 = vmatpush.msra.mxu0 %v6400
        %6492 = vmatmul.f32.gmra.mxu0 %v6414
        %v6493 = vpop.f32.mrf.mxu0
        %v6494 = vadd.f32 0.0, %v6493
        %6495 = vdwg.mxu0
        %6496 = vmatpush.msra.mxu0 0.0
        %6497 = vmatpush.msra.mxu0 0.0
        %6498 = vmatpush.msra.mxu0 0.0
        %6499 = vmatpush.msra.mxu0 0.0
        %6500 = vmatpush.msra.mxu0 0.0
        %6501 = vmatpush.msra.mxu0 0.0
        %6502 = vmatpush.msra.mxu0 0.0
        %6503 = vmatpush.msra.mxu0 0.0
        %6504 = vmatpush.msra.mxu0 0.0
        %6505 = vmatpush.msra.mxu0 0.0
        %6506 = vmatpush.msra.mxu0 0.0
        %6507 = vmatpush.msra.mxu0 0.0
        %6508 = vmatpush.msra.mxu0 0.0
        %6509 = vmatpush.msra.mxu0 0.0
        %6510 = vmatpush.msra.mxu0 %v6409
        %6511 = vmatpush.msra.mxu0 %v6401
        %6512 = vmatmul.f32.gmra.mxu0 %v6414
        %v6513 = vpop.f32.mrf.mxu0
        %v6514 = vadd.f32 0.0, %v6513
        %6515 = vdwg.mxu0
        %6516 = vmatpush.msra.mxu0 0.0
        %6517 = vmatpush.msra.mxu0 0.0
        %6518 = vmatpush.msra.mxu0 0.0
        %6519 = vmatpush.msra.mxu0 0.0
        %6520 = vmatpush.msra.mxu0 0.0
        %6521 = vmatpush.msra.mxu0 0.0
        %6522 = vmatpush.msra.mxu0 0.0
        %6523 = vmatpush.msra.mxu0 0.0
        %6524 = vmatpush.msra.mxu0 0.0
        %6525 = vmatpush.msra.mxu0 0.0
        %6526 = vmatpush.msra.mxu0 0.0
        %6527 = vmatpush.msra.mxu0 0.0
        %6528 = vmatpush.msra.mxu0 0.0
        %6529 = vmatpush.msra.mxu0 0.0
        %6530 = vmatpush.msra.mxu0 %v6410
        %6531 = vmatpush.msra.mxu0 %v6402
        %6532 = vmatmul.f32.gmra.mxu0 %v6414
        %v6533 = vpop.f32.mrf.mxu0
        %v6534 = vadd.f32 0.0, %v6533
        %6535 = vdwg.mxu0
        %6536 = vmatpush.msra.mxu0 0.0
        %6537 = vmatpush.msra.mxu0 0.0
        %6538 = vmatpush.msra.mxu0 0.0
        %6539 = vmatpush.msra.mxu0 0.0
        %6540 = vmatpush.msra.mxu0 0.0
        %6541 = vmatpush.msra.mxu0 0.0
        %6542 = vmatpush.msra.mxu0 0.0
        %6543 = vmatpush.msra.mxu0 0.0
        %6544 = vmatpush.msra.mxu0 0.0
        %6545 = vmatpush.msra.mxu0 0.0
        %6546 = vmatpush.msra.mxu0 0.0
        %6547 = vmatpush.msra.mxu0 0.0
        %6548 = vmatpush.msra.mxu0 0.0
        %6549 = vmatpush.msra.mxu0 0.0
        %6550 = vmatpush.msra.mxu0 %v6411
        %6551 = vmatpush.msra.mxu0 %v6403
        %6552 = vmatmul.f32.gmra.mxu0 %v6414
        %v6553 = vpop.f32.mrf.mxu0
        %v6554 = vadd.f32 0.0, %v6553
        %6555 = vdwg.mxu0
        %6556 = vmatpush.msra.mxu0 0.0
        %6557 = vmatpush.msra.mxu0 0.0
        %6558 = vmatpush.msra.mxu0 0.0
        %6559 = vmatpush.msra.mxu0 0.0
        %6560 = vmatpush.msra.mxu0 0.0
        %6561 = vmatpush.msra.mxu0 0.0
        %6562 = vmatpush.msra.mxu0 0.0
        %6563 = vmatpush.msra.mxu0 0.0
        %6564 = vmatpush.msra.mxu0 0.0
        %6565 = vmatpush.msra.mxu0 0.0
        %6566 = vmatpush.msra.mxu0 0.0
        %6567 = vmatpush.msra.mxu0 0.0
        %6568 = vmatpush.msra.mxu0 0.0
        %6569 = vmatpush.msra.mxu0 0.0
        %6570 = vmatpush.msra.mxu0 %v6412
        %6571 = vmatpush.msra.mxu0 %v6404
        %6572 = vmatmul.f32.gmra.mxu0 %v6414
        %v6573 = vpop.f32.mrf.mxu0
        %v6574 = vadd.f32 0.0, %v6573
        %6575 = vdwg.mxu0
        %v6576 = vadd.f32 %v6388, %v6434
        %v6577 = vadd.f32 %v6389, %v6454
        %v6578 = vadd.f32 %v6390, %v6474
        %v6579 = vadd.f32 %v6391, %v6494
        %v6580 = vadd.f32 %v6392, %v6514
        %v6581 = vadd.f32 %v6393, %v6534
        %v6582 = vadd.f32 %v6394, %v6554
        %v6583 = vadd.f32 %v6395, %v6574
        %s6584 = scalar_lea.vmem [#allocation16], 3200
        %v6585 = vld [vmem:[%s6584] sm:$0xff]
        %v6586 = vld [vmem:[%s6584 + $0x8] sm:$0xff]
        %v6587 = vld [vmem:[%s6584 + $0x10] sm:$0xff]
        %v6588 = vld [vmem:[%s6584 + $0x18] sm:$0xff]
        %v6589 = vld [vmem:[%s6584 + $0x20] sm:$0xff]
        %v6590 = vld [vmem:[%s6584 + $0x28] sm:$0xff]
        %v6591 = vld [vmem:[%s6584 + $0x30] sm:$0xff]
        %v6592 = vld [vmem:[%s6584 + $0x38] sm:$0xff]
        %v6593 = vld [vmem:[%s6584 + $0x40] sm:$0xff]
        %v6594 = vld [vmem:[%s6584 + $0x48] sm:$0xff]
        %v6595 = vld [vmem:[%s6584 + $0x50] sm:$0xff]
        %v6596 = vld [vmem:[%s6584 + $0x58] sm:$0xff]
        %v6597 = vld [vmem:[%s6584 + $0x60] sm:$0xff]
        %v6598 = vld [vmem:[%s6584 + $0x68] sm:$0xff]
        %v6599 = vld [vmem:[%s6584 + $0x70] sm:$0xff]
        %v6600 = vld [vmem:[%s6584 + $0x78] sm:$0xff]
        %v6601 = vrot.slane %v1900, 1
        %v6602 = vsel %vm1359, %v6601, 0
        %6604 = vmatpush.msra.mxu0 0.0
        %6605 = vmatpush.msra.mxu0 0.0
        %6606 = vmatpush.msra.mxu0 0.0
        %6607 = vmatpush.msra.mxu0 0.0
        %6608 = vmatpush.msra.mxu0 0.0
        %6609 = vmatpush.msra.mxu0 0.0
        %6610 = vmatpush.msra.mxu0 0.0
        %6611 = vmatpush.msra.mxu0 0.0
        %6612 = vmatpush.msra.mxu0 0.0
        %6613 = vmatpush.msra.mxu0 0.0
        %6614 = vmatpush.msra.mxu0 0.0
        %6615 = vmatpush.msra.mxu0 0.0
        %6616 = vmatpush.msra.mxu0 0.0
        %6617 = vmatpush.msra.mxu0 0.0
        %6618 = vmatpush.msra.mxu0 %v6593
        %6619 = vmatpush.msra.mxu0 %v6585
        %6620 = vmatmul.f32.gmra.mxu0 %v6602
        %v6621 = vpop.f32.mrf.mxu0
        %v6622 = vadd.f32 0.0, %v6621
        %6623 = vdwg.mxu0
        %6624 = vmatpush.msra.mxu0 0.0
        %6625 = vmatpush.msra.mxu0 0.0
        %6626 = vmatpush.msra.mxu0 0.0
        %6627 = vmatpush.msra.mxu0 0.0
        %6628 = vmatpush.msra.mxu0 0.0
        %6629 = vmatpush.msra.mxu0 0.0
        %6630 = vmatpush.msra.mxu0 0.0
        %6631 = vmatpush.msra.mxu0 0.0
        %6632 = vmatpush.msra.mxu0 0.0
        %6633 = vmatpush.msra.mxu0 0.0
        %6634 = vmatpush.msra.mxu0 0.0
        %6635 = vmatpush.msra.mxu0 0.0
        %6636 = vmatpush.msra.mxu0 0.0
        %6637 = vmatpush.msra.mxu0 0.0
        %6638 = vmatpush.msra.mxu0 %v6594
        %6639 = vmatpush.msra.mxu0 %v6586
        %6640 = vmatmul.f32.gmra.mxu0 %v6602
        %v6641 = vpop.f32.mrf.mxu0
        %v6642 = vadd.f32 0.0, %v6641
        %6643 = vdwg.mxu0
        %6644 = vmatpush.msra.mxu0 0.0
        %6645 = vmatpush.msra.mxu0 0.0
        %6646 = vmatpush.msra.mxu0 0.0
        %6647 = vmatpush.msra.mxu0 0.0
        %6648 = vmatpush.msra.mxu0 0.0
        %6649 = vmatpush.msra.mxu0 0.0
        %6650 = vmatpush.msra.mxu0 0.0
        %6651 = vmatpush.msra.mxu0 0.0
        %6652 = vmatpush.msra.mxu0 0.0
        %6653 = vmatpush.msra.mxu0 0.0
        %6654 = vmatpush.msra.mxu0 0.0
        %6655 = vmatpush.msra.mxu0 0.0
        %6656 = vmatpush.msra.mxu0 0.0
        %6657 = vmatpush.msra.mxu0 0.0
        %6658 = vmatpush.msra.mxu0 %v6595
        %6659 = vmatpush.msra.mxu0 %v6587
        %6660 = vmatmul.f32.gmra.mxu0 %v6602
        %v6661 = vpop.f32.mrf.mxu0
        %v6662 = vadd.f32 0.0, %v6661
        %6663 = vdwg.mxu0
        %6664 = vmatpush.msra.mxu0 0.0
        %6665 = vmatpush.msra.mxu0 0.0
        %6666 = vmatpush.msra.mxu0 0.0
        %6667 = vmatpush.msra.mxu0 0.0
        %6668 = vmatpush.msra.mxu0 0.0
        %6669 = vmatpush.msra.mxu0 0.0
        %6670 = vmatpush.msra.mxu0 0.0
        %6671 = vmatpush.msra.mxu0 0.0
        %6672 = vmatpush.msra.mxu0 0.0
        %6673 = vmatpush.msra.mxu0 0.0
        %6674 = vmatpush.msra.mxu0 0.0
        %6675 = vmatpush.msra.mxu0 0.0
        %6676 = vmatpush.msra.mxu0 0.0
        %6677 = vmatpush.msra.mxu0 0.0
        %6678 = vmatpush.msra.mxu0 %v6596
        %6679 = vmatpush.msra.mxu0 %v6588
        %6680 = vmatmul.f32.gmra.mxu0 %v6602
        %v6681 = vpop.f32.mrf.mxu0
        %v6682 = vadd.f32 0.0, %v6681
        %6683 = vdwg.mxu0
        %6684 = vmatpush.msra.mxu0 0.0
        %6685 = vmatpush.msra.mxu0 0.0
        %6686 = vmatpush.msra.mxu0 0.0
        %6687 = vmatpush.msra.mxu0 0.0
        %6688 = vmatpush.msra.mxu0 0.0
        %6689 = vmatpush.msra.mxu0 0.0
        %6690 = vmatpush.msra.mxu0 0.0
        %6691 = vmatpush.msra.mxu0 0.0
        %6692 = vmatpush.msra.mxu0 0.0
        %6693 = vmatpush.msra.mxu0 0.0
        %6694 = vmatpush.msra.mxu0 0.0
        %6695 = vmatpush.msra.mxu0 0.0
        %6696 = vmatpush.msra.mxu0 0.0
        %6697 = vmatpush.msra.mxu0 0.0
        %6698 = vmatpush.msra.mxu0 %v6597
        %6699 = vmatpush.msra.mxu0 %v6589
        %6700 = vmatmul.f32.gmra.mxu0 %v6602
        %v6701 = vpop.f32.mrf.mxu0
        %v6702 = vadd.f32 0.0, %v6701
        %6703 = vdwg.mxu0
        %6704 = vmatpush.msra.mxu0 0.0
        %6705 = vmatpush.msra.mxu0 0.0
        %6706 = vmatpush.msra.mxu0 0.0
        %6707 = vmatpush.msra.mxu0 0.0
        %6708 = vmatpush.msra.mxu0 0.0
        %6709 = vmatpush.msra.mxu0 0.0
        %6710 = vmatpush.msra.mxu0 0.0
        %6711 = vmatpush.msra.mxu0 0.0
        %6712 = vmatpush.msra.mxu0 0.0
        %6713 = vmatpush.msra.mxu0 0.0
        %6714 = vmatpush.msra.mxu0 0.0
        %6715 = vmatpush.msra.mxu0 0.0
        %6716 = vmatpush.msra.mxu0 0.0
        %6717 = vmatpush.msra.mxu0 0.0
        %6718 = vmatpush.msra.mxu0 %v6598
        %6719 = vmatpush.msra.mxu0 %v6590
        %6720 = vmatmul.f32.gmra.mxu0 %v6602
        %v6721 = vpop.f32.mrf.mxu0
        %v6722 = vadd.f32 0.0, %v6721
        %6723 = vdwg.mxu0
        %6724 = vmatpush.msra.mxu0 0.0
        %6725 = vmatpush.msra.mxu0 0.0
        %6726 = vmatpush.msra.mxu0 0.0
        %6727 = vmatpush.msra.mxu0 0.0
        %6728 = vmatpush.msra.mxu0 0.0
        %6729 = vmatpush.msra.mxu0 0.0
        %6730 = vmatpush.msra.mxu0 0.0
        %6731 = vmatpush.msra.mxu0 0.0
        %6732 = vmatpush.msra.mxu0 0.0
        %6733 = vmatpush.msra.mxu0 0.0
        %6734 = vmatpush.msra.mxu0 0.0
        %6735 = vmatpush.msra.mxu0 0.0
        %6736 = vmatpush.msra.mxu0 0.0
        %6737 = vmatpush.msra.mxu0 0.0
        %6738 = vmatpush.msra.mxu0 %v6599
        %6739 = vmatpush.msra.mxu0 %v6591
        %6740 = vmatmul.f32.gmra.mxu0 %v6602
        %v6741 = vpop.f32.mrf.mxu0
        %v6742 = vadd.f32 0.0, %v6741
        %6743 = vdwg.mxu0
        %6744 = vmatpush.msra.mxu0 0.0
        %6745 = vmatpush.msra.mxu0 0.0
        %6746 = vmatpush.msra.mxu0 0.0
        %6747 = vmatpush.msra.mxu0 0.0
        %6748 = vmatpush.msra.mxu0 0.0
        %6749 = vmatpush.msra.mxu0 0.0
        %6750 = vmatpush.msra.mxu0 0.0
        %6751 = vmatpush.msra.mxu0 0.0
        %6752 = vmatpush.msra.mxu0 0.0
        %6753 = vmatpush.msra.mxu0 0.0
        %6754 = vmatpush.msra.mxu0 0.0
        %6755 = vmatpush.msra.mxu0 0.0
        %6756 = vmatpush.msra.mxu0 0.0
        %6757 = vmatpush.msra.mxu0 0.0
        %6758 = vmatpush.msra.mxu0 %v6600
        %6759 = vmatpush.msra.mxu0 %v6592
        %6760 = vmatmul.f32.gmra.mxu0 %v6602
        %v6761 = vpop.f32.mrf.mxu0
        %v6762 = vadd.f32 0.0, %v6761
        %6763 = vdwg.mxu0
        %v6764 = vadd.f32 %v6576, %v6622
        %v6765 = vadd.f32 %v6577, %v6642
        %v6766 = vadd.f32 %v6578, %v6662
        %v6767 = vadd.f32 %v6579, %v6682
        %v6768 = vadd.f32 %v6580, %v6702
        %v6769 = vadd.f32 %v6581, %v6722
        %v6770 = vadd.f32 %v6582, %v6742
        %v6771 = vadd.f32 %v6583, %v6762
        %s6772 = scalar_lea.vmem [#allocation16], 3328
        %v6773 = vld [vmem:[%s6772] sm:$0xff]
        %v6774 = vld [vmem:[%s6772 + $0x8] sm:$0xff]
        %v6775 = vld [vmem:[%s6772 + $0x10] sm:$0xff]
        %v6776 = vld [vmem:[%s6772 + $0x18] sm:$0xff]
        %v6777 = vld [vmem:[%s6772 + $0x20] sm:$0xff]
        %v6778 = vld [vmem:[%s6772 + $0x28] sm:$0xff]
        %v6779 = vld [vmem:[%s6772 + $0x30] sm:$0xff]
        %v6780 = vld [vmem:[%s6772 + $0x38] sm:$0xff]
        %v6781 = vld [vmem:[%s6772 + $0x40] sm:$0xff]
        %v6782 = vld [vmem:[%s6772 + $0x48] sm:$0xff]
        %v6783 = vld [vmem:[%s6772 + $0x50] sm:$0xff]
        %v6784 = vld [vmem:[%s6772 + $0x58] sm:$0xff]
        %v6785 = vld [vmem:[%s6772 + $0x60] sm:$0xff]
        %v6786 = vld [vmem:[%s6772 + $0x68] sm:$0xff]
        %v6787 = vld [vmem:[%s6772 + $0x70] sm:$0xff]
        %v6788 = vld [vmem:[%s6772 + $0x78] sm:$0xff]
        %v6789 = vrot.slane %v1900, 2
        %v6790 = vsel %vm1359, %v6789, 0
        %6792 = vmatpush.msra.mxu0 0.0
        %6793 = vmatpush.msra.mxu0 0.0
        %6794 = vmatpush.msra.mxu0 0.0
        %6795 = vmatpush.msra.mxu0 0.0
        %6796 = vmatpush.msra.mxu0 0.0
        %6797 = vmatpush.msra.mxu0 0.0
        %6798 = vmatpush.msra.mxu0 0.0
        %6799 = vmatpush.msra.mxu0 0.0
        %6800 = vmatpush.msra.mxu0 0.0
        %6801 = vmatpush.msra.mxu0 0.0
        %6802 = vmatpush.msra.mxu0 0.0
        %6803 = vmatpush.msra.mxu0 0.0
        %6804 = vmatpush.msra.mxu0 0.0
        %6805 = vmatpush.msra.mxu0 0.0
        %6806 = vmatpush.msra.mxu0 %v6781
        %6807 = vmatpush.msra.mxu0 %v6773
        %6808 = vmatmul.f32.gmra.mxu0 %v6790
        %v6809 = vpop.f32.mrf.mxu0
        %v6810 = vadd.f32 0.0, %v6809
        %6811 = vdwg.mxu0
        %6812 = vmatpush.msra.mxu0 0.0
        %6813 = vmatpush.msra.mxu0 0.0
        %6814 = vmatpush.msra.mxu0 0.0
        %6815 = vmatpush.msra.mxu0 0.0
        %6816 = vmatpush.msra.mxu0 0.0
        %6817 = vmatpush.msra.mxu0 0.0
        %6818 = vmatpush.msra.mxu0 0.0
        %6819 = vmatpush.msra.mxu0 0.0
        %6820 = vmatpush.msra.mxu0 0.0
        %6821 = vmatpush.msra.mxu0 0.0
        %6822 = vmatpush.msra.mxu0 0.0
        %6823 = vmatpush.msra.mxu0 0.0
        %6824 = vmatpush.msra.mxu0 0.0
        %6825 = vmatpush.msra.mxu0 0.0
        %6826 = vmatpush.msra.mxu0 %v6782
        %6827 = vmatpush.msra.mxu0 %v6774
        %6828 = vmatmul.f32.gmra.mxu0 %v6790
        %v6829 = vpop.f32.mrf.mxu0
        %v6830 = vadd.f32 0.0, %v6829
        %6831 = vdwg.mxu0
        %6832 = vmatpush.msra.mxu0 0.0
        %6833 = vmatpush.msra.mxu0 0.0
        %6834 = vmatpush.msra.mxu0 0.0
        %6835 = vmatpush.msra.mxu0 0.0
        %6836 = vmatpush.msra.mxu0 0.0
        %6837 = vmatpush.msra.mxu0 0.0
        %6838 = vmatpush.msra.mxu0 0.0
        %6839 = vmatpush.msra.mxu0 0.0
        %6840 = vmatpush.msra.mxu0 0.0
        %6841 = vmatpush.msra.mxu0 0.0
        %6842 = vmatpush.msra.mxu0 0.0
        %6843 = vmatpush.msra.mxu0 0.0
        %6844 = vmatpush.msra.mxu0 0.0
        %6845 = vmatpush.msra.mxu0 0.0
        %6846 = vmatpush.msra.mxu0 %v6783
        %6847 = vmatpush.msra.mxu0 %v6775
        %6848 = vmatmul.f32.gmra.mxu0 %v6790
        %v6849 = vpop.f32.mrf.mxu0
        %v6850 = vadd.f32 0.0, %v6849
        %6851 = vdwg.mxu0
        %6852 = vmatpush.msra.mxu0 0.0
        %6853 = vmatpush.msra.mxu0 0.0
        %6854 = vmatpush.msra.mxu0 0.0
        %6855 = vmatpush.msra.mxu0 0.0
        %6856 = vmatpush.msra.mxu0 0.0
        %6857 = vmatpush.msra.mxu0 0.0
        %6858 = vmatpush.msra.mxu0 0.0
        %6859 = vmatpush.msra.mxu0 0.0
        %6860 = vmatpush.msra.mxu0 0.0
        %6861 = vmatpush.msra.mxu0 0.0
        %6862 = vmatpush.msra.mxu0 0.0
        %6863 = vmatpush.msra.mxu0 0.0
        %6864 = vmatpush.msra.mxu0 0.0
        %6865 = vmatpush.msra.mxu0 0.0
        %6866 = vmatpush.msra.mxu0 %v6784
        %6867 = vmatpush.msra.mxu0 %v6776
        %6868 = vmatmul.f32.gmra.mxu0 %v6790
        %v6869 = vpop.f32.mrf.mxu0
        %v6870 = vadd.f32 0.0, %v6869
        %6871 = vdwg.mxu0
        %6872 = vmatpush.msra.mxu0 0.0
        %6873 = vmatpush.msra.mxu0 0.0
        %6874 = vmatpush.msra.mxu0 0.0
        %6875 = vmatpush.msra.mxu0 0.0
        %6876 = vmatpush.msra.mxu0 0.0
        %6877 = vmatpush.msra.mxu0 0.0
        %6878 = vmatpush.msra.mxu0 0.0
        %6879 = vmatpush.msra.mxu0 0.0
        %6880 = vmatpush.msra.mxu0 0.0
        %6881 = vmatpush.msra.mxu0 0.0
        %6882 = vmatpush.msra.mxu0 0.0
        %6883 = vmatpush.msra.mxu0 0.0
        %6884 = vmatpush.msra.mxu0 0.0
        %6885 = vmatpush.msra.mxu0 0.0
        %6886 = vmatpush.msra.mxu0 %v6785
        %6887 = vmatpush.msra.mxu0 %v6777
        %6888 = vmatmul.f32.gmra.mxu0 %v6790
        %v6889 = vpop.f32.mrf.mxu0
        %v6890 = vadd.f32 0.0, %v6889
        %6891 = vdwg.mxu0
        %6892 = vmatpush.msra.mxu0 0.0
        %6893 = vmatpush.msra.mxu0 0.0
        %6894 = vmatpush.msra.mxu0 0.0
        %6895 = vmatpush.msra.mxu0 0.0
        %6896 = vmatpush.msra.mxu0 0.0
        %6897 = vmatpush.msra.mxu0 0.0
        %6898 = vmatpush.msra.mxu0 0.0
        %6899 = vmatpush.msra.mxu0 0.0
        %6900 = vmatpush.msra.mxu0 0.0
        %6901 = vmatpush.msra.mxu0 0.0
        %6902 = vmatpush.msra.mxu0 0.0
        %6903 = vmatpush.msra.mxu0 0.0
        %6904 = vmatpush.msra.mxu0 0.0
        %6905 = vmatpush.msra.mxu0 0.0
        %6906 = vmatpush.msra.mxu0 %v6786
        %6907 = vmatpush.msra.mxu0 %v6778
        %6908 = vmatmul.f32.gmra.mxu0 %v6790
        %v6909 = vpop.f32.mrf.mxu0
        %v6910 = vadd.f32 0.0, %v6909
        %6911 = vdwg.mxu0
        %6912 = vmatpush.msra.mxu0 0.0
        %6913 = vmatpush.msra.mxu0 0.0
        %6914 = vmatpush.msra.mxu0 0.0
        %6915 = vmatpush.msra.mxu0 0.0
        %6916 = vmatpush.msra.mxu0 0.0
        %6917 = vmatpush.msra.mxu0 0.0
        %6918 = vmatpush.msra.mxu0 0.0
        %6919 = vmatpush.msra.mxu0 0.0
        %6920 = vmatpush.msra.mxu0 0.0
        %6921 = vmatpush.msra.mxu0 0.0
        %6922 = vmatpush.msra.mxu0 0.0
        %6923 = vmatpush.msra.mxu0 0.0
        %6924 = vmatpush.msra.mxu0 0.0
        %6925 = vmatpush.msra.mxu0 0.0
        %6926 = vmatpush.msra.mxu0 %v6787
        %6927 = vmatpush.msra.mxu0 %v6779
        %6928 = vmatmul.f32.gmra.mxu0 %v6790
        %v6929 = vpop.f32.mrf.mxu0
        %v6930 = vadd.f32 0.0, %v6929
        %6931 = vdwg.mxu0
        %6932 = vmatpush.msra.mxu0 0.0
        %6933 = vmatpush.msra.mxu0 0.0
        %6934 = vmatpush.msra.mxu0 0.0
        %6935 = vmatpush.msra.mxu0 0.0
        %6936 = vmatpush.msra.mxu0 0.0
        %6937 = vmatpush.msra.mxu0 0.0
        %6938 = vmatpush.msra.mxu0 0.0
        %6939 = vmatpush.msra.mxu0 0.0
        %6940 = vmatpush.msra.mxu0 0.0
        %6941 = vmatpush.msra.mxu0 0.0
        %6942 = vmatpush.msra.mxu0 0.0
        %6943 = vmatpush.msra.mxu0 0.0
        %6944 = vmatpush.msra.mxu0 0.0
        %6945 = vmatpush.msra.mxu0 0.0
        %6946 = vmatpush.msra.mxu0 %v6788
        %6947 = vmatpush.msra.mxu0 %v6780
        %6948 = vmatmul.f32.gmra.mxu0 %v6790
        %v6949 = vpop.f32.mrf.mxu0
        %v6950 = vadd.f32 0.0, %v6949
        %6951 = vdwg.mxu0
        %v6952 = vadd.f32 %v6764, %v6810
        %v6953 = vadd.f32 %v6765, %v6830
        %v6954 = vadd.f32 %v6766, %v6850
        %v6955 = vadd.f32 %v6767, %v6870
        %v6956 = vadd.f32 %v6768, %v6890
        %v6957 = vadd.f32 %v6769, %v6910
        %v6958 = vadd.f32 %v6770, %v6930
        %v6959 = vadd.f32 %v6771, %v6950
        %s6960 = scalar_lea.vmem [#allocation16], 3456
        %v6961 = vld [vmem:[%s6960] sm:$0xff]
        %v6962 = vld [vmem:[%s6960 + $0x8] sm:$0xff]
        %v6963 = vld [vmem:[%s6960 + $0x10] sm:$0xff]
        %v6964 = vld [vmem:[%s6960 + $0x18] sm:$0xff]
        %v6965 = vld [vmem:[%s6960 + $0x20] sm:$0xff]
        %v6966 = vld [vmem:[%s6960 + $0x28] sm:$0xff]
        %v6967 = vld [vmem:[%s6960 + $0x30] sm:$0xff]
        %v6968 = vld [vmem:[%s6960 + $0x38] sm:$0xff]
        %v6969 = vld [vmem:[%s6960 + $0x40] sm:$0xff]
        %v6970 = vld [vmem:[%s6960 + $0x48] sm:$0xff]
        %v6971 = vld [vmem:[%s6960 + $0x50] sm:$0xff]
        %v6972 = vld [vmem:[%s6960 + $0x58] sm:$0xff]
        %v6973 = vld [vmem:[%s6960 + $0x60] sm:$0xff]
        %v6974 = vld [vmem:[%s6960 + $0x68] sm:$0xff]
        %v6975 = vld [vmem:[%s6960 + $0x70] sm:$0xff]
        %v6976 = vld [vmem:[%s6960 + $0x78] sm:$0xff]
        %v6977 = vrot.slane %v1900, 3
        %v6978 = vsel %vm1359, %v6977, 0
        %6980 = vmatpush.msra.mxu0 0.0
        %6981 = vmatpush.msra.mxu0 0.0
        %6982 = vmatpush.msra.mxu0 0.0
        %6983 = vmatpush.msra.mxu0 0.0
        %6984 = vmatpush.msra.mxu0 0.0
        %6985 = vmatpush.msra.mxu0 0.0
        %6986 = vmatpush.msra.mxu0 0.0
        %6987 = vmatpush.msra.mxu0 0.0
        %6988 = vmatpush.msra.mxu0 0.0
        %6989 = vmatpush.msra.mxu0 0.0
        %6990 = vmatpush.msra.mxu0 0.0
        %6991 = vmatpush.msra.mxu0 0.0
        %6992 = vmatpush.msra.mxu0 0.0
        %6993 = vmatpush.msra.mxu0 0.0
        %6994 = vmatpush.msra.mxu0 %v6969
        %6995 = vmatpush.msra.mxu0 %v6961
        %6996 = vmatmul.f32.gmra.mxu0 %v6978
        %v6997 = vpop.f32.mrf.mxu0
        %v6998 = vadd.f32 0.0, %v6997
        %6999 = vdwg.mxu0
        %7000 = vmatpush.msra.mxu0 0.0
        %7001 = vmatpush.msra.mxu0 0.0
        %7002 = vmatpush.msra.mxu0 0.0
        %7003 = vmatpush.msra.mxu0 0.0
        %7004 = vmatpush.msra.mxu0 0.0
        %7005 = vmatpush.msra.mxu0 0.0
        %7006 = vmatpush.msra.mxu0 0.0
        %7007 = vmatpush.msra.mxu0 0.0
        %7008 = vmatpush.msra.mxu0 0.0
        %7009 = vmatpush.msra.mxu0 0.0
        %7010 = vmatpush.msra.mxu0 0.0
        %7011 = vmatpush.msra.mxu0 0.0
        %7012 = vmatpush.msra.mxu0 0.0
        %7013 = vmatpush.msra.mxu0 0.0
        %7014 = vmatpush.msra.mxu0 %v6970
        %7015 = vmatpush.msra.mxu0 %v6962
        %7016 = vmatmul.f32.gmra.mxu0 %v6978
        %v7017 = vpop.f32.mrf.mxu0
        %v7018 = vadd.f32 0.0, %v7017
        %7019 = vdwg.mxu0
        %7020 = vmatpush.msra.mxu0 0.0
        %7021 = vmatpush.msra.mxu0 0.0
        %7022 = vmatpush.msra.mxu0 0.0
        %7023 = vmatpush.msra.mxu0 0.0
        %7024 = vmatpush.msra.mxu0 0.0
        %7025 = vmatpush.msra.mxu0 0.0
        %7026 = vmatpush.msra.mxu0 0.0
        %7027 = vmatpush.msra.mxu0 0.0
        %7028 = vmatpush.msra.mxu0 0.0
        %7029 = vmatpush.msra.mxu0 0.0
        %7030 = vmatpush.msra.mxu0 0.0
        %7031 = vmatpush.msra.mxu0 0.0
        %7032 = vmatpush.msra.mxu0 0.0
        %7033 = vmatpush.msra.mxu0 0.0
        %7034 = vmatpush.msra.mxu0 %v6971
        %7035 = vmatpush.msra.mxu0 %v6963
        %7036 = vmatmul.f32.gmra.mxu0 %v6978
        %v7037 = vpop.f32.mrf.mxu0
        %v7038 = vadd.f32 0.0, %v7037
        %7039 = vdwg.mxu0
        %7040 = vmatpush.msra.mxu0 0.0
        %7041 = vmatpush.msra.mxu0 0.0
        %7042 = vmatpush.msra.mxu0 0.0
        %7043 = vmatpush.msra.mxu0 0.0
        %7044 = vmatpush.msra.mxu0 0.0
        %7045 = vmatpush.msra.mxu0 0.0
        %7046 = vmatpush.msra.mxu0 0.0
        %7047 = vmatpush.msra.mxu0 0.0
        %7048 = vmatpush.msra.mxu0 0.0
        %7049 = vmatpush.msra.mxu0 0.0
        %7050 = vmatpush.msra.mxu0 0.0
        %7051 = vmatpush.msra.mxu0 0.0
        %7052 = vmatpush.msra.mxu0 0.0
        %7053 = vmatpush.msra.mxu0 0.0
        %7054 = vmatpush.msra.mxu0 %v6972
        %7055 = vmatpush.msra.mxu0 %v6964
        %7056 = vmatmul.f32.gmra.mxu0 %v6978
        %v7057 = vpop.f32.mrf.mxu0
        %v7058 = vadd.f32 0.0, %v7057
        %7059 = vdwg.mxu0
        %7060 = vmatpush.msra.mxu0 0.0
        %7061 = vmatpush.msra.mxu0 0.0
        %7062 = vmatpush.msra.mxu0 0.0
        %7063 = vmatpush.msra.mxu0 0.0
        %7064 = vmatpush.msra.mxu0 0.0
        %7065 = vmatpush.msra.mxu0 0.0
        %7066 = vmatpush.msra.mxu0 0.0
        %7067 = vmatpush.msra.mxu0 0.0
        %7068 = vmatpush.msra.mxu0 0.0
        %7069 = vmatpush.msra.mxu0 0.0
        %7070 = vmatpush.msra.mxu0 0.0
        %7071 = vmatpush.msra.mxu0 0.0
        %7072 = vmatpush.msra.mxu0 0.0
        %7073 = vmatpush.msra.mxu0 0.0
        %7074 = vmatpush.msra.mxu0 %v6973
        %7075 = vmatpush.msra.mxu0 %v6965
        %7076 = vmatmul.f32.gmra.mxu0 %v6978
        %v7077 = vpop.f32.mrf.mxu0
        %v7078 = vadd.f32 0.0, %v7077
        %7079 = vdwg.mxu0
        %7080 = vmatpush.msra.mxu0 0.0
        %7081 = vmatpush.msra.mxu0 0.0
        %7082 = vmatpush.msra.mxu0 0.0
        %7083 = vmatpush.msra.mxu0 0.0
        %7084 = vmatpush.msra.mxu0 0.0
        %7085 = vmatpush.msra.mxu0 0.0
        %7086 = vmatpush.msra.mxu0 0.0
        %7087 = vmatpush.msra.mxu0 0.0
        %7088 = vmatpush.msra.mxu0 0.0
        %7089 = vmatpush.msra.mxu0 0.0
        %7090 = vmatpush.msra.mxu0 0.0
        %7091 = vmatpush.msra.mxu0 0.0
        %7092 = vmatpush.msra.mxu0 0.0
        %7093 = vmatpush.msra.mxu0 0.0
        %7094 = vmatpush.msra.mxu0 %v6974
        %7095 = vmatpush.msra.mxu0 %v6966
        %7096 = vmatmul.f32.gmra.mxu0 %v6978
        %v7097 = vpop.f32.mrf.mxu0
        %v7098 = vadd.f32 0.0, %v7097
        %7099 = vdwg.mxu0
        %7100 = vmatpush.msra.mxu0 0.0
        %7101 = vmatpush.msra.mxu0 0.0
        %7102 = vmatpush.msra.mxu0 0.0
        %7103 = vmatpush.msra.mxu0 0.0
        %7104 = vmatpush.msra.mxu0 0.0
        %7105 = vmatpush.msra.mxu0 0.0
        %7106 = vmatpush.msra.mxu0 0.0
        %7107 = vmatpush.msra.mxu0 0.0
        %7108 = vmatpush.msra.mxu0 0.0
        %7109 = vmatpush.msra.mxu0 0.0
        %7110 = vmatpush.msra.mxu0 0.0
        %7111 = vmatpush.msra.mxu0 0.0
        %7112 = vmatpush.msra.mxu0 0.0
        %7113 = vmatpush.msra.mxu0 0.0
        %7114 = vmatpush.msra.mxu0 %v6975
        %7115 = vmatpush.msra.mxu0 %v6967
        %7116 = vmatmul.f32.gmra.mxu0 %v6978
        %v7117 = vpop.f32.mrf.mxu0
        %v7118 = vadd.f32 0.0, %v7117
        %7119 = vdwg.mxu0
        %7120 = vmatpush.msra.mxu0 0.0
        %7121 = vmatpush.msra.mxu0 0.0
        %7122 = vmatpush.msra.mxu0 0.0
        %7123 = vmatpush.msra.mxu0 0.0
        %7124 = vmatpush.msra.mxu0 0.0
        %7125 = vmatpush.msra.mxu0 0.0
        %7126 = vmatpush.msra.mxu0 0.0
        %7127 = vmatpush.msra.mxu0 0.0
        %7128 = vmatpush.msra.mxu0 0.0
        %7129 = vmatpush.msra.mxu0 0.0
        %7130 = vmatpush.msra.mxu0 0.0
        %7131 = vmatpush.msra.mxu0 0.0
        %7132 = vmatpush.msra.mxu0 0.0
        %7133 = vmatpush.msra.mxu0 0.0
        %7134 = vmatpush.msra.mxu0 %v6976
        %7135 = vmatpush.msra.mxu0 %v6968
        %7136 = vmatmul.f32.gmra.mxu0 %v6978
        %v7137 = vpop.f32.mrf.mxu0
        %v7138 = vadd.f32 0.0, %v7137
        %7139 = vdwg.mxu0
        %v7140 = vadd.f32 %v6952, %v6998
        %v7141 = vadd.f32 %v6953, %v7018
        %v7142 = vadd.f32 %v6954, %v7038
        %v7143 = vadd.f32 %v6955, %v7058
        %v7144 = vadd.f32 %v6956, %v7078
        %v7145 = vadd.f32 %v6957, %v7098
        %v7146 = vadd.f32 %v6958, %v7118
        %v7147 = vadd.f32 %v6959, %v7138
        %s7148 = scalar_lea.vmem [#allocation16], 3584
        %v7149 = vld [vmem:[%s7148] sm:$0xff]
        %v7150 = vld [vmem:[%s7148 + $0x8] sm:$0xff]
        %v7151 = vld [vmem:[%s7148 + $0x10] sm:$0xff]
        %v7152 = vld [vmem:[%s7148 + $0x18] sm:$0xff]
        %v7153 = vld [vmem:[%s7148 + $0x20] sm:$0xff]
        %v7154 = vld [vmem:[%s7148 + $0x28] sm:$0xff]
        %v7155 = vld [vmem:[%s7148 + $0x30] sm:$0xff]
        %v7156 = vld [vmem:[%s7148 + $0x38] sm:$0xff]
        %v7157 = vld [vmem:[%s7148 + $0x40] sm:$0xff]
        %v7158 = vld [vmem:[%s7148 + $0x48] sm:$0xff]
        %v7159 = vld [vmem:[%s7148 + $0x50] sm:$0xff]
        %v7160 = vld [vmem:[%s7148 + $0x58] sm:$0xff]
        %v7161 = vld [vmem:[%s7148 + $0x60] sm:$0xff]
        %v7162 = vld [vmem:[%s7148 + $0x68] sm:$0xff]
        %v7163 = vld [vmem:[%s7148 + $0x70] sm:$0xff]
        %v7164 = vld [vmem:[%s7148 + $0x78] sm:$0xff]
        %v7165 = vrot.slane %v1900, 4
        %v7166 = vsel %vm1359, %v7165, 0
        %7168 = vmatpush.msra.mxu0 0.0
        %7169 = vmatpush.msra.mxu0 0.0
        %7170 = vmatpush.msra.mxu0 0.0
        %7171 = vmatpush.msra.mxu0 0.0
        %7172 = vmatpush.msra.mxu0 0.0
        %7173 = vmatpush.msra.mxu0 0.0
        %7174 = vmatpush.msra.mxu0 0.0
        %7175 = vmatpush.msra.mxu0 0.0
        %7176 = vmatpush.msra.mxu0 0.0
        %7177 = vmatpush.msra.mxu0 0.0
        %7178 = vmatpush.msra.mxu0 0.0
        %7179 = vmatpush.msra.mxu0 0.0
        %7180 = vmatpush.msra.mxu0 0.0
        %7181 = vmatpush.msra.mxu0 0.0
        %7182 = vmatpush.msra.mxu0 %v7157
        %7183 = vmatpush.msra.mxu0 %v7149
        %7184 = vmatmul.f32.gmra.mxu0 %v7166
        %v7185 = vpop.f32.mrf.mxu0
        %v7186 = vadd.f32 0.0, %v7185
        %7187 = vdwg.mxu0
        %7188 = vmatpush.msra.mxu0 0.0
        %7189 = vmatpush.msra.mxu0 0.0
        %7190 = vmatpush.msra.mxu0 0.0
        %7191 = vmatpush.msra.mxu0 0.0
        %7192 = vmatpush.msra.mxu0 0.0
        %7193 = vmatpush.msra.mxu0 0.0
        %7194 = vmatpush.msra.mxu0 0.0
        %7195 = vmatpush.msra.mxu0 0.0
        %7196 = vmatpush.msra.mxu0 0.0
        %7197 = vmatpush.msra.mxu0 0.0
        %7198 = vmatpush.msra.mxu0 0.0
        %7199 = vmatpush.msra.mxu0 0.0
        %7200 = vmatpush.msra.mxu0 0.0
        %7201 = vmatpush.msra.mxu0 0.0
        %7202 = vmatpush.msra.mxu0 %v7158
        %7203 = vmatpush.msra.mxu0 %v7150
        %7204 = vmatmul.f32.gmra.mxu0 %v7166
        %v7205 = vpop.f32.mrf.mxu0
        %v7206 = vadd.f32 0.0, %v7205
        %7207 = vdwg.mxu0
        %7208 = vmatpush.msra.mxu0 0.0
        %7209 = vmatpush.msra.mxu0 0.0
        %7210 = vmatpush.msra.mxu0 0.0
        %7211 = vmatpush.msra.mxu0 0.0
        %7212 = vmatpush.msra.mxu0 0.0
        %7213 = vmatpush.msra.mxu0 0.0
        %7214 = vmatpush.msra.mxu0 0.0
        %7215 = vmatpush.msra.mxu0 0.0
        %7216 = vmatpush.msra.mxu0 0.0
        %7217 = vmatpush.msra.mxu0 0.0
        %7218 = vmatpush.msra.mxu0 0.0
        %7219 = vmatpush.msra.mxu0 0.0
        %7220 = vmatpush.msra.mxu0 0.0
        %7221 = vmatpush.msra.mxu0 0.0
        %7222 = vmatpush.msra.mxu0 %v7159
        %7223 = vmatpush.msra.mxu0 %v7151
        %7224 = vmatmul.f32.gmra.mxu0 %v7166
        %v7225 = vpop.f32.mrf.mxu0
        %v7226 = vadd.f32 0.0, %v7225
        %7227 = vdwg.mxu0
        %7228 = vmatpush.msra.mxu0 0.0
        %7229 = vmatpush.msra.mxu0 0.0
        %7230 = vmatpush.msra.mxu0 0.0
        %7231 = vmatpush.msra.mxu0 0.0
        %7232 = vmatpush.msra.mxu0 0.0
        %7233 = vmatpush.msra.mxu0 0.0
        %7234 = vmatpush.msra.mxu0 0.0
        %7235 = vmatpush.msra.mxu0 0.0
        %7236 = vmatpush.msra.mxu0 0.0
        %7237 = vmatpush.msra.mxu0 0.0
        %7238 = vmatpush.msra.mxu0 0.0
        %7239 = vmatpush.msra.mxu0 0.0
        %7240 = vmatpush.msra.mxu0 0.0
        %7241 = vmatpush.msra.mxu0 0.0
        %7242 = vmatpush.msra.mxu0 %v7160
        %7243 = vmatpush.msra.mxu0 %v7152
        %7244 = vmatmul.f32.gmra.mxu0 %v7166
        %v7245 = vpop.f32.mrf.mxu0
        %v7246 = vadd.f32 0.0, %v7245
        %7247 = vdwg.mxu0
        %7248 = vmatpush.msra.mxu0 0.0
        %7249 = vmatpush.msra.mxu0 0.0
        %7250 = vmatpush.msra.mxu0 0.0
        %7251 = vmatpush.msra.mxu0 0.0
        %7252 = vmatpush.msra.mxu0 0.0
        %7253 = vmatpush.msra.mxu0 0.0
        %7254 = vmatpush.msra.mxu0 0.0
        %7255 = vmatpush.msra.mxu0 0.0
        %7256 = vmatpush.msra.mxu0 0.0
        %7257 = vmatpush.msra.mxu0 0.0
        %7258 = vmatpush.msra.mxu0 0.0
        %7259 = vmatpush.msra.mxu0 0.0
        %7260 = vmatpush.msra.mxu0 0.0
        %7261 = vmatpush.msra.mxu0 0.0
        %7262 = vmatpush.msra.mxu0 %v7161
        %7263 = vmatpush.msra.mxu0 %v7153
        %7264 = vmatmul.f32.gmra.mxu0 %v7166
        %v7265 = vpop.f32.mrf.mxu0
        %v7266 = vadd.f32 0.0, %v7265
        %7267 = vdwg.mxu0
        %7268 = vmatpush.msra.mxu0 0.0
        %7269 = vmatpush.msra.mxu0 0.0
        %7270 = vmatpush.msra.mxu0 0.0
        %7271 = vmatpush.msra.mxu0 0.0
        %7272 = vmatpush.msra.mxu0 0.0
        %7273 = vmatpush.msra.mxu0 0.0
        %7274 = vmatpush.msra.mxu0 0.0
        %7275 = vmatpush.msra.mxu0 0.0
        %7276 = vmatpush.msra.mxu0 0.0
        %7277 = vmatpush.msra.mxu0 0.0
        %7278 = vmatpush.msra.mxu0 0.0
        %7279 = vmatpush.msra.mxu0 0.0
        %7280 = vmatpush.msra.mxu0 0.0
        %7281 = vmatpush.msra.mxu0 0.0
        %7282 = vmatpush.msra.mxu0 %v7162
        %7283 = vmatpush.msra.mxu0 %v7154
        %7284 = vmatmul.f32.gmra.mxu0 %v7166
        %v7285 = vpop.f32.mrf.mxu0
        %v7286 = vadd.f32 0.0, %v7285
        %7287 = vdwg.mxu0
        %7288 = vmatpush.msra.mxu0 0.0
        %7289 = vmatpush.msra.mxu0 0.0
        %7290 = vmatpush.msra.mxu0 0.0
        %7291 = vmatpush.msra.mxu0 0.0
        %7292 = vmatpush.msra.mxu0 0.0
        %7293 = vmatpush.msra.mxu0 0.0
        %7294 = vmatpush.msra.mxu0 0.0
        %7295 = vmatpush.msra.mxu0 0.0
        %7296 = vmatpush.msra.mxu0 0.0
        %7297 = vmatpush.msra.mxu0 0.0
        %7298 = vmatpush.msra.mxu0 0.0
        %7299 = vmatpush.msra.mxu0 0.0
        %7300 = vmatpush.msra.mxu0 0.0
        %7301 = vmatpush.msra.mxu0 0.0
        %7302 = vmatpush.msra.mxu0 %v7163
        %7303 = vmatpush.msra.mxu0 %v7155
        %7304 = vmatmul.f32.gmra.mxu0 %v7166
        %v7305 = vpop.f32.mrf.mxu0
        %v7306 = vadd.f32 0.0, %v7305
        %7307 = vdwg.mxu0
        %7308 = vmatpush.msra.mxu0 0.0
        %7309 = vmatpush.msra.mxu0 0.0
        %7310 = vmatpush.msra.mxu0 0.0
        %7311 = vmatpush.msra.mxu0 0.0
        %7312 = vmatpush.msra.mxu0 0.0
        %7313 = vmatpush.msra.mxu0 0.0
        %7314 = vmatpush.msra.mxu0 0.0
        %7315 = vmatpush.msra.mxu0 0.0
        %7316 = vmatpush.msra.mxu0 0.0
        %7317 = vmatpush.msra.mxu0 0.0
        %7318 = vmatpush.msra.mxu0 0.0
        %7319 = vmatpush.msra.mxu0 0.0
        %7320 = vmatpush.msra.mxu0 0.0
        %7321 = vmatpush.msra.mxu0 0.0
        %7322 = vmatpush.msra.mxu0 %v7164
        %7323 = vmatpush.msra.mxu0 %v7156
        %7324 = vmatmul.f32.gmra.mxu0 %v7166
        %v7325 = vpop.f32.mrf.mxu0
        %v7326 = vadd.f32 0.0, %v7325
        %7327 = vdwg.mxu0
        %v7328 = vadd.f32 %v7140, %v7186
        %v7329 = vadd.f32 %v7141, %v7206
        %v7330 = vadd.f32 %v7142, %v7226
        %v7331 = vadd.f32 %v7143, %v7246
        %v7332 = vadd.f32 %v7144, %v7266
        %v7333 = vadd.f32 %v7145, %v7286
        %v7334 = vadd.f32 %v7146, %v7306
        %v7335 = vadd.f32 %v7147, %v7326
        %s7336 = scalar_lea.vmem [#allocation16], 3712
        %v7337 = vld [vmem:[%s7336] sm:$0xff]
        %v7338 = vld [vmem:[%s7336 + $0x8] sm:$0xff]
        %v7339 = vld [vmem:[%s7336 + $0x10] sm:$0xff]
        %v7340 = vld [vmem:[%s7336 + $0x18] sm:$0xff]
        %v7341 = vld [vmem:[%s7336 + $0x20] sm:$0xff]
        %v7342 = vld [vmem:[%s7336 + $0x28] sm:$0xff]
        %v7343 = vld [vmem:[%s7336 + $0x30] sm:$0xff]
        %v7344 = vld [vmem:[%s7336 + $0x38] sm:$0xff]
        %v7345 = vld [vmem:[%s7336 + $0x40] sm:$0xff]
        %v7346 = vld [vmem:[%s7336 + $0x48] sm:$0xff]
        %v7347 = vld [vmem:[%s7336 + $0x50] sm:$0xff]
        %v7348 = vld [vmem:[%s7336 + $0x58] sm:$0xff]
        %v7349 = vld [vmem:[%s7336 + $0x60] sm:$0xff]
        %v7350 = vld [vmem:[%s7336 + $0x68] sm:$0xff]
        %v7351 = vld [vmem:[%s7336 + $0x70] sm:$0xff]
        %v7352 = vld [vmem:[%s7336 + $0x78] sm:$0xff]
        %v7353 = vrot.slane %v1900, 5
        %v7354 = vsel %vm1359, %v7353, 0
        %7356 = vmatpush.msra.mxu0 0.0
        %7357 = vmatpush.msra.mxu0 0.0
        %7358 = vmatpush.msra.mxu0 0.0
        %7359 = vmatpush.msra.mxu0 0.0
        %7360 = vmatpush.msra.mxu0 0.0
        %7361 = vmatpush.msra.mxu0 0.0
        %7362 = vmatpush.msra.mxu0 0.0
        %7363 = vmatpush.msra.mxu0 0.0
        %7364 = vmatpush.msra.mxu0 0.0
        %7365 = vmatpush.msra.mxu0 0.0
        %7366 = vmatpush.msra.mxu0 0.0
        %7367 = vmatpush.msra.mxu0 0.0
        %7368 = vmatpush.msra.mxu0 0.0
        %7369 = vmatpush.msra.mxu0 0.0
        %7370 = vmatpush.msra.mxu0 %v7345
        %7371 = vmatpush.msra.mxu0 %v7337
        %7372 = vmatmul.f32.gmra.mxu0 %v7354
        %v7373 = vpop.f32.mrf.mxu0
        %v7374 = vadd.f32 0.0, %v7373
        %7375 = vdwg.mxu0
        %7376 = vmatpush.msra.mxu0 0.0
        %7377 = vmatpush.msra.mxu0 0.0
        %7378 = vmatpush.msra.mxu0 0.0
        %7379 = vmatpush.msra.mxu0 0.0
        %7380 = vmatpush.msra.mxu0 0.0
        %7381 = vmatpush.msra.mxu0 0.0
        %7382 = vmatpush.msra.mxu0 0.0
        %7383 = vmatpush.msra.mxu0 0.0
        %7384 = vmatpush.msra.mxu0 0.0
        %7385 = vmatpush.msra.mxu0 0.0
        %7386 = vmatpush.msra.mxu0 0.0
        %7387 = vmatpush.msra.mxu0 0.0
        %7388 = vmatpush.msra.mxu0 0.0
        %7389 = vmatpush.msra.mxu0 0.0
        %7390 = vmatpush.msra.mxu0 %v7346
        %7391 = vmatpush.msra.mxu0 %v7338
        %7392 = vmatmul.f32.gmra.mxu0 %v7354
        %v7393 = vpop.f32.mrf.mxu0
        %v7394 = vadd.f32 0.0, %v7393
        %7395 = vdwg.mxu0
        %7396 = vmatpush.msra.mxu0 0.0
        %7397 = vmatpush.msra.mxu0 0.0
        %7398 = vmatpush.msra.mxu0 0.0
        %7399 = vmatpush.msra.mxu0 0.0
        %7400 = vmatpush.msra.mxu0 0.0
        %7401 = vmatpush.msra.mxu0 0.0
        %7402 = vmatpush.msra.mxu0 0.0
        %7403 = vmatpush.msra.mxu0 0.0
        %7404 = vmatpush.msra.mxu0 0.0
        %7405 = vmatpush.msra.mxu0 0.0
        %7406 = vmatpush.msra.mxu0 0.0
        %7407 = vmatpush.msra.mxu0 0.0
        %7408 = vmatpush.msra.mxu0 0.0
        %7409 = vmatpush.msra.mxu0 0.0
        %7410 = vmatpush.msra.mxu0 %v7347
        %7411 = vmatpush.msra.mxu0 %v7339
        %7412 = vmatmul.f32.gmra.mxu0 %v7354
        %v7413 = vpop.f32.mrf.mxu0
        %v7414 = vadd.f32 0.0, %v7413
        %7415 = vdwg.mxu0
        %7416 = vmatpush.msra.mxu0 0.0
        %7417 = vmatpush.msra.mxu0 0.0
        %7418 = vmatpush.msra.mxu0 0.0
        %7419 = vmatpush.msra.mxu0 0.0
        %7420 = vmatpush.msra.mxu0 0.0
        %7421 = vmatpush.msra.mxu0 0.0
        %7422 = vmatpush.msra.mxu0 0.0
        %7423 = vmatpush.msra.mxu0 0.0
        %7424 = vmatpush.msra.mxu0 0.0
        %7425 = vmatpush.msra.mxu0 0.0
        %7426 = vmatpush.msra.mxu0 0.0
        %7427 = vmatpush.msra.mxu0 0.0
        %7428 = vmatpush.msra.mxu0 0.0
        %7429 = vmatpush.msra.mxu0 0.0
        %7430 = vmatpush.msra.mxu0 %v7348
        %7431 = vmatpush.msra.mxu0 %v7340
        %7432 = vmatmul.f32.gmra.mxu0 %v7354
        %v7433 = vpop.f32.mrf.mxu0
        %v7434 = vadd.f32 0.0, %v7433
        %7435 = vdwg.mxu0
        %7436 = vmatpush.msra.mxu0 0.0
        %7437 = vmatpush.msra.mxu0 0.0
        %7438 = vmatpush.msra.mxu0 0.0
        %7439 = vmatpush.msra.mxu0 0.0
        %7440 = vmatpush.msra.mxu0 0.0
        %7441 = vmatpush.msra.mxu0 0.0
        %7442 = vmatpush.msra.mxu0 0.0
        %7443 = vmatpush.msra.mxu0 0.0
        %7444 = vmatpush.msra.mxu0 0.0
        %7445 = vmatpush.msra.mxu0 0.0
        %7446 = vmatpush.msra.mxu0 0.0
        %7447 = vmatpush.msra.mxu0 0.0
        %7448 = vmatpush.msra.mxu0 0.0
        %7449 = vmatpush.msra.mxu0 0.0
        %7450 = vmatpush.msra.mxu0 %v7349
        %7451 = vmatpush.msra.mxu0 %v7341
        %7452 = vmatmul.f32.gmra.mxu0 %v7354
        %v7453 = vpop.f32.mrf.mxu0
        %v7454 = vadd.f32 0.0, %v7453
        %7455 = vdwg.mxu0
        %7456 = vmatpush.msra.mxu0 0.0
        %7457 = vmatpush.msra.mxu0 0.0
        %7458 = vmatpush.msra.mxu0 0.0
        %7459 = vmatpush.msra.mxu0 0.0
        %7460 = vmatpush.msra.mxu0 0.0
        %7461 = vmatpush.msra.mxu0 0.0
        %7462 = vmatpush.msra.mxu0 0.0
        %7463 = vmatpush.msra.mxu0 0.0
        %7464 = vmatpush.msra.mxu0 0.0
        %7465 = vmatpush.msra.mxu0 0.0
        %7466 = vmatpush.msra.mxu0 0.0
        %7467 = vmatpush.msra.mxu0 0.0
        %7468 = vmatpush.msra.mxu0 0.0
        %7469 = vmatpush.msra.mxu0 0.0
        %7470 = vmatpush.msra.mxu0 %v7350
        %7471 = vmatpush.msra.mxu0 %v7342
        %7472 = vmatmul.f32.gmra.mxu0 %v7354
        %v7473 = vpop.f32.mrf.mxu0
        %v7474 = vadd.f32 0.0, %v7473
        %7475 = vdwg.mxu0
        %7476 = vmatpush.msra.mxu0 0.0
        %7477 = vmatpush.msra.mxu0 0.0
        %7478 = vmatpush.msra.mxu0 0.0
        %7479 = vmatpush.msra.mxu0 0.0
        %7480 = vmatpush.msra.mxu0 0.0
        %7481 = vmatpush.msra.mxu0 0.0
        %7482 = vmatpush.msra.mxu0 0.0
        %7483 = vmatpush.msra.mxu0 0.0
        %7484 = vmatpush.msra.mxu0 0.0
        %7485 = vmatpush.msra.mxu0 0.0
        %7486 = vmatpush.msra.mxu0 0.0
        %7487 = vmatpush.msra.mxu0 0.0
        %7488 = vmatpush.msra.mxu0 0.0
        %7489 = vmatpush.msra.mxu0 0.0
        %7490 = vmatpush.msra.mxu0 %v7351
        %7491 = vmatpush.msra.mxu0 %v7343
        %7492 = vmatmul.f32.gmra.mxu0 %v7354
        %v7493 = vpop.f32.mrf.mxu0
        %v7494 = vadd.f32 0.0, %v7493
        %7495 = vdwg.mxu0
        %7496 = vmatpush.msra.mxu0 0.0
        %7497 = vmatpush.msra.mxu0 0.0
        %7498 = vmatpush.msra.mxu0 0.0
        %7499 = vmatpush.msra.mxu0 0.0
        %7500 = vmatpush.msra.mxu0 0.0
        %7501 = vmatpush.msra.mxu0 0.0
        %7502 = vmatpush.msra.mxu0 0.0
        %7503 = vmatpush.msra.mxu0 0.0
        %7504 = vmatpush.msra.mxu0 0.0
        %7505 = vmatpush.msra.mxu0 0.0
        %7506 = vmatpush.msra.mxu0 0.0
        %7507 = vmatpush.msra.mxu0 0.0
        %7508 = vmatpush.msra.mxu0 0.0
        %7509 = vmatpush.msra.mxu0 0.0
        %7510 = vmatpush.msra.mxu0 %v7352
        %7511 = vmatpush.msra.mxu0 %v7344
        %7512 = vmatmul.f32.gmra.mxu0 %v7354
        %v7513 = vpop.f32.mrf.mxu0
        %v7514 = vadd.f32 0.0, %v7513
        %7515 = vdwg.mxu0
        %v7516 = vadd.f32 %v7328, %v7374
        %v7517 = vadd.f32 %v7329, %v7394
        %v7518 = vadd.f32 %v7330, %v7414
        %v7519 = vadd.f32 %v7331, %v7434
        %v7520 = vadd.f32 %v7332, %v7454
        %v7521 = vadd.f32 %v7333, %v7474
        %v7522 = vadd.f32 %v7334, %v7494
        %v7523 = vadd.f32 %v7335, %v7514
        %s7524 = scalar_lea.vmem [#allocation16], 3840
        %v7525 = vld [vmem:[%s7524] sm:$0xff]
        %v7526 = vld [vmem:[%s7524 + $0x8] sm:$0xff]
        %v7527 = vld [vmem:[%s7524 + $0x10] sm:$0xff]
        %v7528 = vld [vmem:[%s7524 + $0x18] sm:$0xff]
        %v7529 = vld [vmem:[%s7524 + $0x20] sm:$0xff]
        %v7530 = vld [vmem:[%s7524 + $0x28] sm:$0xff]
        %v7531 = vld [vmem:[%s7524 + $0x30] sm:$0xff]
        %v7532 = vld [vmem:[%s7524 + $0x38] sm:$0xff]
        %v7533 = vld [vmem:[%s7524 + $0x40] sm:$0xff]
        %v7534 = vld [vmem:[%s7524 + $0x48] sm:$0xff]
        %v7535 = vld [vmem:[%s7524 + $0x50] sm:$0xff]
        %v7536 = vld [vmem:[%s7524 + $0x58] sm:$0xff]
        %v7537 = vld [vmem:[%s7524 + $0x60] sm:$0xff]
        %v7538 = vld [vmem:[%s7524 + $0x68] sm:$0xff]
        %v7539 = vld [vmem:[%s7524 + $0x70] sm:$0xff]
        %v7540 = vld [vmem:[%s7524 + $0x78] sm:$0xff]
        %v7541 = vrot.slane %v1900, 6
        %v7542 = vsel %vm1359, %v7541, 0
        %7544 = vmatpush.msra.mxu0 0.0
        %7545 = vmatpush.msra.mxu0 0.0
        %7546 = vmatpush.msra.mxu0 0.0
        %7547 = vmatpush.msra.mxu0 0.0
        %7548 = vmatpush.msra.mxu0 0.0
        %7549 = vmatpush.msra.mxu0 0.0
        %7550 = vmatpush.msra.mxu0 0.0
        %7551 = vmatpush.msra.mxu0 0.0
        %7552 = vmatpush.msra.mxu0 0.0
        %7553 = vmatpush.msra.mxu0 0.0
        %7554 = vmatpush.msra.mxu0 0.0
        %7555 = vmatpush.msra.mxu0 0.0
        %7556 = vmatpush.msra.mxu0 0.0
        %7557 = vmatpush.msra.mxu0 0.0
        %7558 = vmatpush.msra.mxu0 %v7533
        %7559 = vmatpush.msra.mxu0 %v7525
        %7560 = vmatmul.f32.gmra.mxu0 %v7542
        %v7561 = vpop.f32.mrf.mxu0
        %v7562 = vadd.f32 0.0, %v7561
        %7563 = vdwg.mxu0
        %7564 = vmatpush.msra.mxu0 0.0
        %7565 = vmatpush.msra.mxu0 0.0
        %7566 = vmatpush.msra.mxu0 0.0
        %7567 = vmatpush.msra.mxu0 0.0
        %7568 = vmatpush.msra.mxu0 0.0
        %7569 = vmatpush.msra.mxu0 0.0
        %7570 = vmatpush.msra.mxu0 0.0
        %7571 = vmatpush.msra.mxu0 0.0
        %7572 = vmatpush.msra.mxu0 0.0
        %7573 = vmatpush.msra.mxu0 0.0
        %7574 = vmatpush.msra.mxu0 0.0
        %7575 = vmatpush.msra.mxu0 0.0
        %7576 = vmatpush.msra.mxu0 0.0
        %7577 = vmatpush.msra.mxu0 0.0
        %7578 = vmatpush.msra.mxu0 %v7534
        %7579 = vmatpush.msra.mxu0 %v7526
        %7580 = vmatmul.f32.gmra.mxu0 %v7542
        %v7581 = vpop.f32.mrf.mxu0
        %v7582 = vadd.f32 0.0, %v7581
        %7583 = vdwg.mxu0
        %7584 = vmatpush.msra.mxu0 0.0
        %7585 = vmatpush.msra.mxu0 0.0
        %7586 = vmatpush.msra.mxu0 0.0
        %7587 = vmatpush.msra.mxu0 0.0
        %7588 = vmatpush.msra.mxu0 0.0
        %7589 = vmatpush.msra.mxu0 0.0
        %7590 = vmatpush.msra.mxu0 0.0
        %7591 = vmatpush.msra.mxu0 0.0
        %7592 = vmatpush.msra.mxu0 0.0
        %7593 = vmatpush.msra.mxu0 0.0
        %7594 = vmatpush.msra.mxu0 0.0
        %7595 = vmatpush.msra.mxu0 0.0
        %7596 = vmatpush.msra.mxu0 0.0
        %7597 = vmatpush.msra.mxu0 0.0
        %7598 = vmatpush.msra.mxu0 %v7535
        %7599 = vmatpush.msra.mxu0 %v7527
        %7600 = vmatmul.f32.gmra.mxu0 %v7542
        %v7601 = vpop.f32.mrf.mxu0
        %v7602 = vadd.f32 0.0, %v7601
        %7603 = vdwg.mxu0
        %7604 = vmatpush.msra.mxu0 0.0
        %7605 = vmatpush.msra.mxu0 0.0
        %7606 = vmatpush.msra.mxu0 0.0
        %7607 = vmatpush.msra.mxu0 0.0
        %7608 = vmatpush.msra.mxu0 0.0
        %7609 = vmatpush.msra.mxu0 0.0
        %7610 = vmatpush.msra.mxu0 0.0
        %7611 = vmatpush.msra.mxu0 0.0
        %7612 = vmatpush.msra.mxu0 0.0
        %7613 = vmatpush.msra.mxu0 0.0
        %7614 = vmatpush.msra.mxu0 0.0
        %7615 = vmatpush.msra.mxu0 0.0
        %7616 = vmatpush.msra.mxu0 0.0
        %7617 = vmatpush.msra.mxu0 0.0
        %7618 = vmatpush.msra.mxu0 %v7536
        %7619 = vmatpush.msra.mxu0 %v7528
        %7620 = vmatmul.f32.gmra.mxu0 %v7542
        %v7621 = vpop.f32.mrf.mxu0
        %v7622 = vadd.f32 0.0, %v7621
        %7623 = vdwg.mxu0
        %7624 = vmatpush.msra.mxu0 0.0
        %7625 = vmatpush.msra.mxu0 0.0
        %7626 = vmatpush.msra.mxu0 0.0
        %7627 = vmatpush.msra.mxu0 0.0
        %7628 = vmatpush.msra.mxu0 0.0
        %7629 = vmatpush.msra.mxu0 0.0
        %7630 = vmatpush.msra.mxu0 0.0
        %7631 = vmatpush.msra.mxu0 0.0
        %7632 = vmatpush.msra.mxu0 0.0
        %7633 = vmatpush.msra.mxu0 0.0
        %7634 = vmatpush.msra.mxu0 0.0
        %7635 = vmatpush.msra.mxu0 0.0
        %7636 = vmatpush.msra.mxu0 0.0
        %7637 = vmatpush.msra.mxu0 0.0
        %7638 = vmatpush.msra.mxu0 %v7537
        %7639 = vmatpush.msra.mxu0 %v7529
        %7640 = vmatmul.f32.gmra.mxu0 %v7542
        %v7641 = vpop.f32.mrf.mxu0
        %v7642 = vadd.f32 0.0, %v7641
        %7643 = vdwg.mxu0
        %7644 = vmatpush.msra.mxu0 0.0
        %7645 = vmatpush.msra.mxu0 0.0
        %7646 = vmatpush.msra.mxu0 0.0
        %7647 = vmatpush.msra.mxu0 0.0
        %7648 = vmatpush.msra.mxu0 0.0
        %7649 = vmatpush.msra.mxu0 0.0
        %7650 = vmatpush.msra.mxu0 0.0
        %7651 = vmatpush.msra.mxu0 0.0
        %7652 = vmatpush.msra.mxu0 0.0
        %7653 = vmatpush.msra.mxu0 0.0
        %7654 = vmatpush.msra.mxu0 0.0
        %7655 = vmatpush.msra.mxu0 0.0
        %7656 = vmatpush.msra.mxu0 0.0
        %7657 = vmatpush.msra.mxu0 0.0
        %7658 = vmatpush.msra.mxu0 %v7538
        %7659 = vmatpush.msra.mxu0 %v7530
        %7660 = vmatmul.f32.gmra.mxu0 %v7542
        %v7661 = vpop.f32.mrf.mxu0
        %v7662 = vadd.f32 0.0, %v7661
        %7663 = vdwg.mxu0
        %7664 = vmatpush.msra.mxu0 0.0
        %7665 = vmatpush.msra.mxu0 0.0
        %7666 = vmatpush.msra.mxu0 0.0
        %7667 = vmatpush.msra.mxu0 0.0
        %7668 = vmatpush.msra.mxu0 0.0
        %7669 = vmatpush.msra.mxu0 0.0
        %7670 = vmatpush.msra.mxu0 0.0
        %7671 = vmatpush.msra.mxu0 0.0
        %7672 = vmatpush.msra.mxu0 0.0
        %7673 = vmatpush.msra.mxu0 0.0
        %7674 = vmatpush.msra.mxu0 0.0
        %7675 = vmatpush.msra.mxu0 0.0
        %7676 = vmatpush.msra.mxu0 0.0
        %7677 = vmatpush.msra.mxu0 0.0
        %7678 = vmatpush.msra.mxu0 %v7539
        %7679 = vmatpush.msra.mxu0 %v7531
        %7680 = vmatmul.f32.gmra.mxu0 %v7542
        %v7681 = vpop.f32.mrf.mxu0
        %v7682 = vadd.f32 0.0, %v7681
        %7683 = vdwg.mxu0
        %7684 = vmatpush.msra.mxu0 0.0
        %7685 = vmatpush.msra.mxu0 0.0
        %7686 = vmatpush.msra.mxu0 0.0
        %7687 = vmatpush.msra.mxu0 0.0
        %7688 = vmatpush.msra.mxu0 0.0
        %7689 = vmatpush.msra.mxu0 0.0
        %7690 = vmatpush.msra.mxu0 0.0
        %7691 = vmatpush.msra.mxu0 0.0
        %7692 = vmatpush.msra.mxu0 0.0
        %7693 = vmatpush.msra.mxu0 0.0
        %7694 = vmatpush.msra.mxu0 0.0
        %7695 = vmatpush.msra.mxu0 0.0
        %7696 = vmatpush.msra.mxu0 0.0
        %7697 = vmatpush.msra.mxu0 0.0
        %7698 = vmatpush.msra.mxu0 %v7540
        %7699 = vmatpush.msra.mxu0 %v7532
        %7700 = vmatmul.f32.gmra.mxu0 %v7542
        %v7701 = vpop.f32.mrf.mxu0
        %v7702 = vadd.f32 0.0, %v7701
        %7703 = vdwg.mxu0
        %v7704 = vadd.f32 %v7516, %v7562
        %v7705 = vadd.f32 %v7517, %v7582
        %v7706 = vadd.f32 %v7518, %v7602
        %v7707 = vadd.f32 %v7519, %v7622
        %v7708 = vadd.f32 %v7520, %v7642
        %v7709 = vadd.f32 %v7521, %v7662
        %v7710 = vadd.f32 %v7522, %v7682
        %v7711 = vadd.f32 %v7523, %v7702
        %s7712 = scalar_lea.vmem [#allocation16], 3968
        %v7713 = vld [vmem:[%s7712] sm:$0xff]
        %v7714 = vld [vmem:[%s7712 + $0x8] sm:$0xff]
        %v7715 = vld [vmem:[%s7712 + $0x10] sm:$0xff]
        %v7716 = vld [vmem:[%s7712 + $0x18] sm:$0xff]
        %v7717 = vld [vmem:[%s7712 + $0x20] sm:$0xff]
        %v7718 = vld [vmem:[%s7712 + $0x28] sm:$0xff]
        %v7719 = vld [vmem:[%s7712 + $0x30] sm:$0xff]
        %v7720 = vld [vmem:[%s7712 + $0x38] sm:$0xff]
        %v7721 = vld [vmem:[%s7712 + $0x40] sm:$0xff]
        %v7722 = vld [vmem:[%s7712 + $0x48] sm:$0xff]
        %v7723 = vld [vmem:[%s7712 + $0x50] sm:$0xff]
        %v7724 = vld [vmem:[%s7712 + $0x58] sm:$0xff]
        %v7725 = vld [vmem:[%s7712 + $0x60] sm:$0xff]
        %v7726 = vld [vmem:[%s7712 + $0x68] sm:$0xff]
        %v7727 = vld [vmem:[%s7712 + $0x70] sm:$0xff]
        %v7728 = vld [vmem:[%s7712 + $0x78] sm:$0xff]
        %v7729 = vrot.slane %v1900, 7
        %v7730 = vsel %vm1359, %v7729, 0
        %7732 = vmatpush.msra.mxu0 0.0
        %7733 = vmatpush.msra.mxu0 0.0
        %7734 = vmatpush.msra.mxu0 0.0
        %7735 = vmatpush.msra.mxu0 0.0
        %7736 = vmatpush.msra.mxu0 0.0
        %7737 = vmatpush.msra.mxu0 0.0
        %7738 = vmatpush.msra.mxu0 0.0
        %7739 = vmatpush.msra.mxu0 0.0
        %7740 = vmatpush.msra.mxu0 0.0
        %7741 = vmatpush.msra.mxu0 0.0
        %7742 = vmatpush.msra.mxu0 0.0
        %7743 = vmatpush.msra.mxu0 0.0
        %7744 = vmatpush.msra.mxu0 0.0
        %7745 = vmatpush.msra.mxu0 0.0
        %7746 = vmatpush.msra.mxu0 %v7721
        %7747 = vmatpush.msra.mxu0 %v7713
        %7748 = vmatmul.f32.gmra.mxu0 %v7730
        %v7749 = vpop.f32.mrf.mxu0
        %v7750 = vadd.f32 0.0, %v7749
        %7751 = vdwg.mxu0
        %7752 = vmatpush.msra.mxu0 0.0
        %7753 = vmatpush.msra.mxu0 0.0
        %7754 = vmatpush.msra.mxu0 0.0
        %7755 = vmatpush.msra.mxu0 0.0
        %7756 = vmatpush.msra.mxu0 0.0
        %7757 = vmatpush.msra.mxu0 0.0
        %7758 = vmatpush.msra.mxu0 0.0
        %7759 = vmatpush.msra.mxu0 0.0
        %7760 = vmatpush.msra.mxu0 0.0
        %7761 = vmatpush.msra.mxu0 0.0
        %7762 = vmatpush.msra.mxu0 0.0
        %7763 = vmatpush.msra.mxu0 0.0
        %7764 = vmatpush.msra.mxu0 0.0
        %7765 = vmatpush.msra.mxu0 0.0
        %7766 = vmatpush.msra.mxu0 %v7722
        %7767 = vmatpush.msra.mxu0 %v7714
        %7768 = vmatmul.f32.gmra.mxu0 %v7730
        %v7769 = vpop.f32.mrf.mxu0
        %v7770 = vadd.f32 0.0, %v7769
        %7771 = vdwg.mxu0
        %7772 = vmatpush.msra.mxu0 0.0
        %7773 = vmatpush.msra.mxu0 0.0
        %7774 = vmatpush.msra.mxu0 0.0
        %7775 = vmatpush.msra.mxu0 0.0
        %7776 = vmatpush.msra.mxu0 0.0
        %7777 = vmatpush.msra.mxu0 0.0
        %7778 = vmatpush.msra.mxu0 0.0
        %7779 = vmatpush.msra.mxu0 0.0
        %7780 = vmatpush.msra.mxu0 0.0
        %7781 = vmatpush.msra.mxu0 0.0
        %7782 = vmatpush.msra.mxu0 0.0
        %7783 = vmatpush.msra.mxu0 0.0
        %7784 = vmatpush.msra.mxu0 0.0
        %7785 = vmatpush.msra.mxu0 0.0
        %7786 = vmatpush.msra.mxu0 %v7723
        %7787 = vmatpush.msra.mxu0 %v7715
        %7788 = vmatmul.f32.gmra.mxu0 %v7730
        %v7789 = vpop.f32.mrf.mxu0
        %v7790 = vadd.f32 0.0, %v7789
        %7791 = vdwg.mxu0
        %7792 = vmatpush.msra.mxu0 0.0
        %7793 = vmatpush.msra.mxu0 0.0
        %7794 = vmatpush.msra.mxu0 0.0
        %7795 = vmatpush.msra.mxu0 0.0
        %7796 = vmatpush.msra.mxu0 0.0
        %7797 = vmatpush.msra.mxu0 0.0
        %7798 = vmatpush.msra.mxu0 0.0
        %7799 = vmatpush.msra.mxu0 0.0
        %7800 = vmatpush.msra.mxu0 0.0
        %7801 = vmatpush.msra.mxu0 0.0
        %7802 = vmatpush.msra.mxu0 0.0
        %7803 = vmatpush.msra.mxu0 0.0
        %7804 = vmatpush.msra.mxu0 0.0
        %7805 = vmatpush.msra.mxu0 0.0
        %7806 = vmatpush.msra.mxu0 %v7724
        %7807 = vmatpush.msra.mxu0 %v7716
        %7808 = vmatmul.f32.gmra.mxu0 %v7730
        %v7809 = vpop.f32.mrf.mxu0
        %v7810 = vadd.f32 0.0, %v7809
        %7811 = vdwg.mxu0
        %7812 = vmatpush.msra.mxu0 0.0
        %7813 = vmatpush.msra.mxu0 0.0
        %7814 = vmatpush.msra.mxu0 0.0
        %7815 = vmatpush.msra.mxu0 0.0
        %7816 = vmatpush.msra.mxu0 0.0
        %7817 = vmatpush.msra.mxu0 0.0
        %7818 = vmatpush.msra.mxu0 0.0
        %7819 = vmatpush.msra.mxu0 0.0
        %7820 = vmatpush.msra.mxu0 0.0
        %7821 = vmatpush.msra.mxu0 0.0
        %7822 = vmatpush.msra.mxu0 0.0
        %7823 = vmatpush.msra.mxu0 0.0
        %7824 = vmatpush.msra.mxu0 0.0
        %7825 = vmatpush.msra.mxu0 0.0
        %7826 = vmatpush.msra.mxu0 %v7725
        %7827 = vmatpush.msra.mxu0 %v7717
        %7828 = vmatmul.f32.gmra.mxu0 %v7730
        %v7829 = vpop.f32.mrf.mxu0
        %v7830 = vadd.f32 0.0, %v7829
        %7831 = vdwg.mxu0
        %7832 = vmatpush.msra.mxu0 0.0
        %7833 = vmatpush.msra.mxu0 0.0
        %7834 = vmatpush.msra.mxu0 0.0
        %7835 = vmatpush.msra.mxu0 0.0
        %7836 = vmatpush.msra.mxu0 0.0
        %7837 = vmatpush.msra.mxu0 0.0
        %7838 = vmatpush.msra.mxu0 0.0
        %7839 = vmatpush.msra.mxu0 0.0
        %7840 = vmatpush.msra.mxu0 0.0
        %7841 = vmatpush.msra.mxu0 0.0
        %7842 = vmatpush.msra.mxu0 0.0
        %7843 = vmatpush.msra.mxu0 0.0
        %7844 = vmatpush.msra.mxu0 0.0
        %7845 = vmatpush.msra.mxu0 0.0
        %7846 = vmatpush.msra.mxu0 %v7726
        %7847 = vmatpush.msra.mxu0 %v7718
        %7848 = vmatmul.f32.gmra.mxu0 %v7730
        %v7849 = vpop.f32.mrf.mxu0
        %v7850 = vadd.f32 0.0, %v7849
        %7851 = vdwg.mxu0
        %7852 = vmatpush.msra.mxu0 0.0
        %7853 = vmatpush.msra.mxu0 0.0
        %7854 = vmatpush.msra.mxu0 0.0
        %7855 = vmatpush.msra.mxu0 0.0
        %7856 = vmatpush.msra.mxu0 0.0
        %7857 = vmatpush.msra.mxu0 0.0
        %7858 = vmatpush.msra.mxu0 0.0
        %7859 = vmatpush.msra.mxu0 0.0
        %7860 = vmatpush.msra.mxu0 0.0
        %7861 = vmatpush.msra.mxu0 0.0
        %7862 = vmatpush.msra.mxu0 0.0
        %7863 = vmatpush.msra.mxu0 0.0
        %7864 = vmatpush.msra.mxu0 0.0
        %7865 = vmatpush.msra.mxu0 0.0
        %7866 = vmatpush.msra.mxu0 %v7727
        %7867 = vmatpush.msra.mxu0 %v7719
        %7868 = vmatmul.f32.gmra.mxu0 %v7730
        %v7869 = vpop.f32.mrf.mxu0
        %v7870 = vadd.f32 0.0, %v7869
        %7871 = vdwg.mxu0
        %7872 = vmatpush.msra.mxu0 0.0
        %7873 = vmatpush.msra.mxu0 0.0
        %7874 = vmatpush.msra.mxu0 0.0
        %7875 = vmatpush.msra.mxu0 0.0
        %7876 = vmatpush.msra.mxu0 0.0
        %7877 = vmatpush.msra.mxu0 0.0
        %7878 = vmatpush.msra.mxu0 0.0
        %7879 = vmatpush.msra.mxu0 0.0
        %7880 = vmatpush.msra.mxu0 0.0
        %7881 = vmatpush.msra.mxu0 0.0
        %7882 = vmatpush.msra.mxu0 0.0
        %7883 = vmatpush.msra.mxu0 0.0
        %7884 = vmatpush.msra.mxu0 0.0
        %7885 = vmatpush.msra.mxu0 0.0
        %7886 = vmatpush.msra.mxu0 %v7728
        %7887 = vmatpush.msra.mxu0 %v7720
        %7888 = vmatmul.f32.gmra.mxu0 %v7730
        %v7889 = vpop.f32.mrf.mxu0
        %v7890 = vadd.f32 0.0, %v7889
        %7891 = vdwg.mxu0
        %v7892 = vadd.f32 %v7704, %v7750
        %v7893 = vadd.f32 %v7705, %v7770
        %v7894 = vadd.f32 %v7706, %v7790
        %v7895 = vadd.f32 %v7707, %v7810
        %v7896 = vadd.f32 %v7708, %v7830
        %v7897 = vadd.f32 %v7709, %v7850
        %v7898 = vadd.f32 %v7710, %v7870
        %v7899 = vadd.f32 %v7711, %v7890
        %v7900 = vmul.f32 %v7892, %v7892
        %v7901 = vmul.f32 %v7893, %v7893
        %v7902 = vmul.f32 %v7894, %v7894
        %v7903 = vmul.f32 %v7895, %v7895
        %v7904 = vmul.f32 %v7896, %v7896
        %v7905 = vmul.f32 %v7897, %v7897
        %v7906 = vmul.f32 %v7898, %v7898
        %v7907 = vmul.f32 %v7899, %v7899
        %v7908 = vadd.f32 %v7900, %v7904
        %v7909 = vadd.f32 %v7901, %v7905
        %v7910 = vadd.f32 %v7902, %v7906
        %v7911 = vadd.f32 %v7903, %v7907
        %v7912 = vld [vmem:[%s12] sm:$0xff]
        %v7913 = vld [vmem:[%s12 + $0x8] sm:$0xff]
        %v7914 = vld [vmem:[%s12 + $0x10] sm:$0xff]
        %v7915 = vld [vmem:[%s12 + $0x18] sm:$0xff]
        %v7916 = vld [vmem:[%s12 + $0x20] sm:$0xff]
        %v7917 = vld [vmem:[%s12 + $0x28] sm:$0xff]
        %v7918 = vld [vmem:[%s12 + $0x30] sm:$0xff]
        %v7919 = vld [vmem:[%s12 + $0x38] sm:$0xff]
        %v7920 = vld [vmem:[%s12 + $0x40] sm:$0xff]
        %v7921 = vld [vmem:[%s12 + $0x48] sm:$0xff]
        %v7922 = vld [vmem:[%s12 + $0x50] sm:$0xff]
        %v7923 = vld [vmem:[%s12 + $0x58] sm:$0xff]
        %v7924 = vld [vmem:[%s12 + $0x60] sm:$0xff]
        %v7925 = vld [vmem:[%s12 + $0x68] sm:$0xff]
        %v7926 = vld [vmem:[%s12 + $0x70] sm:$0xff]
        %v7927 = vld [vmem:[%s12 + $0x78] sm:$0xff]
        %v7928 = vld [vmem:[%s12 + $0x80] sm:$0xff]
        %v7929 = vld [vmem:[%s12 + $0x88] sm:$0xff]
        %v7930 = vld [vmem:[%s12 + $0x90] sm:$0xff]
        %v7931 = vld [vmem:[%s12 + $0x98] sm:$0xff]
        %v7932 = vld [vmem:[%s12 + $0xa0] sm:$0xff]
        %v7933 = vld [vmem:[%s12 + $0xa8] sm:$0xff]
        %v7934 = vld [vmem:[%s12 + $0xb0] sm:$0xff]
        %v7935 = vld [vmem:[%s12 + $0xb8] sm:$0xff]
        %v7936 = vld [vmem:[%s12 + $0xc0] sm:$0xff]
        %v7937 = vld [vmem:[%s12 + $0xc8] sm:$0xff]
        %v7938 = vld [vmem:[%s12 + $0xd0] sm:$0xff]
        %v7939 = vld [vmem:[%s12 + $0xd8] sm:$0xff]
        %v7940 = vld [vmem:[%s12 + $0xe0] sm:$0xff]
        %v7941 = vld [vmem:[%s12 + $0xe8] sm:$0xff]
        %v7942 = vld [vmem:[%s12 + $0xf0] sm:$0xff]
        %v7943 = vld [vmem:[%s12 + $0xf8] sm:$0xff]
        %v7944 = vld [vmem:[%s12 + $0x100] sm:$0xff]
        %v7945 = vld [vmem:[%s12 + $0x108] sm:$0xff]
        %v7946 = vld [vmem:[%s12 + $0x110] sm:$0xff]
        %v7947 = vld [vmem:[%s12 + $0x118] sm:$0xff]
        %v7948 = vld [vmem:[%s12 + $0x120] sm:$0xff]
        %v7949 = vld [vmem:[%s12 + $0x128] sm:$0xff]
        %v7950 = vld [vmem:[%s12 + $0x130] sm:$0xff]
        %v7951 = vld [vmem:[%s12 + $0x138] sm:$0xff]
        %v7952 = vld [vmem:[%s12 + $0x140] sm:$0xff]
        %v7953 = vld [vmem:[%s12 + $0x148] sm:$0xff]
        %v7954 = vld [vmem:[%s12 + $0x150] sm:$0xff]
        %v7955 = vld [vmem:[%s12 + $0x158] sm:$0xff]
        %v7956 = vld [vmem:[%s12 + $0x160] sm:$0xff]
        %v7957 = vld [vmem:[%s12 + $0x168] sm:$0xff]
        %v7958 = vld [vmem:[%s12 + $0x170] sm:$0xff]
        %v7959 = vld [vmem:[%s12 + $0x178] sm:$0xff]
        %v7960 = vld [vmem:[%s12 + $0x180] sm:$0xff]
        %v7961 = vld [vmem:[%s12 + $0x188] sm:$0xff]
        %v7962 = vld [vmem:[%s12 + $0x190] sm:$0xff]
        %v7963 = vld [vmem:[%s12 + $0x198] sm:$0xff]
        %v7964 = vld [vmem:[%s12 + $0x1a0] sm:$0xff]
        %v7965 = vld [vmem:[%s12 + $0x1a8] sm:$0xff]
        %v7966 = vld [vmem:[%s12 + $0x1b0] sm:$0xff]
        %v7967 = vld [vmem:[%s12 + $0x1b8] sm:$0xff]
        %v7968 = vld [vmem:[%s12 + $0x1c0] sm:$0xff]
        %v7969 = vld [vmem:[%s12 + $0x1c8] sm:$0xff]
        %v7970 = vld [vmem:[%s12 + $0x1d0] sm:$0xff]
        %v7971 = vld [vmem:[%s12 + $0x1d8] sm:$0xff]
        %v7972 = vld [vmem:[%s12 + $0x1e0] sm:$0xff]
        %v7973 = vld [vmem:[%s12 + $0x1e8] sm:$0xff]
        %v7974 = vld [vmem:[%s12 + $0x1f0] sm:$0xff]
        %v7975 = vld [vmem:[%s12 + $0x1f8] sm:$0xff]
        %v7976 = vld [vmem:[#allocation17] sm:$0x1]
        %7977 = vmatpush.msra.mxu0 %v7927
        %7978 = vmatpush.msra.mxu0 %v7926
        %7979 = vmatpush.msra.mxu0 %v7925
        %7980 = vmatpush.msra.mxu0 %v7924
        %7981 = vmatpush.msra.mxu0 %v7923
        %7982 = vmatpush.msra.mxu0 %v7922
        %7983 = vmatpush.msra.mxu0 %v7921
        %7984 = vmatpush.msra.mxu0 %v7920
        %7985 = vmatpush.msra.mxu0 %v7919
        %7986 = vmatpush.msra.mxu0 %v7918
        %7987 = vmatpush.msra.mxu0 %v7917
        %7988 = vmatpush.msra.mxu0 %v7916
        %7989 = vmatpush.msra.mxu0 %v7915
        %7990 = vmatpush.msra.mxu0 %v7914
        %7991 = vmatpush.msra.mxu0 %v7913
        %7992 = vmatpush.msra.mxu0 %v7912
        %7993 = vmatmul.f32.gmra.mxu0 %v7908
        %v7994 = vpop.f32.mrf.mxu0
        %v7995 = vadd.f32 %v7976, %v7994
        %7996 = vdwg.mxu0
        %7997 = vmatpush.msra.mxu0 %v7943
        %7998 = vmatpush.msra.mxu0 %v7942
        %7999 = vmatpush.msra.mxu0 %v7941
        %8000 = vmatpush.msra.mxu0 %v7940
        %8001 = vmatpush.msra.mxu0 %v7939
        %8002 = vmatpush.msra.mxu0 %v7938
        %8003 = vmatpush.msra.mxu0 %v7937
        %8004 = vmatpush.msra.mxu0 %v7936
        %8005 = vmatpush.msra.mxu0 %v7935
        %8006 = vmatpush.msra.mxu0 %v7934
        %8007 = vmatpush.msra.mxu0 %v7933
        %8008 = vmatpush.msra.mxu0 %v7932
        %8009 = vmatpush.msra.mxu0 %v7931
        %8010 = vmatpush.msra.mxu0 %v7930
        %8011 = vmatpush.msra.mxu0 %v7929
        %8012 = vmatpush.msra.mxu0 %v7928
        %8013 = vmatmul.f32.gmra.mxu0 %v7909
        %v8014 = vpop.f32.mrf.mxu0
        %v8015 = vadd.f32 %v7995, %v8014
        %8016 = vdwg.mxu0
        %8017 = vmatpush.msra.mxu0 %v7959
        %8018 = vmatpush.msra.mxu0 %v7958
        %8019 = vmatpush.msra.mxu0 %v7957
        %8020 = vmatpush.msra.mxu0 %v7956
        %8021 = vmatpush.msra.mxu0 %v7955
        %8022 = vmatpush.msra.mxu0 %v7954
        %8023 = vmatpush.msra.mxu0 %v7953
        %8024 = vmatpush.msra.mxu0 %v7952
        %8025 = vmatpush.msra.mxu0 %v7951
        %8026 = vmatpush.msra.mxu0 %v7950
        %8027 = vmatpush.msra.mxu0 %v7949
        %8028 = vmatpush.msra.mxu0 %v7948
        %8029 = vmatpush.msra.mxu0 %v7947
        %8030 = vmatpush.msra.mxu0 %v7946
        %8031 = vmatpush.msra.mxu0 %v7945
        %8032 = vmatpush.msra.mxu0 %v7944
        %8033 = vmatmul.f32.gmra.mxu0 %v7910
        %v8034 = vpop.f32.mrf.mxu0
        %v8035 = vadd.f32 %v8015, %v8034
        %8036 = vdwg.mxu0
        %8037 = vmatpush.msra.mxu0 %v7975
        %8038 = vmatpush.msra.mxu0 %v7974
        %8039 = vmatpush.msra.mxu0 %v7973
        %8040 = vmatpush.msra.mxu0 %v7972
        %8041 = vmatpush.msra.mxu0 %v7971
        %8042 = vmatpush.msra.mxu0 %v7970
        %8043 = vmatpush.msra.mxu0 %v7969
        %8044 = vmatpush.msra.mxu0 %v7968
        %8045 = vmatpush.msra.mxu0 %v7967
        %8046 = vmatpush.msra.mxu0 %v7966
        %8047 = vmatpush.msra.mxu0 %v7965
        %8048 = vmatpush.msra.mxu0 %v7964
        %8049 = vmatpush.msra.mxu0 %v7963
        %8050 = vmatpush.msra.mxu0 %v7962
        %8051 = vmatpush.msra.mxu0 %v7961
        %8052 = vmatpush.msra.mxu0 %v7960
        %8053 = vmatmul.f32.gmra.mxu0 %v7911
        %v8054 = vpop.f32.mrf.mxu0
        %v8055 = vadd.f32 %v8035, %v8054
        %8056 = vdwg.mxu0
        %vm8057 = vcmask 8192
        %8058 = vst.msk [vmem:[%s613] sm:$0x1] %vm8057, %v8055
        %s8059 = sand.u32 %s341, 1
        %s8060 = scalar_lea.sflag [#allocation4], %s8059
        %s8061 = sand.u32 %s341, 1
        %s8062 = scalar_lea.vmem [#allocation19], %s8061
        // Predicated region
        $region117: #{quantum_forward.1} parent=75 // pred_check
          %p8063 = pneg %p351
        $region118: #{quantum_forward.1} parent=75 // pred_check_branch
          %8065 = sbr.rel (%p8063) target = $region120
        $region119: #{quantum_forward.1} parent=75 // pred_region
          %8067 = vsyncadd %s8060, 0
          %s8068 = scalar_lea.hbm %s14, %s34
          %s8070 = sshll.u32 %s8062, 4
          %s8071 = int_to_ptr.vmem [resolvable:$true] %s8070
          %s8072 = sshll.u32 %s8068, 4
          %s8073 = int_to_ptr.hbm [resolvable:$true] %s8072
          %8075 = dma.vmem_to_hbm [thread:$0]  %s8071, 16, %s8073, %s8060
        $region120: #{quantum_forward.1} parent=75 // pred_fallthru
          _
      $region76: #{quantum_forward.1} parent=5 // pred_fallthru
        _
      %p8076 = scmp.le.s32.totalorder 2, %s29
      // Predicated region
      $region121: #{quantum_forward.1} parent=5 // pred_check
        %p8077 = pneg %p8076
      $region122: #{quantum_forward.1} parent=5 // pred_check_branch
        %8079 = sbr.rel (%p8077) target = $region124
      $region123: #{quantum_forward.1} parent=5 // pred_region
        %s8080 = ssub.s32 %s29, 2
        // Predicated region
        $region125: #{quantum_forward.1} parent=123 // pred_check
          %p8081 = pneg %p357
        $region126: #{quantum_forward.1} parent=123 // pred_check_branch
          %8083 = sbr.rel (%p8081) target = $region128
        $region127: #{quantum_forward.1} parent=123 // pred_region
          %s8084 = sand.u32 %s342, 1
          %s8085 = scalar_lea.sflag [#allocation4], %s8084
          %s8086 = sand.u32 %s342, 1
          %s8087 = scalar_lea.vmem [#allocation19], %s8086
          %8089 = dma.done %s8085, 16
        $region128: #{quantum_forward.1} parent=123 // pred_fallthru
          _
      $region124: #{quantum_forward.1} parent=5 // pred_fallthru
        _
    $region6: #{quantum_forward.1} parent=1 // loop_footer
      %s33 = sadd.s32 1, %s29
    $region7: #{quantum_forward.1} parent=1 // loop_footer_branch
      %28 = sbr.rel target = $region3
    $region8: #{quantum_forward.1} parent=1 // loop_exit
      _
    %8090 = vsyncpa [#allocation3], 1
    %s8091 = scalar_lea.sflag [#allocation3], 1
    %8092 = vsyncpa %s8091, 1
    %8093 = vsyncpa [#allocation6], 1
    %8094 = vsyncpa [#allocation9], 1
    %8095 = vsyncpa [#allocation12], 1
    %8096 = vsyncpa [#allocation15], 1
    %8097 = vsyncpa [#allocation18], 1
    %8098 = vsyncpa [#allocation4], 1
    %s8099 = scalar_lea.sflag [#allocation4], 1
    %8100 = vsyncpa %s8099, 1

</llo_original>
